<compile_context>
chip_gen: v5e
topology: v5e:2x2
jax: 0.10.0
libtpu: 0.0.40
codegen_flags: <defaults>
</compile_context>

<pallas_src>
import functools
import math

import numpy as np
import jax
import jax.numpy as jnp
from jax.experimental import pallas as pl
from jax.experimental.pallas import tpu as pltpu

BN_EPS = 1e-5


# ----------------------------------------------------------------------------
# Pallas kernels
# ----------------------------------------------------------------------------
def _stem_kernel(x_ref, w_ref, sc_ref, b_ref, o_ref):
    """Single-tile fused matmul + folded BN + ReLU (stem 7x7 conv)."""
    acc = jnp.dot(x_ref[...], w_ref[...], preferred_element_type=jnp.float32)
    o_ref[...] = jnp.maximum(acc * sc_ref[...] + b_ref[...], 0.0)


def make_block_kernel(has_ds):
    """Whole basic residual block fused in one kernel.

    conv1 (3x3) -> BN -> ReLU, optional 1x1 downsample conv + BN,
    conv2 (3x3) -> BN -> +identity -> ReLU.  The 3x3 convs are expressed as a
    sum over 9 taps:   out = sum_t  Sel_t @ x @ W_t
    where Sel_t is a constant 0/1 (M_out, M_in) selection matrix that encodes
    stride / padding / dilation / batch boundaries (built host-side).
    All intermediates stay in VMEM; MXU operands bf16, accum f32.
    """

    def kernel(x_ref, sel1_ref, w1_ref, sc1_ref, b1_ref,
               sel2_ref, w2_ref, sc2_ref, b2_ref, *rest):
        if has_ds:
            seld_ref, wd_ref, scd_ref, bd_ref, o_ref = rest
        else:
            (o_ref,) = rest

        x = x_ref[...]                       # (Mi, Cin) f32
        xb = x.astype(jnp.bfloat16)

        def conv(sel_ref, w_ref, src_b):
            taps, mo, _ = sel_ref.shape
            co = w_ref.shape[2]
            acc = jnp.zeros((mo, co), jnp.float32)
            for t in range(taps):            # static unroll (9 taps)
                g = jnp.dot(sel_ref[t], src_b,
                            preferred_element_type=jnp.float32)
                acc = acc + jnp.dot(g.astype(jnp.bfloat16), w_ref[t],
                                    preferred_element_type=jnp.float32)
            return acc

        # conv1 + BN + ReLU
        y1 = jnp.maximum(
            conv(sel1_ref, w1_ref, xb) * sc1_ref[...] + b1_ref[...], 0.0)

        # identity path
        if has_ds:
            gi = jnp.dot(seld_ref[...], xb, preferred_element_type=jnp.float32)
            identity = (jnp.dot(gi.astype(jnp.bfloat16), wd_ref[...],
                                preferred_element_type=jnp.float32)
                        * scd_ref[...] + bd_ref[...])
        else:
            identity = x

        # conv2 + BN + residual + ReLU
        y2 = conv(sel2_ref, w2_ref, y1.astype(jnp.bfloat16))
        o_ref[...] = jnp.maximum(y2 * sc2_ref[...] + b2_ref[...] + identity, 0.0)

    return kernel


# ----------------------------------------------------------------------------
# Host-side helpers (constants / tiny XLA glue)
# ----------------------------------------------------------------------------
@functools.lru_cache(maxsize=None)
def _conv_selectors_np(B, H, W, kh, kw, stride, padding, dilation):
    """Per-tap 0/1 selection matrices (kh*kw, B*oh*ow, B*H*W)."""
    oh = (H + 2 * padding - dilation * (kh - 1) - 1) // stride + 1
    ow = (W + 2 * padding - dilation * (kw - 1) - 1) // stride + 1
    sel = np.zeros((kh * kw, B * oh * ow, B * H * W), np.float32)
    for t in range(kh * kw):
        ki, kj = divmod(t, kw)
        for b in range(B):
            for oy in range(oh):
                iy = oy * stride - padding + ki * dilation
                if iy < 0 or iy >= H:
                    continue
                for ox in range(ow):
                    ix = ox * stride - padding + kj * dilation
                    if ix < 0 or ix >= W:
                        continue
                    sel[t, (b * oh + oy) * ow + ox, (b * H + iy) * W + ix] = 1.0
    return sel, oh, ow


def conv_selectors(B, H, W, kh, kw, stride, padding, dilation):
    sel, oh, ow = _conv_selectors_np(B, H, W, kh, kw, stride, padding, dilation)
    return jnp.asarray(sel, jnp.bfloat16), oh, ow


def im2col(x, kh, kw, stride, padding, dilation=1):
    """x: NHWC -> (N*oh*ow, kh*kw*C). Only used for the stem (K=147)."""
    N, H, W, C = x.shape
    xp = jnp.pad(x, ((0, 0), (padding, padding), (padding, padding), (0, 0)))
    oh = (H + 2 * padding - dilation * (kh - 1) - 1) // stride + 1
    ow = (W + 2 * padding - dilation * (kw - 1) - 1) // stride + 1
    cols = []
    for i in range(kh):
        for j in range(kw):
            h0, w0 = i * dilation, j * dilation
            cols.append(xp[:, h0:h0 + stride * (oh - 1) + 1:stride,
                              w0:w0 + stride * (ow - 1) + 1:stride, :])
    col = jnp.stack(cols, axis=3)            # (N, oh, ow, kh*kw, C)
    return col.reshape(N * oh * ow, kh * kw * C), oh, ow


def maxpool_nhwc(x, ks=3, stride=2, padding=1):
    """3x3/s2/p1 max pool as a pairwise maximum tree (no kernel, no stack)."""
    B, H, W, C = x.shape
    neg = jnp.finfo(x.dtype).min
    xp = jnp.pad(x, ((0, 0), (padding, padding), (padding, padding), (0, 0)),
                 constant_values=neg)
    oh = (H + 2 * padding - ks) // stride + 1
    ow = (W + 2 * padding - ks) // stride + 1
    out = None
    for i in range(ks):
        for j in range(ks):
            tap = xp[:, i:i + stride * (oh - 1) + 1:stride,
                        j:j + stride * (ow - 1) + 1:stride, :]
            out = tap if out is None else jnp.maximum(out, tap)
    return out


# ----------------------------------------------------------------------------
# Pallas wrappers
# ----------------------------------------------------------------------------
def stem_conv(x_nhwc, p):
    B = x_nhwc.shape[0]
    col, oh, ow = im2col(x_nhwc, 7, 7, stride=2, padding=3)
    col = col.astype(jnp.bfloat16)
    M, K = col.shape
    N = p["w"].shape[1]
    tm = 256 if M % 256 == 0 else (128 if M % 128 == 0 else M)
    out = pl.pallas_call(
        _stem_kernel,
        out_shape=jax.ShapeDtypeStruct((M, N), jnp.float32),
        grid_spec=pltpu.PrefetchScalarGridSpec(
            num_scalar_prefetch=0,
            grid=(M // tm,),
            in_specs=[pl.BlockSpec((tm, K), lambda i: (i, 0)),
                      pl.BlockSpec((K, N), lambda i: (0, 0)),
                      pl.BlockSpec((1, N), lambda i: (0, 0)),
                      pl.BlockSpec((1, N), lambda i: (0, 0))],
            out_specs=pl.BlockSpec((tm, N), lambda i: (i, 0)),
        ),
        compiler_params=pltpu.CompilerParams(
            dimension_semantics=("parallel",)),
    )(col, p["w"], p["sc"], p["b"])
    return out.reshape(B, oh, ow, N)


def basic_block(x2d, B, H, W, bp, *, stride, dilation):
    """x2d: (B*H*W, Cin) f32 rows.  Returns ((B*oh*ow, Cout) f32, oh, ow)."""
    has_ds = "wd" in bp
    cout = bp["w1"].shape[2]
    sel1, oh, ow = conv_selectors(B, H, W, 3, 3, stride, dilation, dilation)
    sel2, _, _ = conv_selectors(B, oh, ow, 3, 3, 1, dilation, dilation)
    inputs = [x2d, sel1, bp["w1"], bp["sc1"], bp["b1"],
              sel2, bp["w2"], bp["sc2"], bp["b2"]]
    if has_ds:
        seld, _, _ = conv_selectors(B, H, W, 1, 1, stride, 0, 1)
        inputs += [seld[0], bp["wd"], bp["scd"], bp["bd"]]
    out = pl.pallas_call(
        make_block_kernel(has_ds),
        out_shape=jax.ShapeDtypeStruct((B * oh * ow, cout), jnp.float32),
    )(*inputs)
    return out, oh, ow


# ----------------------------------------------------------------------------
# Backbone (resnetsub-style) parameters
# ----------------------------------------------------------------------------
def _conv_w(key, out_c, in_c, kh, kw):
    fan_in = in_c * kh * kw
    return jax.random.normal(key, (out_c, in_c, kh, kw), jnp.float32) * (
        1.0 / math.sqrt(fan_in))


def _fold_bn(key, c):
    """Eval-mode BatchNorm folded to per-channel scale/bias (synthetic stats)."""
    k1, k2 = jax.random.split(key)
    gamma = 1.0 + 0.1 * jax.random.normal(k1, (c,), jnp.float32)
    beta = 0.1 * jax.random.normal(k2, (c,), jnp.float32)
    mean = jnp.zeros((c,), jnp.float32)
    var = jnp.ones((c,), jnp.float32)
    scale = gamma / jnp.sqrt(var + BN_EPS)
    bias = beta - mean * scale
    return scale.reshape(1, c), bias.reshape(1, c)


def _block_params(keys, in_c, out_c, downsample):
    w1 = _conv_w(next(keys), out_c, in_c, 3, 3)
    sc1, b1 = _fold_bn(next(keys), out_c)
    w2 = _conv_w(next(keys), out_c, out_c, 3, 3)
    sc2, b2 = _fold_bn(next(keys), out_c)
    bp = {
        # per-tap layout: (kh*kw, Cin, Cout), bf16 for MXU
        "w1": jnp.transpose(w1, (2, 3, 1, 0)).reshape(9, in_c, out_c)
              .astype(jnp.bfloat16),
        "sc1": sc1, "b1": b1,
        "w2": jnp.transpose(w2, (2, 3, 1, 0)).reshape(9, out_c, out_c)
              .astype(jnp.bfloat16),
        "sc2": sc2, "b2": b2,
    }
    if downsample:
        wd = _conv_w(next(keys), out_c, in_c, 1, 1)
        scd, bd = _fold_bn(next(keys), out_c)
        bp["wd"] = wd.reshape(out_c, in_c).T.astype(jnp.bfloat16)  # (Cin, Cout)
        bp["scd"] = scd
        bp["bd"] = bd
    return bp


def init_backbone_params(key):
    keys = iter(jax.random.split(key, 64))
    w_stem = _conv_w(next(keys), 16, 3, 7, 7)
    sc, b = _fold_bn(next(keys), 16)
    return {
        "stem": {"w": jnp.transpose(w_stem, (2, 3, 1, 0)).reshape(147, 16)
                      .astype(jnp.bfloat16),
                 "sc": sc, "b": b},
        "layer1": _block_params(keys, 16, 16, downsample=False),
        "layer2": _block_params(keys, 16, 32, downsample=True),
        "layer3": _block_params(keys, 32, 64, downsample=True),
        "layer4": _block_params(keys, 64, 128, downsample=True),
    }


# ----------------------------------------------------------------------------
# Forward
# ----------------------------------------------------------------------------
def backbone_forward(params, x_nchw):
    """Returns (x, low_level_feat) in NCHW, like the deeplab resnet backbone."""
    x = jnp.transpose(x_nchw, (0, 2, 3, 1)).astype(jnp.float32)   # NCHW->NHWC
    B = x.shape[0]
    x = stem_conv(x, params["stem"])            # (B, H/2, W/2, 16)
    x = maxpool_nhwc(x, 3, 2, 1)                # (B, H/4, W/4, 16)
    _, h, w, c = x.shape
    x2 = x.reshape(B * h * w, c)

    x2, h, w = basic_block(x2, B, h, w, params["layer1"], stride=1, dilation=1)
    low = x2.reshape(B, h, w, -1)
    x2, h, w = basic_block(x2, B, h, w, params["layer2"], stride=2, dilation=1)
    x2, h, w = basic_block(x2, B, h, w, params["layer3"], stride=2, dilation=1)
    # output_stride=16 -> layer4 keeps stride 1 with dilation 2
    x2, h, w = basic_block(x2, B, h, w, params["layer4"], stride=1, dilation=2)
    high = x2.reshape(B, h, w, -1)

    return (jnp.transpose(high, (0, 3, 1, 2)),
            jnp.transpose(low, (0, 3, 1, 2)))


# ----------------------------------------------------------------------------
if __name__ == "__main__":
    key = jax.random.PRNGKey(0)
    k_params, k_input = jax.random.split(key)
    params = init_backbone_params(k_params)
    x = jax.random.normal(k_input, (2, 3, 32, 32), jnp.float32)   # NCHW input

    fwd = jax.jit(backbone_forward)
    high, low = fwd(params, x)
    jax.block_until_ready(high)
    jax.block_until_ready(low)

    assert high.shape == (2, 128, 2, 2), high.shape
    assert low.shape == (2, 16, 8, 8), low.shape
    assert bool(jnp.all(jnp.isfinite(high))) and bool(jnp.all(jnp.isfinite(low)))
    print("KERNEL_OK")
</pallas_src>

<mosaic_0001>
module attributes {stable_mosaic.version = 11 : i64} {
  func.func @_stem_kernel(%arg0: i32, %arg1: memref<256x147xbf16, #tpu.memory_space<vmem>>, %arg2: memref<147x16xbf16, #tpu.memory_space<vmem>>, %arg3: memref<1x16xf32, #tpu.memory_space<vmem>>, %arg4: memref<1x16xf32, #tpu.memory_space<vmem>>, %arg5: memref<256x16xf32, #tpu.memory_space<vmem>>) attributes {dimension_semantics = [#tpu.dimension_semantics<parallel>], iteration_bounds = array<i64: 2>, scalar_prefetch = 0 : i64, scratch_operands = 0 : i64, tpu.core_type = #tpu.core_type<tc>, window_params = [{transform_indices = @transform_0, window_bounds = array<i64: 256, 147>}, {pipeline_mode = #tpu.pipeline_mode<synchronous>, transform_indices = @transform_1, window_bounds = array<i64: 147, 16>}, {pipeline_mode = #tpu.pipeline_mode<synchronous>, transform_indices = @transform_2, window_bounds = array<i64: 1, 16>}, {pipeline_mode = #tpu.pipeline_mode<synchronous>, transform_indices = @transform_3, window_bounds = array<i64: 1, 16>}, {transform_indices = @transform_4, window_bounds = array<i64: 256, 16>}]} {
    %c0 = arith.constant 0 : index
    %c0_0 = arith.constant 0 : index
    %0 = vector.load %arg1[%c0, %c0_0] : memref<256x147xbf16, #tpu.memory_space<vmem>>, vector<256x147xbf16>
    %c0_1 = arith.constant 0 : index
    %c0_2 = arith.constant 0 : index
    %1 = vector.load %arg2[%c0_1, %c0_2] : memref<147x16xbf16, #tpu.memory_space<vmem>>, vector<147x16xbf16>
    %cst = arith.constant dense<0.000000e+00> : vector<256x16xf32>
    %2 = tpu.matmul %0, %1, %cst {dimension_numbers = #tpu.dot_dimension_numbers<[1], [0], [0], [1], [0, 0, 1, 1], [], []>} : vector<256x147xbf16>, vector<147x16xbf16>, vector<256x16xf32> -> vector<256x16xf32>
    %c0_3 = arith.constant 0 : index
    %c0_4 = arith.constant 0 : index
    %3 = vector.load %arg3[%c0_3, %c0_4] : memref<1x16xf32, #tpu.memory_space<vmem>>, vector<1x16xf32>
    %4 = vector.broadcast %3 : vector<1x16xf32> to vector<256x16xf32>
    %5 = arith.mulf %2, %4 : vector<256x16xf32>
    %c0_5 = arith.constant 0 : index
    %c0_6 = arith.constant 0 : index
    %6 = vector.load %arg4[%c0_5, %c0_6] : memref<1x16xf32, #tpu.memory_space<vmem>>, vector<1x16xf32>
    %7 = vector.broadcast %6 : vector<1x16xf32> to vector<256x16xf32>
    %8 = arith.addf %5, %7 : vector<256x16xf32>
    %cst_7 = arith.constant 0.000000e+00 : f32
    %9 = vector.broadcast %cst_7 : f32 to vector<256x16xf32>
    %10 = arith.maximumf %8, %9 : vector<256x16xf32>
    %c0_8 = arith.constant 0 : index
    %c0_9 = arith.constant 0 : index
    %11 = vector.load %arg5[%c0_8, %c0_9] : memref<256x16xf32, #tpu.memory_space<vmem>>, vector<256x16xf32>
    tpu.vector_store %arg5[%c0_8, %c0_9], %10 {strides = array<i32>} : memref<256x16xf32, #tpu.memory_space<vmem>>, vector<256x16xf32>,
    return
  }
  func.func @transform_0(%arg0: i32) -> (i32, i32) {
    %c0_i32 = arith.constant 0 : i32
    %c0_i32_0 = arith.constant 0 : i32
    return %arg0, %c0_i32 : i32, i32
  }
  func.func @transform_1(%arg0: i32) -> (i32, i32) {
    %c0_i32 = arith.constant 0 : i32
    %c0_i32_0 = arith.constant 0 : i32
    %c0_i32_1 = arith.constant 0 : i32
    return %c0_i32, %c0_i32_0 : i32, i32
  }
  func.func @transform_2(%arg0: i32) -> (i32, i32) {
    %c0_i32 = arith.constant 0 : i32
    %c0_i32_0 = arith.constant 0 : i32
    %c0_i32_1 = arith.constant 0 : i32
    return %c0_i32, %c0_i32_0 : i32, i32
  }
  func.func @transform_3(%arg0: i32) -> (i32, i32) {
    %c0_i32 = arith.constant 0 : i32
    %c0_i32_0 = arith.constant 0 : i32
    %c0_i32_1 = arith.constant 0 : i32
    return %c0_i32, %c0_i32_0 : i32, i32
  }
  func.func @transform_4(%arg0: i32) -> (i32, i32) {
    %c0_i32 = arith.constant 0 : i32
    %c0_i32_0 = arith.constant 0 : i32
    return %arg0, %c0_i32 : i32, i32
  }
}

module attributes {stable_mosaic.version = 11 : i64} {
  func.func @kernel(%arg0: memref<128x16xf32, #tpu.memory_space<vmem>>, %arg1: memref<9x32x128xbf16, #tpu.memory_space<vmem>>, %arg2: memref<9x16x32xbf16, #tpu.memory_space<vmem>>, %arg3: memref<1x32xf32, #tpu.memory_space<vmem>>, %arg4: memref<1x32xf32, #tpu.memory_space<vmem>>, %arg5: memref<9x32x32xbf16, #tpu.memory_space<vmem>>, %arg6: memref<9x32x32xbf16, #tpu.memory_space<vmem>>, %arg7: memref<1x32xf32, #tpu.memory_space<vmem>>, %arg8: memref<1x32xf32, #tpu.memory_space<vmem>>, %arg9: memref<32x128xbf16, #tpu.memory_space<vmem>>, %arg10: memref<16x32xbf16, #tpu.memory_space<vmem>>, %arg11: memref<1x32xf32, #tpu.memory_space<vmem>>, %arg12: memref<1x32xf32, #tpu.memory_space<vmem>>, %arg13: memref<32x32xf32, #tpu.memory_space<vmem>>) attributes {dimension_semantics = [], scalar_prefetch = 0 : i64, scratch_operands = 0 : i64, tpu.core_type = #tpu.core_type<tc>} {
    %c0 = arith.constant 0 : index
    %c0_0 = arith.constant 0 : index
    %0 = vector.load %arg0[%c0, %c0_0] : memref<128x16xf32, #tpu.memory_space<vmem>>, vector<128x16xf32>
    %1 = arith.truncf %0 : vector<128x16xf32> to vector<128x16xbf16>
    %cst = arith.constant 0.000000e+00 : f32
    %2 = vector.broadcast %cst : f32 to vector<32x32xf32>
    %c0_1 = arith.constant 0 : index
    %c0_2 = arith.constant 0 : index
    %c0_3 = arith.constant 0 : index
    %3 = vector.load %arg1[%c0_1, %c0_2, %c0_3] : memref<9x32x128xbf16, #tpu.memory_space<vmem>>, vector<1x32x128xbf16>
    %4 = vector.shape_cast %3 : vector<1x32x128xbf16> to vector<32x128xbf16>
    %cst_4 = arith.constant dense<0.000000e+00> : vector<32x16xf32>
    %5 = tpu.matmul %4, %1, %cst_4 {dimension_numbers = #tpu.dot_dimension_numbers<[1], [0], [0], [1], [0, 0, 1, 1], [], []>} : vector<32x128xbf16>, vector<128x16xbf16>, vector<32x16xf32> -> vector<32x16xf32>
    %6 = arith.truncf %5 : vector<32x16xf32> to vector<32x16xbf16>
    %c0_5 = arith.constant 0 : index
    %c0_6 = arith.constant 0 : index
    %c0_7 = arith.constant 0 : index
    %7 = vector.load %arg2[%c0_5, %c0_6, %c0_7] : memref<9x16x32xbf16, #tpu.memory_space<vmem>>, vector<1x16x32xbf16>
    %8 = vector.shape_cast %7 : vector<1x16x32xbf16> to vector<16x32xbf16>
    %cst_8 = arith.constant dense<0.000000e+00> : vector<32x32xf32>
    %9 = tpu.matmul %6, %8, %cst_8 {dimension_numbers = #tpu.dot_dimension_numbers<[1], [0], [0], [1], [0, 0, 1, 1], [], []>} : vector<32x16xbf16>, vector<16x32xbf16>, vector<32x32xf32> -> vector<32x32xf32>
    %10 = arith.addf %2, %9 : vector<32x32xf32>
    %c1 = arith.constant 1 : index
    %c0_9 = arith.constant 0 : index
    %c0_10 = arith.constant 0 : index
    %11 = vector.load %arg1[%c1, %c0_9, %c0_10] : memref<9x32x128xbf16, #tpu.memory_space<vmem>>, vector<1x32x128xbf16>
    %12 = vector.shape_cast %11 : vector<1x32x128xbf16> to vector<32x128xbf16>
    %cst_11 = arith.constant dense<0.000000e+00> : vector<32x16xf32>
    %13 = tpu.matmul %12, %1, %cst_11 {dimension_numbers = #tpu.dot_dimension_numbers<[1], [0], [0], [1], [0, 0, 1, 1], [], []>} : vector<32x128xbf16>, vector<128x16xbf16>, vector<32x16xf32> -> vector<32x16xf32>
    %14 = arith.truncf %13 : vector<32x16xf32> to vector<32x16xbf16>
    %c1_12 = arith.constant 1 : index
    %c0_13 = arith.constant 0 : index
    %c0_14 = arith.constant 0 : index
    %15 = vector.load %arg2[%c1_12, %c0_13, %c0_14] : memref<9x16x32xbf16, #tpu.memory_space<vmem>>, vector<1x16x32xbf16>
    %16 = vector.shape_cast %15 : vector<1x16x32xbf16> to vector<16x32xbf16>
    %cst_15 = arith.constant dense<0.000000e+00> : vector<32x32xf32>
    %17 = tpu.matmul %14, %16, %cst_15 {dimension_numbers = #tpu.dot_dimension_numbers<[1], [0], [0], [1], [0, 0, 1, 1], [], []>} : vector<32x16xbf16>, vector<16x32xbf16>, vector<32x32xf32> -> vector<32x32xf32>
    %18 = arith.addf %10, %17 : vector<32x32xf32>
    %c2 = arith.constant 2 : index
    %c0_16 = arith.constant 0 : index
    %c0_17 = arith.constant 0 : index
    %19 = vector.load %arg1[%c2, %c0_16, %c0_17] : memref<9x32x128xbf16, #tpu.memory_space<vmem>>, vector<1x32x128xbf16>
    %20 = vector.shape_cast %19 : vector<1x32x128xbf16> to vector<32x128xbf16>
    %cst_18 = arith.constant dense<0.000000e+00> : vector<32x16xf32>
    %21 = tpu.matmul %20, %1, %cst_18 {dimension_numbers = #tpu.dot_dimension_numbers<[1], [0], [0], [1], [0, 0, 1, 1], [], []>} : vector<32x128xbf16>, vector<128x16xbf16>, vector<32x16xf32> -> vector<32x16xf32>
    %22 = arith.truncf %21 : vector<32x16xf32> to vector<32x16xbf16>
    %c2_19 = arith.constant 2 : index
    %c0_20 = arith.constant 0 : index
    %c0_21 = arith.constant 0 : index
    %23 = vector.load %arg2[%c2_19, %c0_20, %c0_21] : memref<9x16x32xbf16, #tpu.memory_space<vmem>>, vector<1x16x32xbf16>
    %24 = vector.shape_cast %23 : vector<1x16x32xbf16> to vector<16x32xbf16>
    %cst_22 = arith.constant dense<0.000000e+00> : vector<32x32xf32>
    %25 = tpu.matmul %22, %24, %cst_22 {dimension_numbers = #tpu.dot_dimension_numbers<[1], [0], [0], [1], [0, 0, 1, 1], [], []>} : vector<32x16xbf16>, vector<16x32xbf16>, vector<32x32xf32> -> vector<32x32xf32>
    %26 = arith.addf %18, %25 : vector<32x32xf32>
    %c3 = arith.constant 3 : index
    %c0_23 = arith.constant 0 : index
    %c0_24 = arith.constant 0 : index
    %27 = vector.load %arg1[%c3, %c0_23, %c0_24] : memref<9x32x128xbf16, #tpu.memory_space<vmem>>, vector<1x32x128xbf16>
    %28 = vector.shape_cast %27 : vector<1x32x128xbf16> to vector<32x128xbf16>
    %cst_25 = arith.constant dense<0.000000e+00> : vector<32x16xf32>
    %29 = tpu.matmul %28, %1, %cst_25 {dimension_numbers = #tpu.dot_dimension_numbers<[1], [0], [0], [1], [0, 0, 1, 1], [], []>} : vector<32x128xbf16>, vector<128x16xbf16>, vector<32x16xf32> -> vector<32x16xf32>
    %30 = arith.truncf %29 : vector<32x16xf32> to vector<32x16xbf16>
    %c3_26 = arith.constant 3 : index
    %c0_27 = arith.constant 0 : index
    %c0_28 = arith.constant 0 : index
    %31 = vector.load %arg2[%c3_26, %c0_27, %c0_28] : memref<9x16x32xbf16, #tpu.memory_space<vmem>>, vector<1x16x32xbf16>
    %32 = vector.shape_cast %31 : vector<1x16x32xbf16> to vector<16x32xbf16>
    %cst_29 = arith.constant dense<0.000000e+00> : vector<32x32xf32>
    %33 = tpu.matmul %30, %32, %cst_29 {dimension_numbers = #tpu.dot_dimension_numbers<[1], [0], [0], [1], [0, 0, 1, 1], [], []>} : vector<32x16xbf16>, vector<16x32xbf16>, vector<32x32xf32> -> vector<32x32xf32>
    %34 = arith.addf %26, %33 : vector<32x32xf32>
    %c4 = arith.constant 4 : index
    %c0_30 = arith.constant 0 : index
    %c0_31 = arith.constant 0 : index
    %35 = vector.load %arg1[%c4, %c0_30, %c0_31] : memref<9x32x128xbf16, #tpu.memory_space<vmem>>, vector<1x32x128xbf16>
    %36 = vector.shape_cast %35 : vector<1x32x128xbf16> to vector<32x128xbf16>
    %cst_32 = arith.constant dense<0.000000e+00> : vector<32x16xf32>
    %37 = tpu.matmul %36, %1, %cst_32 {dimension_numbers = #tpu.dot_dimension_numbers<[1], [0], [0], [1], [0, 0, 1, 1], [], []>} : vector<32x128xbf16>, vector<128x16xbf16>, vector<32x16xf32> -> vector<32x16xf32>
    %38 = arith.truncf %37 : vector<32x16xf32> to vector<32x16xbf16>
    %c4_33 = arith.constant 4 : index
    %c0_34 = arith.constant 0 : index
    %c0_35 = arith.constant 0 : index
    %39 = vector.load %arg2[%c4_33, %c0_34, %c0_35] : memref<9x16x32xbf16, #tpu.memory_space<vmem>>, vector<1x16x32xbf16>
    %40 = vector.shape_cast %39 : vector<1x16x32xbf16> to vector<16x32xbf16>
    %cst_36 = arith.constant dense<0.000000e+00> : vector<32x32xf32>
    %41 = tpu.matmul %38, %40, %cst_36 {dimension_numbers = #tpu.dot_dimension_numbers<[1], [0], [0], [1], [0, 0, 1, 1], [], []>} : vector<32x16xbf16>, vector<16x32xbf16>, vector<32x32xf32> -> vector<32x32xf32>
    %42 = arith.addf %34, %41 : vector<32x32xf32>
    %c5 = arith.constant 5 : index
    %c0_37 = arith.constant 0 : index
    %c0_38 = arith.constant 0 : index
    %43 = vector.load %arg1[%c5, %c0_37, %c0_38] : memref<9x32x128xbf16, #tpu.memory_space<vmem>>, vector<1x32x128xbf16>
    %44 = vector.shape_cast %43 : vector<1x32x128xbf16> to vector<32x128xbf16>
    %cst_39 = arith.constant dense<0.000000e+00> : vector<32x16xf32>
    %45 = tpu.matmul %44, %1, %cst_39 {dimension_numbers = #tpu.dot_dimension_numbers<[1], [0], [0], [1], [0, 0, 1, 1], [], []>} : vector<32x128xbf16>, vector<128x16xbf16>, vector<32x16xf32> -> vector<32x16xf32>
    %46 = arith.truncf %45 : vector<32x16xf32> to vector<32x16xbf16>
    %c5_40 = arith.constant 5 : index
    %c0_41 = arith.constant 0 : index
    %c0_42 = arith.constant 0 : index
    %47 = vector.load %arg2[%c5_40, %c0_41, %c0_42] : memref<9x16x32xbf16, #tpu.memory_space<vmem>>, vector<1x16x32xbf16>
    %48 = vector.shape_cast %47 : vector<1x16x32xbf16> to vector<16x32xbf16>
    %cst_43 = arith.constant dense<0.000000e+00> : vector<32x32xf32>
    %49 = tpu.matmul %46, %48, %cst_43 {dimension_numbers = #tpu.dot_dimension_numbers<[1], [0], [0], [1], [0, 0, 1, 1], [], []>} : vector<32x16xbf16>, vector<16x32xbf16>, vector<32x32xf32> -> vector<32x32xf32>
    %50 = arith.addf %42, %49 : vector<32x32xf32>
    %c6 = arith.constant 6 : index
    %c0_44 = arith.constant 0 : index
    %c0_45 = arith.constant 0 : index
    %51 = vector.load %arg1[%c6, %c0_44, %c0_45] : memref<9x32x128xbf16, #tpu.memory_space<vmem>>, vector<1x32x128xbf16>
    %52 = vector.shape_cast %51 : vector<1x32x128xbf16> to vector<32x128xbf16>
    %cst_46 = arith.constant dense<0.000000e+00> : vector<32x16xf32>
    %53 = tpu.matmul %52, %1, %cst_46 {dimension_numbers = #tpu.dot_dimension_numbers<[1], [0], [0], [1], [0, 0, 1, 1], [], []>} : vector<32x128xbf16>, vector<128x16xbf16>, vector<32x16xf32> -> vector<32x16xf32>
    %54 = arith.truncf %53 : vector<32x16xf32> to vector<32x16xbf16>
    %c6_47 = arith.constant 6 : index
    %c0_48 = arith.constant 0 : index
    %c0_49 = arith.constant 0 : index
    %55 = vector.load %arg2[%c6_47, %c0_48, %c0_49] : memref<9x16x32xbf16, #tpu.memory_space<vmem>>, vector<1x16x32xbf16>
    %56 = vector.shape_cast %55 : vector<1x16x32xbf16> to vector<16x32xbf16>
    %cst_50 = arith.constant dense<0.000000e+00> : vector<32x32xf32>
    %57 = tpu.matmul %54, %56, %cst_50 {dimension_numbers = #tpu.dot_dimension_numbers<[1], [0], [0], [1], [0, 0, 1, 1], [], []>} : vector<32x16xbf16>, vector<16x32xbf16>, vector<32x32xf32> -> vector<32x32xf32>
    %58 = arith.addf %50, %57 : vector<32x32xf32>
    %c7 = arith.constant 7 : index
    %c0_51 = arith.constant 0 : index
    %c0_52 = arith.constant 0 : index
    %59 = vector.load %arg1[%c7, %c0_51, %c0_52] : memref<9x32x128xbf16, #tpu.memory_space<vmem>>, vector<1x32x128xbf16>
    %60 = vector.shape_cast %59 : vector<1x32x128xbf16> to vector<32x128xbf16>
    %cst_53 = arith.constant dense<0.000000e+00> : vector<32x16xf32>
    %61 = tpu.matmul %60, %1, %cst_53 {dimension_numbers = #tpu.dot_dimension_numbers<[1], [0], [0], [1], [0, 0, 1, 1], [], []>} : vector<32x128xbf16>, vector<128x16xbf16>, vector<32x16xf32> -> vector<32x16xf32>
    %62 = arith.truncf %61 : vector<32x16xf32> to vector<32x16xbf16>
    %c7_54 = arith.constant 7 : index
    %c0_55 = arith.constant 0 : index
    %c0_56 = arith.constant 0 : index
    %63 = vector.load %arg2[%c7_54, %c0_55, %c0_56] : memref<9x16x32xbf16, #tpu.memory_space<vmem>>, vector<1x16x32xbf16>
    %64 = vector.shape_cast %63 : vector<1x16x32xbf16> to vector<16x32xbf16>
    %cst_57 = arith.constant dense<0.000000e+00> : vector<32x32xf32>
    %65 = tpu.matmul %62, %64, %cst_57 {dimension_numbers = #tpu.dot_dimension_numbers<[1], [0], [0], [1], [0, 0, 1, 1], [], []>} : vector<32x16xbf16>, vector<16x32xbf16>, vector<32x32xf32> -> vector<32x32xf32>
    %66 = arith.addf %58, %65 : vector<32x32xf32>
    %c8 = arith.constant 8 : index
    %c0_58 = arith.constant 0 : index
    %c0_59 = arith.constant 0 : index
    %67 = vector.load %arg1[%c8, %c0_58, %c0_59] : memref<9x32x128xbf16, #tpu.memory_space<vmem>>, vector<1x32x128xbf16>
    %68 = vector.shape_cast %67 : vector<1x32x128xbf16> to vector<32x128xbf16>
    %cst_60 = arith.constant dense<0.000000e+00> : vector<32x16xf32>
    %69 = tpu.matmul %68, %1, %cst_60 {dimension_numbers = #tpu.dot_dimension_numbers<[1], [0], [0], [1], [0, 0, 1, 1], [], []>} : vector<32x128xbf16>, vector<128x16xbf16>, vector<32x16xf32> -> vector<32x16xf32>
    %70 = arith.truncf %69 : vector<32x16xf32> to vector<32x16xbf16>
    %c8_61 = arith.constant 8 : index
    %c0_62 = arith.constant 0 : index
    %c0_63 = arith.constant 0 : index
    %71 = vector.load %arg2[%c8_61, %c0_62, %c0_63] : memref<9x16x32xbf16, #tpu.memory_space<vmem>>, vector<1x16x32xbf16>
    %72 = vector.shape_cast %71 : vector<1x16x32xbf16> to vector<16x32xbf16>
    %cst_64 = arith.constant dense<0.000000e+00> : vector<32x32xf32>
    %73 = tpu.matmul %70, %72, %cst_64 {dimension_numbers = #tpu.dot_dimension_numbers<[1], [0], [0], [1], [0, 0, 1, 1], [], []>} : vector<32x16xbf16>, vector<16x32xbf16>, vector<32x32xf32> -> vector<32x32xf32>
    %74 = arith.addf %66, %73 : vector<32x32xf32>
    %c0_65 = arith.constant 0 : index
    %c0_66 = arith.constant 0 : index
    %75 = vector.load %arg3[%c0_65, %c0_66] : memref<1x32xf32, #tpu.memory_space<vmem>>, vector<1x32xf32>
    %76 = vector.broadcast %75 : vector<1x32xf32> to vector<32x32xf32>
    %77 = arith.mulf %74, %76 : vector<32x32xf32>
    %c0_67 = arith.constant 0 : index
    %c0_68 = arith.constant 0 : index
    %78 = vector.load %arg4[%c0_67, %c0_68] : memref<1x32xf32, #tpu.memory_space<vmem>>, vector<1x32xf32>
    %79 = vector.broadcast %78 : vector<1x32xf32> to vector<32x32xf32>
    %80 = arith.addf %77, %79 : vector<32x32xf32>
    %cst_69 = arith.constant 0.000000e+00 : f32
    %81 = vector.broadcast %cst_69 : f32 to vector<32x32xf32>
    %82 = arith.maximumf %80, %81 : vector<32x32xf32>
    %c0_70 = arith.constant 0 : index
    %c0_71 = arith.constant 0 : index
    %83 = vector.load %arg9[%c0_70, %c0_71] : memref<32x128xbf16, #tpu.memory_space<vmem>>, vector<32x128xbf16>
    %cst_72 = arith.constant dense<0.000000e+00> : vector<32x16xf32>
    %84 = tpu.matmul %83, %1, %cst_72 {dimension_numbers = #tpu.dot_dimension_numbers<[1], [0], [0], [1], [0, 0, 1, 1], [], []>} : vector<32x128xbf16>, vector<128x16xbf16>, vector<32x16xf32> -> vector<32x16xf32>
    %85 = arith.truncf %84 : vector<32x16xf32> to vector<32x16xbf16>
    %c0_73 = arith.constant 0 : index
    %c0_74 = arith.constant 0 : index
    %86 = vector.load %arg10[%c0_73, %c0_74] : memref<16x32xbf16, #tpu.memory_space<vmem>>, vector<16x32xbf16>
    %cst_75 = arith.constant dense<0.000000e+00> : vector<32x32xf32>
    %87 = tpu.matmul %85, %86, %cst_75 {dimension_numbers = #tpu.dot_dimension_numbers<[1], [0], [0], [1], [0, 0, 1, 1], [], []>} : vector<32x16xbf16>, vector<16x32xbf16>, vector<32x32xf32> -> vector<32x32xf32>
    %c0_76 = arith.constant 0 : index
    %c0_77 = arith.constant 0 : index
    %88 = vector.load %arg11[%c0_76, %c0_77] : memref<1x32xf32, #tpu.memory_space<vmem>>, vector<1x32xf32>
    %89 = vector.broadcast %88 : vector<1x32xf32> to vector<32x32xf32>
    %90 = arith.mulf %87, %89 : vector<32x32xf32>
    %c0_78 = arith.constant 0 : index
    %c0_79 = arith.constant 0 : index
    %91 = vector.load %arg12[%c0_78, %c0_79] : memref<1x32xf32, #tpu.memory_space<vmem>>, vector<1x32xf32>
    %92 = vector.broadcast %91 : vector<1x32xf32> to vector<32x32xf32>
    %93 = arith.addf %90, %92 : vector<32x32xf32>
    %94 = arith.truncf %82 : vector<32x32xf32> to vector<32x32xbf16>
    %cst_80 = arith.constant 0.000000e+00 : f32
    %95 = vector.broadcast %cst_80 : f32 to vector<32x32xf32>
    %c0_81 = arith.constant 0 : index
    %c0_82 = arith.constant 0 : index
    %c0_83 = arith.constant 0 : index
    %96 = vector.load %arg5[%c0_81, %c0_82, %c0_83] : memref<9x32x32xbf16, #tpu.memory_space<vmem>>, vector<1x32x32xbf16>
    %97 = vector.shape_cast %96 : vector<1x32x32xbf16> to vector<32x32xbf16>
    %cst_84 = arith.constant dense<0.000000e+00> : vector<32x32xf32>
    %98 = tpu.matmul %97, %94, %cst_84 {dimension_numbers = #tpu.dot_dimension_numbers<[1], [0], [0], [1], [0, 0, 1, 1], [], []>} : vector<32x32xbf16>, vector<32x32xbf16>, vector<32x32xf32> -> vector<32x32xf32>
    %99 = arith.truncf %98 : vector<32x32xf32> to vector<32x32xbf16>
    %c0_85 = arith.constant 0 : index
    %c0_86 = arith.constant 0 : index
    %c0_87 = arith.constant 0 : index
    %100 = vector.load %arg6[%c0_85, %c0_86, %c0_87] : memref<9x32x32xbf16, #tpu.memory_space<vmem>>, vector<1x32x32xbf16>
    %101 = vector.shape_cast %100 : vector<1x32x32xbf16> to vector<32x32xbf16>
    %cst_88 = arith.constant dense<0.000000e+00> : vector<32x32xf32>
    %102 = tpu.matmul %99, %101, %cst_88 {dimension_numbers = #tpu.dot_dimension_numbers<[1], [0], [0], [1], [0, 0, 1, 1], [], []>} : vector<32x32xbf16>, vector<32x32xbf16>, vector<32x32xf32> -> vector<32x32xf32>
    %103 = arith.addf %95, %102 : vector<32x32xf32>
    %c1_89 = arith.constant 1 : index
    %c0_90 = arith.constant 0 : index
    %c0_91 = arith.constant 0 : index
    %104 = vector.load %arg5[%c1_89, %c0_90, %c0_91] : memref<9x32x32xbf16, #tpu.memory_space<vmem>>, vector<1x32x32xbf16>
    %105 = vector.shape_cast %104 : vector<1x32x32xbf16> to vector<32x32xbf16>
    %cst_92 = arith.constant dense<0.000000e+00> : vector<32x32xf32>
    %106 = tpu.matmul %105, %94, %cst_92 {dimension_numbers = #tpu.dot_dimension_numbers<[1], [0], [0], [1], [0, 0, 1, 1], [], []>} : vector<32x32xbf16>, vector<32x32xbf16>, vector<32x32xf32> -> vector<32x32xf32>
    %107 = arith.truncf %106 : vector<32x32xf32> to vector<32x32xbf16>
    %c1_93 = arith.constant 1 : index
    %c0_94 = arith.constant 0 : index
    %c0_95 = arith.constant 0 : index
    %108 = vector.load %arg6[%c1_93, %c0_94, %c0_95] : memref<9x32x32xbf16, #tpu.memory_space<vmem>>, vector<1x32x32xbf16>
    %109 = vector.shape_cast %108 : vector<1x32x32xbf16> to vector<32x32xbf16>
    %cst_96 = arith.constant dense<0.000000e+00> : vector<32x32xf32>
    %110 = tpu.matmul %107, %109, %cst_96 {dimension_numbers = #tpu.dot_dimension_numbers<[1], [0], [0], [1], [0, 0, 1, 1], [], []>} : vector<32x32xbf16>, vector<32x32xbf16>, vector<32x32xf32> -> vector<32x32xf32>
    %111 = arith.addf %103, %110 : vector<32x32xf32>
    %c2_97 = arith.constant 2 : index
    %c0_98 = arith.constant 0 : index
    %c0_99 = arith.constant 0 : index
    %112 = vector.load %arg5[%c2_97, %c0_98, %c0_99] : memref<9x32x32xbf16, #tpu.memory_space<vmem>>, vector<1x32x32xbf16>
    %113 = vector.shape_cast %112 : vector<1x32x32xbf16> to vector<32x32xbf16>
    %cst_100 = arith.constant dense<0.000000e+00> : vector<32x32xf32>
    %114 = tpu.matmul %113, %94, %cst_100 {dimension_numbers = #tpu.dot_dimension_numbers<[1], [0], [0], [1], [0, 0, 1, 1], [], []>} : vector<32x32xbf16>, vector<32x32xbf16>, vector<32x32xf32> -> vector<32x32xf32>
    %115 = arith.truncf %114 : vector<32x32xf32> to vector<32x32xbf16>
    %c2_101 = arith.constant 2 : index
    %c0_102 = arith.constant 0 : index
    %c0_103 = arith.constant 0 : index
    %116 = vector.load %arg6[%c2_101, %c0_102, %c0_103] : memref<9x32x32xbf16, #tpu.memory_space<vmem>>, vector<1x32x32xbf16>
    %117 = vector.shape_cast %116 : vector<1x32x32xbf16> to vector<32x32xbf16>
    %cst_104 = arith.constant dense<0.000000e+00> : vector<32x32xf32>
    %118 = tpu.matmul %115, %117, %cst_104 {dimension_numbers = #tpu.dot_dimension_numbers<[1], [0], [0], [1], [0, 0, 1, 1], [], []>} : vector<32x32xbf16>, vector<32x32xbf16>, vector<32x32xf32> -> vector<32x32xf32>
    %119 = arith.addf %111, %118 : vector<32x32xf32>
    %c3_105 = arith.constant 3 : index
    %c0_106 = arith.constant 0 : index
    %c0_107 = arith.constant 0 : index
    %120 = vector.load %arg5[%c3_105, %c0_106, %c0_107] : memref<9x32x32xbf16, #tpu.memory_space<vmem>>, vector<1x32x32xbf16>
    %121 = vector.shape_cast %120 : vector<1x32x32xbf16> to vector<32x32xbf16>
    %cst_108 = arith.constant dense<0.000000e+00> : vector<32x32xf32>
    %122 = tpu.matmul %121, %94, %cst_108 {dimension_numbers = #tpu.dot_dimension_numbers<[1], [0], [0], [1], [0, 0, 1, 1], [], []>} : vector<32x32xbf16>, vector<32x32xbf16>, vector<32x32xf32> -> vector<32x32xf32>
    %123 = arith.truncf %122 : vector<32x32xf32> to vector<32x32xbf16>
    %c3_109 = arith.constant 3 : index
    %c0_110 = arith.constant 0 : index
    %c0_111 = arith.constant 0 : index
    %124 = vector.load %arg6[%c3_109, %c0_110, %c0_111] : memref<9x32x32xbf16, #tpu.memory_space<vmem>>, vector<1x32x32xbf16>
    %125 = vector.shape_cast %124 : vector<1x32x32xbf16> to vector<32x32xbf16>
    %cst_112 = arith.constant dense<0.000000e+00> : vector<32x32xf32>
    %126 = tpu.matmul %123, %125, %cst_112 {dimension_numbers = #tpu.dot_dimension_numbers<[1], [0], [0], [1], [0, 0, 1, 1], [], []>} : vector<32x32xbf16>, vector<32x32xbf16>, vector<32x32xf32> -> vector<32x32xf32>
    %127 = arith.addf %119, %126 : vector<32x32xf32>
    %c4_113 = arith.constant 4 : index
    %c0_114 = arith.constant 0 : index
    %c0_115 = arith.constant 0 : index
    %128 = vector.load %arg5[%c4_113, %c0_114, %c0_115] : memref<9x32x32xbf16, #tpu.memory_space<vmem>>, vector<1x32x32xbf16>
    %129 = vector.shape_cast %128 : vector<1x32x32xbf16> to vector<32x32xbf16>
    %cst_116 = arith.constant dense<0.000000e+00> : vector<32x32xf32>
    %130 = tpu.matmul %129, %94, %cst_116 {dimension_numbers = #tpu.dot_dimension_numbers<[1], [0], [0], [1], [0, 0, 1, 1], [], []>} : vector<32x32xbf16>, vector<32x32xbf16>, vector<32x32xf32> -> vector<32x32xf32>
    %131 = arith.truncf %130 : vector<32x32xf32> to vector<32x32xbf16>
    %c4_117 = arith.constant 4 : index
    %c0_118 = arith.constant 0 : index
    %c0_119 = arith.constant 0 : index
    %132 = vector.load %arg6[%c4_117, %c0_118, %c0_119] : memref<9x32x32xbf16, #tpu.memory_space<vmem>>, vector<1x32x32xbf16>
    %133 = vector.shape_cast %132 : vector<1x32x32xbf16> to vector<32x32xbf16>
    %cst_120 = arith.constant dense<0.000000e+00> : vector<32x32xf32>
    %134 = tpu.matmul %131, %133, %cst_120 {dimension_numbers = #tpu.dot_dimension_numbers<[1], [0], [0], [1], [0, 0, 1, 1], [], []>} : vector<32x32xbf16>, vector<32x32xbf16>, vector<32x32xf32> -> vector<32x32xf32>
    %135 = arith.addf %127, %134 : vector<32x32xf32>
    %c5_121 = arith.constant 5 : index
    %c0_122 = arith.constant 0 : index
    %c0_123 = arith.constant 0 : index
    %136 = vector.load %arg5[%c5_121, %c0_122, %c0_123] : memref<9x32x32xbf16, #tpu.memory_space<vmem>>, vector<1x32x32xbf16>
    %137 = vector.shape_cast %136 : vector<1x32x32xbf16> to vector<32x32xbf16>
    %cst_124 = arith.constant dense<0.000000e+00> : vector<32x32xf32>
    %138 = tpu.matmul %137, %94, %cst_124 {dimension_numbers = #tpu.dot_dimension_numbers<[1], [0], [0], [1], [0, 0, 1, 1], [], []>} : vector<32x32xbf16>, vector<32x32xbf16>, vector<32x32xf32> -> vector<32x32xf32>
    %139 = arith.truncf %138 : vector<32x32xf32> to vector<32x32xbf16>
    %c5_125 = arith.constant 5 : index
    %c0_126 = arith.constant 0 : index
    %c0_127 = arith.constant 0 : index
    %140 = vector.load %arg6[%c5_125, %c0_126, %c0_127] : memref<9x32x32xbf16, #tpu.memory_space<vmem>>, vector<1x32x32xbf16>
    %141 = vector.shape_cast %140 : vector<1x32x32xbf16> to vector<32x32xbf16>
    %cst_128 = arith.constant dense<0.000000e+00> : vector<32x32xf32>
    %142 = tpu.matmul %139, %141, %cst_128 {dimension_numbers = #tpu.dot_dimension_numbers<[1], [0], [0], [1], [0, 0, 1, 1], [], []>} : vector<32x32xbf16>, vector<32x32xbf16>, vector<32x32xf32> -> vector<32x32xf32>
    %143 = arith.addf %135, %142 : vector<32x32xf32>
    %c6_129 = arith.constant 6 : index
    %c0_130 = arith.constant 0 : index
    %c0_131 = arith.constant 0 : index
    %144 = vector.load %arg5[%c6_129, %c0_130, %c0_131] : memref<9x32x32xbf16, #tpu.memory_space<vmem>>, vector<1x32x32xbf16>
    %145 = vector.shape_cast %144 : vector<1x32x32xbf16> to vector<32x32xbf16>
    %cst_132 = arith.constant dense<0.000000e+00> : vector<32x32xf32>
    %146 = tpu.matmul %145, %94, %cst_132 {dimension_numbers = #tpu.dot_dimension_numbers<[1], [0], [0], [1], [0, 0, 1, 1], [], []>} : vector<32x32xbf16>, vector<32x32xbf16>, vector<32x32xf32> -> vector<32x32xf32>
    %147 = arith.truncf %146 : vector<32x32xf32> to vector<32x32xbf16>
    %c6_133 = arith.constant 6 : index
    %c0_134 = arith.constant 0 : index
    %c0_135 = arith.constant 0 : index
    %148 = vector.load %arg6[%c6_133, %c0_134, %c0_135] : memref<9x32x32xbf16, #tpu.memory_space<vmem>>, vector<1x32x32xbf16>
    %149 = vector.shape_cast %148 : vector<1x32x32xbf16> to vector<32x32xbf16>
    %cst_136 = arith.constant dense<0.000000e+00> : vector<32x32xf32>
    %150 = tpu.matmul %147, %149, %cst_136 {dimension_numbers = #tpu.dot_dimension_numbers<[1], [0], [0], [1], [0, 0, 1, 1], [], []>} : vector<32x32xbf16>, vector<32x32xbf16>, vector<32x32xf32> -> vector<32x32xf32>
    %151 = arith.addf %143, %150 : vector<32x32xf32>
    %c7_137 = arith.constant 7 : index
    %c0_138 = arith.constant 0 : index
    %c0_139 = arith.constant 0 : index
    %152 = vector.load %arg5[%c7_137, %c0_138, %c0_139] : memref<9x32x32xbf16, #tpu.memory_space<vmem>>, vector<1x32x32xbf16>
    %153 = vector.shape_cast %152 : vector<1x32x32xbf16> to vector<32x32xbf16>
    %cst_140 = arith.constant dense<0.000000e+00> : vector<32x32xf32>
    %154 = tpu.matmul %153, %94, %cst_140 {dimension_numbers = #tpu.dot_dimension_numbers<[1], [0], [0], [1], [0, 0, 1, 1], [], []>} : vector<32x32xbf16>, vector<32x32xbf16>, vector<32x32xf32> -> vector<32x32xf32>
    %155 = arith.truncf %154 : vector<32x32xf32> to vector<32x32xbf16>
    %c7_141 = arith.constant 7 : index
    %c0_142 = arith.constant 0 : index
    %c0_143 = arith.constant 0 : index
    %156 = vector.load %arg6[%c7_141, %c0_142, %c0_143] : memref<9x32x32xbf16, #tpu.memory_space<vmem>>, vector<1x32x32xbf16>
    %157 = vector.shape_cast %156 : vector<1x32x32xbf16> to vector<32x32xbf16>
    %cst_144 = arith.constant dense<0.000000e+00> : vector<32x32xf32>
    %158 = tpu.matmul %155, %157, %cst_144 {dimension_numbers = #tpu.dot_dimension_numbers<[1], [0], [0], [1], [0, 0, 1, 1], [], []>} : vector<32x32xbf16>, vector<32x32xbf16>, vector<32x32xf32> -> vector<32x32xf32>
    %159 = arith.addf %151, %158 : vector<32x32xf32>
    %c8_145 = arith.constant 8 : index
    %c0_146 = arith.constant 0 : index
    %c0_147 = arith.constant 0 : index
    %160 = vector.load %arg5[%c8_145, %c0_146, %c0_147] : memref<9x32x32xbf16, #tpu.memory_space<vmem>>, vector<1x32x32xbf16>
    %161 = vector.shape_cast %160 : vector<1x32x32xbf16> to vector<32x32xbf16>
    %cst_148 = arith.constant dense<0.000000e+00> : vector<32x32xf32>
    %162 = tpu.matmul %161, %94, %cst_148 {dimension_numbers = #tpu.dot_dimension_numbers<[1], [0], [0], [1], [0, 0, 1, 1], [], []>} : vector<32x32xbf16>, vector<32x32xbf16>, vector<32x32xf32> -> vector<32x32xf32>
    %163 = arith.truncf %162 : vector<32x32xf32> to vector<32x32xbf16>
    %c8_149 = arith.constant 8 : index
    %c0_150 = arith.constant 0 : index
    %c0_151 = arith.constant 0 : index
    %164 = vector.load %arg6[%c8_149, %c0_150, %c0_151] : memref<9x32x32xbf16, #tpu.memory_space<vmem>>, vector<1x32x32xbf16>
    %165 = vector.shape_cast %164 : vector<1x32x32xbf16> to vector<32x32xbf16>
    %cst_152 = arith.constant dense<0.000000e+00> : vector<32x32xf32>
    %166 = tpu.matmul %163, %165, %cst_152 {dimension_numbers = #tpu.dot_dimension_numbers<[1], [0], [0], [1], [0, 0, 1, 1], [], []>} : vector<32x32xbf16>, vector<32x32xbf16>, vector<32x32xf32> -> vector<32x32xf32>
    %167 = arith.addf %159, %166 : vector<32x32xf32>
    %c0_153 = arith.constant 0 : index
    %c0_154 = arith.constant 0 : index
    %168 = vector.load %arg7[%c0_153, %c0_154] : memref<1x32xf32, #tpu.memory_space<vmem>>, vector<1x32xf32>
    %169 = vector.broadcast %168 : vector<1x32xf32> to vector<32x32xf32>
    %170 = arith.mulf %167, %169 : vector<32x32xf32>
    %c0_155 = arith.constant 0 : index
    %c0_156 = arith.constant 0 : index
    %171 = vector.load %arg8[%c0_155, %c0_156] : memref<1x32xf32, #tpu.memory_space<vmem>>, vector<1x32xf32>
    %172 = vector.broadcast %171 : vector<1x32xf32> to vector<32x32xf32>
    %173 = arith.addf %170, %172 : vector<32x32xf32>
    %174 = arith.addf %173, %93 : vector<32x32xf32>
    %cst_157 = arith.constant 0.000000e+00 : f32
    %175 = vector.broadcast %cst_157 : f32 to vector<32x32xf32>
    %176 = arith.maximumf %174, %175 : vector<32x32xf32>
    %c0_158 = arith.constant 0 : index
    %c0_159 = arith.constant 0 : index
    %177 = vector.load %arg13[%c0_158, %c0_159] : memref<32x32xf32, #tpu.memory_space<vmem>>, vector<32x32xf32>
    tpu.vector_store %arg13[%c0_158, %c0_159], %176 {strides = array<i32>} : memref<32x32xf32, #tpu.memory_space<vmem>>, vector<32x32xf32>,
    return
  }
}

module attributes {stable_mosaic.version = 11 : i64} {
  func.func @kernel(%arg0: memref<128x16xf32, #tpu.memory_space<vmem>>, %arg1: memref<9x128x128xbf16, #tpu.memory_space<vmem>>, %arg2: memref<9x16x16xbf16, #tpu.memory_space<vmem>>, %arg3: memref<1x16xf32, #tpu.memory_space<vmem>>, %arg4: memref<1x16xf32, #tpu.memory_space<vmem>>, %arg5: memref<9x128x128xbf16, #tpu.memory_space<vmem>>, %arg6: memref<9x16x16xbf16, #tpu.memory_space<vmem>>, %arg7: memref<1x16xf32, #tpu.memory_space<vmem>>, %arg8: memref<1x16xf32, #tpu.memory_space<vmem>>, %arg9: memref<128x16xf32, #tpu.memory_space<vmem>>) attributes {dimension_semantics = [], scalar_prefetch = 0 : i64, scratch_operands = 0 : i64, tpu.core_type = #tpu.core_type<tc>} {
    %c0 = arith.constant 0 : index
    %c0_0 = arith.constant 0 : index
    %0 = vector.load %arg0[%c0, %c0_0] : memref<128x16xf32, #tpu.memory_space<vmem>>, vector<128x16xf32>
    %1 = arith.truncf %0 : vector<128x16xf32> to vector<128x16xbf16>
    %cst = arith.constant 0.000000e+00 : f32
    %2 = vector.broadcast %cst : f32 to vector<128x16xf32>
    %c0_1 = arith.constant 0 : index
    %c0_2 = arith.constant 0 : index
    %c0_3 = arith.constant 0 : index
    %3 = vector.load %arg1[%c0_1, %c0_2, %c0_3] : memref<9x128x128xbf16, #tpu.memory_space<vmem>>, vector<1x128x128xbf16>
    %4 = vector.shape_cast %3 : vector<1x128x128xbf16> to vector<128x128xbf16>
    %cst_4 = arith.constant dense<0.000000e+00> : vector<128x16xf32>
    %5 = tpu.matmul %4, %1, %cst_4 {dimension_numbers = #tpu.dot_dimension_numbers<[1], [0], [0], [1], [0, 0, 1, 1], [], []>} : vector<128x128xbf16>, vector<128x16xbf16>, vector<128x16xf32> -> vector<128x16xf32>
    %6 = arith.truncf %5 : vector<128x16xf32> to vector<128x16xbf16>
    %c0_5 = arith.constant 0 : index
    %c0_6 = arith.constant 0 : index
    %c0_7 = arith.constant 0 : index
    %7 = vector.load %arg2[%c0_5, %c0_6, %c0_7] : memref<9x16x16xbf16, #tpu.memory_space<vmem>>, vector<1x16x16xbf16>
    %8 = vector.shape_cast %7 : vector<1x16x16xbf16> to vector<16x16xbf16>
    %cst_8 = arith.constant dense<0.000000e+00> : vector<128x16xf32>
    %9 = tpu.matmul %6, %8, %cst_8 {dimension_numbers = #tpu.dot_dimension_numbers<[1], [0], [0], [1], [0, 0, 1, 1], [], []>} : vector<128x16xbf16>, vector<16x16xbf16>, vector<128x16xf32> -> vector<128x16xf32>
    %10 = arith.addf %2, %9 : vector<128x16xf32>
    %c1 = arith.constant 1 : index
    %c0_9 = arith.constant 0 : index
    %c0_10 = arith.constant 0 : index
    %11 = vector.load %arg1[%c1, %c0_9, %c0_10] : memref<9x128x128xbf16, #tpu.memory_space<vmem>>, vector<1x128x128xbf16>
    %12 = vector.shape_cast %11 : vector<1x128x128xbf16> to vector<128x128xbf16>
    %cst_11 = arith.constant dense<0.000000e+00> : vector<128x16xf32>
    %13 = tpu.matmul %12, %1, %cst_11 {dimension_numbers = #tpu.dot_dimension_numbers<[1], [0], [0], [1], [0, 0, 1, 1], [], []>} : vector<128x128xbf16>, vector<128x16xbf16>, vector<128x16xf32> -> vector<128x16xf32>
    %14 = arith.truncf %13 : vector<128x16xf32> to vector<128x16xbf16>
    %c1_12 = arith.constant 1 : index
    %c0_13 = arith.constant 0 : index
    %c0_14 = arith.constant 0 : index
    %15 = vector.load %arg2[%c1_12, %c0_13, %c0_14] : memref<9x16x16xbf16, #tpu.memory_space<vmem>>, vector<1x16x16xbf16>
    %16 = vector.shape_cast %15 : vector<1x16x16xbf16> to vector<16x16xbf16>
    %cst_15 = arith.constant dense<0.000000e+00> : vector<128x16xf32>
    %17 = tpu.matmul %14, %16, %cst_15 {dimension_numbers = #tpu.dot_dimension_numbers<[1], [0], [0], [1], [0, 0, 1, 1], [], []>} : vector<128x16xbf16>, vector<16x16xbf16>, vector<128x16xf32> -> vector<128x16xf32>
    %18 = arith.addf %10, %17 : vector<128x16xf32>
    %c2 = arith.constant 2 : index
    %c0_16 = arith.constant 0 : index
    %c0_17 = arith.constant 0 : index
    %19 = vector.load %arg1[%c2, %c0_16, %c0_17] : memref<9x128x128xbf16, #tpu.memory_space<vmem>>, vector<1x128x128xbf16>
    %20 = vector.shape_cast %19 : vector<1x128x128xbf16> to vector<128x128xbf16>
    %cst_18 = arith.constant dense<0.000000e+00> : vector<128x16xf32>
    %21 = tpu.matmul %20, %1, %cst_18 {dimension_numbers = #tpu.dot_dimension_numbers<[1], [0], [0], [1], [0, 0, 1, 1], [], []>} : vector<128x128xbf16>, vector<128x16xbf16>, vector<128x16xf32> -> vector<128x16xf32>
    %22 = arith.truncf %21 : vector<128x16xf32> to vector<128x16xbf16>
    %c2_19 = arith.constant 2 : index
    %c0_20 = arith.constant 0 : index
    %c0_21 = arith.constant 0 : index
    %23 = vector.load %arg2[%c2_19, %c0_20, %c0_21] : memref<9x16x16xbf16, #tpu.memory_space<vmem>>, vector<1x16x16xbf16>
    %24 = vector.shape_cast %23 : vector<1x16x16xbf16> to vector<16x16xbf16>
    %cst_22 = arith.constant dense<0.000000e+00> : vector<128x16xf32>
    %25 = tpu.matmul %22, %24, %cst_22 {dimension_numbers = #tpu.dot_dimension_numbers<[1], [0], [0], [1], [0, 0, 1, 1], [], []>} : vector<128x16xbf16>, vector<16x16xbf16>, vector<128x16xf32> -> vector<128x16xf32>
    %26 = arith.addf %18, %25 : vector<128x16xf32>
    %c3 = arith.constant 3 : index
    %c0_23 = arith.constant 0 : index
    %c0_24 = arith.constant 0 : index
    %27 = vector.load %arg1[%c3, %c0_23, %c0_24] : memref<9x128x128xbf16, #tpu.memory_space<vmem>>, vector<1x128x128xbf16>
    %28 = vector.shape_cast %27 : vector<1x128x128xbf16> to vector<128x128xbf16>
    %cst_25 = arith.constant dense<0.000000e+00> : vector<128x16xf32>
    %29 = tpu.matmul %28, %1, %cst_25 {dimension_numbers = #tpu.dot_dimension_numbers<[1], [0], [0], [1], [0, 0, 1, 1], [], []>} : vector<128x128xbf16>, vector<128x16xbf16>, vector<128x16xf32> -> vector<128x16xf32>
    %30 = arith.truncf %29 : vector<128x16xf32> to vector<128x16xbf16>
    %c3_26 = arith.constant 3 : index
    %c0_27 = arith.constant 0 : index
    %c0_28 = arith.constant 0 : index
    %31 = vector.load %arg2[%c3_26, %c0_27, %c0_28] : memref<9x16x16xbf16, #tpu.memory_space<vmem>>, vector<1x16x16xbf16>
    %32 = vector.shape_cast %31 : vector<1x16x16xbf16> to vector<16x16xbf16>
    %cst_29 = arith.constant dense<0.000000e+00> : vector<128x16xf32>
    %33 = tpu.matmul %30, %32, %cst_29 {dimension_numbers = #tpu.dot_dimension_numbers<[1], [0], [0], [1], [0, 0, 1, 1], [], []>} : vector<128x16xbf16>, vector<16x16xbf16>, vector<128x16xf32> -> vector<128x16xf32>
    %34 = arith.addf %26, %33 : vector<128x16xf32>
    %c4 = arith.constant 4 : index
    %c0_30 = arith.constant 0 : index
    %c0_31 = arith.constant 0 : index
    %35 = vector.load %arg1[%c4, %c0_30, %c0_31] : memref<9x128x128xbf16, #tpu.memory_space<vmem>>, vector<1x128x128xbf16>
    %36 = vector.shape_cast %35 : vector<1x128x128xbf16> to vector<128x128xbf16>
    %cst_32 = arith.constant dense<0.000000e+00> : vector<128x16xf32>
    %37 = tpu.matmul %36, %1, %cst_32 {dimension_numbers = #tpu.dot_dimension_numbers<[1], [0], [0], [1], [0, 0, 1, 1], [], []>} : vector<128x128xbf16>, vector<128x16xbf16>, vector<128x16xf32> -> vector<128x16xf32>
    %38 = arith.truncf %37 : vector<128x16xf32> to vector<128x16xbf16>
    %c4_33 = arith.constant 4 : index
    %c0_34 = arith.constant 0 : index
    %c0_35 = arith.constant 0 : index
    %39 = vector.load %arg2[%c4_33, %c0_34, %c0_35] : memref<9x16x16xbf16, #tpu.memory_space<vmem>>, vector<1x16x16xbf16>
    %40 = vector.shape_cast %39 : vector<1x16x16xbf16> to vector<16x16xbf16>
    %cst_36 = arith.constant dense<0.000000e+00> : vector<128x16xf32>
    %41 = tpu.matmul %38, %40, %cst_36 {dimension_numbers = #tpu.dot_dimension_numbers<[1], [0], [0], [1], [0, 0, 1, 1], [], []>} : vector<128x16xbf16>, vector<16x16xbf16>, vector<128x16xf32> -> vector<128x16xf32>
    %42 = arith.addf %34, %41 : vector<128x16xf32>
    %c5 = arith.constant 5 : index
    %c0_37 = arith.constant 0 : index
    %c0_38 = arith.constant 0 : index
    %43 = vector.load %arg1[%c5, %c0_37, %c0_38] : memref<9x128x128xbf16, #tpu.memory_space<vmem>>, vector<1x128x128xbf16>
    %44 = vector.shape_cast %43 : vector<1x128x128xbf16> to vector<128x128xbf16>
    %cst_39 = arith.constant dense<0.000000e+00> : vector<128x16xf32>
    %45 = tpu.matmul %44, %1, %cst_39 {dimension_numbers = #tpu.dot_dimension_numbers<[1], [0], [0], [1], [0, 0, 1, 1], [], []>} : vector<128x128xbf16>, vector<128x16xbf16>, vector<128x16xf32> -> vector<128x16xf32>
    %46 = arith.truncf %45 : vector<128x16xf32> to vector<128x16xbf16>
    %c5_40 = arith.constant 5 : index
    %c0_41 = arith.constant 0 : index
    %c0_42 = arith.constant 0 : index
    %47 = vector.load %arg2[%c5_40, %c0_41, %c0_42] : memref<9x16x16xbf16, #tpu.memory_space<vmem>>, vector<1x16x16xbf16>
    %48 = vector.shape_cast %47 : vector<1x16x16xbf16> to vector<16x16xbf16>
    %cst_43 = arith.constant dense<0.000000e+00> : vector<128x16xf32>
    %49 = tpu.matmul %46, %48, %cst_43 {dimension_numbers = #tpu.dot_dimension_numbers<[1], [0], [0], [1], [0, 0, 1, 1], [], []>} : vector<128x16xbf16>, vector<16x16xbf16>, vector<128x16xf32> -> vector<128x16xf32>
    %50 = arith.addf %42, %49 : vector<128x16xf32>
    %c6 = arith.constant 6 : index
    %c0_44 = arith.constant 0 : index
    %c0_45 = arith.constant 0 : index
    %51 = vector.load %arg1[%c6, %c0_44, %c0_45] : memref<9x128x128xbf16, #tpu.memory_space<vmem>>, vector<1x128x128xbf16>
    %52 = vector.shape_cast %51 : vector<1x128x128xbf16> to vector<128x128xbf16>
    %cst_46 = arith.constant dense<0.000000e+00> : vector<128x16xf32>
    %53 = tpu.matmul %52, %1, %cst_46 {dimension_numbers = #tpu.dot_dimension_numbers<[1], [0], [0], [1], [0, 0, 1, 1], [], []>} : vector<128x128xbf16>, vector<128x16xbf16>, vector<128x16xf32> -> vector<128x16xf32>
    %54 = arith.truncf %53 : vector<128x16xf32> to vector<128x16xbf16>
    %c6_47 = arith.constant 6 : index
    %c0_48 = arith.constant 0 : index
    %c0_49 = arith.constant 0 : index
    %55 = vector.load %arg2[%c6_47, %c0_48, %c0_49] : memref<9x16x16xbf16, #tpu.memory_space<vmem>>, vector<1x16x16xbf16>
    %56 = vector.shape_cast %55 : vector<1x16x16xbf16> to vector<16x16xbf16>
    %cst_50 = arith.constant dense<0.000000e+00> : vector<128x16xf32>
    %57 = tpu.matmul %54, %56, %cst_50 {dimension_numbers = #tpu.dot_dimension_numbers<[1], [0], [0], [1], [0, 0, 1, 1], [], []>} : vector<128x16xbf16>, vector<16x16xbf16>, vector<128x16xf32> -> vector<128x16xf32>
    %58 = arith.addf %50, %57 : vector<128x16xf32>
    %c7 = arith.constant 7 : index
    %c0_51 = arith.constant 0 : index
    %c0_52 = arith.constant 0 : index
    %59 = vector.load %arg1[%c7, %c0_51, %c0_52] : memref<9x128x128xbf16, #tpu.memory_space<vmem>>, vector<1x128x128xbf16>
    %60 = vector.shape_cast %59 : vector<1x128x128xbf16> to vector<128x128xbf16>
    %cst_53 = arith.constant dense<0.000000e+00> : vector<128x16xf32>
    %61 = tpu.matmul %60, %1, %cst_53 {dimension_numbers = #tpu.dot_dimension_numbers<[1], [0], [0], [1], [0, 0, 1, 1], [], []>} : vector<128x128xbf16>, vector<128x16xbf16>, vector<128x16xf32> -> vector<128x16xf32>
    %62 = arith.truncf %61 : vector<128x16xf32> to vector<128x16xbf16>
    %c7_54 = arith.constant 7 : index
    %c0_55 = arith.constant 0 : index
    %c0_56 = arith.constant 0 : index
    %63 = vector.load %arg2[%c7_54, %c0_55, %c0_56] : memref<9x16x16xbf16, #tpu.memory_space<vmem>>, vector<1x16x16xbf16>
    %64 = vector.shape_cast %63 : vector<1x16x16xbf16> to vector<16x16xbf16>
    %cst_57 = arith.constant dense<0.000000e+00> : vector<128x16xf32>
    %65 = tpu.matmul %62, %64, %cst_57 {dimension_numbers = #tpu.dot_dimension_numbers<[1], [0], [0], [1], [0, 0, 1, 1], [], []>} : vector<128x16xbf16>, vector<16x16xbf16>, vector<128x16xf32> -> vector<128x16xf32>
    %66 = arith.addf %58, %65 : vector<128x16xf32>
    %c8 = arith.constant 8 : index
    %c0_58 = arith.constant 0 : index
    %c0_59 = arith.constant 0 : index
    %67 = vector.load %arg1[%c8, %c0_58, %c0_59] : memref<9x128x128xbf16, #tpu.memory_space<vmem>>, vector<1x128x128xbf16>
    %68 = vector.shape_cast %67 : vector<1x128x128xbf16> to vector<128x128xbf16>
    %cst_60 = arith.constant dense<0.000000e+00> : vector<128x16xf32>
    %69 = tpu.matmul %68, %1, %cst_60 {dimension_numbers = #tpu.dot_dimension_numbers<[1], [0], [0], [1], [0, 0, 1, 1], [], []>} : vector<128x128xbf16>, vector<128x16xbf16>, vector<128x16xf32> -> vector<128x16xf32>
    %70 = arith.truncf %69 : vector<128x16xf32> to vector<128x16xbf16>
    %c8_61 = arith.constant 8 : index
    %c0_62 = arith.constant 0 : index
    %c0_63 = arith.constant 0 : index
    %71 = vector.load %arg2[%c8_61, %c0_62, %c0_63] : memref<9x16x16xbf16, #tpu.memory_space<vmem>>, vector<1x16x16xbf16>
    %72 = vector.shape_cast %71 : vector<1x16x16xbf16> to vector<16x16xbf16>
    %cst_64 = arith.constant dense<0.000000e+00> : vector<128x16xf32>
    %73 = tpu.matmul %70, %72, %cst_64 {dimension_numbers = #tpu.dot_dimension_numbers<[1], [0], [0], [1], [0, 0, 1, 1], [], []>} : vector<128x16xbf16>, vector<16x16xbf16>, vector<128x16xf32> -> vector<128x16xf32>
    %74 = arith.addf %66, %73 : vector<128x16xf32>
    %c0_65 = arith.constant 0 : index
    %c0_66 = arith.constant 0 : index
    %75 = vector.load %arg3[%c0_65, %c0_66] : memref<1x16xf32, #tpu.memory_space<vmem>>, vector<1x16xf32>
    %76 = vector.broadcast %75 : vector<1x16xf32> to vector<128x16xf32>
    %77 = arith.mulf %74, %76 : vector<128x16xf32>
    %c0_67 = arith.constant 0 : index
    %c0_68 = arith.constant 0 : index
    %78 = vector.load %arg4[%c0_67, %c0_68] : memref<1x16xf32, #tpu.memory_space<vmem>>, vector<1x16xf32>
    %79 = vector.broadcast %78 : vector<1x16xf32> to vector<128x16xf32>
    %80 = arith.addf %77, %79 : vector<128x16xf32>
    %cst_69 = arith.constant 0.000000e+00 : f32
    %81 = vector.broadcast %cst_69 : f32 to vector<128x16xf32>
    %82 = arith.maximumf %80, %81 : vector<128x16xf32>
    %83 = arith.truncf %82 : vector<128x16xf32> to vector<128x16xbf16>
    %cst_70 = arith.constant 0.000000e+00 : f32
    %84 = vector.broadcast %cst_70 : f32 to vector<128x16xf32>
    %c0_71 = arith.constant 0 : index
    %c0_72 = arith.constant 0 : index
    %c0_73 = arith.constant 0 : index
    %85 = vector.load %arg5[%c0_71, %c0_72, %c0_73] : memref<9x128x128xbf16, #tpu.memory_space<vmem>>, vector<1x128x128xbf16>
    %86 = vector.shape_cast %85 : vector<1x128x128xbf16> to vector<128x128xbf16>
    %cst_74 = arith.constant dense<0.000000e+00> : vector<128x16xf32>
    %87 = tpu.matmul %86, %83, %cst_74 {dimension_numbers = #tpu.dot_dimension_numbers<[1], [0], [0], [1], [0, 0, 1, 1], [], []>} : vector<128x128xbf16>, vector<128x16xbf16>, vector<128x16xf32> -> vector<128x16xf32>
    %88 = arith.truncf %87 : vector<128x16xf32> to vector<128x16xbf16>
    %c0_75 = arith.constant 0 : index
    %c0_76 = arith.constant 0 : index
    %c0_77 = arith.constant 0 : index
    %89 = vector.load %arg6[%c0_75, %c0_76, %c0_77] : memref<9x16x16xbf16, #tpu.memory_space<vmem>>, vector<1x16x16xbf16>
    %90 = vector.shape_cast %89 : vector<1x16x16xbf16> to vector<16x16xbf16>
    %cst_78 = arith.constant dense<0.000000e+00> : vector<128x16xf32>
    %91 = tpu.matmul %88, %90, %cst_78 {dimension_numbers = #tpu.dot_dimension_numbers<[1], [0], [0], [1], [0, 0, 1, 1], [], []>} : vector<128x16xbf16>, vector<16x16xbf16>, vector<128x16xf32> -> vector<128x16xf32>
    %92 = arith.addf %84, %91 : vector<128x16xf32>
    %c1_79 = arith.constant 1 : index
    %c0_80 = arith.constant 0 : index
    %c0_81 = arith.constant 0 : index
    %93 = vector.load %arg5[%c1_79, %c0_80, %c0_81] : memref<9x128x128xbf16, #tpu.memory_space<vmem>>, vector<1x128x128xbf16>
    %94 = vector.shape_cast %93 : vector<1x128x128xbf16> to vector<128x128xbf16>
    %cst_82 = arith.constant dense<0.000000e+00> : vector<128x16xf32>
    %95 = tpu.matmul %94, %83, %cst_82 {dimension_numbers = #tpu.dot_dimension_numbers<[1], [0], [0], [1], [0, 0, 1, 1], [], []>} : vector<128x128xbf16>, vector<128x16xbf16>, vector<128x16xf32> -> vector<128x16xf32>
    %96 = arith.truncf %95 : vector<128x16xf32> to vector<128x16xbf16>
    %c1_83 = arith.constant 1 : index
    %c0_84 = arith.constant 0 : index
    %c0_85 = arith.constant 0 : index
    %97 = vector.load %arg6[%c1_83, %c0_84, %c0_85] : memref<9x16x16xbf16, #tpu.memory_space<vmem>>, vector<1x16x16xbf16>
    %98 = vector.shape_cast %97 : vector<1x16x16xbf16> to vector<16x16xbf16>
    %cst_86 = arith.constant dense<0.000000e+00> : vector<128x16xf32>
    %99 = tpu.matmul %96, %98, %cst_86 {dimension_numbers = #tpu.dot_dimension_numbers<[1], [0], [0], [1], [0, 0, 1, 1], [], []>} : vector<128x16xbf16>, vector<16x16xbf16>, vector<128x16xf32> -> vector<128x16xf32>
    %100 = arith.addf %92, %99 : vector<128x16xf32>
    %c2_87 = arith.constant 2 : index
    %c0_88 = arith.constant 0 : index
    %c0_89 = arith.constant 0 : index
    %101 = vector.load %arg5[%c2_87, %c0_88, %c0_89] : memref<9x128x128xbf16, #tpu.memory_space<vmem>>, vector<1x128x128xbf16>
    %102 = vector.shape_cast %101 : vector<1x128x128xbf16> to vector<128x128xbf16>
    %cst_90 = arith.constant dense<0.000000e+00> : vector<128x16xf32>
    %103 = tpu.matmul %102, %83, %cst_90 {dimension_numbers = #tpu.dot_dimension_numbers<[1], [0], [0], [1], [0, 0, 1, 1], [], []>} : vector<128x128xbf16>, vector<128x16xbf16>, vector<128x16xf32> -> vector<128x16xf32>
    %104 = arith.truncf %103 : vector<128x16xf32> to vector<128x16xbf16>
    %c2_91 = arith.constant 2 : index
    %c0_92 = arith.constant 0 : index
    %c0_93 = arith.constant 0 : index
    %105 = vector.load %arg6[%c2_91, %c0_92, %c0_93] : memref<9x16x16xbf16, #tpu.memory_space<vmem>>, vector<1x16x16xbf16>
    %106 = vector.shape_cast %105 : vector<1x16x16xbf16> to vector<16x16xbf16>
    %cst_94 = arith.constant dense<0.000000e+00> : vector<128x16xf32>
    %107 = tpu.matmul %104, %106, %cst_94 {dimension_numbers = #tpu.dot_dimension_numbers<[1], [0], [0], [1], [0, 0, 1, 1], [], []>} : vector<128x16xbf16>, vector<16x16xbf16>, vector<128x16xf32> -> vector<128x16xf32>
    %108 = arith.addf %100, %107 : vector<128x16xf32>
    %c3_95 = arith.constant 3 : index
    %c0_96 = arith.constant 0 : index
    %c0_97 = arith.constant 0 : index
    %109 = vector.load %arg5[%c3_95, %c0_96, %c0_97] : memref<9x128x128xbf16, #tpu.memory_space<vmem>>, vector<1x128x128xbf16>
    %110 = vector.shape_cast %109 : vector<1x128x128xbf16> to vector<128x128xbf16>
    %cst_98 = arith.constant dense<0.000000e+00> : vector<128x16xf32>
    %111 = tpu.matmul %110, %83, %cst_98 {dimension_numbers = #tpu.dot_dimension_numbers<[1], [0], [0], [1], [0, 0, 1, 1], [], []>} : vector<128x128xbf16>, vector<128x16xbf16>, vector<128x16xf32> -> vector<128x16xf32>
    %112 = arith.truncf %111 : vector<128x16xf32> to vector<128x16xbf16>
    %c3_99 = arith.constant 3 : index
    %c0_100 = arith.constant 0 : index
    %c0_101 = arith.constant 0 : index
    %113 = vector.load %arg6[%c3_99, %c0_100, %c0_101] : memref<9x16x16xbf16, #tpu.memory_space<vmem>>, vector<1x16x16xbf16>
    %114 = vector.shape_cast %113 : vector<1x16x16xbf16> to vector<16x16xbf16>
    %cst_102 = arith.constant dense<0.000000e+00> : vector<128x16xf32>
    %115 = tpu.matmul %112, %114, %cst_102 {dimension_numbers = #tpu.dot_dimension_numbers<[1], [0], [0], [1], [0, 0, 1, 1], [], []>} : vector<128x16xbf16>, vector<16x16xbf16>, vector<128x16xf32> -> vector<128x16xf32>
    %116 = arith.addf %108, %115 : vector<128x16xf32>
    %c4_103 = arith.constant 4 : index
    %c0_104 = arith.constant 0 : index
    %c0_105 = arith.constant 0 : index
    %117 = vector.load %arg5[%c4_103, %c0_104, %c0_105] : memref<9x128x128xbf16, #tpu.memory_space<vmem>>, vector<1x128x128xbf16>
    %118 = vector.shape_cast %117 : vector<1x128x128xbf16> to vector<128x128xbf16>
    %cst_106 = arith.constant dense<0.000000e+00> : vector<128x16xf32>
    %119 = tpu.matmul %118, %83, %cst_106 {dimension_numbers = #tpu.dot_dimension_numbers<[1], [0], [0], [1], [0, 0, 1, 1], [], []>} : vector<128x128xbf16>, vector<128x16xbf16>, vector<128x16xf32> -> vector<128x16xf32>
    %120 = arith.truncf %119 : vector<128x16xf32> to vector<128x16xbf16>
    %c4_107 = arith.constant 4 : index
    %c0_108 = arith.constant 0 : index
    %c0_109 = arith.constant 0 : index
    %121 = vector.load %arg6[%c4_107, %c0_108, %c0_109] : memref<9x16x16xbf16, #tpu.memory_space<vmem>>, vector<1x16x16xbf16>
    %122 = vector.shape_cast %121 : vector<1x16x16xbf16> to vector<16x16xbf16>
    %cst_110 = arith.constant dense<0.000000e+00> : vector<128x16xf32>
    %123 = tpu.matmul %120, %122, %cst_110 {dimension_numbers = #tpu.dot_dimension_numbers<[1], [0], [0], [1], [0, 0, 1, 1], [], []>} : vector<128x16xbf16>, vector<16x16xbf16>, vector<128x16xf32> -> vector<128x16xf32>
    %124 = arith.addf %116, %123 : vector<128x16xf32>
    %c5_111 = arith.constant 5 : index
    %c0_112 = arith.constant 0 : index
    %c0_113 = arith.constant 0 : index
    %125 = vector.load %arg5[%c5_111, %c0_112, %c0_113] : memref<9x128x128xbf16, #tpu.memory_space<vmem>>, vector<1x128x128xbf16>
    %126 = vector.shape_cast %125 : vector<1x128x128xbf16> to vector<128x128xbf16>
    %cst_114 = arith.constant dense<0.000000e+00> : vector<128x16xf32>
    %127 = tpu.matmul %126, %83, %cst_114 {dimension_numbers = #tpu.dot_dimension_numbers<[1], [0], [0], [1], [0, 0, 1, 1], [], []>} : vector<128x128xbf16>, vector<128x16xbf16>, vector<128x16xf32> -> vector<128x16xf32>
    %128 = arith.truncf %127 : vector<128x16xf32> to vector<128x16xbf16>
    %c5_115 = arith.constant 5 : index
    %c0_116 = arith.constant 0 : index
    %c0_117 = arith.constant 0 : index
    %129 = vector.load %arg6[%c5_115, %c0_116, %c0_117] : memref<9x16x16xbf16, #tpu.memory_space<vmem>>, vector<1x16x16xbf16>
    %130 = vector.shape_cast %129 : vector<1x16x16xbf16> to vector<16x16xbf16>
    %cst_118 = arith.constant dense<0.000000e+00> : vector<128x16xf32>
    %131 = tpu.matmul %128, %130, %cst_118 {dimension_numbers = #tpu.dot_dimension_numbers<[1], [0], [0], [1], [0, 0, 1, 1], [], []>} : vector<128x16xbf16>, vector<16x16xbf16>, vector<128x16xf32> -> vector<128x16xf32>
    %132 = arith.addf %124, %131 : vector<128x16xf32>
    %c6_119 = arith.constant 6 : index
    %c0_120 = arith.constant 0 : index
    %c0_121 = arith.constant 0 : index
    %133 = vector.load %arg5[%c6_119, %c0_120, %c0_121] : memref<9x128x128xbf16, #tpu.memory_space<vmem>>, vector<1x128x128xbf16>
    %134 = vector.shape_cast %133 : vector<1x128x128xbf16> to vector<128x128xbf16>
    %cst_122 = arith.constant dense<0.000000e+00> : vector<128x16xf32>
    %135 = tpu.matmul %134, %83, %cst_122 {dimension_numbers = #tpu.dot_dimension_numbers<[1], [0], [0], [1], [0, 0, 1, 1], [], []>} : vector<128x128xbf16>, vector<128x16xbf16>, vector<128x16xf32> -> vector<128x16xf32>
    %136 = arith.truncf %135 : vector<128x16xf32> to vector<128x16xbf16>
    %c6_123 = arith.constant 6 : index
    %c0_124 = arith.constant 0 : index
    %c0_125 = arith.constant 0 : index
    %137 = vector.load %arg6[%c6_123, %c0_124, %c0_125] : memref<9x16x16xbf16, #tpu.memory_space<vmem>>, vector<1x16x16xbf16>
    %138 = vector.shape_cast %137 : vector<1x16x16xbf16> to vector<16x16xbf16>
    %cst_126 = arith.constant dense<0.000000e+00> : vector<128x16xf32>
    %139 = tpu.matmul %136, %138, %cst_126 {dimension_numbers = #tpu.dot_dimension_numbers<[1], [0], [0], [1], [0, 0, 1, 1], [], []>} : vector<128x16xbf16>, vector<16x16xbf16>, vector<128x16xf32> -> vector<128x16xf32>
    %140 = arith.addf %132, %139 : vector<128x16xf32>
    %c7_127 = arith.constant 7 : index
    %c0_128 = arith.constant 0 : index
    %c0_129 = arith.constant 0 : index
    %141 = vector.load %arg5[%c7_127, %c0_128, %c0_129] : memref<9x128x128xbf16, #tpu.memory_space<vmem>>, vector<1x128x128xbf16>
    %142 = vector.shape_cast %141 : vector<1x128x128xbf16> to vector<128x128xbf16>
    %cst_130 = arith.constant dense<0.000000e+00> : vector<128x16xf32>
    %143 = tpu.matmul %142, %83, %cst_130 {dimension_numbers = #tpu.dot_dimension_numbers<[1], [0], [0], [1], [0, 0, 1, 1], [], []>} : vector<128x128xbf16>, vector<128x16xbf16>, vector<128x16xf32> -> vector<128x16xf32>
    %144 = arith.truncf %143 : vector<128x16xf32> to vector<128x16xbf16>
    %c7_131 = arith.constant 7 : index
    %c0_132 = arith.constant 0 : index
    %c0_133 = arith.constant 0 : index
    %145 = vector.load %arg6[%c7_131, %c0_132, %c0_133] : memref<9x16x16xbf16, #tpu.memory_space<vmem>>, vector<1x16x16xbf16>
    %146 = vector.shape_cast %145 : vector<1x16x16xbf16> to vector<16x16xbf16>
    %cst_134 = arith.constant dense<0.000000e+00> : vector<128x16xf32>
    %147 = tpu.matmul %144, %146, %cst_134 {dimension_numbers = #tpu.dot_dimension_numbers<[1], [0], [0], [1], [0, 0, 1, 1], [], []>} : vector<128x16xbf16>, vector<16x16xbf16>, vector<128x16xf32> -> vector<128x16xf32>
    %148 = arith.addf %140, %147 : vector<128x16xf32>
    %c8_135 = arith.constant 8 : index
    %c0_136 = arith.constant 0 : index
    %c0_137 = arith.constant 0 : index
    %149 = vector.load %arg5[%c8_135, %c0_136, %c0_137] : memref<9x128x128xbf16, #tpu.memory_space<vmem>>, vector<1x128x128xbf16>
    %150 = vector.shape_cast %149 : vector<1x128x128xbf16> to vector<128x128xbf16>
    %cst_138 = arith.constant dense<0.000000e+00> : vector<128x16xf32>
    %151 = tpu.matmul %150, %83, %cst_138 {dimension_numbers = #tpu.dot_dimension_numbers<[1], [0], [0], [1], [0, 0, 1, 1], [], []>} : vector<128x128xbf16>, vector<128x16xbf16>, vector<128x16xf32> -> vector<128x16xf32>
    %152 = arith.truncf %151 : vector<128x16xf32> to vector<128x16xbf16>
    %c8_139 = arith.constant 8 : index
    %c0_140 = arith.constant 0 : index
    %c0_141 = arith.constant 0 : index
    %153 = vector.load %arg6[%c8_139, %c0_140, %c0_141] : memref<9x16x16xbf16, #tpu.memory_space<vmem>>, vector<1x16x16xbf16>
    %154 = vector.shape_cast %153 : vector<1x16x16xbf16> to vector<16x16xbf16>
    %cst_142 = arith.constant dense<0.000000e+00> : vector<128x16xf32>
    %155 = tpu.matmul %152, %154, %cst_142 {dimension_numbers = #tpu.dot_dimension_numbers<[1], [0], [0], [1], [0, 0, 1, 1], [], []>} : vector<128x16xbf16>, vector<16x16xbf16>, vector<128x16xf32> -> vector<128x16xf32>
    %156 = arith.addf %148, %155 : vector<128x16xf32>
    %c0_143 = arith.constant 0 : index
    %c0_144 = arith.constant 0 : index
    %157 = vector.load %arg7[%c0_143, %c0_144] : memref<1x16xf32, #tpu.memory_space<vmem>>, vector<1x16xf32>
    %158 = vector.broadcast %157 : vector<1x16xf32> to vector<128x16xf32>
    %159 = arith.mulf %156, %158 : vector<128x16xf32>
    %c0_145 = arith.constant 0 : index
    %c0_146 = arith.constant 0 : index
    %160 = vector.load %arg8[%c0_145, %c0_146] : memref<1x16xf32, #tpu.memory_space<vmem>>, vector<1x16xf32>
    %161 = vector.broadcast %160 : vector<1x16xf32> to vector<128x16xf32>
    %162 = arith.addf %159, %161 : vector<128x16xf32>
    %163 = arith.addf %162, %0 : vector<128x16xf32>
    %cst_147 = arith.constant 0.000000e+00 : f32
    %164 = vector.broadcast %cst_147 : f32 to vector<128x16xf32>
    %165 = arith.maximumf %163, %164 : vector<128x16xf32>
    %c0_148 = arith.constant 0 : index
    %c0_149 = arith.constant 0 : index
    %166 = vector.load %arg9[%c0_148, %c0_149] : memref<128x16xf32, #tpu.memory_space<vmem>>, vector<128x16xf32>
    tpu.vector_store %arg9[%c0_148, %c0_149], %165 {strides = array<i32>} : memref<128x16xf32, #tpu.memory_space<vmem>>, vector<128x16xf32>,
    return
  }
}

module attributes {stable_mosaic.version = 11 : i64} {
  func.func @kernel(%arg0: memref<32x32xf32, #tpu.memory_space<vmem>>, %arg1: memref<9x8x32xbf16, #tpu.memory_space<vmem>>, %arg2: memref<9x32x64xbf16, #tpu.memory_space<vmem>>, %arg3: memref<1x64xf32, #tpu.memory_space<vmem>>, %arg4: memref<1x64xf32, #tpu.memory_space<vmem>>, %arg5: memref<9x8x8xbf16, #tpu.memory_space<vmem>>, %arg6: memref<9x64x64xbf16, #tpu.memory_space<vmem>>, %arg7: memref<1x64xf32, #tpu.memory_space<vmem>>, %arg8: memref<1x64xf32, #tpu.memory_space<vmem>>, %arg9: memref<8x32xbf16, #tpu.memory_space<vmem>>, %arg10: memref<32x64xbf16, #tpu.memory_space<vmem>>, %arg11: memref<1x64xf32, #tpu.memory_space<vmem>>, %arg12: memref<1x64xf32, #tpu.memory_space<vmem>>, %arg13: memref<8x64xf32, #tpu.memory_space<vmem>>) attributes {dimension_semantics = [], scalar_prefetch = 0 : i64, scratch_operands = 0 : i64, tpu.core_type = #tpu.core_type<tc>} {
    %c0 = arith.constant 0 : index
    %c0_0 = arith.constant 0 : index
    %0 = vector.load %arg0[%c0, %c0_0] : memref<32x32xf32, #tpu.memory_space<vmem>>, vector<32x32xf32>
    %1 = arith.truncf %0 : vector<32x32xf32> to vector<32x32xbf16>
    %cst = arith.constant 0.000000e+00 : f32
    %2 = vector.broadcast %cst : f32 to vector<8x64xf32>
    %c0_1 = arith.constant 0 : index
    %c0_2 = arith.constant 0 : index
    %c0_3 = arith.constant 0 : index
    %3 = vector.load %arg1[%c0_1, %c0_2, %c0_3] : memref<9x8x32xbf16, #tpu.memory_space<vmem>>, vector<1x8x32xbf16>
    %4 = vector.shape_cast %3 : vector<1x8x32xbf16> to vector<8x32xbf16>
    %cst_4 = arith.constant dense<0.000000e+00> : vector<8x32xf32>
    %5 = tpu.matmul %4, %1, %cst_4 {dimension_numbers = #tpu.dot_dimension_numbers<[1], [0], [0], [1], [0, 0, 1, 1], [], []>} : vector<8x32xbf16>, vector<32x32xbf16>, vector<8x32xf32> -> vector<8x32xf32>
    %6 = arith.truncf %5 : vector<8x32xf32> to vector<8x32xbf16>
    %c0_5 = arith.constant 0 : index
    %c0_6 = arith.constant 0 : index
    %c0_7 = arith.constant 0 : index
    %7 = vector.load %arg2[%c0_5, %c0_6, %c0_7] : memref<9x32x64xbf16, #tpu.memory_space<vmem>>, vector<1x32x64xbf16>
    %8 = vector.shape_cast %7 : vector<1x32x64xbf16> to vector<32x64xbf16>
    %cst_8 = arith.constant dense<0.000000e+00> : vector<8x64xf32>
    %9 = tpu.matmul %6, %8, %cst_8 {dimension_numbers = #tpu.dot_dimension_numbers<[1], [0], [0], [1], [0, 0, 1, 1], [], []>} : vector<8x32xbf16>, vector<32x64xbf16>, vector<8x64xf32> -> vector<8x64xf32>
    %10 = arith.addf %2, %9 : vector<8x64xf32>
    %c1 = arith.constant 1 : index
    %c0_9 = arith.constant 0 : index
    %c0_10 = arith.constant 0 : index
    %11 = vector.load %arg1[%c1, %c0_9, %c0_10] : memref<9x8x32xbf16, #tpu.memory_space<vmem>>, vector<1x8x32xbf16>
    %12 = vector.shape_cast %11 : vector<1x8x32xbf16> to vector<8x32xbf16>
    %cst_11 = arith.constant dense<0.000000e+00> : vector<8x32xf32>
    %13 = tpu.matmul %12, %1, %cst_11 {dimension_numbers = #tpu.dot_dimension_numbers<[1], [0], [0], [1], [0, 0, 1, 1], [], []>} : vector<8x32xbf16>, vector<32x32xbf16>, vector<8x32xf32> -> vector<8x32xf32>
    %14 = arith.truncf %13 : vector<8x32xf32> to vector<8x32xbf16>
    %c1_12 = arith.constant 1 : index
    %c0_13 = arith.constant 0 : index
    %c0_14 = arith.constant 0 : index
    %15 = vector.load %arg2[%c1_12, %c0_13, %c0_14] : memref<9x32x64xbf16, #tpu.memory_space<vmem>>, vector<1x32x64xbf16>
    %16 = vector.shape_cast %15 : vector<1x32x64xbf16> to vector<32x64xbf16>
    %cst_15 = arith.constant dense<0.000000e+00> : vector<8x64xf32>
    %17 = tpu.matmul %14, %16, %cst_15 {dimension_numbers = #tpu.dot_dimension_numbers<[1], [0], [0], [1], [0, 0, 1, 1], [], []>} : vector<8x32xbf16>, vector<32x64xbf16>, vector<8x64xf32> -> vector<8x64xf32>
    %18 = arith.addf %10, %17 : vector<8x64xf32>
    %c2 = arith.constant 2 : index
    %c0_16 = arith.constant 0 : index
    %c0_17 = arith.constant 0 : index
    %19 = vector.load %arg1[%c2, %c0_16, %c0_17] : memref<9x8x32xbf16, #tpu.memory_space<vmem>>, vector<1x8x32xbf16>
    %20 = vector.shape_cast %19 : vector<1x8x32xbf16> to vector<8x32xbf16>
    %cst_18 = arith.constant dense<0.000000e+00> : vector<8x32xf32>
    %21 = tpu.matmul %20, %1, %cst_18 {dimension_numbers = #tpu.dot_dimension_numbers<[1], [0], [0], [1], [0, 0, 1, 1], [], []>} : vector<8x32xbf16>, vector<32x32xbf16>, vector<8x32xf32> -> vector<8x32xf32>
    %22 = arith.truncf %21 : vector<8x32xf32> to vector<8x32xbf16>
    %c2_19 = arith.constant 2 : index
    %c0_20 = arith.constant 0 : index
    %c0_21 = arith.constant 0 : index
    %23 = vector.load %arg2[%c2_19, %c0_20, %c0_21] : memref<9x32x64xbf16, #tpu.memory_space<vmem>>, vector<1x32x64xbf16>
    %24 = vector.shape_cast %23 : vector<1x32x64xbf16> to vector<32x64xbf16>
    %cst_22 = arith.constant dense<0.000000e+00> : vector<8x64xf32>
    %25 = tpu.matmul %22, %24, %cst_22 {dimension_numbers = #tpu.dot_dimension_numbers<[1], [0], [0], [1], [0, 0, 1, 1], [], []>} : vector<8x32xbf16>, vector<32x64xbf16>, vector<8x64xf32> -> vector<8x64xf32>
    %26 = arith.addf %18, %25 : vector<8x64xf32>
    %c3 = arith.constant 3 : index
    %c0_23 = arith.constant 0 : index
    %c0_24 = arith.constant 0 : index
    %27 = vector.load %arg1[%c3, %c0_23, %c0_24] : memref<9x8x32xbf16, #tpu.memory_space<vmem>>, vector<1x8x32xbf16>
    %28 = vector.shape_cast %27 : vector<1x8x32xbf16> to vector<8x32xbf16>
    %cst_25 = arith.constant dense<0.000000e+00> : vector<8x32xf32>
    %29 = tpu.matmul %28, %1, %cst_25 {dimension_numbers = #tpu.dot_dimension_numbers<[1], [0], [0], [1], [0, 0, 1, 1], [], []>} : vector<8x32xbf16>, vector<32x32xbf16>, vector<8x32xf32> -> vector<8x32xf32>
    %30 = arith.truncf %29 : vector<8x32xf32> to vector<8x32xbf16>
    %c3_26 = arith.constant 3 : index
    %c0_27 = arith.constant 0 : index
    %c0_28 = arith.constant 0 : index
    %31 = vector.load %arg2[%c3_26, %c0_27, %c0_28] : memref<9x32x64xbf16, #tpu.memory_space<vmem>>, vector<1x32x64xbf16>
    %32 = vector.shape_cast %31 : vector<1x32x64xbf16> to vector<32x64xbf16>
    %cst_29 = arith.constant dense<0.000000e+00> : vector<8x64xf32>
    %33 = tpu.matmul %30, %32, %cst_29 {dimension_numbers = #tpu.dot_dimension_numbers<[1], [0], [0], [1], [0, 0, 1, 1], [], []>} : vector<8x32xbf16>, vector<32x64xbf16>, vector<8x64xf32> -> vector<8x64xf32>
    %34 = arith.addf %26, %33 : vector<8x64xf32>
    %c4 = arith.constant 4 : index
    %c0_30 = arith.constant 0 : index
    %c0_31 = arith.constant 0 : index
    %35 = vector.load %arg1[%c4, %c0_30, %c0_31] : memref<9x8x32xbf16, #tpu.memory_space<vmem>>, vector<1x8x32xbf16>
    %36 = vector.shape_cast %35 : vector<1x8x32xbf16> to vector<8x32xbf16>
    %cst_32 = arith.constant dense<0.000000e+00> : vector<8x32xf32>
    %37 = tpu.matmul %36, %1, %cst_32 {dimension_numbers = #tpu.dot_dimension_numbers<[1], [0], [0], [1], [0, 0, 1, 1], [], []>} : vector<8x32xbf16>, vector<32x32xbf16>, vector<8x32xf32> -> vector<8x32xf32>
    %38 = arith.truncf %37 : vector<8x32xf32> to vector<8x32xbf16>
    %c4_33 = arith.constant 4 : index
    %c0_34 = arith.constant 0 : index
    %c0_35 = arith.constant 0 : index
    %39 = vector.load %arg2[%c4_33, %c0_34, %c0_35] : memref<9x32x64xbf16, #tpu.memory_space<vmem>>, vector<1x32x64xbf16>
    %40 = vector.shape_cast %39 : vector<1x32x64xbf16> to vector<32x64xbf16>
    %cst_36 = arith.constant dense<0.000000e+00> : vector<8x64xf32>
    %41 = tpu.matmul %38, %40, %cst_36 {dimension_numbers = #tpu.dot_dimension_numbers<[1], [0], [0], [1], [0, 0, 1, 1], [], []>} : vector<8x32xbf16>, vector<32x64xbf16>, vector<8x64xf32> -> vector<8x64xf32>
    %42 = arith.addf %34, %41 : vector<8x64xf32>
    %c5 = arith.constant 5 : index
    %c0_37 = arith.constant 0 : index
    %c0_38 = arith.constant 0 : index
    %43 = vector.load %arg1[%c5, %c0_37, %c0_38] : memref<9x8x32xbf16, #tpu.memory_space<vmem>>, vector<1x8x32xbf16>
    %44 = vector.shape_cast %43 : vector<1x8x32xbf16> to vector<8x32xbf16>
    %cst_39 = arith.constant dense<0.000000e+00> : vector<8x32xf32>
    %45 = tpu.matmul %44, %1, %cst_39 {dimension_numbers = #tpu.dot_dimension_numbers<[1], [0], [0], [1], [0, 0, 1, 1], [], []>} : vector<8x32xbf16>, vector<32x32xbf16>, vector<8x32xf32> -> vector<8x32xf32>
    %46 = arith.truncf %45 : vector<8x32xf32> to vector<8x32xbf16>
    %c5_40 = arith.constant 5 : index
    %c0_41 = arith.constant 0 : index
    %c0_42 = arith.constant 0 : index
    %47 = vector.load %arg2[%c5_40, %c0_41, %c0_42] : memref<9x32x64xbf16, #tpu.memory_space<vmem>>, vector<1x32x64xbf16>
    %48 = vector.shape_cast %47 : vector<1x32x64xbf16> to vector<32x64xbf16>
    %cst_43 = arith.constant dense<0.000000e+00> : vector<8x64xf32>
    %49 = tpu.matmul %46, %48, %cst_43 {dimension_numbers = #tpu.dot_dimension_numbers<[1], [0], [0], [1], [0, 0, 1, 1], [], []>} : vector<8x32xbf16>, vector<32x64xbf16>, vector<8x64xf32> -> vector<8x64xf32>
    %50 = arith.addf %42, %49 : vector<8x64xf32>
    %c6 = arith.constant 6 : index
    %c0_44 = arith.constant 0 : index
    %c0_45 = arith.constant 0 : index
    %51 = vector.load %arg1[%c6, %c0_44, %c0_45] : memref<9x8x32xbf16, #tpu.memory_space<vmem>>, vector<1x8x32xbf16>
    %52 = vector.shape_cast %51 : vector<1x8x32xbf16> to vector<8x32xbf16>
    %cst_46 = arith.constant dense<0.000000e+00> : vector<8x32xf32>
    %53 = tpu.matmul %52, %1, %cst_46 {dimension_numbers = #tpu.dot_dimension_numbers<[1], [0], [0], [1], [0, 0, 1, 1], [], []>} : vector<8x32xbf16>, vector<32x32xbf16>, vector<8x32xf32> -> vector<8x32xf32>
    %54 = arith.truncf %53 : vector<8x32xf32> to vector<8x32xbf16>
    %c6_47 = arith.constant 6 : index
    %c0_48 = arith.constant 0 : index
    %c0_49 = arith.constant 0 : index
    %55 = vector.load %arg2[%c6_47, %c0_48, %c0_49] : memref<9x32x64xbf16, #tpu.memory_space<vmem>>, vector<1x32x64xbf16>
    %56 = vector.shape_cast %55 : vector<1x32x64xbf16> to vector<32x64xbf16>
    %cst_50 = arith.constant dense<0.000000e+00> : vector<8x64xf32>
    %57 = tpu.matmul %54, %56, %cst_50 {dimension_numbers = #tpu.dot_dimension_numbers<[1], [0], [0], [1], [0, 0, 1, 1], [], []>} : vector<8x32xbf16>, vector<32x64xbf16>, vector<8x64xf32> -> vector<8x64xf32>
    %58 = arith.addf %50, %57 : vector<8x64xf32>
    %c7 = arith.constant 7 : index
    %c0_51 = arith.constant 0 : index
    %c0_52 = arith.constant 0 : index
    %59 = vector.load %arg1[%c7, %c0_51, %c0_52] : memref<9x8x32xbf16, #tpu.memory_space<vmem>>, vector<1x8x32xbf16>
    %60 = vector.shape_cast %59 : vector<1x8x32xbf16> to vector<8x32xbf16>
    %cst_53 = arith.constant dense<0.000000e+00> : vector<8x32xf32>
    %61 = tpu.matmul %60, %1, %cst_53 {dimension_numbers = #tpu.dot_dimension_numbers<[1], [0], [0], [1], [0, 0, 1, 1], [], []>} : vector<8x32xbf16>, vector<32x32xbf16>, vector<8x32xf32> -> vector<8x32xf32>
    %62 = arith.truncf %61 : vector<8x32xf32> to vector<8x32xbf16>
    %c7_54 = arith.constant 7 : index
    %c0_55 = arith.constant 0 : index
    %c0_56 = arith.constant 0 : index
    %63 = vector.load %arg2[%c7_54, %c0_55, %c0_56] : memref<9x32x64xbf16, #tpu.memory_space<vmem>>, vector<1x32x64xbf16>
    %64 = vector.shape_cast %63 : vector<1x32x64xbf16> to vector<32x64xbf16>
    %cst_57 = arith.constant dense<0.000000e+00> : vector<8x64xf32>
    %65 = tpu.matmul %62, %64, %cst_57 {dimension_numbers = #tpu.dot_dimension_numbers<[1], [0], [0], [1], [0, 0, 1, 1], [], []>} : vector<8x32xbf16>, vector<32x64xbf16>, vector<8x64xf32> -> vector<8x64xf32>
    %66 = arith.addf %58, %65 : vector<8x64xf32>
    %c8 = arith.constant 8 : index
    %c0_58 = arith.constant 0 : index
    %c0_59 = arith.constant 0 : index
    %67 = vector.load %arg1[%c8, %c0_58, %c0_59] : memref<9x8x32xbf16, #tpu.memory_space<vmem>>, vector<1x8x32xbf16>
    %68 = vector.shape_cast %67 : vector<1x8x32xbf16> to vector<8x32xbf16>
    %cst_60 = arith.constant dense<0.000000e+00> : vector<8x32xf32>
    %69 = tpu.matmul %68, %1, %cst_60 {dimension_numbers = #tpu.dot_dimension_numbers<[1], [0], [0], [1], [0, 0, 1, 1], [], []>} : vector<8x32xbf16>, vector<32x32xbf16>, vector<8x32xf32> -> vector<8x32xf32>
    %70 = arith.truncf %69 : vector<8x32xf32> to vector<8x32xbf16>
    %c8_61 = arith.constant 8 : index
    %c0_62 = arith.constant 0 : index
    %c0_63 = arith.constant 0 : index
    %71 = vector.load %arg2[%c8_61, %c0_62, %c0_63] : memref<9x32x64xbf16, #tpu.memory_space<vmem>>, vector<1x32x64xbf16>
    %72 = vector.shape_cast %71 : vector<1x32x64xbf16> to vector<32x64xbf16>
    %cst_64 = arith.constant dense<0.000000e+00> : vector<8x64xf32>
    %73 = tpu.matmul %70, %72, %cst_64 {dimension_numbers = #tpu.dot_dimension_numbers<[1], [0], [0], [1], [0, 0, 1, 1], [], []>} : vector<8x32xbf16>, vector<32x64xbf16>, vector<8x64xf32> -> vector<8x64xf32>
    %74 = arith.addf %66, %73 : vector<8x64xf32>
    %c0_65 = arith.constant 0 : index
    %c0_66 = arith.constant 0 : index
    %75 = vector.load %arg3[%c0_65, %c0_66] : memref<1x64xf32, #tpu.memory_space<vmem>>, vector<1x64xf32>
    %76 = vector.broadcast %75 : vector<1x64xf32> to vector<8x64xf32>
    %77 = arith.mulf %74, %76 : vector<8x64xf32>
    %c0_67 = arith.constant 0 : index
    %c0_68 = arith.constant 0 : index
    %78 = vector.load %arg4[%c0_67, %c0_68] : memref<1x64xf32, #tpu.memory_space<vmem>>, vector<1x64xf32>
    %79 = vector.broadcast %78 : vector<1x64xf32> to vector<8x64xf32>
    %80 = arith.addf %77, %79 : vector<8x64xf32>
    %cst_69 = arith.constant 0.000000e+00 : f32
    %81 = vector.broadcast %cst_69 : f32 to vector<8x64xf32>
    %82 = arith.maximumf %80, %81 : vector<8x64xf32>
    %c0_70 = arith.constant 0 : index
    %c0_71 = arith.constant 0 : index
    %83 = vector.load %arg9[%c0_70, %c0_71] : memref<8x32xbf16, #tpu.memory_space<vmem>>, vector<8x32xbf16>
    %cst_72 = arith.constant dense<0.000000e+00> : vector<8x32xf32>
    %84 = tpu.matmul %83, %1, %cst_72 {dimension_numbers = #tpu.dot_dimension_numbers<[1], [0], [0], [1], [0, 0, 1, 1], [], []>} : vector<8x32xbf16>, vector<32x32xbf16>, vector<8x32xf32> -> vector<8x32xf32>
    %85 = arith.truncf %84 : vector<8x32xf32> to vector<8x32xbf16>
    %c0_73 = arith.constant 0 : index
    %c0_74 = arith.constant 0 : index
    %86 = vector.load %arg10[%c0_73, %c0_74] : memref<32x64xbf16, #tpu.memory_space<vmem>>, vector<32x64xbf16>
    %cst_75 = arith.constant dense<0.000000e+00> : vector<8x64xf32>
    %87 = tpu.matmul %85, %86, %cst_75 {dimension_numbers = #tpu.dot_dimension_numbers<[1], [0], [0], [1], [0, 0, 1, 1], [], []>} : vector<8x32xbf16>, vector<32x64xbf16>, vector<8x64xf32> -> vector<8x64xf32>
    %c0_76 = arith.constant 0 : index
    %c0_77 = arith.constant 0 : index
    %88 = vector.load %arg11[%c0_76, %c0_77] : memref<1x64xf32, #tpu.memory_space<vmem>>, vector<1x64xf32>
    %89 = vector.broadcast %88 : vector<1x64xf32> to vector<8x64xf32>
    %90 = arith.mulf %87, %89 : vector<8x64xf32>
    %c0_78 = arith.constant 0 : index
    %c0_79 = arith.constant 0 : index
    %91 = vector.load %arg12[%c0_78, %c0_79] : memref<1x64xf32, #tpu.memory_space<vmem>>, vector<1x64xf32>
    %92 = vector.broadcast %91 : vector<1x64xf32> to vector<8x64xf32>
    %93 = arith.addf %90, %92 : vector<8x64xf32>
    %94 = arith.truncf %82 : vector<8x64xf32> to vector<8x64xbf16>
    %cst_80 = arith.constant 0.000000e+00 : f32
    %95 = vector.broadcast %cst_80 : f32 to vector<8x64xf32>
    %c0_81 = arith.constant 0 : index
    %c0_82 = arith.constant 0 : index
    %c0_83 = arith.constant 0 : index
    %96 = vector.load %arg5[%c0_81, %c0_82, %c0_83] : memref<9x8x8xbf16, #tpu.memory_space<vmem>>, vector<1x8x8xbf16>
    %97 = vector.shape_cast %96 : vector<1x8x8xbf16> to vector<8x8xbf16>
    %cst_84 = arith.constant dense<0.000000e+00> : vector<8x64xf32>
    %98 = tpu.matmul %97, %94, %cst_84 {dimension_numbers = #tpu.dot_dimension_numbers<[1], [0], [0], [1], [0, 0, 1, 1], [], []>} : vector<8x8xbf16>, vector<8x64xbf16>, vector<8x64xf32> -> vector<8x64xf32>
    %99 = arith.truncf %98 : vector<8x64xf32> to vector<8x64xbf16>
    %c0_85 = arith.constant 0 : index
    %c0_86 = arith.constant 0 : index
    %c0_87 = arith.constant 0 : index
    %100 = vector.load %arg6[%c0_85, %c0_86, %c0_87] : memref<9x64x64xbf16, #tpu.memory_space<vmem>>, vector<1x64x64xbf16>
    %101 = vector.shape_cast %100 : vector<1x64x64xbf16> to vector<64x64xbf16>
    %cst_88 = arith.constant dense<0.000000e+00> : vector<8x64xf32>
    %102 = tpu.matmul %99, %101, %cst_88 {dimension_numbers = #tpu.dot_dimension_numbers<[1], [0], [0], [1], [0, 0, 1, 1], [], []>} : vector<8x64xbf16>, vector<64x64xbf16>, vector<8x64xf32> -> vector<8x64xf32>
    %103 = arith.addf %95, %102 : vector<8x64xf32>
    %c1_89 = arith.constant 1 : index
    %c0_90 = arith.constant 0 : index
    %c0_91 = arith.constant 0 : index
    %104 = vector.load %arg5[%c1_89, %c0_90, %c0_91] : memref<9x8x8xbf16, #tpu.memory_space<vmem>>, vector<1x8x8xbf16>
    %105 = vector.shape_cast %104 : vector<1x8x8xbf16> to vector<8x8xbf16>
    %cst_92 = arith.constant dense<0.000000e+00> : vector<8x64xf32>
    %106 = tpu.matmul %105, %94, %cst_92 {dimension_numbers = #tpu.dot_dimension_numbers<[1], [0], [0], [1], [0, 0, 1, 1], [], []>} : vector<8x8xbf16>, vector<8x64xbf16>, vector<8x64xf32> -> vector<8x64xf32>
    %107 = arith.truncf %106 : vector<8x64xf32> to vector<8x64xbf16>
    %c1_93 = arith.constant 1 : index
    %c0_94 = arith.constant 0 : index
    %c0_95 = arith.constant 0 : index
    %108 = vector.load %arg6[%c1_93, %c0_94, %c0_95] : memref<9x64x64xbf16, #tpu.memory_space<vmem>>, vector<1x64x64xbf16>
    %109 = vector.shape_cast %108 : vector<1x64x64xbf16> to vector<64x64xbf16>
    %cst_96 = arith.constant dense<0.000000e+00> : vector<8x64xf32>
    %110 = tpu.matmul %107, %109, %cst_96 {dimension_numbers = #tpu.dot_dimension_numbers<[1], [0], [0], [1], [0, 0, 1, 1], [], []>} : vector<8x64xbf16>, vector<64x64xbf16>, vector<8x64xf32> -> vector<8x64xf32>
    %111 = arith.addf %103, %110 : vector<8x64xf32>
    %c2_97 = arith.constant 2 : index
    %c0_98 = arith.constant 0 : index
    %c0_99 = arith.constant 0 : index
    %112 = vector.load %arg5[%c2_97, %c0_98, %c0_99] : memref<9x8x8xbf16, #tpu.memory_space<vmem>>, vector<1x8x8xbf16>
    %113 = vector.shape_cast %112 : vector<1x8x8xbf16> to vector<8x8xbf16>
    %cst_100 = arith.constant dense<0.000000e+00> : vector<8x64xf32>
    %114 = tpu.matmul %113, %94, %cst_100 {dimension_numbers = #tpu.dot_dimension_numbers<[1], [0], [0], [1], [0, 0, 1, 1], [], []>} : vector<8x8xbf16>, vector<8x64xbf16>, vector<8x64xf32> -> vector<8x64xf32>
    %115 = arith.truncf %114 : vector<8x64xf32> to vector<8x64xbf16>
    %c2_101 = arith.constant 2 : index
    %c0_102 = arith.constant 0 : index
    %c0_103 = arith.constant 0 : index
    %116 = vector.load %arg6[%c2_101, %c0_102, %c0_103] : memref<9x64x64xbf16, #tpu.memory_space<vmem>>, vector<1x64x64xbf16>
    %117 = vector.shape_cast %116 : vector<1x64x64xbf16> to vector<64x64xbf16>
    %cst_104 = arith.constant dense<0.000000e+00> : vector<8x64xf32>
    %118 = tpu.matmul %115, %117, %cst_104 {dimension_numbers = #tpu.dot_dimension_numbers<[1], [0], [0], [1], [0, 0, 1, 1], [], []>} : vector<8x64xbf16>, vector<64x64xbf16>, vector<8x64xf32> -> vector<8x64xf32>
    %119 = arith.addf %111, %118 : vector<8x64xf32>
    %c3_105 = arith.constant 3 : index
    %c0_106 = arith.constant 0 : index
    %c0_107 = arith.constant 0 : index
    %120 = vector.load %arg5[%c3_105, %c0_106, %c0_107] : memref<9x8x8xbf16, #tpu.memory_space<vmem>>, vector<1x8x8xbf16>
    %121 = vector.shape_cast %120 : vector<1x8x8xbf16> to vector<8x8xbf16>
    %cst_108 = arith.constant dense<0.000000e+00> : vector<8x64xf32>
    %122 = tpu.matmul %121, %94, %cst_108 {dimension_numbers = #tpu.dot_dimension_numbers<[1], [0], [0], [1], [0, 0, 1, 1], [], []>} : vector<8x8xbf16>, vector<8x64xbf16>, vector<8x64xf32> -> vector<8x64xf32>
    %123 = arith.truncf %122 : vector<8x64xf32> to vector<8x64xbf16>
    %c3_109 = arith.constant 3 : index
    %c0_110 = arith.constant 0 : index
    %c0_111 = arith.constant 0 : index
    %124 = vector.load %arg6[%c3_109, %c0_110, %c0_111] : memref<9x64x64xbf16, #tpu.memory_space<vmem>>, vector<1x64x64xbf16>
    %125 = vector.shape_cast %124 : vector<1x64x64xbf16> to vector<64x64xbf16>
    %cst_112 = arith.constant dense<0.000000e+00> : vector<8x64xf32>
    %126 = tpu.matmul %123, %125, %cst_112 {dimension_numbers = #tpu.dot_dimension_numbers<[1], [0], [0], [1], [0, 0, 1, 1], [], []>} : vector<8x64xbf16>, vector<64x64xbf16>, vector<8x64xf32> -> vector<8x64xf32>
    %127 = arith.addf %119, %126 : vector<8x64xf32>
    %c4_113 = arith.constant 4 : index
    %c0_114 = arith.constant 0 : index
    %c0_115 = arith.constant 0 : index
    %128 = vector.load %arg5[%c4_113, %c0_114, %c0_115] : memref<9x8x8xbf16, #tpu.memory_space<vmem>>, vector<1x8x8xbf16>
    %129 = vector.shape_cast %128 : vector<1x8x8xbf16> to vector<8x8xbf16>
    %cst_116 = arith.constant dense<0.000000e+00> : vector<8x64xf32>
    %130 = tpu.matmul %129, %94, %cst_116 {dimension_numbers = #tpu.dot_dimension_numbers<[1], [0], [0], [1], [0, 0, 1, 1], [], []>} : vector<8x8xbf16>, vector<8x64xbf16>, vector<8x64xf32> -> vector<8x64xf32>
    %131 = arith.truncf %130 : vector<8x64xf32> to vector<8x64xbf16>
    %c4_117 = arith.constant 4 : index
    %c0_118 = arith.constant 0 : index
    %c0_119 = arith.constant 0 : index
    %132 = vector.load %arg6[%c4_117, %c0_118, %c0_119] : memref<9x64x64xbf16, #tpu.memory_space<vmem>>, vector<1x64x64xbf16>
    %133 = vector.shape_cast %132 : vector<1x64x64xbf16> to vector<64x64xbf16>
    %cst_120 = arith.constant dense<0.000000e+00> : vector<8x64xf32>
    %134 = tpu.matmul %131, %133, %cst_120 {dimension_numbers = #tpu.dot_dimension_numbers<[1], [0], [0], [1], [0, 0, 1, 1], [], []>} : vector<8x64xbf16>, vector<64x64xbf16>, vector<8x64xf32> -> vector<8x64xf32>
    %135 = arith.addf %127, %134 : vector<8x64xf32>
    %c5_121 = arith.constant 5 : index
    %c0_122 = arith.constant 0 : index
    %c0_123 = arith.constant 0 : index
    %136 = vector.load %arg5[%c5_121, %c0_122, %c0_123] : memref<9x8x8xbf16, #tpu.memory_space<vmem>>, vector<1x8x8xbf16>
    %137 = vector.shape_cast %136 : vector<1x8x8xbf16> to vector<8x8xbf16>
    %cst_124 = arith.constant dense<0.000000e+00> : vector<8x64xf32>
    %138 = tpu.matmul %137, %94, %cst_124 {dimension_numbers = #tpu.dot_dimension_numbers<[1], [0], [0], [1], [0, 0, 1, 1], [], []>} : vector<8x8xbf16>, vector<8x64xbf16>, vector<8x64xf32> -> vector<8x64xf32>
    %139 = arith.truncf %138 : vector<8x64xf32> to vector<8x64xbf16>
    %c5_125 = arith.constant 5 : index
    %c0_126 = arith.constant 0 : index
    %c0_127 = arith.constant 0 : index
    %140 = vector.load %arg6[%c5_125, %c0_126, %c0_127] : memref<9x64x64xbf16, #tpu.memory_space<vmem>>, vector<1x64x64xbf16>
    %141 = vector.shape_cast %140 : vector<1x64x64xbf16> to vector<64x64xbf16>
    %cst_128 = arith.constant dense<0.000000e+00> : vector<8x64xf32>
    %142 = tpu.matmul %139, %141, %cst_128 {dimension_numbers = #tpu.dot_dimension_numbers<[1], [0], [0], [1], [0, 0, 1, 1], [], []>} : vector<8x64xbf16>, vector<64x64xbf16>, vector<8x64xf32> -> vector<8x64xf32>
    %143 = arith.addf %135, %142 : vector<8x64xf32>
    %c6_129 = arith.constant 6 : index
    %c0_130 = arith.constant 0 : index
    %c0_131 = arith.constant 0 : index
    %144 = vector.load %arg5[%c6_129, %c0_130, %c0_131] : memref<9x8x8xbf16, #tpu.memory_space<vmem>>, vector<1x8x8xbf16>
    %145 = vector.shape_cast %144 : vector<1x8x8xbf16> to vector<8x8xbf16>
    %cst_132 = arith.constant dense<0.000000e+00> : vector<8x64xf32>
    %146 = tpu.matmul %145, %94, %cst_132 {dimension_numbers = #tpu.dot_dimension_numbers<[1], [0], [0], [1], [0, 0, 1, 1], [], []>} : vector<8x8xbf16>, vector<8x64xbf16>, vector<8x64xf32> -> vector<8x64xf32>
    %147 = arith.truncf %146 : vector<8x64xf32> to vector<8x64xbf16>
    %c6_133 = arith.constant 6 : index
    %c0_134 = arith.constant 0 : index
    %c0_135 = arith.constant 0 : index
    %148 = vector.load %arg6[%c6_133, %c0_134, %c0_135] : memref<9x64x64xbf16, #tpu.memory_space<vmem>>, vector<1x64x64xbf16>
    %149 = vector.shape_cast %148 : vector<1x64x64xbf16> to vector<64x64xbf16>
    %cst_136 = arith.constant dense<0.000000e+00> : vector<8x64xf32>
    %150 = tpu.matmul %147, %149, %cst_136 {dimension_numbers = #tpu.dot_dimension_numbers<[1], [0], [0], [1], [0, 0, 1, 1], [], []>} : vector<8x64xbf16>, vector<64x64xbf16>, vector<8x64xf32> -> vector<8x64xf32>
    %151 = arith.addf %143, %150 : vector<8x64xf32>
    %c7_137 = arith.constant 7 : index
    %c0_138 = arith.constant 0 : index
    %c0_139 = arith.constant 0 : index
    %152 = vector.load %arg5[%c7_137, %c0_138, %c0_139] : memref<9x8x8xbf16, #tpu.memory_space<vmem>>, vector<1x8x8xbf16>
    %153 = vector.shape_cast %152 : vector<1x8x8xbf16> to vector<8x8xbf16>
    %cst_140 = arith.constant dense<0.000000e+00> : vector<8x64xf32>
    %154 = tpu.matmul %153, %94, %cst_140 {dimension_numbers = #tpu.dot_dimension_numbers<[1], [0], [0], [1], [0, 0, 1, 1], [], []>} : vector<8x8xbf16>, vector<8x64xbf16>, vector<8x64xf32> -> vector<8x64xf32>
    %155 = arith.truncf %154 : vector<8x64xf32> to vector<8x64xbf16>
    %c7_141 = arith.constant 7 : index
    %c0_142 = arith.constant 0 : index
    %c0_143 = arith.constant 0 : index
    %156 = vector.load %arg6[%c7_141, %c0_142, %c0_143] : memref<9x64x64xbf16, #tpu.memory_space<vmem>>, vector<1x64x64xbf16>
    %157 = vector.shape_cast %156 : vector<1x64x64xbf16> to vector<64x64xbf16>
    %cst_144 = arith.constant dense<0.000000e+00> : vector<8x64xf32>
    %158 = tpu.matmul %155, %157, %cst_144 {dimension_numbers = #tpu.dot_dimension_numbers<[1], [0], [0], [1], [0, 0, 1, 1], [], []>} : vector<8x64xbf16>, vector<64x64xbf16>, vector<8x64xf32> -> vector<8x64xf32>
    %159 = arith.addf %151, %158 : vector<8x64xf32>
    %c8_145 = arith.constant 8 : index
    %c0_146 = arith.constant 0 : index
    %c0_147 = arith.constant 0 : index
    %160 = vector.load %arg5[%c8_145, %c0_146, %c0_147] : memref<9x8x8xbf16, #tpu.memory_space<vmem>>, vector<1x8x8xbf16>
    %161 = vector.shape_cast %160 : vector<1x8x8xbf16> to vector<8x8xbf16>
    %cst_148 = arith.constant dense<0.000000e+00> : vector<8x64xf32>
    %162 = tpu.matmul %161, %94, %cst_148 {dimension_numbers = #tpu.dot_dimension_numbers<[1], [0], [0], [1], [0, 0, 1, 1], [], []>} : vector<8x8xbf16>, vector<8x64xbf16>, vector<8x64xf32> -> vector<8x64xf32>
    %163 = arith.truncf %162 : vector<8x64xf32> to vector<8x64xbf16>
    %c8_149 = arith.constant 8 : index
    %c0_150 = arith.constant 0 : index
    %c0_151 = arith.constant 0 : index
    %164 = vector.load %arg6[%c8_149, %c0_150, %c0_151] : memref<9x64x64xbf16, #tpu.memory_space<vmem>>, vector<1x64x64xbf16>
    %165 = vector.shape_cast %164 : vector<1x64x64xbf16> to vector<64x64xbf16>
    %cst_152 = arith.constant dense<0.000000e+00> : vector<8x64xf32>
    %166 = tpu.matmul %163, %165, %cst_152 {dimension_numbers = #tpu.dot_dimension_numbers<[1], [0], [0], [1], [0, 0, 1, 1], [], []>} : vector<8x64xbf16>, vector<64x64xbf16>, vector<8x64xf32> -> vector<8x64xf32>
    %167 = arith.addf %159, %166 : vector<8x64xf32>
    %c0_153 = arith.constant 0 : index
    %c0_154 = arith.constant 0 : index
    %168 = vector.load %arg7[%c0_153, %c0_154] : memref<1x64xf32, #tpu.memory_space<vmem>>, vector<1x64xf32>
    %169 = vector.broadcast %168 : vector<1x64xf32> to vector<8x64xf32>
    %170 = arith.mulf %167, %169 : vector<8x64xf32>
    %c0_155 = arith.constant 0 : index
    %c0_156 = arith.constant 0 : index
    %171 = vector.load %arg8[%c0_155, %c0_156] : memref<1x64xf32, #tpu.memory_space<vmem>>, vector<1x64xf32>
    %172 = vector.broadcast %171 : vector<1x64xf32> to vector<8x64xf32>
    %173 = arith.addf %170, %172 : vector<8x64xf32>
    %174 = arith.addf %173, %93 : vector<8x64xf32>
    %cst_157 = arith.constant 0.000000e+00 : f32
    %175 = vector.broadcast %cst_157 : f32 to vector<8x64xf32>
    %176 = arith.maximumf %174, %175 : vector<8x64xf32>
    %c0_158 = arith.constant 0 : index
    %c0_159 = arith.constant 0 : index
    %177 = vector.load %arg13[%c0_158, %c0_159] : memref<8x64xf32, #tpu.memory_space<vmem>>, vector<8x64xf32>
    tpu.vector_store %arg13[%c0_158, %c0_159], %176 {strides = array<i32>} : memref<8x64xf32, #tpu.memory_space<vmem>>, vector<8x64xf32>,
    return
  }
}

module attributes {stable_mosaic.version = 11 : i64} {
  func.func @kernel(%arg0: memref<8x64xf32, #tpu.memory_space<vmem>>, %arg1: memref<9x8x8xbf16, #tpu.memory_space<vmem>>, %arg2: memref<9x64x128xbf16, #tpu.memory_space<vmem>>, %arg3: memref<1x128xf32, #tpu.memory_space<vmem>>, %arg4: memref<1x128xf32, #tpu.memory_space<vmem>>, %arg5: memref<9x8x8xbf16, #tpu.memory_space<vmem>>, %arg6: memref<9x128x128xbf16, #tpu.memory_space<vmem>>, %arg7: memref<1x128xf32, #tpu.memory_space<vmem>>, %arg8: memref<1x128xf32, #tpu.memory_space<vmem>>, %arg9: memref<8x8xbf16, #tpu.memory_space<vmem>>, %arg10: memref<64x128xbf16, #tpu.memory_space<vmem>>, %arg11: memref<1x128xf32, #tpu.memory_space<vmem>>, %arg12: memref<1x128xf32, #tpu.memory_space<vmem>>, %arg13: memref<8x128xf32, #tpu.memory_space<vmem>>) attributes {dimension_semantics = [], scalar_prefetch = 0 : i64, scratch_operands = 0 : i64, tpu.core_type = #tpu.core_type<tc>} {
    %c0 = arith.constant 0 : index
    %c0_0 = arith.constant 0 : index
    %0 = vector.load %arg0[%c0, %c0_0] : memref<8x64xf32, #tpu.memory_space<vmem>>, vector<8x64xf32>
    %1 = arith.truncf %0 : vector<8x64xf32> to vector<8x64xbf16>
    %cst = arith.constant 0.000000e+00 : f32
    %2 = vector.broadcast %cst : f32 to vector<8x128xf32>
    %c0_1 = arith.constant 0 : index
    %c0_2 = arith.constant 0 : index
    %c0_3 = arith.constant 0 : index
    %3 = vector.load %arg1[%c0_1, %c0_2, %c0_3] : memref<9x8x8xbf16, #tpu.memory_space<vmem>>, vector<1x8x8xbf16>
    %4 = vector.shape_cast %3 : vector<1x8x8xbf16> to vector<8x8xbf16>
    %cst_4 = arith.constant dense<0.000000e+00> : vector<8x64xf32>
    %5 = tpu.matmul %4, %1, %cst_4 {dimension_numbers = #tpu.dot_dimension_numbers<[1], [0], [0], [1], [0, 0, 1, 1], [], []>} : vector<8x8xbf16>, vector<8x64xbf16>, vector<8x64xf32> -> vector<8x64xf32>
    %6 = arith.truncf %5 : vector<8x64xf32> to vector<8x64xbf16>
    %c0_5 = arith.constant 0 : index
    %c0_6 = arith.constant 0 : index
    %c0_7 = arith.constant 0 : index
    %7 = vector.load %arg2[%c0_5, %c0_6, %c0_7] : memref<9x64x128xbf16, #tpu.memory_space<vmem>>, vector<1x64x128xbf16>
    %8 = vector.shape_cast %7 : vector<1x64x128xbf16> to vector<64x128xbf16>
    %cst_8 = arith.constant dense<0.000000e+00> : vector<8x128xf32>
    %9 = tpu.matmul %6, %8, %cst_8 {dimension_numbers = #tpu.dot_dimension_numbers<[1], [0], [0], [1], [0, 0, 1, 1], [], []>} : vector<8x64xbf16>, vector<64x128xbf16>, vector<8x128xf32> -> vector<8x128xf32>
    %10 = arith.addf %2, %9 : vector<8x128xf32>
    %c1 = arith.constant 1 : index
    %c0_9 = arith.constant 0 : index
    %c0_10 = arith.constant 0 : index
    %11 = vector.load %arg1[%c1, %c0_9, %c0_10] : memref<9x8x8xbf16, #tpu.memory_space<vmem>>, vector<1x8x8xbf16>
    %12 = vector.shape_cast %11 : vector<1x8x8xbf16> to vector<8x8xbf16>
    %cst_11 = arith.constant dense<0.000000e+00> : vector<8x64xf32>
    %13 = tpu.matmul %12, %1, %cst_11 {dimension_numbers = #tpu.dot_dimension_numbers<[1], [0], [0], [1], [0, 0, 1, 1], [], []>} : vector<8x8xbf16>, vector<8x64xbf16>, vector<8x64xf32> -> vector<8x64xf32>
    %14 = arith.truncf %13 : vector<8x64xf32> to vector<8x64xbf16>
    %c1_12 = arith.constant 1 : index
    %c0_13 = arith.constant 0 : index
    %c0_14 = arith.constant 0 : index
    %15 = vector.load %arg2[%c1_12, %c0_13, %c0_14] : memref<9x64x128xbf16, #tpu.memory_space<vmem>>, vector<1x64x128xbf16>
    %16 = vector.shape_cast %15 : vector<1x64x128xbf16> to vector<64x128xbf16>
    %cst_15 = arith.constant dense<0.000000e+00> : vector<8x128xf32>
    %17 = tpu.matmul %14, %16, %cst_15 {dimension_numbers = #tpu.dot_dimension_numbers<[1], [0], [0], [1], [0, 0, 1, 1], [], []>} : vector<8x64xbf16>, vector<64x128xbf16>, vector<8x128xf32> -> vector<8x128xf32>
    %18 = arith.addf %10, %17 : vector<8x128xf32>
    %c2 = arith.constant 2 : index
    %c0_16 = arith.constant 0 : index
    %c0_17 = arith.constant 0 : index
    %19 = vector.load %arg1[%c2, %c0_16, %c0_17] : memref<9x8x8xbf16, #tpu.memory_space<vmem>>, vector<1x8x8xbf16>
    %20 = vector.shape_cast %19 : vector<1x8x8xbf16> to vector<8x8xbf16>
    %cst_18 = arith.constant dense<0.000000e+00> : vector<8x64xf32>
    %21 = tpu.matmul %20, %1, %cst_18 {dimension_numbers = #tpu.dot_dimension_numbers<[1], [0], [0], [1], [0, 0, 1, 1], [], []>} : vector<8x8xbf16>, vector<8x64xbf16>, vector<8x64xf32> -> vector<8x64xf32>
    %22 = arith.truncf %21 : vector<8x64xf32> to vector<8x64xbf16>
    %c2_19 = arith.constant 2 : index
    %c0_20 = arith.constant 0 : index
    %c0_21 = arith.constant 0 : index
    %23 = vector.load %arg2[%c2_19, %c0_20, %c0_21] : memref<9x64x128xbf16, #tpu.memory_space<vmem>>, vector<1x64x128xbf16>
    %24 = vector.shape_cast %23 : vector<1x64x128xbf16> to vector<64x128xbf16>
    %cst_22 = arith.constant dense<0.000000e+00> : vector<8x128xf32>
    %25 = tpu.matmul %22, %24, %cst_22 {dimension_numbers = #tpu.dot_dimension_numbers<[1], [0], [0], [1], [0, 0, 1, 1], [], []>} : vector<8x64xbf16>, vector<64x128xbf16>, vector<8x128xf32> -> vector<8x128xf32>
    %26 = arith.addf %18, %25 : vector<8x128xf32>
    %c3 = arith.constant 3 : index
    %c0_23 = arith.constant 0 : index
    %c0_24 = arith.constant 0 : index
    %27 = vector.load %arg1[%c3, %c0_23, %c0_24] : memref<9x8x8xbf16, #tpu.memory_space<vmem>>, vector<1x8x8xbf16>
    %28 = vector.shape_cast %27 : vector<1x8x8xbf16> to vector<8x8xbf16>
    %cst_25 = arith.constant dense<0.000000e+00> : vector<8x64xf32>
    %29 = tpu.matmul %28, %1, %cst_25 {dimension_numbers = #tpu.dot_dimension_numbers<[1], [0], [0], [1], [0, 0, 1, 1], [], []>} : vector<8x8xbf16>, vector<8x64xbf16>, vector<8x64xf32> -> vector<8x64xf32>
    %30 = arith.truncf %29 : vector<8x64xf32> to vector<8x64xbf16>
    %c3_26 = arith.constant 3 : index
    %c0_27 = arith.constant 0 : index
    %c0_28 = arith.constant 0 : index
    %31 = vector.load %arg2[%c3_26, %c0_27, %c0_28] : memref<9x64x128xbf16, #tpu.memory_space<vmem>>, vector<1x64x128xbf16>
    %32 = vector.shape_cast %31 : vector<1x64x128xbf16> to vector<64x128xbf16>
    %cst_29 = arith.constant dense<0.000000e+00> : vector<8x128xf32>
    %33 = tpu.matmul %30, %32, %cst_29 {dimension_numbers = #tpu.dot_dimension_numbers<[1], [0], [0], [1], [0, 0, 1, 1], [], []>} : vector<8x64xbf16>, vector<64x128xbf16>, vector<8x128xf32> -> vector<8x128xf32>
    %34 = arith.addf %26, %33 : vector<8x128xf32>
    %c4 = arith.constant 4 : index
    %c0_30 = arith.constant 0 : index
    %c0_31 = arith.constant 0 : index
    %35 = vector.load %arg1[%c4, %c0_30, %c0_31] : memref<9x8x8xbf16, #tpu.memory_space<vmem>>, vector<1x8x8xbf16>
    %36 = vector.shape_cast %35 : vector<1x8x8xbf16> to vector<8x8xbf16>
    %cst_32 = arith.constant dense<0.000000e+00> : vector<8x64xf32>
    %37 = tpu.matmul %36, %1, %cst_32 {dimension_numbers = #tpu.dot_dimension_numbers<[1], [0], [0], [1], [0, 0, 1, 1], [], []>} : vector<8x8xbf16>, vector<8x64xbf16>, vector<8x64xf32> -> vector<8x64xf32>
    %38 = arith.truncf %37 : vector<8x64xf32> to vector<8x64xbf16>
    %c4_33 = arith.constant 4 : index
    %c0_34 = arith.constant 0 : index
    %c0_35 = arith.constant 0 : index
    %39 = vector.load %arg2[%c4_33, %c0_34, %c0_35] : memref<9x64x128xbf16, #tpu.memory_space<vmem>>, vector<1x64x128xbf16>
    %40 = vector.shape_cast %39 : vector<1x64x128xbf16> to vector<64x128xbf16>
    %cst_36 = arith.constant dense<0.000000e+00> : vector<8x128xf32>
    %41 = tpu.matmul %38, %40, %cst_36 {dimension_numbers = #tpu.dot_dimension_numbers<[1], [0], [0], [1], [0, 0, 1, 1], [], []>} : vector<8x64xbf16>, vector<64x128xbf16>, vector<8x128xf32> -> vector<8x128xf32>
    %42 = arith.addf %34, %41 : vector<8x128xf32>
    %c5 = arith.constant 5 : index
    %c0_37 = arith.constant 0 : index
    %c0_38 = arith.constant 0 : index
    %43 = vector.load %arg1[%c5, %c0_37, %c0_38] : memref<9x8x8xbf16, #tpu.memory_space<vmem>>, vector<1x8x8xbf16>
    %44 = vector.shape_cast %43 : vector<1x8x8xbf16> to vector<8x8xbf16>
    %cst_39 = arith.constant dense<0.000000e+00> : vector<8x64xf32>
    %45 = tpu.matmul %44, %1, %cst_39 {dimension_numbers = #tpu.dot_dimension_numbers<[1], [0], [0], [1], [0, 0, 1, 1], [], []>} : vector<8x8xbf16>, vector<8x64xbf16>, vector<8x64xf32> -> vector<8x64xf32>
    %46 = arith.truncf %45 : vector<8x64xf32> to vector<8x64xbf16>
    %c5_40 = arith.constant 5 : index
    %c0_41 = arith.constant 0 : index
    %c0_42 = arith.constant 0 : index
    %47 = vector.load %arg2[%c5_40, %c0_41, %c0_42] : memref<9x64x128xbf16, #tpu.memory_space<vmem>>, vector<1x64x128xbf16>
    %48 = vector.shape_cast %47 : vector<1x64x128xbf16> to vector<64x128xbf16>
    %cst_43 = arith.constant dense<0.000000e+00> : vector<8x128xf32>
    %49 = tpu.matmul %46, %48, %cst_43 {dimension_numbers = #tpu.dot_dimension_numbers<[1], [0], [0], [1], [0, 0, 1, 1], [], []>} : vector<8x64xbf16>, vector<64x128xbf16>, vector<8x128xf32> -> vector<8x128xf32>
    %50 = arith.addf %42, %49 : vector<8x128xf32>
    %c6 = arith.constant 6 : index
    %c0_44 = arith.constant 0 : index
    %c0_45 = arith.constant 0 : index
    %51 = vector.load %arg1[%c6, %c0_44, %c0_45] : memref<9x8x8xbf16, #tpu.memory_space<vmem>>, vector<1x8x8xbf16>
    %52 = vector.shape_cast %51 : vector<1x8x8xbf16> to vector<8x8xbf16>
    %cst_46 = arith.constant dense<0.000000e+00> : vector<8x64xf32>
    %53 = tpu.matmul %52, %1, %cst_46 {dimension_numbers = #tpu.dot_dimension_numbers<[1], [0], [0], [1], [0, 0, 1, 1], [], []>} : vector<8x8xbf16>, vector<8x64xbf16>, vector<8x64xf32> -> vector<8x64xf32>
    %54 = arith.truncf %53 : vector<8x64xf32> to vector<8x64xbf16>
    %c6_47 = arith.constant 6 : index
    %c0_48 = arith.constant 0 : index
    %c0_49 = arith.constant 0 : index
    %55 = vector.load %arg2[%c6_47, %c0_48, %c0_49] : memref<9x64x128xbf16, #tpu.memory_space<vmem>>, vector<1x64x128xbf16>
    %56 = vector.shape_cast %55 : vector<1x64x128xbf16> to vector<64x128xbf16>
    %cst_50 = arith.constant dense<0.000000e+00> : vector<8x128xf32>
    %57 = tpu.matmul %54, %56, %cst_50 {dimension_numbers = #tpu.dot_dimension_numbers<[1], [0], [0], [1], [0, 0, 1, 1], [], []>} : vector<8x64xbf16>, vector<64x128xbf16>, vector<8x128xf32> -> vector<8x128xf32>
    %58 = arith.addf %50, %57 : vector<8x128xf32>
    %c7 = arith.constant 7 : index
    %c0_51 = arith.constant 0 : index
    %c0_52 = arith.constant 0 : index
    %59 = vector.load %arg1[%c7, %c0_51, %c0_52] : memref<9x8x8xbf16, #tpu.memory_space<vmem>>, vector<1x8x8xbf16>
    %60 = vector.shape_cast %59 : vector<1x8x8xbf16> to vector<8x8xbf16>
    %cst_53 = arith.constant dense<0.000000e+00> : vector<8x64xf32>
    %61 = tpu.matmul %60, %1, %cst_53 {dimension_numbers = #tpu.dot_dimension_numbers<[1], [0], [0], [1], [0, 0, 1, 1], [], []>} : vector<8x8xbf16>, vector<8x64xbf16>, vector<8x64xf32> -> vector<8x64xf32>
    %62 = arith.truncf %61 : vector<8x64xf32> to vector<8x64xbf16>
    %c7_54 = arith.constant 7 : index
    %c0_55 = arith.constant 0 : index
    %c0_56 = arith.constant 0 : index
    %63 = vector.load %arg2[%c7_54, %c0_55, %c0_56] : memref<9x64x128xbf16, #tpu.memory_space<vmem>>, vector<1x64x128xbf16>
    %64 = vector.shape_cast %63 : vector<1x64x128xbf16> to vector<64x128xbf16>
    %cst_57 = arith.constant dense<0.000000e+00> : vector<8x128xf32>
    %65 = tpu.matmul %62, %64, %cst_57 {dimension_numbers = #tpu.dot_dimension_numbers<[1], [0], [0], [1], [0, 0, 1, 1], [], []>} : vector<8x64xbf16>, vector<64x128xbf16>, vector<8x128xf32> -> vector<8x128xf32>
    %66 = arith.addf %58, %65 : vector<8x128xf32>
    %c8 = arith.constant 8 : index
    %c0_58 = arith.constant 0 : index
    %c0_59 = arith.constant 0 : index
    %67 = vector.load %arg1[%c8, %c0_58, %c0_59] : memref<9x8x8xbf16, #tpu.memory_space<vmem>>, vector<1x8x8xbf16>
    %68 = vector.shape_cast %67 : vector<1x8x8xbf16> to vector<8x8xbf16>
    %cst_60 = arith.constant dense<0.000000e+00> : vector<8x64xf32>
    %69 = tpu.matmul %68, %1, %cst_60 {dimension_numbers = #tpu.dot_dimension_numbers<[1], [0], [0], [1], [0, 0, 1, 1], [], []>} : vector<8x8xbf16>, vector<8x64xbf16>, vector<8x64xf32> -> vector<8x64xf32>
    %70 = arith.truncf %69 : vector<8x64xf32> to vector<8x64xbf16>
    %c8_61 = arith.constant 8 : index
    %c0_62 = arith.constant 0 : index
    %c0_63 = arith.constant 0 : index
    %71 = vector.load %arg2[%c8_61, %c0_62, %c0_63] : memref<9x64x128xbf16, #tpu.memory_space<vmem>>, vector<1x64x128xbf16>
    %72 = vector.shape_cast %71 : vector<1x64x128xbf16> to vector<64x128xbf16>
    %cst_64 = arith.constant dense<0.000000e+00> : vector<8x128xf32>
    %73 = tpu.matmul %70, %72, %cst_64 {dimension_numbers = #tpu.dot_dimension_numbers<[1], [0], [0], [1], [0, 0, 1, 1], [], []>} : vector<8x64xbf16>, vector<64x128xbf16>, vector<8x128xf32> -> vector<8x128xf32>
    %74 = arith.addf %66, %73 : vector<8x128xf32>
    %c0_65 = arith.constant 0 : index
    %c0_66 = arith.constant 0 : index
    %75 = vector.load %arg3[%c0_65, %c0_66] : memref<1x128xf32, #tpu.memory_space<vmem>>, vector<1x128xf32>
    %76 = vector.broadcast %75 : vector<1x128xf32> to vector<8x128xf32>
    %77 = arith.mulf %74, %76 : vector<8x128xf32>
    %c0_67 = arith.constant 0 : index
    %c0_68 = arith.constant 0 : index
    %78 = vector.load %arg4[%c0_67, %c0_68] : memref<1x128xf32, #tpu.memory_space<vmem>>, vector<1x128xf32>
    %79 = vector.broadcast %78 : vector<1x128xf32> to vector<8x128xf32>
    %80 = arith.addf %77, %79 : vector<8x128xf32>
    %cst_69 = arith.constant 0.000000e+00 : f32
    %81 = vector.broadcast %cst_69 : f32 to vector<8x128xf32>
    %82 = arith.maximumf %80, %81 : vector<8x128xf32>
    %c0_70 = arith.constant 0 : index
    %c0_71 = arith.constant 0 : index
    %83 = vector.load %arg9[%c0_70, %c0_71] : memref<8x8xbf16, #tpu.memory_space<vmem>>, vector<8x8xbf16>
    %cst_72 = arith.constant dense<0.000000e+00> : vector<8x64xf32>
    %84 = tpu.matmul %83, %1, %cst_72 {dimension_numbers = #tpu.dot_dimension_numbers<[1], [0], [0], [1], [0, 0, 1, 1], [], []>} : vector<8x8xbf16>, vector<8x64xbf16>, vector<8x64xf32> -> vector<8x64xf32>
    %85 = arith.truncf %84 : vector<8x64xf32> to vector<8x64xbf16>
    %c0_73 = arith.constant 0 : index
    %c0_74 = arith.constant 0 : index
    %86 = vector.load %arg10[%c0_73, %c0_74] : memref<64x128xbf16, #tpu.memory_space<vmem>>, vector<64x128xbf16>
    %cst_75 = arith.constant dense<0.000000e+00> : vector<8x128xf32>
    %87 = tpu.matmul %85, %86, %cst_75 {dimension_numbers = #tpu.dot_dimension_numbers<[1], [0], [0], [1], [0, 0, 1, 1], [], []>} : vector<8x64xbf16>, vector<64x128xbf16>, vector<8x128xf32> -> vector<8x128xf32>
    %c0_76 = arith.constant 0 : index
    %c0_77 = arith.constant 0 : index
    %88 = vector.load %arg11[%c0_76, %c0_77] : memref<1x128xf32, #tpu.memory_space<vmem>>, vector<1x128xf32>
    %89 = vector.broadcast %88 : vector<1x128xf32> to vector<8x128xf32>
    %90 = arith.mulf %87, %89 : vector<8x128xf32>
    %c0_78 = arith.constant 0 : index
    %c0_79 = arith.constant 0 : index
    %91 = vector.load %arg12[%c0_78, %c0_79] : memref<1x128xf32, #tpu.memory_space<vmem>>, vector<1x128xf32>
    %92 = vector.broadcast %91 : vector<1x128xf32> to vector<8x128xf32>
    %93 = arith.addf %90, %92 : vector<8x128xf32>
    %94 = arith.truncf %82 : vector<8x128xf32> to vector<8x128xbf16>
    %cst_80 = arith.constant 0.000000e+00 : f32
    %95 = vector.broadcast %cst_80 : f32 to vector<8x128xf32>
    %c0_81 = arith.constant 0 : index
    %c0_82 = arith.constant 0 : index
    %c0_83 = arith.constant 0 : index
    %96 = vector.load %arg5[%c0_81, %c0_82, %c0_83] : memref<9x8x8xbf16, #tpu.memory_space<vmem>>, vector<1x8x8xbf16>
    %97 = vector.shape_cast %96 : vector<1x8x8xbf16> to vector<8x8xbf16>
    %cst_84 = arith.constant dense<0.000000e+00> : vector<8x128xf32>
    %98 = tpu.matmul %97, %94, %cst_84 {dimension_numbers = #tpu.dot_dimension_numbers<[1], [0], [0], [1], [0, 0, 1, 1], [], []>} : vector<8x8xbf16>, vector<8x128xbf16>, vector<8x128xf32> -> vector<8x128xf32>
    %99 = arith.truncf %98 : vector<8x128xf32> to vector<8x128xbf16>
    %c0_85 = arith.constant 0 : index
    %c0_86 = arith.constant 0 : index
    %c0_87 = arith.constant 0 : index
    %100 = vector.load %arg6[%c0_85, %c0_86, %c0_87] : memref<9x128x128xbf16, #tpu.memory_space<vmem>>, vector<1x128x128xbf16>
    %101 = vector.shape_cast %100 : vector<1x128x128xbf16> to vector<128x128xbf16>
    %cst_88 = arith.constant dense<0.000000e+00> : vector<8x128xf32>
    %102 = tpu.matmul %99, %101, %cst_88 {dimension_numbers = #tpu.dot_dimension_numbers<[1], [0], [0], [1], [0, 0, 1, 1], [], []>} : vector<8x128xbf16>, vector<128x128xbf16>, vector<8x128xf32> -> vector<8x128xf32>
    %103 = arith.addf %95, %102 : vector<8x128xf32>
    %c1_89 = arith.constant 1 : index
    %c0_90 = arith.constant 0 : index
    %c0_91 = arith.constant 0 : index
    %104 = vector.load %arg5[%c1_89, %c0_90, %c0_91] : memref<9x8x8xbf16, #tpu.memory_space<vmem>>, vector<1x8x8xbf16>
    %105 = vector.shape_cast %104 : vector<1x8x8xbf16> to vector<8x8xbf16>
    %cst_92 = arith.constant dense<0.000000e+00> : vector<8x128xf32>
    %106 = tpu.matmul %105, %94, %cst_92 {dimension_numbers = #tpu.dot_dimension_numbers<[1], [0], [0], [1], [0, 0, 1, 1], [], []>} : vector<8x8xbf16>, vector<8x128xbf16>, vector<8x128xf32> -> vector<8x128xf32>
    %107 = arith.truncf %106 : vector<8x128xf32> to vector<8x128xbf16>
    %c1_93 = arith.constant 1 : index
    %c0_94 = arith.constant 0 : index
    %c0_95 = arith.constant 0 : index
    %108 = vector.load %arg6[%c1_93, %c0_94, %c0_95] : memref<9x128x128xbf16, #tpu.memory_space<vmem>>, vector<1x128x128xbf16>
    %109 = vector.shape_cast %108 : vector<1x128x128xbf16> to vector<128x128xbf16>
    %cst_96 = arith.constant dense<0.000000e+00> : vector<8x128xf32>
    %110 = tpu.matmul %107, %109, %cst_96 {dimension_numbers = #tpu.dot_dimension_numbers<[1], [0], [0], [1], [0, 0, 1, 1], [], []>} : vector<8x128xbf16>, vector<128x128xbf16>, vector<8x128xf32> -> vector<8x128xf32>
    %111 = arith.addf %103, %110 : vector<8x128xf32>
    %c2_97 = arith.constant 2 : index
    %c0_98 = arith.constant 0 : index
    %c0_99 = arith.constant 0 : index
    %112 = vector.load %arg5[%c2_97, %c0_98, %c0_99] : memref<9x8x8xbf16, #tpu.memory_space<vmem>>, vector<1x8x8xbf16>
    %113 = vector.shape_cast %112 : vector<1x8x8xbf16> to vector<8x8xbf16>
    %cst_100 = arith.constant dense<0.000000e+00> : vector<8x128xf32>
    %114 = tpu.matmul %113, %94, %cst_100 {dimension_numbers = #tpu.dot_dimension_numbers<[1], [0], [0], [1], [0, 0, 1, 1], [], []>} : vector<8x8xbf16>, vector<8x128xbf16>, vector<8x128xf32> -> vector<8x128xf32>
    %115 = arith.truncf %114 : vector<8x128xf32> to vector<8x128xbf16>
    %c2_101 = arith.constant 2 : index
    %c0_102 = arith.constant 0 : index
    %c0_103 = arith.constant 0 : index
    %116 = vector.load %arg6[%c2_101, %c0_102, %c0_103] : memref<9x128x128xbf16, #tpu.memory_space<vmem>>, vector<1x128x128xbf16>
    %117 = vector.shape_cast %116 : vector<1x128x128xbf16> to vector<128x128xbf16>
    %cst_104 = arith.constant dense<0.000000e+00> : vector<8x128xf32>
    %118 = tpu.matmul %115, %117, %cst_104 {dimension_numbers = #tpu.dot_dimension_numbers<[1], [0], [0], [1], [0, 0, 1, 1], [], []>} : vector<8x128xbf16>, vector<128x128xbf16>, vector<8x128xf32> -> vector<8x128xf32>
    %119 = arith.addf %111, %118 : vector<8x128xf32>
    %c3_105 = arith.constant 3 : index
    %c0_106 = arith.constant 0 : index
    %c0_107 = arith.constant 0 : index
    %120 = vector.load %arg5[%c3_105, %c0_106, %c0_107] : memref<9x8x8xbf16, #tpu.memory_space<vmem>>, vector<1x8x8xbf16>
    %121 = vector.shape_cast %120 : vector<1x8x8xbf16> to vector<8x8xbf16>
    %cst_108 = arith.constant dense<0.000000e+00> : vector<8x128xf32>
    %122 = tpu.matmul %121, %94, %cst_108 {dimension_numbers = #tpu.dot_dimension_numbers<[1], [0], [0], [1], [0, 0, 1, 1], [], []>} : vector<8x8xbf16>, vector<8x128xbf16>, vector<8x128xf32> -> vector<8x128xf32>
    %123 = arith.truncf %122 : vector<8x128xf32> to vector<8x128xbf16>
    %c3_109 = arith.constant 3 : index
    %c0_110 = arith.constant 0 : index
    %c0_111 = arith.constant 0 : index
    %124 = vector.load %arg6[%c3_109, %c0_110, %c0_111] : memref<9x128x128xbf16, #tpu.memory_space<vmem>>, vector<1x128x128xbf16>
    %125 = vector.shape_cast %124 : vector<1x128x128xbf16> to vector<128x128xbf16>
    %cst_112 = arith.constant dense<0.000000e+00> : vector<8x128xf32>
    %126 = tpu.matmul %123, %125, %cst_112 {dimension_numbers = #tpu.dot_dimension_numbers<[1], [0], [0], [1], [0, 0, 1, 1], [], []>} : vector<8x128xbf16>, vector<128x128xbf16>, vector<8x128xf32> -> vector<8x128xf32>
    %127 = arith.addf %119, %126 : vector<8x128xf32>
    %c4_113 = arith.constant 4 : index
    %c0_114 = arith.constant 0 : index
    %c0_115 = arith.constant 0 : index
    %128 = vector.load %arg5[%c4_113, %c0_114, %c0_115] : memref<9x8x8xbf16, #tpu.memory_space<vmem>>, vector<1x8x8xbf16>
    %129 = vector.shape_cast %128 : vector<1x8x8xbf16> to vector<8x8xbf16>
    %cst_116 = arith.constant dense<0.000000e+00> : vector<8x128xf32>
    %130 = tpu.matmul %129, %94, %cst_116 {dimension_numbers = #tpu.dot_dimension_numbers<[1], [0], [0], [1], [0, 0, 1, 1], [], []>} : vector<8x8xbf16>, vector<8x128xbf16>, vector<8x128xf32> -> vector<8x128xf32>
    %131 = arith.truncf %130 : vector<8x128xf32> to vector<8x128xbf16>
    %c4_117 = arith.constant 4 : index
    %c0_118 = arith.constant 0 : index
    %c0_119 = arith.constant 0 : index
    %132 = vector.load %arg6[%c4_117, %c0_118, %c0_119] : memref<9x128x128xbf16, #tpu.memory_space<vmem>>, vector<1x128x128xbf16>
    %133 = vector.shape_cast %132 : vector<1x128x128xbf16> to vector<128x128xbf16>
    %cst_120 = arith.constant dense<0.000000e+00> : vector<8x128xf32>
    %134 = tpu.matmul %131, %133, %cst_120 {dimension_numbers = #tpu.dot_dimension_numbers<[1], [0], [0], [1], [0, 0, 1, 1], [], []>} : vector<8x128xbf16>, vector<128x128xbf16>, vector<8x128xf32> -> vector<8x128xf32>
    %135 = arith.addf %127, %134 : vector<8x128xf32>
    %c5_121 = arith.constant 5 : index
    %c0_122 = arith.constant 0 : index
    %c0_123 = arith.constant 0 : index
    %136 = vector.load %arg5[%c5_121, %c0_122, %c0_123] : memref<9x8x8xbf16, #tpu.memory_space<vmem>>, vector<1x8x8xbf16>
    %137 = vector.shape_cast %136 : vector<1x8x8xbf16> to vector<8x8xbf16>
    %cst_124 = arith.constant dense<0.000000e+00> : vector<8x128xf32>
    %138 = tpu.matmul %137, %94, %cst_124 {dimension_numbers = #tpu.dot_dimension_numbers<[1], [0], [0], [1], [0, 0, 1, 1], [], []>} : vector<8x8xbf16>, vector<8x128xbf16>, vector<8x128xf32> -> vector<8x128xf32>
    %139 = arith.truncf %138 : vector<8x128xf32> to vector<8x128xbf16>
    %c5_125 = arith.constant 5 : index
    %c0_126 = arith.constant 0 : index
    %c0_127 = arith.constant 0 : index
    %140 = vector.load %arg6[%c5_125, %c0_126, %c0_127] : memref<9x128x128xbf16, #tpu.memory_space<vmem>>, vector<1x128x128xbf16>
    %141 = vector.shape_cast %140 : vector<1x128x128xbf16> to vector<128x128xbf16>
    %cst_128 = arith.constant dense<0.000000e+00> : vector<8x128xf32>
    %142 = tpu.matmul %139, %141, %cst_128 {dimension_numbers = #tpu.dot_dimension_numbers<[1], [0], [0], [1], [0, 0, 1, 1], [], []>} : vector<8x128xbf16>, vector<128x128xbf16>, vector<8x128xf32> -> vector<8x128xf32>
    %143 = arith.addf %135, %142 : vector<8x128xf32>
    %c6_129 = arith.constant 6 : index
    %c0_130 = arith.constant 0 : index
    %c0_131 = arith.constant 0 : index
    %144 = vector.load %arg5[%c6_129, %c0_130, %c0_131] : memref<9x8x8xbf16, #tpu.memory_space<vmem>>, vector<1x8x8xbf16>
    %145 = vector.shape_cast %144 : vector<1x8x8xbf16> to vector<8x8xbf16>
    %cst_132 = arith.constant dense<0.000000e+00> : vector<8x128xf32>
    %146 = tpu.matmul %145, %94, %cst_132 {dimension_numbers = #tpu.dot_dimension_numbers<[1], [0], [0], [1], [0, 0, 1, 1], [], []>} : vector<8x8xbf16>, vector<8x128xbf16>, vector<8x128xf32> -> vector<8x128xf32>
    %147 = arith.truncf %146 : vector<8x128xf32> to vector<8x128xbf16>
    %c6_133 = arith.constant 6 : index
    %c0_134 = arith.constant 0 : index
    %c0_135 = arith.constant 0 : index
    %148 = vector.load %arg6[%c6_133, %c0_134, %c0_135] : memref<9x128x128xbf16, #tpu.memory_space<vmem>>, vector<1x128x128xbf16>
    %149 = vector.shape_cast %148 : vector<1x128x128xbf16> to vector<128x128xbf16>
    %cst_136 = arith.constant dense<0.000000e+00> : vector<8x128xf32>
    %150 = tpu.matmul %147, %149, %cst_136 {dimension_numbers = #tpu.dot_dimension_numbers<[1], [0], [0], [1], [0, 0, 1, 1], [], []>} : vector<8x128xbf16>, vector<128x128xbf16>, vector<8x128xf32> -> vector<8x128xf32>
    %151 = arith.addf %143, %150 : vector<8x128xf32>
    %c7_137 = arith.constant 7 : index
    %c0_138 = arith.constant 0 : index
    %c0_139 = arith.constant 0 : index
    %152 = vector.load %arg5[%c7_137, %c0_138, %c0_139] : memref<9x8x8xbf16, #tpu.memory_space<vmem>>, vector<1x8x8xbf16>
    %153 = vector.shape_cast %152 : vector<1x8x8xbf16> to vector<8x8xbf16>
    %cst_140 = arith.constant dense<0.000000e+00> : vector<8x128xf32>
    %154 = tpu.matmul %153, %94, %cst_140 {dimension_numbers = #tpu.dot_dimension_numbers<[1], [0], [0], [1], [0, 0, 1, 1], [], []>} : vector<8x8xbf16>, vector<8x128xbf16>, vector<8x128xf32> -> vector<8x128xf32>
    %155 = arith.truncf %154 : vector<8x128xf32> to vector<8x128xbf16>
    %c7_141 = arith.constant 7 : index
    %c0_142 = arith.constant 0 : index
    %c0_143 = arith.constant 0 : index
    %156 = vector.load %arg6[%c7_141, %c0_142, %c0_143] : memref<9x128x128xbf16, #tpu.memory_space<vmem>>, vector<1x128x128xbf16>
    %157 = vector.shape_cast %156 : vector<1x128x128xbf16> to vector<128x128xbf16>
    %cst_144 = arith.constant dense<0.000000e+00> : vector<8x128xf32>
    %158 = tpu.matmul %155, %157, %cst_144 {dimension_numbers = #tpu.dot_dimension_numbers<[1], [0], [0], [1], [0, 0, 1, 1], [], []>} : vector<8x128xbf16>, vector<128x128xbf16>, vector<8x128xf32> -> vector<8x128xf32>
    %159 = arith.addf %151, %158 : vector<8x128xf32>
    %c8_145 = arith.constant 8 : index
    %c0_146 = arith.constant 0 : index
    %c0_147 = arith.constant 0 : index
    %160 = vector.load %arg5[%c8_145, %c0_146, %c0_147] : memref<9x8x8xbf16, #tpu.memory_space<vmem>>, vector<1x8x8xbf16>
    %161 = vector.shape_cast %160 : vector<1x8x8xbf16> to vector<8x8xbf16>
    %cst_148 = arith.constant dense<0.000000e+00> : vector<8x128xf32>
    %162 = tpu.matmul %161, %94, %cst_148 {dimension_numbers = #tpu.dot_dimension_numbers<[1], [0], [0], [1], [0, 0, 1, 1], [], []>} : vector<8x8xbf16>, vector<8x128xbf16>, vector<8x128xf32> -> vector<8x128xf32>
    %163 = arith.truncf %162 : vector<8x128xf32> to vector<8x128xbf16>
    %c8_149 = arith.constant 8 : index
    %c0_150 = arith.constant 0 : index
    %c0_151 = arith.constant 0 : index
    %164 = vector.load %arg6[%c8_149, %c0_150, %c0_151] : memref<9x128x128xbf16, #tpu.memory_space<vmem>>, vector<1x128x128xbf16>
    %165 = vector.shape_cast %164 : vector<1x128x128xbf16> to vector<128x128xbf16>
    %cst_152 = arith.constant dense<0.000000e+00> : vector<8x128xf32>
    %166 = tpu.matmul %163, %165, %cst_152 {dimension_numbers = #tpu.dot_dimension_numbers<[1], [0], [0], [1], [0, 0, 1, 1], [], []>} : vector<8x128xbf16>, vector<128x128xbf16>, vector<8x128xf32> -> vector<8x128xf32>
    %167 = arith.addf %159, %166 : vector<8x128xf32>
    %c0_153 = arith.constant 0 : index
    %c0_154 = arith.constant 0 : index
    %168 = vector.load %arg7[%c0_153, %c0_154] : memref<1x128xf32, #tpu.memory_space<vmem>>, vector<1x128xf32>
    %169 = vector.broadcast %168 : vector<1x128xf32> to vector<8x128xf32>
    %170 = arith.mulf %167, %169 : vector<8x128xf32>
    %c0_155 = arith.constant 0 : index
    %c0_156 = arith.constant 0 : index
    %171 = vector.load %arg8[%c0_155, %c0_156] : memref<1x128xf32, #tpu.memory_space<vmem>>, vector<1x128xf32>
    %172 = vector.broadcast %171 : vector<1x128xf32> to vector<8x128xf32>
    %173 = arith.addf %170, %172 : vector<8x128xf32>
    %174 = arith.addf %173, %93 : vector<8x128xf32>
    %cst_157 = arith.constant 0.000000e+00 : f32
    %175 = vector.broadcast %cst_157 : f32 to vector<8x128xf32>
    %176 = arith.maximumf %174, %175 : vector<8x128xf32>
    %c0_158 = arith.constant 0 : index
    %c0_159 = arith.constant 0 : index
    %177 = vector.load %arg13[%c0_158, %c0_159] : memref<8x128xf32, #tpu.memory_space<vmem>>, vector<8x128xf32>
    tpu.vector_store %arg13[%c0_158, %c0_159], %176 {strides = array<i32>} : memref<8x128xf32, #tpu.memory_space<vmem>>, vector<8x128xf32>,
    return
  }
}

</mosaic_0001>

<llo_original>
// kernel: backbone_forward.5
$region0: #{backbone_forward.5}
  #allocation0 [shape = 'u32[]', space=smem, size = 0x4, offset = 0x4, fixed_abs, tag = 'smem constant byte address 0x4 - core index']
  #allocation1 [shape = 'u32[72,128]{1,0:T(1,128)}', space=vmem, size = 0x9000, scoped, tag = 'internal scratch']
  %s0 = inlined_call_operand.vmem [shape: bf16[512,147], index: 0, kind: input, shape index: {}]
  %s1 = inlined_call_operand.vmem [shape: bf16[147,16], index: 1, kind: input, shape index: {}]
  %s2 = inlined_call_operand.vmem [shape: f32[1,16], index: 2, kind: input, shape index: {}]
  %s3 = inlined_call_operand.vmem [shape: f32[1,16], index: 3, kind: input, shape index: {}]
  %s4 = inlined_call_operand.vmem [shape: f32[512,16], index: 4, kind: output, shape index: {}]
  %s5 = sld [smem:[#allocation0]]
  $region49: #{backbone_forward.5} parent=0
    _
  %s7 = ssub.s32 1, %s5
  %s8 = scalar_select 0, %s7, %s5
  loop: start=0, step=1, limit=4
  $region2: #{backbone_forward.5} parent=0 // loop_pre_header
    _
  $region3: #{backbone_forward.5} parent=0 // loop_header
    %s10 = sphi 0, %s14
    %p11 = scmp.ge.s32.totalorder %s10, 4
    %s20 = sphi 0, %s22
    %s23 = sphi 0, %s20
    %s24 = sphi 0, %s23
    %s40 = sphi 0, %s24
    %s44 = sphi 0, %s44
    %s46 = sphi 0, %s44
    %s47 = sphi 0, %s46
    %s61 = sphi 0, %s47
    %s65 = sphi 0, %s65
    %s67 = sphi 0, %s65
    %s68 = sphi 0, %s67
    %s82 = sphi 0, %s68
    %s86 = sphi 0, %s86
    %s88 = sphi 0, %s86
    %s89 = sphi 0, %s88
    %s103 = sphi 0, %s89
    %s109 = sphi 0, %s111
    %s112 = sphi 0, %s109
    %s113 = sphi 0, %s112
    %s129 = sphi 0, %s113
  $region4: #{backbone_forward.5} parent=0 // loop_header_branch
    %13 = sbr.rel (%p11) target = $region8
  $region5: #{backbone_forward.5} parent=0 // loop_body
    %s15 = ssub.s32 %s10, 1
    %s16 = ssub.s32 %s10, 2
    %s17 = sadd.s32 %s10, 1
    %s18 = ssub.s32 %s10, %s17
    %p19 = scmp.eq.s32.totalorder %s18, 0
    %s21 = sadd.s32 %s20, 1
    %s22 = scalar_select %p19, %s20, %s21
    %p25 = pneg %p19
    %p26 = scmp.eq.s32.totalorder %s10, 1
    %p27 = por %p25, %p26
    %p28 = scmp.ne.s32.totalorder %s20, %s23
    %p29 = scmp.eq.s32.totalorder %s10, 0
    %p30 = por %p28, %p29
    %p31 = scmp.ne.s32.totalorder %s20, %s23
    %p32 = scmp.eq.s32.totalorder %s15, 1
    %p33 = por %p31, %p32
    %p34 = scmp.ne.s32.totalorder %s23, %s24
    %p35 = scmp.eq.s32.totalorder %s15, 0
    %p36 = por %p34, %p35
    %p37 = scmp.ne.s32.totalorder %s23, %s24
    %p38 = scmp.eq.s32.totalorder %s16, 1
    %p39 = por %p37, %p38
    %p41 = scmp.ne.s32.totalorder %s24, %s40
    %p42 = scmp.eq.s32.totalorder %s16, 0
    %p43 = por %p41, %p42
    %s45 = sadd.s32 %s44, 1
    %p48 = scmp.eq.s32.totalorder %s10, 1
    %p49 = scmp.ne.s32.totalorder %s44, %s46
    %p50 = scmp.eq.s32.totalorder %s10, 0
    %p51 = por %p49, %p50
    %p52 = scmp.ne.s32.totalorder %s44, %s46
    %p53 = scmp.eq.s32.totalorder %s15, 1
    %p54 = por %p52, %p53
    %p55 = scmp.ne.s32.totalorder %s46, %s47
    %p56 = scmp.eq.s32.totalorder %s15, 0
    %p57 = por %p55, %p56
    %p58 = scmp.ne.s32.totalorder %s46, %s47
    %p59 = scmp.eq.s32.totalorder %s16, 1
    %p60 = por %p58, %p59
    %p62 = scmp.ne.s32.totalorder %s47, %s61
    %p63 = scmp.eq.s32.totalorder %s16, 0
    %p64 = por %p62, %p63
    %s66 = sadd.s32 %s65, 1
    %p69 = scmp.eq.s32.totalorder %s10, 1
    %p70 = scmp.ne.s32.totalorder %s65, %s67
    %p71 = scmp.eq.s32.totalorder %s10, 0
    %p72 = por %p70, %p71
    %p73 = scmp.ne.s32.totalorder %s65, %s67
    %p74 = scmp.eq.s32.totalorder %s15, 1
    %p75 = por %p73, %p74
    %p76 = scmp.ne.s32.totalorder %s67, %s68
    %p77 = scmp.eq.s32.totalorder %s15, 0
    %p78 = por %p76, %p77
    %p79 = scmp.ne.s32.totalorder %s67, %s68
    %p80 = scmp.eq.s32.totalorder %s16, 1
    %p81 = por %p79, %p80
    %p83 = scmp.ne.s32.totalorder %s68, %s82
    %p84 = scmp.eq.s32.totalorder %s16, 0
    %p85 = por %p83, %p84
    %s87 = sadd.s32 %s86, 1
    %p90 = scmp.eq.s32.totalorder %s10, 1
    %p91 = scmp.ne.s32.totalorder %s86, %s88
    %p92 = scmp.eq.s32.totalorder %s10, 0
    %p93 = por %p91, %p92
    %p94 = scmp.ne.s32.totalorder %s86, %s88
    %p95 = scmp.eq.s32.totalorder %s15, 1
    %p96 = por %p94, %p95
    %p97 = scmp.ne.s32.totalorder %s88, %s89
    %p98 = scmp.eq.s32.totalorder %s15, 0
    %p99 = por %p97, %p98
    %p100 = scmp.ne.s32.totalorder %s88, %s89
    %p101 = scmp.eq.s32.totalorder %s16, 1
    %p102 = por %p100, %p101
    %p104 = scmp.ne.s32.totalorder %s89, %s103
    %p105 = scmp.eq.s32.totalorder %s16, 0
    %p106 = por %p104, %p105
    %s107 = ssub.s32 %s10, %s17
    %p108 = scmp.eq.s32.totalorder %s107, 0
    %s110 = sadd.s32 %s109, 1
    %s111 = scalar_select %p108, %s109, %s110
    %p114 = pneg %p108
    %p115 = scmp.eq.s32.totalorder %s10, 1
    %p116 = por %p114, %p115
    %p117 = scmp.ne.s32.totalorder %s109, %s112
    %p118 = scmp.eq.s32.totalorder %s10, 0
    %p119 = por %p117, %p118
    %p120 = scmp.ne.s32.totalorder %s109, %s112
    %p121 = scmp.eq.s32.totalorder %s15, 1
    %p122 = por %p120, %p121
    %p123 = scmp.ne.s32.totalorder %s112, %s113
    %p124 = scmp.eq.s32.totalorder %s15, 0
    %p125 = por %p123, %p124
    %p126 = scmp.ne.s32.totalorder %s112, %s113
    %p127 = scmp.eq.s32.totalorder %s16, 1
    %p128 = por %p126, %p127
    %p130 = scmp.ne.s32.totalorder %s113, %s129
    %p131 = scmp.eq.s32.totalorder %s16, 0
    %p132 = por %p130, %p131
    %p133 = scmp.le.s32.totalorder 1, %s10
    %p134 = scmp.lt.s32.totalorder %s10, 3
    %p135 = pnand %p133, %p134
    %p136 = pneg %p135
    // Predicated region
    $region9: #{backbone_forward.5} parent=5 // pred_check
      _
    $region10: #{backbone_forward.5} parent=5 // pred_check_branch
      %138 = sbr.rel (%p135) target = $region12
    $region11: #{backbone_forward.5} parent=5 // pred_region
      %s139 = ssub.s32 %s10, 1
      // Predicated region
      $region13: #{backbone_forward.5} parent=11 // pred_check
        %p140 = pneg %p57
      $region14: #{backbone_forward.5} parent=11 // pred_check_branch
        %142 = sbr.rel (%p140) target = $region16
      $region15: #{backbone_forward.5} parent=11 // pred_region
        _
      $region16: #{backbone_forward.5} parent=11 // pred_fallthru
        _
      // Predicated region
      $region17: #{backbone_forward.5} parent=11 // pred_check
        %p143 = pneg %p78
      $region18: #{backbone_forward.5} parent=11 // pred_check_branch
        %145 = sbr.rel (%p143) target = $region20
      $region19: #{backbone_forward.5} parent=11 // pred_region
        _
      $region20: #{backbone_forward.5} parent=11 // pred_fallthru
        _
      // Predicated region
      $region21: #{backbone_forward.5} parent=11 // pred_check
        %p146 = pneg %p99
      $region22: #{backbone_forward.5} parent=11 // pred_check_branch
        %148 = sbr.rel (%p146) target = $region24
      $region23: #{backbone_forward.5} parent=11 // pred_region
        _
      $region24: #{backbone_forward.5} parent=11 // pred_fallthru
        _
    $region12: #{backbone_forward.5} parent=5 // pred_fallthru
      _
    %p149 = scmp.lt.s32.totalorder %s10, 2
    // Predicated region
    $region25: #{backbone_forward.5} parent=5 // pred_check
      %p150 = pneg %p149
    $region26: #{backbone_forward.5} parent=5 // pred_check_branch
      %152 = sbr.rel (%p150) target = $region28
    $region27: #{backbone_forward.5} parent=5 // pred_region
      // Predicated region
      $region29: #{backbone_forward.5} parent=27 // pred_check
        %p153 = pneg %p30
      $region30: #{backbone_forward.5} parent=27 // pred_check_branch
        %155 = sbr.rel (%p153) target = $region32
      $region31: #{backbone_forward.5} parent=27 // pred_region
        %s156 = smul.u32 32, %s10
        %p157 = scmp.lt.s32.totalorder %s156, 63
        %s158 = scalar_select %p157, %s156, 63
        %s159 = smul.addr %s158, 2
        %s160 = smul.addr %s159, 4
        %s161 = scalar_lea.vmem %s0, %s160
        %s162 = smul.u32 32, %s10
      $region32: #{backbone_forward.5} parent=27 // pred_fallthru
        _
    $region28: #{backbone_forward.5} parent=5 // pred_fallthru
      _
    %p163 = scmp.le.s32.totalorder 1, %s10
    %p164 = scmp.lt.s32.totalorder %s10, 3
    %p165 = pnand %p163, %p164
    %p166 = pneg %p165
    // Predicated region
    $region33: #{backbone_forward.5} parent=5 // pred_check
      _
    $region34: #{backbone_forward.5} parent=5 // pred_check_branch
      %168 = sbr.rel (%p165) target = $region36
    $region35: #{backbone_forward.5} parent=5 // pred_region
      %s169 = ssub.s32 %s10, 1
      %s170 = smul.u32 32, %s15
      %p171 = scmp.lt.s32.totalorder %s170, 63
      %s172 = scalar_select %p171, %s170, 63
      %s173 = smul.addr %s172, 2
      %s174 = smul.addr %s173, 4
      %s175 = scalar_lea.vmem %s0, %s174
      %p176 = pneg %p36
      %p177 = pneg %p33
      %p178 = pneg %p57
      %p179 = pneg %p54
      %p180 = pneg %p78
      %p181 = pneg %p75
      %p182 = pneg %p99
      %p183 = pneg %p96
      %p184 = pneg %p125
      %p185 = pneg %p122
      %s186 = smul.u32 32, %s15
      %p187 = scmp.lt.s32.totalorder %s186, 63
      %s188 = scalar_select %p187, %s186, 63
      %s189 = smul.addr %s188, 8
      %s190 = scalar_lea.vmem %s4, %s189
      %s191 = smul.u32 32, %s15
      %p192 = scmp.lt.s32.totalorder %s191, 63
      %s193 = scalar_select %p192, %s191, 63
      %s194 = smul.addr %s193, 2
      %s195 = smul.addr %s194, 4
      %s196 = scalar_lea.vmem %s0, %s195
      %s197 = smul.u32 32, %s15
      %s198 = smul.u32 32, %s15
      %p199 = scmp.lt.s32.totalorder %s198, 63
      %s200 = scalar_select %p199, %s198, 63
      %s201 = smul.addr %s200, 8
      %s202 = scalar_lea.vmem %s4, %s201
      %s203 = smul.u32 32, %s15
      %v205 = vld [vmem:[%s196] sm:$0xff]
      %v206 = vld [vmem:[%s196 + $0x8] sm:$0xff]
      %v207 = vld [vmem:[%s196 + $0x10] sm:$0xff]
      %v208 = vld [vmem:[%s196 + $0x18] sm:$0xff]
      %v209 = vld [vmem:[%s196 + $0x20] sm:$0xff]
      %v210 = vld [vmem:[%s196 + $0x28] sm:$0xff]
      %v211 = vld [vmem:[%s196 + $0x30] sm:$0xff]
      %v212 = vld [vmem:[%s196 + $0x38] sm:$0xff]
      %v213 = vld [vmem:[%s196 + $0x40] sm:$0xff]
      %v214 = vld [vmem:[%s196 + $0x48] sm:$0xff]
      %v215 = vld [vmem:[%s196 + $0x50] sm:$0xff]
      %v216 = vld [vmem:[%s196 + $0x58] sm:$0xff]
      %v217 = vld [vmem:[%s196 + $0x60] sm:$0xff]
      %v218 = vld [vmem:[%s196 + $0x68] sm:$0xff]
      %v219 = vld [vmem:[%s196 + $0x70] sm:$0xff]
      %v220 = vld [vmem:[%s196 + $0x78] sm:$0xff]
      %v221 = vld [vmem:[%s196 + $0x80] sm:$0xff]
      %v222 = vld [vmem:[%s196 + $0x88] sm:$0xff]
      %v223 = vld [vmem:[%s196 + $0x90] sm:$0xff]
      %v224 = vld [vmem:[%s196 + $0x98] sm:$0xff]
      %v225 = vld [vmem:[%s196 + $0xa0] sm:$0xff]
      %v226 = vld [vmem:[%s196 + $0xa8] sm:$0xff]
      %v227 = vld [vmem:[%s196 + $0xb0] sm:$0xff]
      %v228 = vld [vmem:[%s196 + $0xb8] sm:$0xff]
      %v229 = vld [vmem:[%s196 + $0xc0] sm:$0xff]
      %v230 = vld [vmem:[%s196 + $0xc8] sm:$0xff]
      %v231 = vld [vmem:[%s196 + $0xd0] sm:$0xff]
      %v232 = vld [vmem:[%s196 + $0xd8] sm:$0xff]
      %v233 = vld [vmem:[%s196 + $0xe0] sm:$0xff]
      %v234 = vld [vmem:[%s196 + $0xe8] sm:$0xff]
      %v235 = vld [vmem:[%s196 + $0xf0] sm:$0xff]
      %v236 = vld [vmem:[%s196 + $0xf8] sm:$0xff]
      %v237 = vld [vmem:[%s1] sm:$0xf]
      %v238 = vld [vmem:[%s1 + $0x4] sm:$0xf]
      %v239 = vld [vmem:[%s1 + $0x8] sm:$0xf]
      %v240 = vld [vmem:[%s1 + $0xc] sm:$0xf]
      %v241 = vld [vmem:[%s1 + $0x10] sm:$0xf]
      %v242 = vld [vmem:[%s1 + $0x14] sm:$0xf]
      %v243 = vld [vmem:[%s1 + $0x18] sm:$0xf]
      %v244 = vld [vmem:[%s1 + $0x1c] sm:$0xf]
      %v245 = vld [vmem:[%s1 + $0x20] sm:$0xf]
      %v246 = vld [vmem:[%s1 + $0x24] sm:$0xf]
      %v247 = vld [vmem:[%s1 + $0x28] sm:$0xf]
      %v248 = vld [vmem:[%s1 + $0x2c] sm:$0xf]
      %v249 = vld [vmem:[%s1 + $0x30] sm:$0xf]
      %v250 = vld [vmem:[%s1 + $0x34] sm:$0xf]
      %v251 = vld [vmem:[%s1 + $0x38] sm:$0xf]
      %v252 = vld [vmem:[%s1 + $0x3c] sm:$0xf]
      %v253 = vld [vmem:[%s1 + $0x40] sm:$0xf]
      %v254 = vld [vmem:[%s1 + $0x44] sm:$0xf]
      %v255 = vld [vmem:[%s1 + $0x48] sm:$0x3]
      %v288 = vunpack.c.l.b16 %v205
      %v289 = vunpack.c.h.b16 %v205
      %v290 = vunpack.c.l.b16 %v206
      %v291 = vunpack.c.h.b16 %v206
      %v292 = vunpack.c.l.b16 %v207
      %v293 = vunpack.c.h.b16 %v207
      %v294 = vunpack.c.l.b16 %v208
      %v295 = vunpack.c.h.b16 %v208
      %v296 = vunpack.c.l.b16 %v209
      %v297 = vunpack.c.h.b16 %v209
      %v298 = vunpack.c.l.b16 %v210
      %v299 = vunpack.c.h.b16 %v210
      %v300 = vunpack.c.l.b16 %v211
      %v301 = vunpack.c.h.b16 %v211
      %v302 = vunpack.c.l.b16 %v212
      %v303 = vunpack.c.h.b16 %v212
      %v304 = vunpack.c.l.b16 %v213
      %v305 = vunpack.c.h.b16 %v213
      %v306 = vunpack.c.l.b16 %v214
      %v307 = vunpack.c.h.b16 %v214
      %v308 = vunpack.c.l.b16 %v215
      %v309 = vunpack.c.h.b16 %v215
      %v310 = vunpack.c.l.b16 %v216
      %v311 = vunpack.c.h.b16 %v216
      %v312 = vunpack.c.l.b16 %v217
      %v313 = vunpack.c.h.b16 %v217
      %v314 = vunpack.c.l.b16 %v218
      %v315 = vunpack.c.h.b16 %v218
      %v316 = vunpack.c.l.b16 %v219
      %v317 = vunpack.c.h.b16 %v219
      %v318 = vunpack.c.l.b16 %v220
      %v319 = vunpack.c.h.b16 %v220
      %v320 = vunpack.c.l.b16 %v221
      %v321 = vunpack.c.h.b16 %v221
      %v322 = vunpack.c.l.b16 %v222
      %v323 = vunpack.c.h.b16 %v222
      %v324 = vunpack.c.l.b16 %v223
      %v325 = vunpack.c.h.b16 %v223
      %v326 = vunpack.c.l.b16 %v224
      %v327 = vunpack.c.h.b16 %v224
      %v328 = vunpack.c.l.b16 %v225
      %v329 = vunpack.c.h.b16 %v225
      %v330 = vunpack.c.l.b16 %v226
      %v331 = vunpack.c.h.b16 %v226
      %v332 = vunpack.c.l.b16 %v227
      %v333 = vunpack.c.h.b16 %v227
      %v334 = vunpack.c.l.b16 %v228
      %v335 = vunpack.c.h.b16 %v228
      %v336 = vunpack.c.l.b16 %v229
      %v337 = vunpack.c.h.b16 %v229
      %v338 = vunpack.c.l.b16 %v230
      %v339 = vunpack.c.h.b16 %v230
      %v340 = vunpack.c.l.b16 %v231
      %v341 = vunpack.c.h.b16 %v231
      %v342 = vunpack.c.l.b16 %v232
      %v343 = vunpack.c.h.b16 %v232
      %v344 = vunpack.c.l.b16 %v233
      %v345 = vunpack.c.h.b16 %v233
      %v346 = vunpack.c.l.b16 %v234
      %v347 = vunpack.c.h.b16 %v234
      %v348 = vunpack.c.l.b16 %v235
      %v349 = vunpack.c.h.b16 %v235
      %v350 = vunpack.c.l.b16 %v236
      %v351 = vunpack.c.h.b16 %v236
      %v352 = vpack.c.b16 %v290, %v288
      %v353 = vpack.c.b16 %v291, %v289
      %v354 = vpack.c.b16 %v294, %v292
      %v355 = vpack.c.b16 %v295, %v293
      %v356 = vpack.c.b16 %v298, %v296
      %v357 = vpack.c.b16 %v299, %v297
      %v358 = vpack.c.b16 %v302, %v300
      %v359 = vpack.c.b16 %v303, %v301
      %v360 = vpack.c.b16 %v306, %v304
      %v361 = vpack.c.b16 %v307, %v305
      %v362 = vpack.c.b16 %v310, %v308
      %v363 = vpack.c.b16 %v311, %v309
      %v364 = vpack.c.b16 %v314, %v312
      %v365 = vpack.c.b16 %v315, %v313
      %v366 = vpack.c.b16 %v318, %v316
      %v367 = vpack.c.b16 %v319, %v317
      %v368 = vpack.c.b16 %v322, %v320
      %v369 = vpack.c.b16 %v323, %v321
      %v370 = vpack.c.b16 %v326, %v324
      %v371 = vpack.c.b16 %v327, %v325
      %v372 = vpack.c.b16 %v330, %v328
      %v373 = vpack.c.b16 %v331, %v329
      %v374 = vpack.c.b16 %v334, %v332
      %v375 = vpack.c.b16 %v335, %v333
      %v376 = vpack.c.b16 %v338, %v336
      %v377 = vpack.c.b16 %v339, %v337
      %v378 = vpack.c.b16 %v342, %v340
      %v379 = vpack.c.b16 %v343, %v341
      %v380 = vpack.c.b16 %v346, %v344
      %v381 = vpack.c.b16 %v347, %v345
      %v382 = vpack.c.b16 %v350, %v348
      %v383 = vpack.c.b16 %v351, %v349
      %v419 = vunpack.c.l.b16 %v237
      %v420 = vunpack.c.l.b16 %v238
      %v421 = vunpack.c.l.b16 %v239
      %v422 = vunpack.c.l.b16 %v240
      %v423 = vunpack.c.l.b16 %v241
      %v424 = vunpack.c.l.b16 %v242
      %v425 = vunpack.c.l.b16 %v243
      %v426 = vunpack.c.l.b16 %v244
      %v427 = vunpack.c.l.b16 %v245
      %v428 = vunpack.c.l.b16 %v246
      %v429 = vunpack.c.l.b16 %v247
      %v430 = vunpack.c.l.b16 %v248
      %v431 = vunpack.c.l.b16 %v249
      %v432 = vunpack.c.l.b16 %v250
      %v433 = vunpack.c.l.b16 %v251
      %v434 = vunpack.c.l.b16 %v252
      %v435 = vunpack.c.l.b16 %v253
      %v436 = vunpack.c.l.b16 %v254
      %v437 = vunpack.c.l.b16 %v255
      %v438 = vpack.c.b16 %v420, %v419
      %v439 = vpack.c.b16 %v422, %v421
      %v440 = vpack.c.b16 %v424, %v423
      %v441 = vpack.c.b16 %v426, %v425
      %v442 = vpack.c.b16 %v428, %v427
      %v443 = vpack.c.b16 %v430, %v429
      %v444 = vpack.c.b16 %v432, %v431
      %v445 = vpack.c.b16 %v434, %v433
      %v446 = vpack.c.b16 %v436, %v435
      %v447 = vpack.c.b16 %v437, %v437
      %vm457 = vcmask 154624
      %v459 = vsel %vm457, %v353, 0
      %v462 = vsel %vm457, %v355, 0
      %v465 = vsel %vm457, %v357, 0
      %v468 = vsel %vm457, %v359, 0
      %v471 = vsel %vm457, %v361, 0
      %v474 = vsel %vm457, %v363, 0
      %v477 = vsel %vm457, %v365, 0
      %v480 = vsel %vm457, %v367, 0
      %v483 = vsel %vm457, %v369, 0
      %v486 = vsel %vm457, %v371, 0
      %v489 = vsel %vm457, %v373, 0
      %v492 = vsel %vm457, %v375, 0
      %v495 = vsel %vm457, %v377, 0
      %v498 = vsel %vm457, %v379, 0
      %v501 = vsel %vm457, %v381, 0
      %v504 = vsel %vm457, %v383, 0
      %vm506 = vcmask 1040384
      %vm507 = vcmask 1041408
      %v508 = vsel %vm506, 4294967295, 65535
      %v509 = vsel %vm507, %v508, 0
      %v511 = vand.u32 %v447, %v509
      %513 = vmatpush.bf16.msra.mxu0 %v445
      %514 = vmatpush.bf16.msra.mxu0 %v444
      %515 = vmatpush.bf16.msra.mxu0 %v443
      %516 = vmatpush.bf16.msra.mxu0 %v442
      %517 = vmatpush.bf16.msra.mxu0 %v441
      %518 = vmatpush.bf16.msra.mxu0 %v440
      %519 = vmatpush.bf16.msra.mxu0 %v439
      %520 = vmatpush.bf16.msra.mxu0 %v438
      %521 = vmatmul.bf16.gmra.mxu0 %v352
      %v522 = vpop.f32.mrf.mxu0
      %v523 = vadd.f32 0.0, %v522
      %v524 = vpop.f32.mrf.mxu0
      %v525 = vadd.f32 0.0, %v524
      %526 = vmatmul.bf16.gmra.mxu0 %v354
      %v527 = vpop.f32.mrf.mxu0
      %v528 = vadd.f32 0.0, %v527
      %v529 = vpop.f32.mrf.mxu0
      %v530 = vadd.f32 0.0, %v529
      %531 = vmatmul.bf16.gmra.mxu0 %v356
      %v532 = vpop.f32.mrf.mxu0
      %v533 = vadd.f32 0.0, %v532
      %v534 = vpop.f32.mrf.mxu0
      %v535 = vadd.f32 0.0, %v534
      %536 = vmatmul.bf16.gmra.mxu0 %v358
      %v537 = vpop.f32.mrf.mxu0
      %v538 = vadd.f32 0.0, %v537
      %v539 = vpop.f32.mrf.mxu0
      %v540 = vadd.f32 0.0, %v539
      %541 = vmatmul.bf16.gmra.mxu0 %v360
      %v542 = vpop.f32.mrf.mxu0
      %v543 = vadd.f32 0.0, %v542
      %v544 = vpop.f32.mrf.mxu0
      %v545 = vadd.f32 0.0, %v544
      %546 = vmatmul.bf16.gmra.mxu0 %v362
      %v547 = vpop.f32.mrf.mxu0
      %v548 = vadd.f32 0.0, %v547
      %v549 = vpop.f32.mrf.mxu0
      %v550 = vadd.f32 0.0, %v549
      %551 = vmatmul.bf16.gmra.mxu0 %v364
      %v552 = vpop.f32.mrf.mxu0
      %v553 = vadd.f32 0.0, %v552
      %v554 = vpop.f32.mrf.mxu0
      %v555 = vadd.f32 0.0, %v554
      %556 = vmatmul.bf16.gmra.mxu0 %v366
      %v557 = vpop.f32.mrf.mxu0
      %v558 = vadd.f32 0.0, %v557
      %v559 = vpop.f32.mrf.mxu0
      %v560 = vadd.f32 0.0, %v559
      %561 = vmatmul.bf16.gmra.mxu0 %v368
      %v562 = vpop.f32.mrf.mxu0
      %v563 = vadd.f32 0.0, %v562
      %v564 = vpop.f32.mrf.mxu0
      %v565 = vadd.f32 0.0, %v564
      %566 = vmatmul.bf16.gmra.mxu0 %v370
      %v567 = vpop.f32.mrf.mxu0
      %v568 = vadd.f32 0.0, %v567
      %v569 = vpop.f32.mrf.mxu0
      %v570 = vadd.f32 0.0, %v569
      %571 = vmatmul.bf16.gmra.mxu0 %v372
      %v572 = vpop.f32.mrf.mxu0
      %v573 = vadd.f32 0.0, %v572
      %v574 = vpop.f32.mrf.mxu0
      %v575 = vadd.f32 0.0, %v574
      %576 = vmatmul.bf16.gmra.mxu0 %v374
      %v577 = vpop.f32.mrf.mxu0
      %v578 = vadd.f32 0.0, %v577
      %v579 = vpop.f32.mrf.mxu0
      %v580 = vadd.f32 0.0, %v579
      %581 = vmatmul.bf16.gmra.mxu0 %v376
      %v582 = vpop.f32.mrf.mxu0
      %v583 = vadd.f32 0.0, %v582
      %v584 = vpop.f32.mrf.mxu0
      %v585 = vadd.f32 0.0, %v584
      %586 = vmatmul.bf16.gmra.mxu0 %v378
      %v587 = vpop.f32.mrf.mxu0
      %v588 = vadd.f32 0.0, %v587
      %v589 = vpop.f32.mrf.mxu0
      %v590 = vadd.f32 0.0, %v589
      %591 = vmatmul.bf16.gmra.mxu0 %v380
      %v592 = vpop.f32.mrf.mxu0
      %v593 = vadd.f32 0.0, %v592
      %v594 = vpop.f32.mrf.mxu0
      %v595 = vadd.f32 0.0, %v594
      %596 = vmatmul.bf16.gmra.mxu0 %v382
      %v597 = vpop.f32.mrf.mxu0
      %v598 = vadd.f32 0.0, %v597
      %v599 = vpop.f32.mrf.mxu0
      %v600 = vadd.f32 0.0, %v599
      %601 = vdwg.mxu0
      %602 = vmatpush.bf16.msra.mxu0 0
      %603 = vmatpush.bf16.msra.mxu0 0
      %604 = vmatpush.bf16.msra.mxu0 0
      %605 = vmatpush.bf16.msra.mxu0 0
      %606 = vmatpush.bf16.msra.mxu0 0
      %607 = vmatpush.bf16.msra.mxu0 0
      %608 = vmatpush.bf16.msra.mxu0 %v511
      %609 = vmatpush.bf16.msra.mxu0 %v446
      %610 = vmatmul.bf16.gmra.mxu0 %v459
      %v611 = vpop.f32.mrf.mxu0
      %v612 = vadd.f32 %v523, %v611
      %v613 = vpop.f32.mrf.mxu0
      %v614 = vadd.f32 %v525, %v613
      %615 = vmatmul.bf16.gmra.mxu0 %v462
      %v616 = vpop.f32.mrf.mxu0
      %v617 = vadd.f32 %v528, %v616
      %v618 = vpop.f32.mrf.mxu0
      %v619 = vadd.f32 %v530, %v618
      %620 = vmatmul.bf16.gmra.mxu0 %v465
      %v621 = vpop.f32.mrf.mxu0
      %v622 = vadd.f32 %v533, %v621
      %v623 = vpop.f32.mrf.mxu0
      %v624 = vadd.f32 %v535, %v623
      %625 = vmatmul.bf16.gmra.mxu0 %v468
      %v626 = vpop.f32.mrf.mxu0
      %v627 = vadd.f32 %v538, %v626
      %v628 = vpop.f32.mrf.mxu0
      %v629 = vadd.f32 %v540, %v628
      %630 = vmatmul.bf16.gmra.mxu0 %v471
      %v631 = vpop.f32.mrf.mxu0
      %v632 = vadd.f32 %v543, %v631
      %v633 = vpop.f32.mrf.mxu0
      %v634 = vadd.f32 %v545, %v633
      %635 = vmatmul.bf16.gmra.mxu0 %v474
      %v636 = vpop.f32.mrf.mxu0
      %v637 = vadd.f32 %v548, %v636
      %v638 = vpop.f32.mrf.mxu0
      %v639 = vadd.f32 %v550, %v638
      %640 = vmatmul.bf16.gmra.mxu0 %v477
      %v641 = vpop.f32.mrf.mxu0
      %v642 = vadd.f32 %v553, %v641
      %v643 = vpop.f32.mrf.mxu0
      %v644 = vadd.f32 %v555, %v643
      %645 = vmatmul.bf16.gmra.mxu0 %v480
      %v646 = vpop.f32.mrf.mxu0
      %v647 = vadd.f32 %v558, %v646
      %v648 = vpop.f32.mrf.mxu0
      %v649 = vadd.f32 %v560, %v648
      %650 = vmatmul.bf16.gmra.mxu0 %v483
      %v651 = vpop.f32.mrf.mxu0
      %v652 = vadd.f32 %v563, %v651
      %v653 = vpop.f32.mrf.mxu0
      %v654 = vadd.f32 %v565, %v653
      %655 = vmatmul.bf16.gmra.mxu0 %v486
      %v656 = vpop.f32.mrf.mxu0
      %v657 = vadd.f32 %v568, %v656
      %v658 = vpop.f32.mrf.mxu0
      %v659 = vadd.f32 %v570, %v658
      %660 = vmatmul.bf16.gmra.mxu0 %v489
      %v661 = vpop.f32.mrf.mxu0
      %v662 = vadd.f32 %v573, %v661
      %v663 = vpop.f32.mrf.mxu0
      %v664 = vadd.f32 %v575, %v663
      %665 = vmatmul.bf16.gmra.mxu0 %v492
      %v666 = vpop.f32.mrf.mxu0
      %v667 = vadd.f32 %v578, %v666
      %v668 = vpop.f32.mrf.mxu0
      %v669 = vadd.f32 %v580, %v668
      %670 = vmatmul.bf16.gmra.mxu0 %v495
      %v671 = vpop.f32.mrf.mxu0
      %v672 = vadd.f32 %v583, %v671
      %v673 = vpop.f32.mrf.mxu0
      %v674 = vadd.f32 %v585, %v673
      %675 = vmatmul.bf16.gmra.mxu0 %v498
      %v676 = vpop.f32.mrf.mxu0
      %v677 = vadd.f32 %v588, %v676
      %v678 = vpop.f32.mrf.mxu0
      %v679 = vadd.f32 %v590, %v678
      %680 = vmatmul.bf16.gmra.mxu0 %v501
      %v681 = vpop.f32.mrf.mxu0
      %v682 = vadd.f32 %v593, %v681
      %v683 = vpop.f32.mrf.mxu0
      %v684 = vadd.f32 %v595, %v683
      %685 = vmatmul.bf16.gmra.mxu0 %v504
      %v686 = vpop.f32.mrf.mxu0
      %v687 = vadd.f32 %v598, %v686
      %v688 = vpop.f32.mrf.mxu0
      %v689 = vadd.f32 %v600, %v688
      %690 = vdwg.mxu0
      %v691 = vld [vmem:[%s2] sm:$0x1]
      %v693 = vperm.slane %v691, 0
      %v695 = vmul.f32 %v612, %v693
      %v696 = vmul.f32 %v614, %v693
      %v697 = vmul.f32 %v617, %v693
      %v698 = vmul.f32 %v619, %v693
      %v699 = vmul.f32 %v622, %v693
      %v700 = vmul.f32 %v624, %v693
      %v701 = vmul.f32 %v627, %v693
      %v702 = vmul.f32 %v629, %v693
      %v703 = vmul.f32 %v632, %v693
      %v704 = vmul.f32 %v634, %v693
      %v705 = vmul.f32 %v637, %v693
      %v706 = vmul.f32 %v639, %v693
      %v707 = vmul.f32 %v642, %v693
      %v708 = vmul.f32 %v644, %v693
      %v709 = vmul.f32 %v647, %v693
      %v710 = vmul.f32 %v649, %v693
      %v711 = vmul.f32 %v652, %v693
      %v712 = vmul.f32 %v654, %v693
      %v713 = vmul.f32 %v657, %v693
      %v714 = vmul.f32 %v659, %v693
      %v715 = vmul.f32 %v662, %v693
      %v716 = vmul.f32 %v664, %v693
      %v717 = vmul.f32 %v667, %v693
      %v718 = vmul.f32 %v669, %v693
      %v719 = vmul.f32 %v672, %v693
      %v720 = vmul.f32 %v674, %v693
      %v721 = vmul.f32 %v677, %v693
      %v722 = vmul.f32 %v679, %v693
      %v723 = vmul.f32 %v682, %v693
      %v724 = vmul.f32 %v684, %v693
      %v725 = vmul.f32 %v687, %v693
      %v726 = vmul.f32 %v689, %v693
      %v727 = vld [vmem:[%s3] sm:$0x1]
      %v729 = vperm.slane %v727, 0
      %v731 = vadd.f32 %v695, %v729
      %v732 = vadd.f32 %v696, %v729
      %v733 = vadd.f32 %v697, %v729
      %v734 = vadd.f32 %v698, %v729
      %v735 = vadd.f32 %v699, %v729
      %v736 = vadd.f32 %v700, %v729
      %v737 = vadd.f32 %v701, %v729
      %v738 = vadd.f32 %v702, %v729
      %v739 = vadd.f32 %v703, %v729
      %v740 = vadd.f32 %v704, %v729
      %v741 = vadd.f32 %v705, %v729
      %v742 = vadd.f32 %v706, %v729
      %v743 = vadd.f32 %v707, %v729
      %v744 = vadd.f32 %v708, %v729
      %v745 = vadd.f32 %v709, %v729
      %v746 = vadd.f32 %v710, %v729
      %v747 = vadd.f32 %v711, %v729
      %v748 = vadd.f32 %v712, %v729
      %v749 = vadd.f32 %v713, %v729
      %v750 = vadd.f32 %v714, %v729
      %v751 = vadd.f32 %v715, %v729
      %v752 = vadd.f32 %v716, %v729
      %v753 = vadd.f32 %v717, %v729
      %v754 = vadd.f32 %v718, %v729
      %v755 = vadd.f32 %v719, %v729
      %v756 = vadd.f32 %v720, %v729
      %v757 = vadd.f32 %v721, %v729
      %v758 = vadd.f32 %v722, %v729
      %v759 = vadd.f32 %v723, %v729
      %v760 = vadd.f32 %v724, %v729
      %v761 = vadd.f32 %v725, %v729
      %v762 = vadd.f32 %v726, %v729
      %v763 = vmax.f32 %v731, 0.0
      %v764 = vmax.f32 %v732, 0.0
      %v765 = vmax.f32 %v733, 0.0
      %v766 = vmax.f32 %v734, 0.0
      %v767 = vmax.f32 %v735, 0.0
      %v768 = vmax.f32 %v736, 0.0
      %v769 = vmax.f32 %v737, 0.0
      %v770 = vmax.f32 %v738, 0.0
      %v771 = vmax.f32 %v739, 0.0
      %v772 = vmax.f32 %v740, 0.0
      %v773 = vmax.f32 %v741, 0.0
      %v774 = vmax.f32 %v742, 0.0
      %v775 = vmax.f32 %v743, 0.0
      %v776 = vmax.f32 %v744, 0.0
      %v777 = vmax.f32 %v745, 0.0
      %v778 = vmax.f32 %v746, 0.0
      %v779 = vmax.f32 %v747, 0.0
      %v780 = vmax.f32 %v748, 0.0
      %v781 = vmax.f32 %v749, 0.0
      %v782 = vmax.f32 %v750, 0.0
      %v783 = vmax.f32 %v751, 0.0
      %v784 = vmax.f32 %v752, 0.0
      %v785 = vmax.f32 %v753, 0.0
      %v786 = vmax.f32 %v754, 0.0
      %v787 = vmax.f32 %v755, 0.0
      %v788 = vmax.f32 %v756, 0.0
      %v789 = vmax.f32 %v757, 0.0
      %v790 = vmax.f32 %v758, 0.0
      %v791 = vmax.f32 %v759, 0.0
      %v792 = vmax.f32 %v760, 0.0
      %v793 = vmax.f32 %v761, 0.0
      %v794 = vmax.f32 %v762, 0.0
      %vm795 = vcmask 130048
      %796 = vst.msk [vmem:[%s202] sm:$0xff] %vm795, %v763
      %797 = vst.msk [vmem:[%s202 + $0x8] sm:$0xff] %vm795, %v764
      %798 = vst.msk [vmem:[%s202 + $0x10] sm:$0xff] %vm795, %v765
      %799 = vst.msk [vmem:[%s202 + $0x18] sm:$0xff] %vm795, %v766
      %800 = vst.msk [vmem:[%s202 + $0x20] sm:$0xff] %vm795, %v767
      %801 = vst.msk [vmem:[%s202 + $0x28] sm:$0xff] %vm795, %v768
      %802 = vst.msk [vmem:[%s202 + $0x30] sm:$0xff] %vm795, %v769
      %803 = vst.msk [vmem:[%s202 + $0x38] sm:$0xff] %vm795, %v770
      %804 = vst.msk [vmem:[%s202 + $0x40] sm:$0xff] %vm795, %v771
      %805 = vst.msk [vmem:[%s202 + $0x48] sm:$0xff] %vm795, %v772
      %806 = vst.msk [vmem:[%s202 + $0x50] sm:$0xff] %vm795, %v773
      %807 = vst.msk [vmem:[%s202 + $0x58] sm:$0xff] %vm795, %v774
      %808 = vst.msk [vmem:[%s202 + $0x60] sm:$0xff] %vm795, %v775
      %809 = vst.msk [vmem:[%s202 + $0x68] sm:$0xff] %vm795, %v776
      %810 = vst.msk [vmem:[%s202 + $0x70] sm:$0xff] %vm795, %v777
      %811 = vst.msk [vmem:[%s202 + $0x78] sm:$0xff] %vm795, %v778
      %812 = vst.msk [vmem:[%s202 + $0x80] sm:$0xff] %vm795, %v779
      %813 = vst.msk [vmem:[%s202 + $0x88] sm:$0xff] %vm795, %v780
      %814 = vst.msk [vmem:[%s202 + $0x90] sm:$0xff] %vm795, %v781
      %815 = vst.msk [vmem:[%s202 + $0x98] sm:$0xff] %vm795, %v782
      %816 = vst.msk [vmem:[%s202 + $0xa0] sm:$0xff] %vm795, %v783
      %817 = vst.msk [vmem:[%s202 + $0xa8] sm:$0xff] %vm795, %v784
      %818 = vst.msk [vmem:[%s202 + $0xb0] sm:$0xff] %vm795, %v785
      %819 = vst.msk [vmem:[%s202 + $0xb8] sm:$0xff] %vm795, %v786
      %820 = vst.msk [vmem:[%s202 + $0xc0] sm:$0xff] %vm795, %v787
      %821 = vst.msk [vmem:[%s202 + $0xc8] sm:$0xff] %vm795, %v788
      %822 = vst.msk [vmem:[%s202 + $0xd0] sm:$0xff] %vm795, %v789
      %823 = vst.msk [vmem:[%s202 + $0xd8] sm:$0xff] %vm795, %v790
      %824 = vst.msk [vmem:[%s202 + $0xe0] sm:$0xff] %vm795, %v791
      %825 = vst.msk [vmem:[%s202 + $0xe8] sm:$0xff] %vm795, %v792
      %826 = vst.msk [vmem:[%s202 + $0xf0] sm:$0xff] %vm795, %v793
      %827 = vst.msk [vmem:[%s202 + $0xf8] sm:$0xff] %vm795, %v794
      %s828 = smul.u32 32, %s15
      %p829 = scmp.lt.s32.totalorder %s828, 63
      %s830 = scalar_select %p829, %s828, 63
      %s831 = smul.addr %s830, 8
      %s832 = scalar_lea.vmem %s4, %s831
      // Predicated region
      $region37: #{backbone_forward.5} parent=35 // pred_check
        %p833 = pneg %p122
      $region38: #{backbone_forward.5} parent=35 // pred_check_branch
        %835 = sbr.rel (%p833) target = $region40
      $region39: #{backbone_forward.5} parent=35 // pred_region
        %s836 = smul.u32 32, %s15
      $region40: #{backbone_forward.5} parent=35 // pred_fallthru
        _
    $region36: #{backbone_forward.5} parent=5 // pred_fallthru
      _
    %p837 = scmp.le.s32.totalorder 2, %s10
    // Predicated region
    $region41: #{backbone_forward.5} parent=5 // pred_check
      %p838 = pneg %p837
    $region42: #{backbone_forward.5} parent=5 // pred_check_branch
      %840 = sbr.rel (%p838) target = $region44
    $region43: #{backbone_forward.5} parent=5 // pred_region
      %s841 = ssub.s32 %s10, 2
      // Predicated region
      $region45: #{backbone_forward.5} parent=43 // pred_check
        %p842 = pneg %p128
      $region46: #{backbone_forward.5} parent=43 // pred_check_branch
        %844 = sbr.rel (%p842) target = $region48
      $region47: #{backbone_forward.5} parent=43 // pred_region
        %s845 = smul.u32 32, %s16
        %p846 = scmp.lt.s32.totalorder %s845, 63
        %s847 = scalar_select %p846, %s845, 63
        %s848 = smul.addr %s847, 8
        %s849 = scalar_lea.vmem %s4, %s848
      $region48: #{backbone_forward.5} parent=43 // pred_fallthru
        _
    $region44: #{backbone_forward.5} parent=5 // pred_fallthru
      _
  $region6: #{backbone_forward.5} parent=0 // loop_footer
    %s14 = sadd.s32 1, %s10
  $region7: #{backbone_forward.5} parent=0 // loop_footer_branch
    %9 = sbr.rel target = $region3
  $region8: #{backbone_forward.5} parent=0 // loop_exit
    _

// kernel: backbone_forward.7
$region0: #{backbone_forward.7}
  #allocation0 [shape = 'u32[]', space=smem, size = 0x4, offset = 0x4, fixed_abs, tag = 'smem constant byte address 0x4 - core index']
  #allocation1 [shape = 'u32[72,128]{1,0:T(1,128)}', space=vmem, size = 0x9000, scoped, tag = 'internal scratch']
  %s0 = inlined_call_operand.vmem [shape: f32[128,16], index: 0, kind: input, shape index: {}]
  %s1 = inlined_call_operand.vmem [shape: bf16[9,32,128], index: 1, kind: input, shape index: {}]
  %s2 = inlined_call_operand.vmem [shape: bf16[9,16,32], index: 2, kind: input, shape index: {}]
  %s3 = inlined_call_operand.vmem [shape: f32[1,32], index: 3, kind: input, shape index: {}]
  %s4 = inlined_call_operand.vmem [shape: f32[1,32], index: 4, kind: input, shape index: {}]
  %s5 = inlined_call_operand.vmem [shape: bf16[9,32,32], index: 5, kind: input, shape index: {}]
  %s6 = inlined_call_operand.vmem [shape: bf16[9,32,32], index: 6, kind: input, shape index: {}]
  %s7 = inlined_call_operand.vmem [shape: f32[1,32], index: 7, kind: input, shape index: {}]
  %s8 = inlined_call_operand.vmem [shape: f32[1,32], index: 8, kind: input, shape index: {}]
  %s9 = inlined_call_operand.vmem [shape: bf16[32,128], index: 9, kind: input, shape index: {}]
  %s10 = inlined_call_operand.vmem [shape: bf16[16,32], index: 10, kind: input, shape index: {}]
  %s11 = inlined_call_operand.vmem [shape: f32[1,32], index: 11, kind: input, shape index: {}]
  %s12 = inlined_call_operand.vmem [shape: f32[1,32], index: 12, kind: input, shape index: {}]
  %s13 = inlined_call_operand.vmem [shape: f32[32,32], index: 13, kind: output, shape index: {}]
  %s14 = sld [smem:[#allocation0]]
  $region62: #{backbone_forward.7} parent=0
    _
  %s16 = ssub.s32 1, %s14
  %s17 = scalar_select 0, %s16, %s14
  // Predicated region
  $region2: #{backbone_forward.7} parent=0 // pred_check
    _
  $region3: #{backbone_forward.7} parent=0 // pred_check_branch
    %19 = sbr.rel (0) target = $region5
  $region4: #{backbone_forward.7} parent=0 // pred_region
    _
  $region5: #{backbone_forward.7} parent=0 // pred_fallthru
    _
  // Predicated region
  $region6: #{backbone_forward.7} parent=0 // pred_check
    _
  $region7: #{backbone_forward.7} parent=0 // pred_check_branch
    %21 = sbr.rel (0) target = $region9
  $region8: #{backbone_forward.7} parent=0 // pred_region
    _
  $region9: #{backbone_forward.7} parent=0 // pred_fallthru
    _
  // Predicated region
  $region10: #{backbone_forward.7} parent=0 // pred_check
    _
  $region11: #{backbone_forward.7} parent=0 // pred_check_branch
    %23 = sbr.rel (0) target = $region13
  $region12: #{backbone_forward.7} parent=0 // pred_region
    _
  $region13: #{backbone_forward.7} parent=0 // pred_fallthru
    _
  // Predicated region
  $region14: #{backbone_forward.7} parent=0 // pred_check
    _
  $region15: #{backbone_forward.7} parent=0 // pred_check_branch
    %25 = sbr.rel (0) target = $region17
  $region16: #{backbone_forward.7} parent=0 // pred_region
    _
  $region17: #{backbone_forward.7} parent=0 // pred_fallthru
    _
  // Predicated region
  $region18: #{backbone_forward.7} parent=0 // pred_check
    _
  $region19: #{backbone_forward.7} parent=0 // pred_check_branch
    %27 = sbr.rel (0) target = $region21
  $region20: #{backbone_forward.7} parent=0 // pred_region
    _
  $region21: #{backbone_forward.7} parent=0 // pred_fallthru
    _
  // Predicated region
  $region22: #{backbone_forward.7} parent=0 // pred_check
    _
  $region23: #{backbone_forward.7} parent=0 // pred_check_branch
    %29 = sbr.rel (0) target = $region25
  $region24: #{backbone_forward.7} parent=0 // pred_region
    _
  $region25: #{backbone_forward.7} parent=0 // pred_fallthru
    _
  // Predicated region
  $region26: #{backbone_forward.7} parent=0 // pred_check
    _
  $region27: #{backbone_forward.7} parent=0 // pred_check_branch
    %31 = sbr.rel (0) target = $region29
  $region28: #{backbone_forward.7} parent=0 // pred_region
    _
  $region29: #{backbone_forward.7} parent=0 // pred_fallthru
    _
  // Predicated region
  $region30: #{backbone_forward.7} parent=0 // pred_check
    _
  $region31: #{backbone_forward.7} parent=0 // pred_check_branch
    %33 = sbr.rel (0) target = $region33
  $region32: #{backbone_forward.7} parent=0 // pred_region
    _
  $region33: #{backbone_forward.7} parent=0 // pred_fallthru
    _
  // Predicated region
  $region34: #{backbone_forward.7} parent=0 // pred_check
    _
  $region35: #{backbone_forward.7} parent=0 // pred_check_branch
    %35 = sbr.rel (0) target = $region37
  $region36: #{backbone_forward.7} parent=0 // pred_region
    _
  $region37: #{backbone_forward.7} parent=0 // pred_fallthru
    _
  // Predicated region
  $region38: #{backbone_forward.7} parent=0 // pred_check
    _
  $region39: #{backbone_forward.7} parent=0 // pred_check_branch
    %37 = sbr.rel (0) target = $region41
  $region40: #{backbone_forward.7} parent=0 // pred_region
    _
  $region41: #{backbone_forward.7} parent=0 // pred_fallthru
    _
  // Predicated region
  $region42: #{backbone_forward.7} parent=0 // pred_check
    _
  $region43: #{backbone_forward.7} parent=0 // pred_check_branch
    %39 = sbr.rel (0) target = $region45
  $region44: #{backbone_forward.7} parent=0 // pred_region
    _
  $region45: #{backbone_forward.7} parent=0 // pred_fallthru
    _
  // Predicated region
  $region46: #{backbone_forward.7} parent=0 // pred_check
    _
  $region47: #{backbone_forward.7} parent=0 // pred_check_branch
    %41 = sbr.rel (0) target = $region49
  $region48: #{backbone_forward.7} parent=0 // pred_region
    _
  $region49: #{backbone_forward.7} parent=0 // pred_fallthru
    _
  // Predicated region
  $region50: #{backbone_forward.7} parent=0 // pred_check
    _
  $region51: #{backbone_forward.7} parent=0 // pred_check_branch
    %43 = sbr.rel (0) target = $region53
  $region52: #{backbone_forward.7} parent=0 // pred_region
    _
  $region53: #{backbone_forward.7} parent=0 // pred_fallthru
    _
  %v45 = vld [vmem:[%s0] sm:$0xff]
  %v46 = vld [vmem:[%s0 + $0x8] sm:$0xff]
  %v47 = vld [vmem:[%s0 + $0x10] sm:$0xff]
  %v48 = vld [vmem:[%s0 + $0x18] sm:$0xff]
  %v49 = vld [vmem:[%s0 + $0x20] sm:$0xff]
  %v50 = vld [vmem:[%s0 + $0x28] sm:$0xff]
  %v51 = vld [vmem:[%s0 + $0x30] sm:$0xff]
  %v52 = vld [vmem:[%s0 + $0x38] sm:$0xff]
  %v53 = vld [vmem:[%s0 + $0x40] sm:$0xff]
  %v54 = vld [vmem:[%s0 + $0x48] sm:$0xff]
  %v55 = vld [vmem:[%s0 + $0x50] sm:$0xff]
  %v56 = vld [vmem:[%s0 + $0x58] sm:$0xff]
  %v57 = vld [vmem:[%s0 + $0x60] sm:$0xff]
  %v58 = vld [vmem:[%s0 + $0x68] sm:$0xff]
  %v59 = vld [vmem:[%s0 + $0x70] sm:$0xff]
  %v60 = vld [vmem:[%s0 + $0x78] sm:$0xff]
  %v61 = vpack.c.bf16 %v46, %v45
  %v62 = vpack.c.bf16 %v48, %v47
  %v63 = vpack.c.bf16 %v50, %v49
  %v64 = vpack.c.bf16 %v52, %v51
  %v65 = vpack.c.bf16 %v54, %v53
  %v66 = vpack.c.bf16 %v56, %v55
  %v67 = vpack.c.bf16 %v58, %v57
  %v68 = vpack.c.bf16 %v60, %v59
  %v69 = vld [vmem:[%s1] sm:$0xf]
  %v70 = vld [vmem:[%s1 + $0x4] sm:$0xf]
  %v71 = vld [vmem:[%s1 + $0x8] sm:$0xf]
  %v72 = vld [vmem:[%s1 + $0xc] sm:$0xf]
  %v77 = vunpack.c.l.b16 %v69
  %v78 = vunpack.c.l.b16 %v70
  %v79 = vunpack.c.l.b16 %v71
  %v80 = vunpack.c.l.b16 %v72
  %v81 = vpack.c.b16 %v78, %v77
  %v82 = vpack.c.b16 %v80, %v79
  %85 = vmatpush.bf16.msra.mxu0 %v68
  %86 = vmatpush.bf16.msra.mxu0 %v67
  %87 = vmatpush.bf16.msra.mxu0 %v66
  %88 = vmatpush.bf16.msra.mxu0 %v65
  %89 = vmatpush.bf16.msra.mxu0 %v64
  %90 = vmatpush.bf16.msra.mxu0 %v63
  %91 = vmatpush.bf16.msra.mxu0 %v62
  %92 = vmatpush.bf16.msra.mxu0 %v61
  %93 = vmatmul.bf16.gmra.mxu0 %v81
  %v94 = vpop.f32.mrf.mxu0
  %v95 = vadd.f32 0.0, %v94
  %v96 = vpop.f32.mrf.mxu0
  %v97 = vadd.f32 0.0, %v96
  %98 = vmatmul.bf16.gmra.mxu0 %v82
  %v99 = vpop.f32.mrf.mxu0
  %v100 = vadd.f32 0.0, %v99
  %v101 = vpop.f32.mrf.mxu0
  %v102 = vadd.f32 0.0, %v101
  %103 = vdwg.mxu0
  %v104 = vpack.c.bf16 %v97, %v95
  %v105 = vpack.c.bf16 %v102, %v100
  %v106 = vld [vmem:[%s2] sm:$0xf]
  %v107 = vld [vmem:[%s2 + $0x4] sm:$0xf]
  %s108 = scalar_lea.vmem %s1, 16
  %v109 = vld [vmem:[%s108] sm:$0xf]
  %v110 = vld [vmem:[%s108 + $0x4] sm:$0xf]
  %v111 = vld [vmem:[%s108 + $0x8] sm:$0xf]
  %v112 = vld [vmem:[%s108 + $0xc] sm:$0xf]
  %v117 = vunpack.c.l.b16 %v109
  %v118 = vunpack.c.l.b16 %v110
  %v119 = vunpack.c.l.b16 %v111
  %v120 = vunpack.c.l.b16 %v112
  %v121 = vpack.c.b16 %v118, %v117
  %v122 = vpack.c.b16 %v120, %v119
  %125 = vmatpush.bf16.msra.mxu0 %v68
  %126 = vmatpush.bf16.msra.mxu0 %v67
  %127 = vmatpush.bf16.msra.mxu0 %v66
  %128 = vmatpush.bf16.msra.mxu0 %v65
  %129 = vmatpush.bf16.msra.mxu0 %v64
  %130 = vmatpush.bf16.msra.mxu0 %v63
  %131 = vmatpush.bf16.msra.mxu0 %v62
  %132 = vmatpush.bf16.msra.mxu0 %v61
  %133 = vmatmul.bf16.gmra.mxu0 %v121
  %v134 = vpop.f32.mrf.mxu0
  %v135 = vadd.f32 0.0, %v134
  %v136 = vpop.f32.mrf.mxu0
  %v137 = vadd.f32 0.0, %v136
  %138 = vmatmul.bf16.gmra.mxu0 %v122
  %v139 = vpop.f32.mrf.mxu0
  %v140 = vadd.f32 0.0, %v139
  %v141 = vpop.f32.mrf.mxu0
  %v142 = vadd.f32 0.0, %v141
  %143 = vdwg.mxu0
  %v144 = vpack.c.bf16 %v137, %v135
  %v145 = vpack.c.bf16 %v142, %v140
  %s146 = scalar_lea.vmem %s2, 8
  %v147 = vld [vmem:[%s146] sm:$0xf]
  %v148 = vld [vmem:[%s146 + $0x4] sm:$0xf]
  %v151 = vunpack.c.l.b16 %v147
  %v152 = vunpack.c.l.b16 %v148
  %v153 = vpack.c.b16 %v152, %v151
  %vm155 = vcmask 130048
  %v157 = vsel %vm155, %v144, 0
  %v160 = vsel %vm155, %v145, 0
  %162 = vmatpush.bf16.msra.mxu0 0
  %163 = vmatpush.bf16.msra.mxu0 0
  %164 = vmatpush.bf16.msra.mxu0 0
  %165 = vmatpush.bf16.msra.mxu0 0
  %166 = vmatpush.bf16.msra.mxu0 0
  %167 = vmatpush.bf16.msra.mxu0 0
  %168 = vmatpush.bf16.msra.mxu0 0
  %169 = vmatpush.bf16.msra.mxu0 %v153
  %170 = vmatmul.bf16.gmra.mxu0 %v157
  %v171 = vpop.f32.mrf.mxu0
  %v172 = vadd.f32 0.0, %v171
  %v173 = vpop.f32.mrf.mxu0
  %v174 = vadd.f32 0.0, %v173
  %175 = vmatmul.bf16.gmra.mxu0 %v160
  %v176 = vpop.f32.mrf.mxu0
  %v177 = vadd.f32 0.0, %v176
  %v178 = vpop.f32.mrf.mxu0
  %v179 = vadd.f32 0.0, %v178
  %180 = vdwg.mxu0
  %v183 = vunpack.c.l.b16 %v106
  %v184 = vunpack.c.l.b16 %v107
  %v185 = vpack.c.b16 %v184, %v183
  %v188 = vsel %vm155, %v104, 0
  %v191 = vsel %vm155, %v105, 0
  %193 = vmatpush.bf16.msra.mxu0 0
  %194 = vmatpush.bf16.msra.mxu0 0
  %195 = vmatpush.bf16.msra.mxu0 0
  %196 = vmatpush.bf16.msra.mxu0 0
  %197 = vmatpush.bf16.msra.mxu0 0
  %198 = vmatpush.bf16.msra.mxu0 0
  %199 = vmatpush.bf16.msra.mxu0 0
  %200 = vmatpush.bf16.msra.mxu0 %v185
  %201 = vmatmul.bf16.gmra.mxu0 %v188
  %v202 = vpop.f32.mrf.mxu0
  %v203 = vadd.f32 %v172, %v202
  %v204 = vpop.f32.mrf.mxu0
  %v205 = vadd.f32 %v174, %v204
  %206 = vmatmul.bf16.gmra.mxu0 %v191
  %v207 = vpop.f32.mrf.mxu0
  %v208 = vadd.f32 %v177, %v207
  %v209 = vpop.f32.mrf.mxu0
  %v210 = vadd.f32 %v179, %v209
  %211 = vdwg.mxu0
  %s212 = scalar_lea.vmem %s1, 32
  %v213 = vld [vmem:[%s212] sm:$0xf]
  %v214 = vld [vmem:[%s212 + $0x4] sm:$0xf]
  %v215 = vld [vmem:[%s212 + $0x8] sm:$0xf]
  %v216 = vld [vmem:[%s212 + $0xc] sm:$0xf]
  %v221 = vunpack.c.l.b16 %v213
  %v222 = vunpack.c.l.b16 %v214
  %v223 = vunpack.c.l.b16 %v215
  %v224 = vunpack.c.l.b16 %v216
  %v225 = vpack.c.b16 %v222, %v221
  %v226 = vpack.c.b16 %v224, %v223
  %229 = vmatpush.bf16.msra.mxu0 %v68
  %230 = vmatpush.bf16.msra.mxu0 %v67
  %231 = vmatpush.bf16.msra.mxu0 %v66
  %232 = vmatpush.bf16.msra.mxu0 %v65
  %233 = vmatpush.bf16.msra.mxu0 %v64
  %234 = vmatpush.bf16.msra.mxu0 %v63
  %235 = vmatpush.bf16.msra.mxu0 %v62
  %236 = vmatpush.bf16.msra.mxu0 %v61
  %237 = vmatmul.bf16.gmra.mxu0 %v225
  %v238 = vpop.f32.mrf.mxu0
  %v239 = vadd.f32 0.0, %v238
  %v240 = vpop.f32.mrf.mxu0
  %v241 = vadd.f32 0.0, %v240
  %242 = vmatmul.bf16.gmra.mxu0 %v226
  %v243 = vpop.f32.mrf.mxu0
  %v244 = vadd.f32 0.0, %v243
  %v245 = vpop.f32.mrf.mxu0
  %v246 = vadd.f32 0.0, %v245
  %247 = vdwg.mxu0
  %v248 = vpack.c.bf16 %v241, %v239
  %v249 = vpack.c.bf16 %v246, %v244
  %s250 = scalar_lea.vmem %s2, 16
  %v251 = vld [vmem:[%s250] sm:$0xf]
  %v252 = vld [vmem:[%s250 + $0x4] sm:$0xf]
  %v255 = vunpack.c.l.b16 %v251
  %v256 = vunpack.c.l.b16 %v252
  %v257 = vpack.c.b16 %v256, %v255
  %v260 = vsel %vm155, %v248, 0
  %v263 = vsel %vm155, %v249, 0
  %265 = vmatpush.bf16.msra.mxu0 0
  %266 = vmatpush.bf16.msra.mxu0 0
  %267 = vmatpush.bf16.msra.mxu0 0
  %268 = vmatpush.bf16.msra.mxu0 0
  %269 = vmatpush.bf16.msra.mxu0 0
  %270 = vmatpush.bf16.msra.mxu0 0
  %271 = vmatpush.bf16.msra.mxu0 0
  %272 = vmatpush.bf16.msra.mxu0 %v257
  %273 = vmatmul.bf16.gmra.mxu0 %v260
  %v274 = vpop.f32.mrf.mxu0
  %v275 = vadd.f32 0.0, %v274
  %v276 = vpop.f32.mrf.mxu0
  %v277 = vadd.f32 0.0, %v276
  %278 = vmatmul.bf16.gmra.mxu0 %v263
  %v279 = vpop.f32.mrf.mxu0
  %v280 = vadd.f32 0.0, %v279
  %v281 = vpop.f32.mrf.mxu0
  %v282 = vadd.f32 0.0, %v281
  %283 = vdwg.mxu0
  %v284 = vadd.f32 %v203, %v275
  %v285 = vadd.f32 %v205, %v277
  %v286 = vadd.f32 %v208, %v280
  %v287 = vadd.f32 %v210, %v282
  %s288 = scalar_lea.vmem %s1, 48
  %v289 = vld [vmem:[%s288] sm:$0xf]
  %v290 = vld [vmem:[%s288 + $0x4] sm:$0xf]
  %v291 = vld [vmem:[%s288 + $0x8] sm:$0xf]
  %v292 = vld [vmem:[%s288 + $0xc] sm:$0xf]
  %v297 = vunpack.c.l.b16 %v289
  %v298 = vunpack.c.l.b16 %v290
  %v299 = vunpack.c.l.b16 %v291
  %v300 = vunpack.c.l.b16 %v292
  %v301 = vpack.c.b16 %v298, %v297
  %v302 = vpack.c.b16 %v300, %v299
  %305 = vmatpush.bf16.msra.mxu0 %v68
  %306 = vmatpush.bf16.msra.mxu0 %v67
  %307 = vmatpush.bf16.msra.mxu0 %v66
  %308 = vmatpush.bf16.msra.mxu0 %v65
  %309 = vmatpush.bf16.msra.mxu0 %v64
  %310 = vmatpush.bf16.msra.mxu0 %v63
  %311 = vmatpush.bf16.msra.mxu0 %v62
  %312 = vmatpush.bf16.msra.mxu0 %v61
  %313 = vmatmul.bf16.gmra.mxu0 %v301
  %v314 = vpop.f32.mrf.mxu0
  %v315 = vadd.f32 0.0, %v314
  %v316 = vpop.f32.mrf.mxu0
  %v317 = vadd.f32 0.0, %v316
  %318 = vmatmul.bf16.gmra.mxu0 %v302
  %v319 = vpop.f32.mrf.mxu0
  %v320 = vadd.f32 0.0, %v319
  %v321 = vpop.f32.mrf.mxu0
  %v322 = vadd.f32 0.0, %v321
  %323 = vdwg.mxu0
  %v324 = vpack.c.bf16 %v317, %v315
  %v325 = vpack.c.bf16 %v322, %v320
  %s326 = scalar_lea.vmem %s2, 24
  %v327 = vld [vmem:[%s326] sm:$0xf]
  %v328 = vld [vmem:[%s326 + $0x4] sm:$0xf]
  %v331 = vunpack.c.l.b16 %v327
  %v332 = vunpack.c.l.b16 %v328
  %v333 = vpack.c.b16 %v332, %v331
  %v336 = vsel %vm155, %v324, 0
  %v339 = vsel %vm155, %v325, 0
  %341 = vmatpush.bf16.msra.mxu0 0
  %342 = vmatpush.bf16.msra.mxu0 0
  %343 = vmatpush.bf16.msra.mxu0 0
  %344 = vmatpush.bf16.msra.mxu0 0
  %345 = vmatpush.bf16.msra.mxu0 0
  %346 = vmatpush.bf16.msra.mxu0 0
  %347 = vmatpush.bf16.msra.mxu0 0
  %348 = vmatpush.bf16.msra.mxu0 %v333
  %349 = vmatmul.bf16.gmra.mxu0 %v336
  %v350 = vpop.f32.mrf.mxu0
  %v351 = vadd.f32 0.0, %v350
  %v352 = vpop.f32.mrf.mxu0
  %v353 = vadd.f32 0.0, %v352
  %354 = vmatmul.bf16.gmra.mxu0 %v339
  %v355 = vpop.f32.mrf.mxu0
  %v356 = vadd.f32 0.0, %v355
  %v357 = vpop.f32.mrf.mxu0
  %v358 = vadd.f32 0.0, %v357
  %359 = vdwg.mxu0
  %v360 = vadd.f32 %v284, %v351
  %v361 = vadd.f32 %v285, %v353
  %v362 = vadd.f32 %v286, %v356
  %v363 = vadd.f32 %v287, %v358
  %s364 = scalar_lea.vmem %s1, 64
  %v365 = vld [vmem:[%s364] sm:$0xf]
  %v366 = vld [vmem:[%s364 + $0x4] sm:$0xf]
  %v367 = vld [vmem:[%s364 + $0x8] sm:$0xf]
  %v368 = vld [vmem:[%s364 + $0xc] sm:$0xf]
  %v373 = vunpack.c.l.b16 %v365
  %v374 = vunpack.c.l.b16 %v366
  %v375 = vunpack.c.l.b16 %v367
  %v376 = vunpack.c.l.b16 %v368
  %v377 = vpack.c.b16 %v374, %v373
  %v378 = vpack.c.b16 %v376, %v375
  %381 = vmatpush.bf16.msra.mxu0 %v68
  %382 = vmatpush.bf16.msra.mxu0 %v67
  %383 = vmatpush.bf16.msra.mxu0 %v66
  %384 = vmatpush.bf16.msra.mxu0 %v65
  %385 = vmatpush.bf16.msra.mxu0 %v64
  %386 = vmatpush.bf16.msra.mxu0 %v63
  %387 = vmatpush.bf16.msra.mxu0 %v62
  %388 = vmatpush.bf16.msra.mxu0 %v61
  %389 = vmatmul.bf16.gmra.mxu0 %v377
  %v390 = vpop.f32.mrf.mxu0
  %v391 = vadd.f32 0.0, %v390
  %v392 = vpop.f32.mrf.mxu0
  %v393 = vadd.f32 0.0, %v392
  %394 = vmatmul.bf16.gmra.mxu0 %v378
  %v395 = vpop.f32.mrf.mxu0
  %v396 = vadd.f32 0.0, %v395
  %v397 = vpop.f32.mrf.mxu0
  %v398 = vadd.f32 0.0, %v397
  %399 = vdwg.mxu0
  %v400 = vpack.c.bf16 %v393, %v391
  %v401 = vpack.c.bf16 %v398, %v396
  %s402 = scalar_lea.vmem %s2, 32
  %v403 = vld [vmem:[%s402] sm:$0xf]
  %v404 = vld [vmem:[%s402 + $0x4] sm:$0xf]
  %v407 = vunpack.c.l.b16 %v403
  %v408 = vunpack.c.l.b16 %v404
  %v409 = vpack.c.b16 %v408, %v407
  %v412 = vsel %vm155, %v400, 0
  %v415 = vsel %vm155, %v401, 0
  %417 = vmatpush.bf16.msra.mxu0 0
  %418 = vmatpush.bf16.msra.mxu0 0
  %419 = vmatpush.bf16.msra.mxu0 0
  %420 = vmatpush.bf16.msra.mxu0 0
  %421 = vmatpush.bf16.msra.mxu0 0
  %422 = vmatpush.bf16.msra.mxu0 0
  %423 = vmatpush.bf16.msra.mxu0 0
  %424 = vmatpush.bf16.msra.mxu0 %v409
  %425 = vmatmul.bf16.gmra.mxu0 %v412
  %v426 = vpop.f32.mrf.mxu0
  %v427 = vadd.f32 0.0, %v426
  %v428 = vpop.f32.mrf.mxu0
  %v429 = vadd.f32 0.0, %v428
  %430 = vmatmul.bf16.gmra.mxu0 %v415
  %v431 = vpop.f32.mrf.mxu0
  %v432 = vadd.f32 0.0, %v431
  %v433 = vpop.f32.mrf.mxu0
  %v434 = vadd.f32 0.0, %v433
  %435 = vdwg.mxu0
  %v436 = vadd.f32 %v360, %v427
  %v437 = vadd.f32 %v361, %v429
  %v438 = vadd.f32 %v362, %v432
  %v439 = vadd.f32 %v363, %v434
  %s440 = scalar_lea.vmem %s1, 80
  %v441 = vld [vmem:[%s440] sm:$0xf]
  %v442 = vld [vmem:[%s440 + $0x4] sm:$0xf]
  %v443 = vld [vmem:[%s440 + $0x8] sm:$0xf]
  %v444 = vld [vmem:[%s440 + $0xc] sm:$0xf]
  %v449 = vunpack.c.l.b16 %v441
  %v450 = vunpack.c.l.b16 %v442
  %v451 = vunpack.c.l.b16 %v443
  %v452 = vunpack.c.l.b16 %v444
  %v453 = vpack.c.b16 %v450, %v449
  %v454 = vpack.c.b16 %v452, %v451
  %457 = vmatpush.bf16.msra.mxu0 %v68
  %458 = vmatpush.bf16.msra.mxu0 %v67
  %459 = vmatpush.bf16.msra.mxu0 %v66
  %460 = vmatpush.bf16.msra.mxu0 %v65
  %461 = vmatpush.bf16.msra.mxu0 %v64
  %462 = vmatpush.bf16.msra.mxu0 %v63
  %463 = vmatpush.bf16.msra.mxu0 %v62
  %464 = vmatpush.bf16.msra.mxu0 %v61
  %465 = vmatmul.bf16.gmra.mxu0 %v453
  %v466 = vpop.f32.mrf.mxu0
  %v467 = vadd.f32 0.0, %v466
  %v468 = vpop.f32.mrf.mxu0
  %v469 = vadd.f32 0.0, %v468
  %470 = vmatmul.bf16.gmra.mxu0 %v454
  %v471 = vpop.f32.mrf.mxu0
  %v472 = vadd.f32 0.0, %v471
  %v473 = vpop.f32.mrf.mxu0
  %v474 = vadd.f32 0.0, %v473
  %475 = vdwg.mxu0
  %v476 = vpack.c.bf16 %v469, %v467
  %v477 = vpack.c.bf16 %v474, %v472
  %s478 = scalar_lea.vmem %s2, 40
  %v479 = vld [vmem:[%s478] sm:$0xf]
  %v480 = vld [vmem:[%s478 + $0x4] sm:$0xf]
  %v483 = vunpack.c.l.b16 %v479
  %v484 = vunpack.c.l.b16 %v480
  %v485 = vpack.c.b16 %v484, %v483
  %v488 = vsel %vm155, %v476, 0
  %v491 = vsel %vm155, %v477, 0
  %493 = vmatpush.bf16.msra.mxu0 0
  %494 = vmatpush.bf16.msra.mxu0 0
  %495 = vmatpush.bf16.msra.mxu0 0
  %496 = vmatpush.bf16.msra.mxu0 0
  %497 = vmatpush.bf16.msra.mxu0 0
  %498 = vmatpush.bf16.msra.mxu0 0
  %499 = vmatpush.bf16.msra.mxu0 0
  %500 = vmatpush.bf16.msra.mxu0 %v485
  %501 = vmatmul.bf16.gmra.mxu0 %v488
  %v502 = vpop.f32.mrf.mxu0
  %v503 = vadd.f32 0.0, %v502
  %v504 = vpop.f32.mrf.mxu0
  %v505 = vadd.f32 0.0, %v504
  %506 = vmatmul.bf16.gmra.mxu0 %v491
  %v507 = vpop.f32.mrf.mxu0
  %v508 = vadd.f32 0.0, %v507
  %v509 = vpop.f32.mrf.mxu0
  %v510 = vadd.f32 0.0, %v509
  %511 = vdwg.mxu0
  %v512 = vadd.f32 %v436, %v503
  %v513 = vadd.f32 %v437, %v505
  %v514 = vadd.f32 %v438, %v508
  %v515 = vadd.f32 %v439, %v510
  %s516 = scalar_lea.vmem %s1, 96
  %v517 = vld [vmem:[%s516] sm:$0xf]
  %v518 = vld [vmem:[%s516 + $0x4] sm:$0xf]
  %v519 = vld [vmem:[%s516 + $0x8] sm:$0xf]
  %v520 = vld [vmem:[%s516 + $0xc] sm:$0xf]
  %v525 = vunpack.c.l.b16 %v517
  %v526 = vunpack.c.l.b16 %v518
  %v527 = vunpack.c.l.b16 %v519
  %v528 = vunpack.c.l.b16 %v520
  %v529 = vpack.c.b16 %v526, %v525
  %v530 = vpack.c.b16 %v528, %v527
  %533 = vmatpush.bf16.msra.mxu0 %v68
  %534 = vmatpush.bf16.msra.mxu0 %v67
  %535 = vmatpush.bf16.msra.mxu0 %v66
  %536 = vmatpush.bf16.msra.mxu0 %v65
  %537 = vmatpush.bf16.msra.mxu0 %v64
  %538 = vmatpush.bf16.msra.mxu0 %v63
  %539 = vmatpush.bf16.msra.mxu0 %v62
  %540 = vmatpush.bf16.msra.mxu0 %v61
  %541 = vmatmul.bf16.gmra.mxu0 %v529
  %v542 = vpop.f32.mrf.mxu0
  %v543 = vadd.f32 0.0, %v542
  %v544 = vpop.f32.mrf.mxu0
  %v545 = vadd.f32 0.0, %v544
  %546 = vmatmul.bf16.gmra.mxu0 %v530
  %v547 = vpop.f32.mrf.mxu0
  %v548 = vadd.f32 0.0, %v547
  %v549 = vpop.f32.mrf.mxu0
  %v550 = vadd.f32 0.0, %v549
  %551 = vdwg.mxu0
  %v552 = vpack.c.bf16 %v545, %v543
  %v553 = vpack.c.bf16 %v550, %v548
  %s554 = scalar_lea.vmem %s2, 48
  %v555 = vld [vmem:[%s554] sm:$0xf]
  %v556 = vld [vmem:[%s554 + $0x4] sm:$0xf]
  %v559 = vunpack.c.l.b16 %v555
  %v560 = vunpack.c.l.b16 %v556
  %v561 = vpack.c.b16 %v560, %v559
  %v564 = vsel %vm155, %v552, 0
  %v567 = vsel %vm155, %v553, 0
  %569 = vmatpush.bf16.msra.mxu0 0
  %570 = vmatpush.bf16.msra.mxu0 0
  %571 = vmatpush.bf16.msra.mxu0 0
  %572 = vmatpush.bf16.msra.mxu0 0
  %573 = vmatpush.bf16.msra.mxu0 0
  %574 = vmatpush.bf16.msra.mxu0 0
  %575 = vmatpush.bf16.msra.mxu0 0
  %576 = vmatpush.bf16.msra.mxu0 %v561
  %577 = vmatmul.bf16.gmra.mxu0 %v564
  %v578 = vpop.f32.mrf.mxu0
  %v579 = vadd.f32 0.0, %v578
  %v580 = vpop.f32.mrf.mxu0
  %v581 = vadd.f32 0.0, %v580
  %582 = vmatmul.bf16.gmra.mxu0 %v567
  %v583 = vpop.f32.mrf.mxu0
  %v584 = vadd.f32 0.0, %v583
  %v585 = vpop.f32.mrf.mxu0
  %v586 = vadd.f32 0.0, %v585
  %587 = vdwg.mxu0
  %v588 = vadd.f32 %v512, %v579
  %v589 = vadd.f32 %v513, %v581
  %v590 = vadd.f32 %v514, %v584
  %v591 = vadd.f32 %v515, %v586
  %s592 = scalar_lea.vmem %s1, 112
  %v593 = vld [vmem:[%s592] sm:$0xf]
  %v594 = vld [vmem:[%s592 + $0x4] sm:$0xf]
  %v595 = vld [vmem:[%s592 + $0x8] sm:$0xf]
  %v596 = vld [vmem:[%s592 + $0xc] sm:$0xf]
  %v601 = vunpack.c.l.b16 %v593
  %v602 = vunpack.c.l.b16 %v594
  %v603 = vunpack.c.l.b16 %v595
  %v604 = vunpack.c.l.b16 %v596
  %v605 = vpack.c.b16 %v602, %v601
  %v606 = vpack.c.b16 %v604, %v603
  %609 = vmatpush.bf16.msra.mxu0 %v68
  %610 = vmatpush.bf16.msra.mxu0 %v67
  %611 = vmatpush.bf16.msra.mxu0 %v66
  %612 = vmatpush.bf16.msra.mxu0 %v65
  %613 = vmatpush.bf16.msra.mxu0 %v64
  %614 = vmatpush.bf16.msra.mxu0 %v63
  %615 = vmatpush.bf16.msra.mxu0 %v62
  %616 = vmatpush.bf16.msra.mxu0 %v61
  %617 = vmatmul.bf16.gmra.mxu0 %v605
  %v618 = vpop.f32.mrf.mxu0
  %v619 = vadd.f32 0.0, %v618
  %v620 = vpop.f32.mrf.mxu0
  %v621 = vadd.f32 0.0, %v620
  %622 = vmatmul.bf16.gmra.mxu0 %v606
  %v623 = vpop.f32.mrf.mxu0
  %v624 = vadd.f32 0.0, %v623
  %v625 = vpop.f32.mrf.mxu0
  %v626 = vadd.f32 0.0, %v625
  %627 = vdwg.mxu0
  %v628 = vpack.c.bf16 %v621, %v619
  %v629 = vpack.c.bf16 %v626, %v624
  %s630 = scalar_lea.vmem %s2, 56
  %v631 = vld [vmem:[%s630] sm:$0xf]
  %v632 = vld [vmem:[%s630 + $0x4] sm:$0xf]
  %v635 = vunpack.c.l.b16 %v631
  %v636 = vunpack.c.l.b16 %v632
  %v637 = vpack.c.b16 %v636, %v635
  %v640 = vsel %vm155, %v628, 0
  %v643 = vsel %vm155, %v629, 0
  %645 = vmatpush.bf16.msra.mxu0 0
  %646 = vmatpush.bf16.msra.mxu0 0
  %647 = vmatpush.bf16.msra.mxu0 0
  %648 = vmatpush.bf16.msra.mxu0 0
  %649 = vmatpush.bf16.msra.mxu0 0
  %650 = vmatpush.bf16.msra.mxu0 0
  %651 = vmatpush.bf16.msra.mxu0 0
  %652 = vmatpush.bf16.msra.mxu0 %v637
  %653 = vmatmul.bf16.gmra.mxu0 %v640
  %v654 = vpop.f32.mrf.mxu0
  %v655 = vadd.f32 0.0, %v654
  %v656 = vpop.f32.mrf.mxu0
  %v657 = vadd.f32 0.0, %v656
  %658 = vmatmul.bf16.gmra.mxu0 %v643
  %v659 = vpop.f32.mrf.mxu0
  %v660 = vadd.f32 0.0, %v659
  %v661 = vpop.f32.mrf.mxu0
  %v662 = vadd.f32 0.0, %v661
  %663 = vdwg.mxu0
  %v664 = vadd.f32 %v588, %v655
  %v665 = vadd.f32 %v589, %v657
  %v666 = vadd.f32 %v590, %v660
  %v667 = vadd.f32 %v591, %v662
  %s668 = scalar_lea.vmem %s1, 128
  %v669 = vld [vmem:[%s668] sm:$0xf]
  %v670 = vld [vmem:[%s668 + $0x4] sm:$0xf]
  %v671 = vld [vmem:[%s668 + $0x8] sm:$0xf]
  %v672 = vld [vmem:[%s668 + $0xc] sm:$0xf]
  %v677 = vunpack.c.l.b16 %v669
  %v678 = vunpack.c.l.b16 %v670
  %v679 = vunpack.c.l.b16 %v671
  %v680 = vunpack.c.l.b16 %v672
  %v681 = vpack.c.b16 %v678, %v677
  %v682 = vpack.c.b16 %v680, %v679
  %685 = vmatpush.bf16.msra.mxu0 %v68
  %686 = vmatpush.bf16.msra.mxu0 %v67
  %687 = vmatpush.bf16.msra.mxu0 %v66
  %688 = vmatpush.bf16.msra.mxu0 %v65
  %689 = vmatpush.bf16.msra.mxu0 %v64
  %690 = vmatpush.bf16.msra.mxu0 %v63
  %691 = vmatpush.bf16.msra.mxu0 %v62
  %692 = vmatpush.bf16.msra.mxu0 %v61
  %693 = vmatmul.bf16.gmra.mxu0 %v681
  %v694 = vpop.f32.mrf.mxu0
  %v695 = vadd.f32 0.0, %v694
  %v696 = vpop.f32.mrf.mxu0
  %v697 = vadd.f32 0.0, %v696
  %698 = vmatmul.bf16.gmra.mxu0 %v682
  %v699 = vpop.f32.mrf.mxu0
  %v700 = vadd.f32 0.0, %v699
  %v701 = vpop.f32.mrf.mxu0
  %v702 = vadd.f32 0.0, %v701
  %703 = vdwg.mxu0
  %v704 = vpack.c.bf16 %v697, %v695
  %v705 = vpack.c.bf16 %v702, %v700
  %s706 = scalar_lea.vmem %s2, 64
  %v707 = vld [vmem:[%s706] sm:$0xf]
  %v708 = vld [vmem:[%s706 + $0x4] sm:$0xf]
  %v711 = vunpack.c.l.b16 %v707
  %v712 = vunpack.c.l.b16 %v708
  %v713 = vpack.c.b16 %v712, %v711
  %v716 = vsel %vm155, %v704, 0
  %v719 = vsel %vm155, %v705, 0
  %721 = vmatpush.bf16.msra.mxu0 0
  %722 = vmatpush.bf16.msra.mxu0 0
  %723 = vmatpush.bf16.msra.mxu0 0
  %724 = vmatpush.bf16.msra.mxu0 0
  %725 = vmatpush.bf16.msra.mxu0 0
  %726 = vmatpush.bf16.msra.mxu0 0
  %727 = vmatpush.bf16.msra.mxu0 0
  %728 = vmatpush.bf16.msra.mxu0 %v713
  %729 = vmatmul.bf16.gmra.mxu0 %v716
  %v730 = vpop.f32.mrf.mxu0
  %v731 = vadd.f32 0.0, %v730
  %v732 = vpop.f32.mrf.mxu0
  %v733 = vadd.f32 0.0, %v732
  %734 = vmatmul.bf16.gmra.mxu0 %v719
  %v735 = vpop.f32.mrf.mxu0
  %v736 = vadd.f32 0.0, %v735
  %v737 = vpop.f32.mrf.mxu0
  %v738 = vadd.f32 0.0, %v737
  %739 = vdwg.mxu0
  %v740 = vadd.f32 %v664, %v731
  %v741 = vadd.f32 %v665, %v733
  %v742 = vadd.f32 %v666, %v736
  %v743 = vadd.f32 %v667, %v738
  %v744 = vld [vmem:[%s3] sm:$0x1]
  %v746 = vperm.slane %v744, 0
  %v748 = vmul.f32 %v740, %v746
  %v749 = vmul.f32 %v741, %v746
  %v750 = vmul.f32 %v742, %v746
  %v751 = vmul.f32 %v743, %v746
  %v752 = vld [vmem:[%s4] sm:$0x1]
  %v754 = vperm.slane %v752, 0
  %v756 = vadd.f32 %v748, %v754
  %v757 = vadd.f32 %v749, %v754
  %v758 = vadd.f32 %v750, %v754
  %v759 = vadd.f32 %v751, %v754
  %v760 = vmax.f32 %v756, 0.0
  %v761 = vmax.f32 %v757, 0.0
  %v762 = vmax.f32 %v758, 0.0
  %v763 = vmax.f32 %v759, 0.0
  %v764 = vld [vmem:[%s9] sm:$0xf]
  %v765 = vld [vmem:[%s9 + $0x4] sm:$0xf]
  %v766 = vld [vmem:[%s9 + $0x8] sm:$0xf]
  %v767 = vld [vmem:[%s9 + $0xc] sm:$0xf]
  %v772 = vunpack.c.l.b16 %v764
  %v773 = vunpack.c.l.b16 %v765
  %v774 = vunpack.c.l.b16 %v766
  %v775 = vunpack.c.l.b16 %v767
  %v776 = vpack.c.b16 %v773, %v772
  %v777 = vpack.c.b16 %v775, %v774
  %780 = vmatpush.bf16.msra.mxu0 %v68
  %781 = vmatpush.bf16.msra.mxu0 %v67
  %782 = vmatpush.bf16.msra.mxu0 %v66
  %783 = vmatpush.bf16.msra.mxu0 %v65
  %784 = vmatpush.bf16.msra.mxu0 %v64
  %785 = vmatpush.bf16.msra.mxu0 %v63
  %786 = vmatpush.bf16.msra.mxu0 %v62
  %787 = vmatpush.bf16.msra.mxu0 %v61
  %788 = vmatmul.bf16.gmra.mxu0 %v776
  %v789 = vpop.f32.mrf.mxu0
  %v790 = vadd.f32 0.0, %v789
  %v791 = vpop.f32.mrf.mxu0
  %v792 = vadd.f32 0.0, %v791
  %793 = vmatmul.bf16.gmra.mxu0 %v777
  %v794 = vpop.f32.mrf.mxu0
  %v795 = vadd.f32 0.0, %v794
  %v796 = vpop.f32.mrf.mxu0
  %v797 = vadd.f32 0.0, %v796
  %798 = vdwg.mxu0
  %v799 = vpack.c.bf16 %v792, %v790
  %v800 = vpack.c.bf16 %v797, %v795
  %v801 = vld [vmem:[%s10] sm:$0xf]
  %v802 = vld [vmem:[%s10 + $0x4] sm:$0xf]
  %v805 = vunpack.c.l.b16 %v801
  %v806 = vunpack.c.l.b16 %v802
  %v807 = vpack.c.b16 %v806, %v805
  %v810 = vsel %vm155, %v799, 0
  %v813 = vsel %vm155, %v800, 0
  %815 = vmatpush.bf16.msra.mxu0 0
  %816 = vmatpush.bf16.msra.mxu0 0
  %817 = vmatpush.bf16.msra.mxu0 0
  %818 = vmatpush.bf16.msra.mxu0 0
  %819 = vmatpush.bf16.msra.mxu0 0
  %820 = vmatpush.bf16.msra.mxu0 0
  %821 = vmatpush.bf16.msra.mxu0 0
  %822 = vmatpush.bf16.msra.mxu0 %v807
  %823 = vmatmul.bf16.gmra.mxu0 %v810
  %v824 = vpop.f32.mrf.mxu0
  %v825 = vadd.f32 0.0, %v824
  %v826 = vpop.f32.mrf.mxu0
  %v827 = vadd.f32 0.0, %v826
  %828 = vmatmul.bf16.gmra.mxu0 %v813
  %v829 = vpop.f32.mrf.mxu0
  %v830 = vadd.f32 0.0, %v829
  %v831 = vpop.f32.mrf.mxu0
  %v832 = vadd.f32 0.0, %v831
  %833 = vdwg.mxu0
  %v834 = vld [vmem:[%s11] sm:$0x1]
  %v836 = vperm.slane %v834, 0
  %v838 = vmul.f32 %v825, %v836
  %v839 = vmul.f32 %v827, %v836
  %v840 = vmul.f32 %v830, %v836
  %v841 = vmul.f32 %v832, %v836
  %v842 = vld [vmem:[%s12] sm:$0x1]
  %v844 = vperm.slane %v842, 0
  %v846 = vadd.f32 %v838, %v844
  %v847 = vadd.f32 %v839, %v844
  %v848 = vadd.f32 %v840, %v844
  %v849 = vadd.f32 %v841, %v844
  %v850 = vpack.c.bf16 %v761, %v760
  %v851 = vpack.c.bf16 %v763, %v762
  %v852 = vld [vmem:[%s5] sm:$0xf]
  %v853 = vld [vmem:[%s5 + $0x4] sm:$0xf]
  %v854 = vld [vmem:[%s5 + $0x8] sm:$0xf]
  %v855 = vld [vmem:[%s5 + $0xc] sm:$0xf]
  %v860 = vunpack.c.l.b16 %v852
  %v861 = vunpack.c.l.b16 %v853
  %v862 = vunpack.c.l.b16 %v854
  %v863 = vunpack.c.l.b16 %v855
  %v864 = vpack.c.b16 %v861, %v860
  %v865 = vpack.c.b16 %v863, %v862
  %vm866 = vcmask 261120
  %v868 = vsel %vm866, %v864, 0
  %v871 = vsel %vm866, %v865, 0
  %873 = vmatpush.bf16.msra.mxu0 0
  %874 = vmatpush.bf16.msra.mxu0 0
  %875 = vmatpush.bf16.msra.mxu0 0
  %876 = vmatpush.bf16.msra.mxu0 0
  %877 = vmatpush.bf16.msra.mxu0 0
  %878 = vmatpush.bf16.msra.mxu0 0
  %879 = vmatpush.bf16.msra.mxu0 %v851
  %880 = vmatpush.bf16.msra.mxu0 %v850
  %881 = vmatmul.bf16.gmra.mxu0 %v868
  %v882 = vpop.f32.mrf.mxu0
  %v883 = vadd.f32 0.0, %v882
  %v884 = vpop.f32.mrf.mxu0
  %v885 = vadd.f32 0.0, %v884
  %886 = vmatmul.bf16.gmra.mxu0 %v871
  %v887 = vpop.f32.mrf.mxu0
  %v888 = vadd.f32 0.0, %v887
  %v889 = vpop.f32.mrf.mxu0
  %v890 = vadd.f32 0.0, %v889
  %891 = vdwg.mxu0
  %v892 = vpack.c.bf16 %v885, %v883
  %v893 = vpack.c.bf16 %v890, %v888
  %v894 = vld [vmem:[%s6] sm:$0xf]
  %v895 = vld [vmem:[%s6 + $0x4] sm:$0xf]
  %v896 = vld [vmem:[%s6 + $0x8] sm:$0xf]
  %v897 = vld [vmem:[%s6 + $0xc] sm:$0xf]
  %s898 = scalar_lea.vmem %s5, 16
  %v899 = vld [vmem:[%s898] sm:$0xf]
  %v900 = vld [vmem:[%s898 + $0x4] sm:$0xf]
  %v901 = vld [vmem:[%s898 + $0x8] sm:$0xf]
  %v902 = vld [vmem:[%s898 + $0xc] sm:$0xf]
  %v907 = vunpack.c.l.b16 %v899
  %v908 = vunpack.c.l.b16 %v900
  %v909 = vunpack.c.l.b16 %v901
  %v910 = vunpack.c.l.b16 %v902
  %v911 = vpack.c.b16 %v908, %v907
  %v912 = vpack.c.b16 %v910, %v909
  %v914 = vsel %vm866, %v911, 0
  %v917 = vsel %vm866, %v912, 0
  %919 = vmatpush.bf16.msra.mxu0 0
  %920 = vmatpush.bf16.msra.mxu0 0
  %921 = vmatpush.bf16.msra.mxu0 0
  %922 = vmatpush.bf16.msra.mxu0 0
  %923 = vmatpush.bf16.msra.mxu0 0
  %924 = vmatpush.bf16.msra.mxu0 0
  %925 = vmatpush.bf16.msra.mxu0 %v851
  %926 = vmatpush.bf16.msra.mxu0 %v850
  %927 = vmatmul.bf16.gmra.mxu0 %v914
  %v928 = vpop.f32.mrf.mxu0
  %v929 = vadd.f32 0.0, %v928
  %v930 = vpop.f32.mrf.mxu0
  %v931 = vadd.f32 0.0, %v930
  %932 = vmatmul.bf16.gmra.mxu0 %v917
  %v933 = vpop.f32.mrf.mxu0
  %v934 = vadd.f32 0.0, %v933
  %v935 = vpop.f32.mrf.mxu0
  %v936 = vadd.f32 0.0, %v935
  %937 = vdwg.mxu0
  %v938 = vpack.c.bf16 %v931, %v929
  %v939 = vpack.c.bf16 %v936, %v934
  %s940 = scalar_lea.vmem %s6, 16
  %v941 = vld [vmem:[%s940] sm:$0xf]
  %v942 = vld [vmem:[%s940 + $0x4] sm:$0xf]
  %v943 = vld [vmem:[%s940 + $0x8] sm:$0xf]
  %v944 = vld [vmem:[%s940 + $0xc] sm:$0xf]
  %v949 = vunpack.c.l.b16 %v941
  %v950 = vunpack.c.l.b16 %v942
  %v951 = vunpack.c.l.b16 %v943
  %v952 = vunpack.c.l.b16 %v944
  %v953 = vpack.c.b16 %v950, %v949
  %v954 = vpack.c.b16 %v952, %v951
  %v958 = vsel %vm866, %v938, 0
  %v961 = vsel %vm866, %v939, 0
  %963 = vmatpush.bf16.msra.mxu0 0
  %964 = vmatpush.bf16.msra.mxu0 0
  %965 = vmatpush.bf16.msra.mxu0 0
  %966 = vmatpush.bf16.msra.mxu0 0
  %967 = vmatpush.bf16.msra.mxu0 0
  %968 = vmatpush.bf16.msra.mxu0 0
  %969 = vmatpush.bf16.msra.mxu0 %v954
  %970 = vmatpush.bf16.msra.mxu0 %v953
  %971 = vmatmul.bf16.gmra.mxu0 %v958
  %v972 = vpop.f32.mrf.mxu0
  %v973 = vadd.f32 0.0, %v972
  %v974 = vpop.f32.mrf.mxu0
  %v975 = vadd.f32 0.0, %v974
  %976 = vmatmul.bf16.gmra.mxu0 %v961
  %v977 = vpop.f32.mrf.mxu0
  %v978 = vadd.f32 0.0, %v977
  %v979 = vpop.f32.mrf.mxu0
  %v980 = vadd.f32 0.0, %v979
  %981 = vdwg.mxu0
  %v986 = vunpack.c.l.b16 %v894
  %v987 = vunpack.c.l.b16 %v895
  %v988 = vunpack.c.l.b16 %v896
  %v989 = vunpack.c.l.b16 %v897
  %v990 = vpack.c.b16 %v987, %v986
  %v991 = vpack.c.b16 %v989, %v988
  %v995 = vsel %vm866, %v892, 0
  %v998 = vsel %vm866, %v893, 0
  %1000 = vmatpush.bf16.msra.mxu0 0
  %1001 = vmatpush.bf16.msra.mxu0 0
  %1002 = vmatpush.bf16.msra.mxu0 0
  %1003 = vmatpush.bf16.msra.mxu0 0
  %1004 = vmatpush.bf16.msra.mxu0 0
  %1005 = vmatpush.bf16.msra.mxu0 0
  %1006 = vmatpush.bf16.msra.mxu0 %v991
  %1007 = vmatpush.bf16.msra.mxu0 %v990
  %1008 = vmatmul.bf16.gmra.mxu0 %v995
  %v1009 = vpop.f32.mrf.mxu0
  %v1010 = vadd.f32 %v973, %v1009
  %v1011 = vpop.f32.mrf.mxu0
  %v1012 = vadd.f32 %v975, %v1011
  %1013 = vmatmul.bf16.gmra.mxu0 %v998
  %v1014 = vpop.f32.mrf.mxu0
  %v1015 = vadd.f32 %v978, %v1014
  %v1016 = vpop.f32.mrf.mxu0
  %v1017 = vadd.f32 %v980, %v1016
  %1018 = vdwg.mxu0
  %s1019 = scalar_lea.vmem %s5, 32
  %v1020 = vld [vmem:[%s1019] sm:$0xf]
  %v1021 = vld [vmem:[%s1019 + $0x4] sm:$0xf]
  %v1022 = vld [vmem:[%s1019 + $0x8] sm:$0xf]
  %v1023 = vld [vmem:[%s1019 + $0xc] sm:$0xf]
  %v1028 = vunpack.c.l.b16 %v1020
  %v1029 = vunpack.c.l.b16 %v1021
  %v1030 = vunpack.c.l.b16 %v1022
  %v1031 = vunpack.c.l.b16 %v1023
  %v1032 = vpack.c.b16 %v1029, %v1028
  %v1033 = vpack.c.b16 %v1031, %v1030
  %v1035 = vsel %vm866, %v1032, 0
  %v1038 = vsel %vm866, %v1033, 0
  %1040 = vmatpush.bf16.msra.mxu0 0
  %1041 = vmatpush.bf16.msra.mxu0 0
  %1042 = vmatpush.bf16.msra.mxu0 0
  %1043 = vmatpush.bf16.msra.mxu0 0
  %1044 = vmatpush.bf16.msra.mxu0 0
  %1045 = vmatpush.bf16.msra.mxu0 0
  %1046 = vmatpush.bf16.msra.mxu0 %v851
  %1047 = vmatpush.bf16.msra.mxu0 %v850
  %1048 = vmatmul.bf16.gmra.mxu0 %v1035
  %v1049 = vpop.f32.mrf.mxu0
  %v1050 = vadd.f32 0.0, %v1049
  %v1051 = vpop.f32.mrf.mxu0
  %v1052 = vadd.f32 0.0, %v1051
  %1053 = vmatmul.bf16.gmra.mxu0 %v1038
  %v1054 = vpop.f32.mrf.mxu0
  %v1055 = vadd.f32 0.0, %v1054
  %v1056 = vpop.f32.mrf.mxu0
  %v1057 = vadd.f32 0.0, %v1056
  %1058 = vdwg.mxu0
  %v1059 = vpack.c.bf16 %v1052, %v1050
  %v1060 = vpack.c.bf16 %v1057, %v1055
  %s1061 = scalar_lea.vmem %s6, 32
  %v1062 = vld [vmem:[%s1061] sm:$0xf]
  %v1063 = vld [vmem:[%s1061 + $0x4] sm:$0xf]
  %v1064 = vld [vmem:[%s1061 + $0x8] sm:$0xf]
  %v1065 = vld [vmem:[%s1061 + $0xc] sm:$0xf]
  %v1070 = vunpack.c.l.b16 %v1062
  %v1071 = vunpack.c.l.b16 %v1063
  %v1072 = vunpack.c.l.b16 %v1064
  %v1073 = vunpack.c.l.b16 %v1065
  %v1074 = vpack.c.b16 %v1071, %v1070
  %v1075 = vpack.c.b16 %v1073, %v1072
  %v1079 = vsel %vm866, %v1059, 0
  %v1082 = vsel %vm866, %v1060, 0
  %1084 = vmatpush.bf16.msra.mxu0 0
  %1085 = vmatpush.bf16.msra.mxu0 0
  %1086 = vmatpush.bf16.msra.mxu0 0
  %1087 = vmatpush.bf16.msra.mxu0 0
  %1088 = vmatpush.bf16.msra.mxu0 0
  %1089 = vmatpush.bf16.msra.mxu0 0
  %1090 = vmatpush.bf16.msra.mxu0 %v1075
  %1091 = vmatpush.bf16.msra.mxu0 %v1074
  %1092 = vmatmul.bf16.gmra.mxu0 %v1079
  %v1093 = vpop.f32.mrf.mxu0
  %v1094 = vadd.f32 0.0, %v1093
  %v1095 = vpop.f32.mrf.mxu0
  %v1096 = vadd.f32 0.0, %v1095
  %1097 = vmatmul.bf16.gmra.mxu0 %v1082
  %v1098 = vpop.f32.mrf.mxu0
  %v1099 = vadd.f32 0.0, %v1098
  %v1100 = vpop.f32.mrf.mxu0
  %v1101 = vadd.f32 0.0, %v1100
  %1102 = vdwg.mxu0
  %v1103 = vadd.f32 %v1010, %v1094
  %v1104 = vadd.f32 %v1012, %v1096
  %v1105 = vadd.f32 %v1015, %v1099
  %v1106 = vadd.f32 %v1017, %v1101
  %s1107 = scalar_lea.vmem %s5, 48
  %v1108 = vld [vmem:[%s1107] sm:$0xf]
  %v1109 = vld [vmem:[%s1107 + $0x4] sm:$0xf]
  %v1110 = vld [vmem:[%s1107 + $0x8] sm:$0xf]
  %v1111 = vld [vmem:[%s1107 + $0xc] sm:$0xf]
  %v1116 = vunpack.c.l.b16 %v1108
  %v1117 = vunpack.c.l.b16 %v1109
  %v1118 = vunpack.c.l.b16 %v1110
  %v1119 = vunpack.c.l.b16 %v1111
  %v1120 = vpack.c.b16 %v1117, %v1116
  %v1121 = vpack.c.b16 %v1119, %v1118
  %v1123 = vsel %vm866, %v1120, 0
  %v1126 = vsel %vm866, %v1121, 0
  %1128 = vmatpush.bf16.msra.mxu0 0
  %1129 = vmatpush.bf16.msra.mxu0 0
  %1130 = vmatpush.bf16.msra.mxu0 0
  %1131 = vmatpush.bf16.msra.mxu0 0
  %1132 = vmatpush.bf16.msra.mxu0 0
  %1133 = vmatpush.bf16.msra.mxu0 0
  %1134 = vmatpush.bf16.msra.mxu0 %v851
  %1135 = vmatpush.bf16.msra.mxu0 %v850
  %1136 = vmatmul.bf16.gmra.mxu0 %v1123
  %v1137 = vpop.f32.mrf.mxu0
  %v1138 = vadd.f32 0.0, %v1137
  %v1139 = vpop.f32.mrf.mxu0
  %v1140 = vadd.f32 0.0, %v1139
  %1141 = vmatmul.bf16.gmra.mxu0 %v1126
  %v1142 = vpop.f32.mrf.mxu0
  %v1143 = vadd.f32 0.0, %v1142
  %v1144 = vpop.f32.mrf.mxu0
  %v1145 = vadd.f32 0.0, %v1144
  %1146 = vdwg.mxu0
  %v1147 = vpack.c.bf16 %v1140, %v1138
  %v1148 = vpack.c.bf16 %v1145, %v1143
  %s1149 = scalar_lea.vmem %s6, 48
  %v1150 = vld [vmem:[%s1149] sm:$0xf]
  %v1151 = vld [vmem:[%s1149 + $0x4] sm:$0xf]
  %v1152 = vld [vmem:[%s1149 + $0x8] sm:$0xf]
  %v1153 = vld [vmem:[%s1149 + $0xc] sm:$0xf]
  %v1158 = vunpack.c.l.b16 %v1150
  %v1159 = vunpack.c.l.b16 %v1151
  %v1160 = vunpack.c.l.b16 %v1152
  %v1161 = vunpack.c.l.b16 %v1153
  %v1162 = vpack.c.b16 %v1159, %v1158
  %v1163 = vpack.c.b16 %v1161, %v1160
  %v1167 = vsel %vm866, %v1147, 0
  %v1170 = vsel %vm866, %v1148, 0
  %1172 = vmatpush.bf16.msra.mxu0 0
  %1173 = vmatpush.bf16.msra.mxu0 0
  %1174 = vmatpush.bf16.msra.mxu0 0
  %1175 = vmatpush.bf16.msra.mxu0 0
  %1176 = vmatpush.bf16.msra.mxu0 0
  %1177 = vmatpush.bf16.msra.mxu0 0
  %1178 = vmatpush.bf16.msra.mxu0 %v1163
  %1179 = vmatpush.bf16.msra.mxu0 %v1162
  %1180 = vmatmul.bf16.gmra.mxu0 %v1167
  %v1181 = vpop.f32.mrf.mxu0
  %v1182 = vadd.f32 0.0, %v1181
  %v1183 = vpop.f32.mrf.mxu0
  %v1184 = vadd.f32 0.0, %v1183
  %1185 = vmatmul.bf16.gmra.mxu0 %v1170
  %v1186 = vpop.f32.mrf.mxu0
  %v1187 = vadd.f32 0.0, %v1186
  %v1188 = vpop.f32.mrf.mxu0
  %v1189 = vadd.f32 0.0, %v1188
  %1190 = vdwg.mxu0
  %v1191 = vadd.f32 %v1103, %v1182
  %v1192 = vadd.f32 %v1104, %v1184
  %v1193 = vadd.f32 %v1105, %v1187
  %v1194 = vadd.f32 %v1106, %v1189
  %s1195 = scalar_lea.vmem %s5, 64
  %v1196 = vld [vmem:[%s1195] sm:$0xf]
  %v1197 = vld [vmem:[%s1195 + $0x4] sm:$0xf]
  %v1198 = vld [vmem:[%s1195 + $0x8] sm:$0xf]
  %v1199 = vld [vmem:[%s1195 + $0xc] sm:$0xf]
  %v1204 = vunpack.c.l.b16 %v1196
  %v1205 = vunpack.c.l.b16 %v1197
  %v1206 = vunpack.c.l.b16 %v1198
  %v1207 = vunpack.c.l.b16 %v1199
  %v1208 = vpack.c.b16 %v1205, %v1204
  %v1209 = vpack.c.b16 %v1207, %v1206
  %v1211 = vsel %vm866, %v1208, 0
  %v1214 = vsel %vm866, %v1209, 0
  %1216 = vmatpush.bf16.msra.mxu0 0
  %1217 = vmatpush.bf16.msra.mxu0 0
  %1218 = vmatpush.bf16.msra.mxu0 0
  %1219 = vmatpush.bf16.msra.mxu0 0
  %1220 = vmatpush.bf16.msra.mxu0 0
  %1221 = vmatpush.bf16.msra.mxu0 0
  %1222 = vmatpush.bf16.msra.mxu0 %v851
  %1223 = vmatpush.bf16.msra.mxu0 %v850
  %1224 = vmatmul.bf16.gmra.mxu0 %v1211
  %v1225 = vpop.f32.mrf.mxu0
  %v1226 = vadd.f32 0.0, %v1225
  %v1227 = vpop.f32.mrf.mxu0
  %v1228 = vadd.f32 0.0, %v1227
  %1229 = vmatmul.bf16.gmra.mxu0 %v1214
  %v1230 = vpop.f32.mrf.mxu0
  %v1231 = vadd.f32 0.0, %v1230
  %v1232 = vpop.f32.mrf.mxu0
  %v1233 = vadd.f32 0.0, %v1232
  %1234 = vdwg.mxu0
  %v1235 = vpack.c.bf16 %v1228, %v1226
  %v1236 = vpack.c.bf16 %v1233, %v1231
  %s1237 = scalar_lea.vmem %s6, 64
  %v1238 = vld [vmem:[%s1237] sm:$0xf]
  %v1239 = vld [vmem:[%s1237 + $0x4] sm:$0xf]
  %v1240 = vld [vmem:[%s1237 + $0x8] sm:$0xf]
  %v1241 = vld [vmem:[%s1237 + $0xc] sm:$0xf]
  %v1246 = vunpack.c.l.b16 %v1238
  %v1247 = vunpack.c.l.b16 %v1239
  %v1248 = vunpack.c.l.b16 %v1240
  %v1249 = vunpack.c.l.b16 %v1241
  %v1250 = vpack.c.b16 %v1247, %v1246
  %v1251 = vpack.c.b16 %v1249, %v1248
  %v1255 = vsel %vm866, %v1235, 0
  %v1258 = vsel %vm866, %v1236, 0
  %1260 = vmatpush.bf16.msra.mxu0 0
  %1261 = vmatpush.bf16.msra.mxu0 0
  %1262 = vmatpush.bf16.msra.mxu0 0
  %1263 = vmatpush.bf16.msra.mxu0 0
  %1264 = vmatpush.bf16.msra.mxu0 0
  %1265 = vmatpush.bf16.msra.mxu0 0
  %1266 = vmatpush.bf16.msra.mxu0 %v1251
  %1267 = vmatpush.bf16.msra.mxu0 %v1250
  %1268 = vmatmul.bf16.gmra.mxu0 %v1255
  %v1269 = vpop.f32.mrf.mxu0
  %v1270 = vadd.f32 0.0, %v1269
  %v1271 = vpop.f32.mrf.mxu0
  %v1272 = vadd.f32 0.0, %v1271
  %1273 = vmatmul.bf16.gmra.mxu0 %v1258
  %v1274 = vpop.f32.mrf.mxu0
  %v1275 = vadd.f32 0.0, %v1274
  %v1276 = vpop.f32.mrf.mxu0
  %v1277 = vadd.f32 0.0, %v1276
  %1278 = vdwg.mxu0
  %v1279 = vadd.f32 %v1191, %v1270
  %v1280 = vadd.f32 %v1192, %v1272
  %v1281 = vadd.f32 %v1193, %v1275
  %v1282 = vadd.f32 %v1194, %v1277
  %s1283 = scalar_lea.vmem %s5, 80
  %v1284 = vld [vmem:[%s1283] sm:$0xf]
  %v1285 = vld [vmem:[%s1283 + $0x4] sm:$0xf]
  %v1286 = vld [vmem:[%s1283 + $0x8] sm:$0xf]
  %v1287 = vld [vmem:[%s1283 + $0xc] sm:$0xf]
  %v1292 = vunpack.c.l.b16 %v1284
  %v1293 = vunpack.c.l.b16 %v1285
  %v1294 = vunpack.c.l.b16 %v1286
  %v1295 = vunpack.c.l.b16 %v1287
  %v1296 = vpack.c.b16 %v1293, %v1292
  %v1297 = vpack.c.b16 %v1295, %v1294
  %v1299 = vsel %vm866, %v1296, 0
  %v1302 = vsel %vm866, %v1297, 0
  %1304 = vmatpush.bf16.msra.mxu0 0
  %1305 = vmatpush.bf16.msra.mxu0 0
  %1306 = vmatpush.bf16.msra.mxu0 0
  %1307 = vmatpush.bf16.msra.mxu0 0
  %1308 = vmatpush.bf16.msra.mxu0 0
  %1309 = vmatpush.bf16.msra.mxu0 0
  %1310 = vmatpush.bf16.msra.mxu0 %v851
  %1311 = vmatpush.bf16.msra.mxu0 %v850
  %1312 = vmatmul.bf16.gmra.mxu0 %v1299
  %v1313 = vpop.f32.mrf.mxu0
  %v1314 = vadd.f32 0.0, %v1313
  %v1315 = vpop.f32.mrf.mxu0
  %v1316 = vadd.f32 0.0, %v1315
  %1317 = vmatmul.bf16.gmra.mxu0 %v1302
  %v1318 = vpop.f32.mrf.mxu0
  %v1319 = vadd.f32 0.0, %v1318
  %v1320 = vpop.f32.mrf.mxu0
  %v1321 = vadd.f32 0.0, %v1320
  %1322 = vdwg.mxu0
  %v1323 = vpack.c.bf16 %v1316, %v1314
  %v1324 = vpack.c.bf16 %v1321, %v1319
  %s1325 = scalar_lea.vmem %s6, 80
  %v1326 = vld [vmem:[%s1325] sm:$0xf]
  %v1327 = vld [vmem:[%s1325 + $0x4] sm:$0xf]
  %v1328 = vld [vmem:[%s1325 + $0x8] sm:$0xf]
  %v1329 = vld [vmem:[%s1325 + $0xc] sm:$0xf]
  %v1334 = vunpack.c.l.b16 %v1326
  %v1335 = vunpack.c.l.b16 %v1327
  %v1336 = vunpack.c.l.b16 %v1328
  %v1337 = vunpack.c.l.b16 %v1329
  %v1338 = vpack.c.b16 %v1335, %v1334
  %v1339 = vpack.c.b16 %v1337, %v1336
  %v1343 = vsel %vm866, %v1323, 0
  %v1346 = vsel %vm866, %v1324, 0
  %1348 = vmatpush.bf16.msra.mxu0 0
  %1349 = vmatpush.bf16.msra.mxu0 0
  %1350 = vmatpush.bf16.msra.mxu0 0
  %1351 = vmatpush.bf16.msra.mxu0 0
  %1352 = vmatpush.bf16.msra.mxu0 0
  %1353 = vmatpush.bf16.msra.mxu0 0
  %1354 = vmatpush.bf16.msra.mxu0 %v1339
  %1355 = vmatpush.bf16.msra.mxu0 %v1338
  %1356 = vmatmul.bf16.gmra.mxu0 %v1343
  %v1357 = vpop.f32.mrf.mxu0
  %v1358 = vadd.f32 0.0, %v1357
  %v1359 = vpop.f32.mrf.mxu0
  %v1360 = vadd.f32 0.0, %v1359
  %1361 = vmatmul.bf16.gmra.mxu0 %v1346
  %v1362 = vpop.f32.mrf.mxu0
  %v1363 = vadd.f32 0.0, %v1362
  %v1364 = vpop.f32.mrf.mxu0
  %v1365 = vadd.f32 0.0, %v1364
  %1366 = vdwg.mxu0
  %v1367 = vadd.f32 %v1279, %v1358
  %v1368 = vadd.f32 %v1280, %v1360
  %v1369 = vadd.f32 %v1281, %v1363
  %v1370 = vadd.f32 %v1282, %v1365
  %s1371 = scalar_lea.vmem %s5, 96
  %v1372 = vld [vmem:[%s1371] sm:$0xf]
  %v1373 = vld [vmem:[%s1371 + $0x4] sm:$0xf]
  %v1374 = vld [vmem:[%s1371 + $0x8] sm:$0xf]
  %v1375 = vld [vmem:[%s1371 + $0xc] sm:$0xf]
  %v1380 = vunpack.c.l.b16 %v1372
  %v1381 = vunpack.c.l.b16 %v1373
  %v1382 = vunpack.c.l.b16 %v1374
  %v1383 = vunpack.c.l.b16 %v1375
  %v1384 = vpack.c.b16 %v1381, %v1380
  %v1385 = vpack.c.b16 %v1383, %v1382
  %v1387 = vsel %vm866, %v1384, 0
  %v1390 = vsel %vm866, %v1385, 0
  %1392 = vmatpush.bf16.msra.mxu0 0
  %1393 = vmatpush.bf16.msra.mxu0 0
  %1394 = vmatpush.bf16.msra.mxu0 0
  %1395 = vmatpush.bf16.msra.mxu0 0
  %1396 = vmatpush.bf16.msra.mxu0 0
  %1397 = vmatpush.bf16.msra.mxu0 0
  %1398 = vmatpush.bf16.msra.mxu0 %v851
  %1399 = vmatpush.bf16.msra.mxu0 %v850
  %1400 = vmatmul.bf16.gmra.mxu0 %v1387
  %v1401 = vpop.f32.mrf.mxu0
  %v1402 = vadd.f32 0.0, %v1401
  %v1403 = vpop.f32.mrf.mxu0
  %v1404 = vadd.f32 0.0, %v1403
  %1405 = vmatmul.bf16.gmra.mxu0 %v1390
  %v1406 = vpop.f32.mrf.mxu0
  %v1407 = vadd.f32 0.0, %v1406
  %v1408 = vpop.f32.mrf.mxu0
  %v1409 = vadd.f32 0.0, %v1408
  %1410 = vdwg.mxu0
  %v1411 = vpack.c.bf16 %v1404, %v1402
  %v1412 = vpack.c.bf16 %v1409, %v1407
  %s1413 = scalar_lea.vmem %s6, 96
  %v1414 = vld [vmem:[%s1413] sm:$0xf]
  %v1415 = vld [vmem:[%s1413 + $0x4] sm:$0xf]
  %v1416 = vld [vmem:[%s1413 + $0x8] sm:$0xf]
  %v1417 = vld [vmem:[%s1413 + $0xc] sm:$0xf]
  %v1422 = vunpack.c.l.b16 %v1414
  %v1423 = vunpack.c.l.b16 %v1415
  %v1424 = vunpack.c.l.b16 %v1416
  %v1425 = vunpack.c.l.b16 %v1417
  %v1426 = vpack.c.b16 %v1423, %v1422
  %v1427 = vpack.c.b16 %v1425, %v1424
  %v1431 = vsel %vm866, %v1411, 0
  %v1434 = vsel %vm866, %v1412, 0
  %1436 = vmatpush.bf16.msra.mxu0 0
  %1437 = vmatpush.bf16.msra.mxu0 0
  %1438 = vmatpush.bf16.msra.mxu0 0
  %1439 = vmatpush.bf16.msra.mxu0 0
  %1440 = vmatpush.bf16.msra.mxu0 0
  %1441 = vmatpush.bf16.msra.mxu0 0
  %1442 = vmatpush.bf16.msra.mxu0 %v1427
  %1443 = vmatpush.bf16.msra.mxu0 %v1426
  %1444 = vmatmul.bf16.gmra.mxu0 %v1431
  %v1445 = vpop.f32.mrf.mxu0
  %v1446 = vadd.f32 0.0, %v1445
  %v1447 = vpop.f32.mrf.mxu0
  %v1448 = vadd.f32 0.0, %v1447
  %1449 = vmatmul.bf16.gmra.mxu0 %v1434
  %v1450 = vpop.f32.mrf.mxu0
  %v1451 = vadd.f32 0.0, %v1450
  %v1452 = vpop.f32.mrf.mxu0
  %v1453 = vadd.f32 0.0, %v1452
  %1454 = vdwg.mxu0
  %v1455 = vadd.f32 %v1367, %v1446
  %v1456 = vadd.f32 %v1368, %v1448
  %v1457 = vadd.f32 %v1369, %v1451
  %v1458 = vadd.f32 %v1370, %v1453
  %s1459 = scalar_lea.vmem %s5, 112
  %v1460 = vld [vmem:[%s1459] sm:$0xf]
  %v1461 = vld [vmem:[%s1459 + $0x4] sm:$0xf]
  %v1462 = vld [vmem:[%s1459 + $0x8] sm:$0xf]
  %v1463 = vld [vmem:[%s1459 + $0xc] sm:$0xf]
  %v1468 = vunpack.c.l.b16 %v1460
  %v1469 = vunpack.c.l.b16 %v1461
  %v1470 = vunpack.c.l.b16 %v1462
  %v1471 = vunpack.c.l.b16 %v1463
  %v1472 = vpack.c.b16 %v1469, %v1468
  %v1473 = vpack.c.b16 %v1471, %v1470
  %v1475 = vsel %vm866, %v1472, 0
  %v1478 = vsel %vm866, %v1473, 0
  %1480 = vmatpush.bf16.msra.mxu0 0
  %1481 = vmatpush.bf16.msra.mxu0 0
  %1482 = vmatpush.bf16.msra.mxu0 0
  %1483 = vmatpush.bf16.msra.mxu0 0
  %1484 = vmatpush.bf16.msra.mxu0 0
  %1485 = vmatpush.bf16.msra.mxu0 0
  %1486 = vmatpush.bf16.msra.mxu0 %v851
  %1487 = vmatpush.bf16.msra.mxu0 %v850
  %1488 = vmatmul.bf16.gmra.mxu0 %v1475
  %v1489 = vpop.f32.mrf.mxu0
  %v1490 = vadd.f32 0.0, %v1489
  %v1491 = vpop.f32.mrf.mxu0
  %v1492 = vadd.f32 0.0, %v1491
  %1493 = vmatmul.bf16.gmra.mxu0 %v1478
  %v1494 = vpop.f32.mrf.mxu0
  %v1495 = vadd.f32 0.0, %v1494
  %v1496 = vpop.f32.mrf.mxu0
  %v1497 = vadd.f32 0.0, %v1496
  %1498 = vdwg.mxu0
  %v1499 = vpack.c.bf16 %v1492, %v1490
  %v1500 = vpack.c.bf16 %v1497, %v1495
  %s1501 = scalar_lea.vmem %s6, 112
  %v1502 = vld [vmem:[%s1501] sm:$0xf]
  %v1503 = vld [vmem:[%s1501 + $0x4] sm:$0xf]
  %v1504 = vld [vmem:[%s1501 + $0x8] sm:$0xf]
  %v1505 = vld [vmem:[%s1501 + $0xc] sm:$0xf]
  %v1510 = vunpack.c.l.b16 %v1502
  %v1511 = vunpack.c.l.b16 %v1503
  %v1512 = vunpack.c.l.b16 %v1504
  %v1513 = vunpack.c.l.b16 %v1505
  %v1514 = vpack.c.b16 %v1511, %v1510
  %v1515 = vpack.c.b16 %v1513, %v1512
  %v1519 = vsel %vm866, %v1499, 0
  %v1522 = vsel %vm866, %v1500, 0
  %1524 = vmatpush.bf16.msra.mxu0 0
  %1525 = vmatpush.bf16.msra.mxu0 0
  %1526 = vmatpush.bf16.msra.mxu0 0
  %1527 = vmatpush.bf16.msra.mxu0 0
  %1528 = vmatpush.bf16.msra.mxu0 0
  %1529 = vmatpush.bf16.msra.mxu0 0
  %1530 = vmatpush.bf16.msra.mxu0 %v1515
  %1531 = vmatpush.bf16.msra.mxu0 %v1514
  %1532 = vmatmul.bf16.gmra.mxu0 %v1519
  %v1533 = vpop.f32.mrf.mxu0
  %v1534 = vadd.f32 0.0, %v1533
  %v1535 = vpop.f32.mrf.mxu0
  %v1536 = vadd.f32 0.0, %v1535
  %1537 = vmatmul.bf16.gmra.mxu0 %v1522
  %v1538 = vpop.f32.mrf.mxu0
  %v1539 = vadd.f32 0.0, %v1538
  %v1540 = vpop.f32.mrf.mxu0
  %v1541 = vadd.f32 0.0, %v1540
  %1542 = vdwg.mxu0
  %v1543 = vadd.f32 %v1455, %v1534
  %v1544 = vadd.f32 %v1456, %v1536
  %v1545 = vadd.f32 %v1457, %v1539
  %v1546 = vadd.f32 %v1458, %v1541
  %s1547 = scalar_lea.vmem %s5, 128
  %v1548 = vld [vmem:[%s1547] sm:$0xf]
  %v1549 = vld [vmem:[%s1547 + $0x4] sm:$0xf]
  %v1550 = vld [vmem:[%s1547 + $0x8] sm:$0xf]
  %v1551 = vld [vmem:[%s1547 + $0xc] sm:$0xf]
  %v1556 = vunpack.c.l.b16 %v1548
  %v1557 = vunpack.c.l.b16 %v1549
  %v1558 = vunpack.c.l.b16 %v1550
  %v1559 = vunpack.c.l.b16 %v1551
  %v1560 = vpack.c.b16 %v1557, %v1556
  %v1561 = vpack.c.b16 %v1559, %v1558
  %v1563 = vsel %vm866, %v1560, 0
  %v1566 = vsel %vm866, %v1561, 0
  %1568 = vmatpush.bf16.msra.mxu0 0
  %1569 = vmatpush.bf16.msra.mxu0 0
  %1570 = vmatpush.bf16.msra.mxu0 0
  %1571 = vmatpush.bf16.msra.mxu0 0
  %1572 = vmatpush.bf16.msra.mxu0 0
  %1573 = vmatpush.bf16.msra.mxu0 0
  %1574 = vmatpush.bf16.msra.mxu0 %v851
  %1575 = vmatpush.bf16.msra.mxu0 %v850
  %1576 = vmatmul.bf16.gmra.mxu0 %v1563
  %v1577 = vpop.f32.mrf.mxu0
  %v1578 = vadd.f32 0.0, %v1577
  %v1579 = vpop.f32.mrf.mxu0
  %v1580 = vadd.f32 0.0, %v1579
  %1581 = vmatmul.bf16.gmra.mxu0 %v1566
  %v1582 = vpop.f32.mrf.mxu0
  %v1583 = vadd.f32 0.0, %v1582
  %v1584 = vpop.f32.mrf.mxu0
  %v1585 = vadd.f32 0.0, %v1584
  %1586 = vdwg.mxu0
  %v1587 = vpack.c.bf16 %v1580, %v1578
  %v1588 = vpack.c.bf16 %v1585, %v1583
  %s1589 = scalar_lea.vmem %s6, 128
  %v1590 = vld [vmem:[%s1589] sm:$0xf]
  %v1591 = vld [vmem:[%s1589 + $0x4] sm:$0xf]
  %v1592 = vld [vmem:[%s1589 + $0x8] sm:$0xf]
  %v1593 = vld [vmem:[%s1589 + $0xc] sm:$0xf]
  %v1598 = vunpack.c.l.b16 %v1590
  %v1599 = vunpack.c.l.b16 %v1591
  %v1600 = vunpack.c.l.b16 %v1592
  %v1601 = vunpack.c.l.b16 %v1593
  %v1602 = vpack.c.b16 %v1599, %v1598
  %v1603 = vpack.c.b16 %v1601, %v1600
  %v1607 = vsel %vm866, %v1587, 0
  %v1610 = vsel %vm866, %v1588, 0
  %1612 = vmatpush.bf16.msra.mxu0 0
  %1613 = vmatpush.bf16.msra.mxu0 0
  %1614 = vmatpush.bf16.msra.mxu0 0
  %1615 = vmatpush.bf16.msra.mxu0 0
  %1616 = vmatpush.bf16.msra.mxu0 0
  %1617 = vmatpush.bf16.msra.mxu0 0
  %1618 = vmatpush.bf16.msra.mxu0 %v1603
  %1619 = vmatpush.bf16.msra.mxu0 %v1602
  %1620 = vmatmul.bf16.gmra.mxu0 %v1607
  %v1621 = vpop.f32.mrf.mxu0
  %v1622 = vadd.f32 0.0, %v1621
  %v1623 = vpop.f32.mrf.mxu0
  %v1624 = vadd.f32 0.0, %v1623
  %1625 = vmatmul.bf16.gmra.mxu0 %v1610
  %v1626 = vpop.f32.mrf.mxu0
  %v1627 = vadd.f32 0.0, %v1626
  %v1628 = vpop.f32.mrf.mxu0
  %v1629 = vadd.f32 0.0, %v1628
  %1630 = vdwg.mxu0
  %v1631 = vadd.f32 %v1543, %v1622
  %v1632 = vadd.f32 %v1544, %v1624
  %v1633 = vadd.f32 %v1545, %v1627
  %v1634 = vadd.f32 %v1546, %v1629
  %v1635 = vld [vmem:[%s7] sm:$0x1]
  %v1637 = vperm.slane %v1635, 0
  %v1639 = vmul.f32 %v1631, %v1637
  %v1640 = vmul.f32 %v1632, %v1637
  %v1641 = vmul.f32 %v1633, %v1637
  %v1642 = vmul.f32 %v1634, %v1637
  %v1643 = vld [vmem:[%s8] sm:$0x1]
  %v1645 = vperm.slane %v1643, 0
  %v1647 = vadd.f32 %v1639, %v1645
  %v1648 = vadd.f32 %v1640, %v1645
  %v1649 = vadd.f32 %v1641, %v1645
  %v1650 = vadd.f32 %v1642, %v1645
  %v1651 = vadd.f32 %v1647, %v846
  %v1652 = vadd.f32 %v1648, %v847
  %v1653 = vadd.f32 %v1649, %v848
  %v1654 = vadd.f32 %v1650, %v849
  %v1655 = vmax.f32 %v1651, 0.0
  %v1656 = vmax.f32 %v1652, 0.0
  %v1657 = vmax.f32 %v1653, 0.0
  %v1658 = vmax.f32 %v1654, 0.0
  %1659 = vst.msk [vmem:[%s13] sm:$0xff] %vm866, %v1655
  %1660 = vst.msk [vmem:[%s13 + $0x8] sm:$0xff] %vm866, %v1656
  %1661 = vst.msk [vmem:[%s13 + $0x10] sm:$0xff] %vm866, %v1657
  %1662 = vst.msk [vmem:[%s13 + $0x18] sm:$0xff] %vm866, %v1658
  // Predicated region
  $region54: #{backbone_forward.7} parent=0 // pred_check
    _
  $region55: #{backbone_forward.7} parent=0 // pred_check_branch
    %1664 = sbr.rel (0) target = $region57
  $region56: #{backbone_forward.7} parent=0 // pred_region
    _
  $region57: #{backbone_forward.7} parent=0 // pred_fallthru
    _
  // Predicated region
  $region58: #{backbone_forward.7} parent=0 // pred_check
    _
  $region59: #{backbone_forward.7} parent=0 // pred_check_branch
    %1666 = sbr.rel (0) target = $region61
  $region60: #{backbone_forward.7} parent=0 // pred_region
    _
  $region61: #{backbone_forward.7} parent=0 // pred_fallthru
    _

// kernel: backbone_forward.8
$region0: #{backbone_forward.8}
  #allocation0 [shape = 'u32[]', space=smem, size = 0x4, offset = 0x4, fixed_abs, tag = 'smem constant byte address 0x4 - core index']
  #allocation1 [shape = 'u32[72,128]{1,0:T(1,128)}', space=vmem, size = 0x9000, scoped, tag = 'internal scratch']
  %s0 = inlined_call_operand.vmem [shape: f32[32,32], index: 0, kind: input, shape index: {}]
  %s1 = inlined_call_operand.vmem [shape: bf16[9,8,32], index: 1, kind: input, shape index: {}]
  %s2 = inlined_call_operand.vmem [shape: bf16[9,32,64], index: 2, kind: input, shape index: {}]
  %s3 = inlined_call_operand.vmem [shape: f32[1,64], index: 3, kind: input, shape index: {}]
  %s4 = inlined_call_operand.vmem [shape: f32[1,64], index: 4, kind: input, shape index: {}]
  %s5 = inlined_call_operand.vmem [shape: bf16[9,8,8], index: 5, kind: input, shape index: {}]
  %s6 = inlined_call_operand.vmem [shape: bf16[9,64,64], index: 6, kind: input, shape index: {}]
  %s7 = inlined_call_operand.vmem [shape: f32[1,64], index: 7, kind: input, shape index: {}]
  %s8 = inlined_call_operand.vmem [shape: f32[1,64], index: 8, kind: input, shape index: {}]
  %s9 = inlined_call_operand.vmem [shape: bf16[8,32], index: 9, kind: input, shape index: {}]
  %s10 = inlined_call_operand.vmem [shape: bf16[32,64], index: 10, kind: input, shape index: {}]
  %s11 = inlined_call_operand.vmem [shape: f32[1,64], index: 11, kind: input, shape index: {}]
  %s12 = inlined_call_operand.vmem [shape: f32[1,64], index: 12, kind: input, shape index: {}]
  %s13 = inlined_call_operand.vmem [shape: f32[8,64], index: 13, kind: output, shape index: {}]
  %s14 = sld [smem:[#allocation0]]
  $region62: #{backbone_forward.8} parent=0
    _
  %s16 = ssub.s32 1, %s14
  %s17 = scalar_select 0, %s16, %s14
  // Predicated region
  $region2: #{backbone_forward.8} parent=0 // pred_check
    _
  $region3: #{backbone_forward.8} parent=0 // pred_check_branch
    %19 = sbr.rel (0) target = $region5
  $region4: #{backbone_forward.8} parent=0 // pred_region
    _
  $region5: #{backbone_forward.8} parent=0 // pred_fallthru
    _
  // Predicated region
  $region6: #{backbone_forward.8} parent=0 // pred_check
    _
  $region7: #{backbone_forward.8} parent=0 // pred_check_branch
    %21 = sbr.rel (0) target = $region9
  $region8: #{backbone_forward.8} parent=0 // pred_region
    _
  $region9: #{backbone_forward.8} parent=0 // pred_fallthru
    _
  // Predicated region
  $region10: #{backbone_forward.8} parent=0 // pred_check
    _
  $region11: #{backbone_forward.8} parent=0 // pred_check_branch
    %23 = sbr.rel (0) target = $region13
  $region12: #{backbone_forward.8} parent=0 // pred_region
    _
  $region13: #{backbone_forward.8} parent=0 // pred_fallthru
    _
  // Predicated region
  $region14: #{backbone_forward.8} parent=0 // pred_check
    _
  $region15: #{backbone_forward.8} parent=0 // pred_check_branch
    %25 = sbr.rel (0) target = $region17
  $region16: #{backbone_forward.8} parent=0 // pred_region
    _
  $region17: #{backbone_forward.8} parent=0 // pred_fallthru
    _
  // Predicated region
  $region18: #{backbone_forward.8} parent=0 // pred_check
    _
  $region19: #{backbone_forward.8} parent=0 // pred_check_branch
    %27 = sbr.rel (0) target = $region21
  $region20: #{backbone_forward.8} parent=0 // pred_region
    _
  $region21: #{backbone_forward.8} parent=0 // pred_fallthru
    _
  // Predicated region
  $region22: #{backbone_forward.8} parent=0 // pred_check
    _
  $region23: #{backbone_forward.8} parent=0 // pred_check_branch
    %29 = sbr.rel (0) target = $region25
  $region24: #{backbone_forward.8} parent=0 // pred_region
    _
  $region25: #{backbone_forward.8} parent=0 // pred_fallthru
    _
  // Predicated region
  $region26: #{backbone_forward.8} parent=0 // pred_check
    _
  $region27: #{backbone_forward.8} parent=0 // pred_check_branch
    %31 = sbr.rel (0) target = $region29
  $region28: #{backbone_forward.8} parent=0 // pred_region
    _
  $region29: #{backbone_forward.8} parent=0 // pred_fallthru
    _
  // Predicated region
  $region30: #{backbone_forward.8} parent=0 // pred_check
    _
  $region31: #{backbone_forward.8} parent=0 // pred_check_branch
    %33 = sbr.rel (0) target = $region33
  $region32: #{backbone_forward.8} parent=0 // pred_region
    _
  $region33: #{backbone_forward.8} parent=0 // pred_fallthru
    _
  // Predicated region
  $region34: #{backbone_forward.8} parent=0 // pred_check
    _
  $region35: #{backbone_forward.8} parent=0 // pred_check_branch
    %35 = sbr.rel (0) target = $region37
  $region36: #{backbone_forward.8} parent=0 // pred_region
    _
  $region37: #{backbone_forward.8} parent=0 // pred_fallthru
    _
  // Predicated region
  $region38: #{backbone_forward.8} parent=0 // pred_check
    _
  $region39: #{backbone_forward.8} parent=0 // pred_check_branch
    %37 = sbr.rel (0) target = $region41
  $region40: #{backbone_forward.8} parent=0 // pred_region
    _
  $region41: #{backbone_forward.8} parent=0 // pred_fallthru
    _
  // Predicated region
  $region42: #{backbone_forward.8} parent=0 // pred_check
    _
  $region43: #{backbone_forward.8} parent=0 // pred_check_branch
    %39 = sbr.rel (0) target = $region45
  $region44: #{backbone_forward.8} parent=0 // pred_region
    _
  $region45: #{backbone_forward.8} parent=0 // pred_fallthru
    _
  // Predicated region
  $region46: #{backbone_forward.8} parent=0 // pred_check
    _
  $region47: #{backbone_forward.8} parent=0 // pred_check_branch
    %41 = sbr.rel (0) target = $region49
  $region48: #{backbone_forward.8} parent=0 // pred_region
    _
  $region49: #{backbone_forward.8} parent=0 // pred_fallthru
    _
  // Predicated region
  $region50: #{backbone_forward.8} parent=0 // pred_check
    _
  $region51: #{backbone_forward.8} parent=0 // pred_check_branch
    %43 = sbr.rel (0) target = $region53
  $region52: #{backbone_forward.8} parent=0 // pred_region
    _
  $region53: #{backbone_forward.8} parent=0 // pred_fallthru
    _
  %v45 = vld [vmem:[%s0] sm:$0xff]
  %v46 = vld [vmem:[%s0 + $0x8] sm:$0xff]
  %v47 = vld [vmem:[%s0 + $0x10] sm:$0xff]
  %v48 = vld [vmem:[%s0 + $0x18] sm:$0xff]
  %v49 = vpack.c.bf16 %v46, %v45
  %v50 = vpack.c.bf16 %v48, %v47
  %v51 = vld [vmem:[%s1] sm:$0xf]
  %vm52 = vcmask 261120
  %v54 = vsel %vm52, %v51, 0
  %56 = vmatpush.bf16.msra.mxu0 0
  %57 = vmatpush.bf16.msra.mxu0 0
  %58 = vmatpush.bf16.msra.mxu0 0
  %59 = vmatpush.bf16.msra.mxu0 0
  %60 = vmatpush.bf16.msra.mxu0 0
  %61 = vmatpush.bf16.msra.mxu0 0
  %62 = vmatpush.bf16.msra.mxu0 %v50
  %63 = vmatpush.bf16.msra.mxu0 %v49
  %64 = vmatmul.bf16.gmra.mxu0 %v54
  %v65 = vpop.f32.mrf.mxu0
  %v66 = vadd.f32 0.0, %v65
  %v67 = vpop.f32.mrf.mxu0
  %68 = vdwg.mxu0
  %v69 = vpack.c.bf16 %v66, %v66
  %v70 = vld [vmem:[%s2] sm:$0xf]
  %v71 = vld [vmem:[%s2 + $0x4] sm:$0xf]
  %v72 = vld [vmem:[%s2 + $0x8] sm:$0xf]
  %v73 = vld [vmem:[%s2 + $0xc] sm:$0xf]
  %s74 = scalar_lea.vmem %s1, 4
  %v75 = vld [vmem:[%s74] sm:$0xf]
  %v77 = vsel %vm52, %v75, 0
  %79 = vmatpush.bf16.msra.mxu0 0
  %80 = vmatpush.bf16.msra.mxu0 0
  %81 = vmatpush.bf16.msra.mxu0 0
  %82 = vmatpush.bf16.msra.mxu0 0
  %83 = vmatpush.bf16.msra.mxu0 0
  %84 = vmatpush.bf16.msra.mxu0 0
  %85 = vmatpush.bf16.msra.mxu0 %v50
  %86 = vmatpush.bf16.msra.mxu0 %v49
  %87 = vmatmul.bf16.gmra.mxu0 %v77
  %v88 = vpop.f32.mrf.mxu0
  %v89 = vadd.f32 0.0, %v88
  %v90 = vpop.f32.mrf.mxu0
  %91 = vdwg.mxu0
  %v92 = vpack.c.bf16 %v89, %v89
  %s93 = scalar_lea.vmem %s2, 16
  %v94 = vld [vmem:[%s93] sm:$0xf]
  %v95 = vld [vmem:[%s93 + $0x4] sm:$0xf]
  %v96 = vld [vmem:[%s93 + $0x8] sm:$0xf]
  %v97 = vld [vmem:[%s93 + $0xc] sm:$0xf]
  %v102 = vunpack.c.l.b16 %v94
  %v103 = vunpack.c.l.b16 %v95
  %v104 = vunpack.c.l.b16 %v96
  %v105 = vunpack.c.l.b16 %v97
  %v106 = vpack.c.b16 %v103, %v102
  %v107 = vpack.c.b16 %v105, %v104
  %v111 = vsel %vm52, %v92, 0
  %113 = vmatpush.bf16.msra.mxu0 0
  %114 = vmatpush.bf16.msra.mxu0 0
  %115 = vmatpush.bf16.msra.mxu0 0
  %116 = vmatpush.bf16.msra.mxu0 0
  %117 = vmatpush.bf16.msra.mxu0 0
  %118 = vmatpush.bf16.msra.mxu0 0
  %119 = vmatpush.bf16.msra.mxu0 %v107
  %120 = vmatpush.bf16.msra.mxu0 %v106
  %121 = vmatmul.bf16.gmra.mxu0 %v111
  %v122 = vpop.f32.mrf.mxu0
  %v123 = vadd.f32 0.0, %v122
  %v124 = vpop.f32.mrf.mxu0
  %125 = vdwg.mxu0
  %v130 = vunpack.c.l.b16 %v70
  %v131 = vunpack.c.l.b16 %v71
  %v132 = vunpack.c.l.b16 %v72
  %v133 = vunpack.c.l.b16 %v73
  %v134 = vpack.c.b16 %v131, %v130
  %v135 = vpack.c.b16 %v133, %v132
  %v139 = vsel %vm52, %v69, 0
  %141 = vmatpush.bf16.msra.mxu0 0
  %142 = vmatpush.bf16.msra.mxu0 0
  %143 = vmatpush.bf16.msra.mxu0 0
  %144 = vmatpush.bf16.msra.mxu0 0
  %145 = vmatpush.bf16.msra.mxu0 0
  %146 = vmatpush.bf16.msra.mxu0 0
  %147 = vmatpush.bf16.msra.mxu0 %v135
  %148 = vmatpush.bf16.msra.mxu0 %v134
  %149 = vmatmul.bf16.gmra.mxu0 %v139
  %v150 = vpop.f32.mrf.mxu0
  %v151 = vadd.f32 %v123, %v150
  %v152 = vpop.f32.mrf.mxu0
  %153 = vdwg.mxu0
  %s154 = scalar_lea.vmem %s1, 8
  %v155 = vld [vmem:[%s154] sm:$0xf]
  %v157 = vsel %vm52, %v155, 0
  %159 = vmatpush.bf16.msra.mxu0 0
  %160 = vmatpush.bf16.msra.mxu0 0
  %161 = vmatpush.bf16.msra.mxu0 0
  %162 = vmatpush.bf16.msra.mxu0 0
  %163 = vmatpush.bf16.msra.mxu0 0
  %164 = vmatpush.bf16.msra.mxu0 0
  %165 = vmatpush.bf16.msra.mxu0 %v50
  %166 = vmatpush.bf16.msra.mxu0 %v49
  %167 = vmatmul.bf16.gmra.mxu0 %v157
  %v168 = vpop.f32.mrf.mxu0
  %v169 = vadd.f32 0.0, %v168
  %v170 = vpop.f32.mrf.mxu0
  %171 = vdwg.mxu0
  %v172 = vpack.c.bf16 %v169, %v169
  %s173 = scalar_lea.vmem %s2, 32
  %v174 = vld [vmem:[%s173] sm:$0xf]
  %v175 = vld [vmem:[%s173 + $0x4] sm:$0xf]
  %v176 = vld [vmem:[%s173 + $0x8] sm:$0xf]
  %v177 = vld [vmem:[%s173 + $0xc] sm:$0xf]
  %v182 = vunpack.c.l.b16 %v174
  %v183 = vunpack.c.l.b16 %v175
  %v184 = vunpack.c.l.b16 %v176
  %v185 = vunpack.c.l.b16 %v177
  %v186 = vpack.c.b16 %v183, %v182
  %v187 = vpack.c.b16 %v185, %v184
  %v191 = vsel %vm52, %v172, 0
  %193 = vmatpush.bf16.msra.mxu0 0
  %194 = vmatpush.bf16.msra.mxu0 0
  %195 = vmatpush.bf16.msra.mxu0 0
  %196 = vmatpush.bf16.msra.mxu0 0
  %197 = vmatpush.bf16.msra.mxu0 0
  %198 = vmatpush.bf16.msra.mxu0 0
  %199 = vmatpush.bf16.msra.mxu0 %v187
  %200 = vmatpush.bf16.msra.mxu0 %v186
  %201 = vmatmul.bf16.gmra.mxu0 %v191
  %v202 = vpop.f32.mrf.mxu0
  %v203 = vadd.f32 0.0, %v202
  %v204 = vpop.f32.mrf.mxu0
  %205 = vdwg.mxu0
  %v206 = vadd.f32 %v151, %v203
  %s207 = scalar_lea.vmem %s1, 12
  %v208 = vld [vmem:[%s207] sm:$0xf]
  %v210 = vsel %vm52, %v208, 0
  %212 = vmatpush.bf16.msra.mxu0 0
  %213 = vmatpush.bf16.msra.mxu0 0
  %214 = vmatpush.bf16.msra.mxu0 0
  %215 = vmatpush.bf16.msra.mxu0 0
  %216 = vmatpush.bf16.msra.mxu0 0
  %217 = vmatpush.bf16.msra.mxu0 0
  %218 = vmatpush.bf16.msra.mxu0 %v50
  %219 = vmatpush.bf16.msra.mxu0 %v49
  %220 = vmatmul.bf16.gmra.mxu0 %v210
  %v221 = vpop.f32.mrf.mxu0
  %v222 = vadd.f32 0.0, %v221
  %v223 = vpop.f32.mrf.mxu0
  %224 = vdwg.mxu0
  %v225 = vpack.c.bf16 %v222, %v222
  %s226 = scalar_lea.vmem %s2, 48
  %v227 = vld [vmem:[%s226] sm:$0xf]
  %v228 = vld [vmem:[%s226 + $0x4] sm:$0xf]
  %v229 = vld [vmem:[%s226 + $0x8] sm:$0xf]
  %v230 = vld [vmem:[%s226 + $0xc] sm:$0xf]
  %v235 = vunpack.c.l.b16 %v227
  %v236 = vunpack.c.l.b16 %v228
  %v237 = vunpack.c.l.b16 %v229
  %v238 = vunpack.c.l.b16 %v230
  %v239 = vpack.c.b16 %v236, %v235
  %v240 = vpack.c.b16 %v238, %v237
  %v244 = vsel %vm52, %v225, 0
  %246 = vmatpush.bf16.msra.mxu0 0
  %247 = vmatpush.bf16.msra.mxu0 0
  %248 = vmatpush.bf16.msra.mxu0 0
  %249 = vmatpush.bf16.msra.mxu0 0
  %250 = vmatpush.bf16.msra.mxu0 0
  %251 = vmatpush.bf16.msra.mxu0 0
  %252 = vmatpush.bf16.msra.mxu0 %v240
  %253 = vmatpush.bf16.msra.mxu0 %v239
  %254 = vmatmul.bf16.gmra.mxu0 %v244
  %v255 = vpop.f32.mrf.mxu0
  %v256 = vadd.f32 0.0, %v255
  %v257 = vpop.f32.mrf.mxu0
  %258 = vdwg.mxu0
  %v259 = vadd.f32 %v206, %v256
  %s260 = scalar_lea.vmem %s1, 16
  %v261 = vld [vmem:[%s260] sm:$0xf]
  %v263 = vsel %vm52, %v261, 0
  %265 = vmatpush.bf16.msra.mxu0 0
  %266 = vmatpush.bf16.msra.mxu0 0
  %267 = vmatpush.bf16.msra.mxu0 0
  %268 = vmatpush.bf16.msra.mxu0 0
  %269 = vmatpush.bf16.msra.mxu0 0
  %270 = vmatpush.bf16.msra.mxu0 0
  %271 = vmatpush.bf16.msra.mxu0 %v50
  %272 = vmatpush.bf16.msra.mxu0 %v49
  %273 = vmatmul.bf16.gmra.mxu0 %v263
  %v274 = vpop.f32.mrf.mxu0
  %v275 = vadd.f32 0.0, %v274
  %v276 = vpop.f32.mrf.mxu0
  %277 = vdwg.mxu0
  %v278 = vpack.c.bf16 %v275, %v275
  %s279 = scalar_lea.vmem %s2, 64
  %v280 = vld [vmem:[%s279] sm:$0xf]
  %v281 = vld [vmem:[%s279 + $0x4] sm:$0xf]
  %v282 = vld [vmem:[%s279 + $0x8] sm:$0xf]
  %v283 = vld [vmem:[%s279 + $0xc] sm:$0xf]
  %v288 = vunpack.c.l.b16 %v280
  %v289 = vunpack.c.l.b16 %v281
  %v290 = vunpack.c.l.b16 %v282
  %v291 = vunpack.c.l.b16 %v283
  %v292 = vpack.c.b16 %v289, %v288
  %v293 = vpack.c.b16 %v291, %v290
  %v297 = vsel %vm52, %v278, 0
  %299 = vmatpush.bf16.msra.mxu0 0
  %300 = vmatpush.bf16.msra.mxu0 0
  %301 = vmatpush.bf16.msra.mxu0 0
  %302 = vmatpush.bf16.msra.mxu0 0
  %303 = vmatpush.bf16.msra.mxu0 0
  %304 = vmatpush.bf16.msra.mxu0 0
  %305 = vmatpush.bf16.msra.mxu0 %v293
  %306 = vmatpush.bf16.msra.mxu0 %v292
  %307 = vmatmul.bf16.gmra.mxu0 %v297
  %v308 = vpop.f32.mrf.mxu0
  %v309 = vadd.f32 0.0, %v308
  %v310 = vpop.f32.mrf.mxu0
  %311 = vdwg.mxu0
  %v312 = vadd.f32 %v259, %v309
  %s313 = scalar_lea.vmem %s1, 20
  %v314 = vld [vmem:[%s313] sm:$0xf]
  %v316 = vsel %vm52, %v314, 0
  %318 = vmatpush.bf16.msra.mxu0 0
  %319 = vmatpush.bf16.msra.mxu0 0
  %320 = vmatpush.bf16.msra.mxu0 0
  %321 = vmatpush.bf16.msra.mxu0 0
  %322 = vmatpush.bf16.msra.mxu0 0
  %323 = vmatpush.bf16.msra.mxu0 0
  %324 = vmatpush.bf16.msra.mxu0 %v50
  %325 = vmatpush.bf16.msra.mxu0 %v49
  %326 = vmatmul.bf16.gmra.mxu0 %v316
  %v327 = vpop.f32.mrf.mxu0
  %v328 = vadd.f32 0.0, %v327
  %v329 = vpop.f32.mrf.mxu0
  %330 = vdwg.mxu0
  %v331 = vpack.c.bf16 %v328, %v328
  %s332 = scalar_lea.vmem %s2, 80
  %v333 = vld [vmem:[%s332] sm:$0xf]
  %v334 = vld [vmem:[%s332 + $0x4] sm:$0xf]
  %v335 = vld [vmem:[%s332 + $0x8] sm:$0xf]
  %v336 = vld [vmem:[%s332 + $0xc] sm:$0xf]
  %v341 = vunpack.c.l.b16 %v333
  %v342 = vunpack.c.l.b16 %v334
  %v343 = vunpack.c.l.b16 %v335
  %v344 = vunpack.c.l.b16 %v336
  %v345 = vpack.c.b16 %v342, %v341
  %v346 = vpack.c.b16 %v344, %v343
  %v350 = vsel %vm52, %v331, 0
  %352 = vmatpush.bf16.msra.mxu0 0
  %353 = vmatpush.bf16.msra.mxu0 0
  %354 = vmatpush.bf16.msra.mxu0 0
  %355 = vmatpush.bf16.msra.mxu0 0
  %356 = vmatpush.bf16.msra.mxu0 0
  %357 = vmatpush.bf16.msra.mxu0 0
  %358 = vmatpush.bf16.msra.mxu0 %v346
  %359 = vmatpush.bf16.msra.mxu0 %v345
  %360 = vmatmul.bf16.gmra.mxu0 %v350
  %v361 = vpop.f32.mrf.mxu0
  %v362 = vadd.f32 0.0, %v361
  %v363 = vpop.f32.mrf.mxu0
  %364 = vdwg.mxu0
  %v365 = vadd.f32 %v312, %v362
  %s366 = scalar_lea.vmem %s1, 24
  %v367 = vld [vmem:[%s366] sm:$0xf]
  %v369 = vsel %vm52, %v367, 0
  %371 = vmatpush.bf16.msra.mxu0 0
  %372 = vmatpush.bf16.msra.mxu0 0
  %373 = vmatpush.bf16.msra.mxu0 0
  %374 = vmatpush.bf16.msra.mxu0 0
  %375 = vmatpush.bf16.msra.mxu0 0
  %376 = vmatpush.bf16.msra.mxu0 0
  %377 = vmatpush.bf16.msra.mxu0 %v50
  %378 = vmatpush.bf16.msra.mxu0 %v49
  %379 = vmatmul.bf16.gmra.mxu0 %v369
  %v380 = vpop.f32.mrf.mxu0
  %v381 = vadd.f32 0.0, %v380
  %v382 = vpop.f32.mrf.mxu0
  %383 = vdwg.mxu0
  %v384 = vpack.c.bf16 %v381, %v381
  %s385 = scalar_lea.vmem %s2, 96
  %v386 = vld [vmem:[%s385] sm:$0xf]
  %v387 = vld [vmem:[%s385 + $0x4] sm:$0xf]
  %v388 = vld [vmem:[%s385 + $0x8] sm:$0xf]
  %v389 = vld [vmem:[%s385 + $0xc] sm:$0xf]
  %v394 = vunpack.c.l.b16 %v386
  %v395 = vunpack.c.l.b16 %v387
  %v396 = vunpack.c.l.b16 %v388
  %v397 = vunpack.c.l.b16 %v389
  %v398 = vpack.c.b16 %v395, %v394
  %v399 = vpack.c.b16 %v397, %v396
  %v403 = vsel %vm52, %v384, 0
  %405 = vmatpush.bf16.msra.mxu0 0
  %406 = vmatpush.bf16.msra.mxu0 0
  %407 = vmatpush.bf16.msra.mxu0 0
  %408 = vmatpush.bf16.msra.mxu0 0
  %409 = vmatpush.bf16.msra.mxu0 0
  %410 = vmatpush.bf16.msra.mxu0 0
  %411 = vmatpush.bf16.msra.mxu0 %v399
  %412 = vmatpush.bf16.msra.mxu0 %v398
  %413 = vmatmul.bf16.gmra.mxu0 %v403
  %v414 = vpop.f32.mrf.mxu0
  %v415 = vadd.f32 0.0, %v414
  %v416 = vpop.f32.mrf.mxu0
  %417 = vdwg.mxu0
  %v418 = vadd.f32 %v365, %v415
  %s419 = scalar_lea.vmem %s1, 28
  %v420 = vld [vmem:[%s419] sm:$0xf]
  %v422 = vsel %vm52, %v420, 0
  %424 = vmatpush.bf16.msra.mxu0 0
  %425 = vmatpush.bf16.msra.mxu0 0
  %426 = vmatpush.bf16.msra.mxu0 0
  %427 = vmatpush.bf16.msra.mxu0 0
  %428 = vmatpush.bf16.msra.mxu0 0
  %429 = vmatpush.bf16.msra.mxu0 0
  %430 = vmatpush.bf16.msra.mxu0 %v50
  %431 = vmatpush.bf16.msra.mxu0 %v49
  %432 = vmatmul.bf16.gmra.mxu0 %v422
  %v433 = vpop.f32.mrf.mxu0
  %v434 = vadd.f32 0.0, %v433
  %v435 = vpop.f32.mrf.mxu0
  %436 = vdwg.mxu0
  %v437 = vpack.c.bf16 %v434, %v434
  %s438 = scalar_lea.vmem %s2, 112
  %v439 = vld [vmem:[%s438] sm:$0xf]
  %v440 = vld [vmem:[%s438 + $0x4] sm:$0xf]
  %v441 = vld [vmem:[%s438 + $0x8] sm:$0xf]
  %v442 = vld [vmem:[%s438 + $0xc] sm:$0xf]
  %v447 = vunpack.c.l.b16 %v439
  %v448 = vunpack.c.l.b16 %v440
  %v449 = vunpack.c.l.b16 %v441
  %v450 = vunpack.c.l.b16 %v442
  %v451 = vpack.c.b16 %v448, %v447
  %v452 = vpack.c.b16 %v450, %v449
  %v456 = vsel %vm52, %v437, 0
  %458 = vmatpush.bf16.msra.mxu0 0
  %459 = vmatpush.bf16.msra.mxu0 0
  %460 = vmatpush.bf16.msra.mxu0 0
  %461 = vmatpush.bf16.msra.mxu0 0
  %462 = vmatpush.bf16.msra.mxu0 0
  %463 = vmatpush.bf16.msra.mxu0 0
  %464 = vmatpush.bf16.msra.mxu0 %v452
  %465 = vmatpush.bf16.msra.mxu0 %v451
  %466 = vmatmul.bf16.gmra.mxu0 %v456
  %v467 = vpop.f32.mrf.mxu0
  %v468 = vadd.f32 0.0, %v467
  %v469 = vpop.f32.mrf.mxu0
  %470 = vdwg.mxu0
  %v471 = vadd.f32 %v418, %v468
  %s472 = scalar_lea.vmem %s1, 32
  %v473 = vld [vmem:[%s472] sm:$0xf]
  %v475 = vsel %vm52, %v473, 0
  %477 = vmatpush.bf16.msra.mxu0 0
  %478 = vmatpush.bf16.msra.mxu0 0
  %479 = vmatpush.bf16.msra.mxu0 0
  %480 = vmatpush.bf16.msra.mxu0 0
  %481 = vmatpush.bf16.msra.mxu0 0
  %482 = vmatpush.bf16.msra.mxu0 0
  %483 = vmatpush.bf16.msra.mxu0 %v50
  %484 = vmatpush.bf16.msra.mxu0 %v49
  %485 = vmatmul.bf16.gmra.mxu0 %v475
  %v486 = vpop.f32.mrf.mxu0
  %v487 = vadd.f32 0.0, %v486
  %v488 = vpop.f32.mrf.mxu0
  %489 = vdwg.mxu0
  %v490 = vpack.c.bf16 %v487, %v487
  %s491 = scalar_lea.vmem %s2, 128
  %v492 = vld [vmem:[%s491] sm:$0xf]
  %v493 = vld [vmem:[%s491 + $0x4] sm:$0xf]
  %v494 = vld [vmem:[%s491 + $0x8] sm:$0xf]
  %v495 = vld [vmem:[%s491 + $0xc] sm:$0xf]
  %v500 = vunpack.c.l.b16 %v492
  %v501 = vunpack.c.l.b16 %v493
  %v502 = vunpack.c.l.b16 %v494
  %v503 = vunpack.c.l.b16 %v495
  %v504 = vpack.c.b16 %v501, %v500
  %v505 = vpack.c.b16 %v503, %v502
  %v509 = vsel %vm52, %v490, 0
  %511 = vmatpush.bf16.msra.mxu0 0
  %512 = vmatpush.bf16.msra.mxu0 0
  %513 = vmatpush.bf16.msra.mxu0 0
  %514 = vmatpush.bf16.msra.mxu0 0
  %515 = vmatpush.bf16.msra.mxu0 0
  %516 = vmatpush.bf16.msra.mxu0 0
  %517 = vmatpush.bf16.msra.mxu0 %v505
  %518 = vmatpush.bf16.msra.mxu0 %v504
  %519 = vmatmul.bf16.gmra.mxu0 %v509
  %v520 = vpop.f32.mrf.mxu0
  %v521 = vadd.f32 0.0, %v520
  %v522 = vpop.f32.mrf.mxu0
  %523 = vdwg.mxu0
  %v524 = vadd.f32 %v471, %v521
  %v525 = vld [vmem:[%s3] sm:$0x1]
  %v527 = vperm.slane %v525, 0
  %v529 = vmul.f32 %v524, %v527
  %v530 = vld [vmem:[%s4] sm:$0x1]
  %v532 = vperm.slane %v530, 0
  %v534 = vadd.f32 %v529, %v532
  %v535 = vmax.f32 %v534, 0.0
  %v536 = vld [vmem:[%s9] sm:$0xf]
  %v538 = vsel %vm52, %v536, 0
  %540 = vmatpush.bf16.msra.mxu0 0
  %541 = vmatpush.bf16.msra.mxu0 0
  %542 = vmatpush.bf16.msra.mxu0 0
  %543 = vmatpush.bf16.msra.mxu0 0
  %544 = vmatpush.bf16.msra.mxu0 0
  %545 = vmatpush.bf16.msra.mxu0 0
  %546 = vmatpush.bf16.msra.mxu0 %v50
  %547 = vmatpush.bf16.msra.mxu0 %v49
  %548 = vmatmul.bf16.gmra.mxu0 %v538
  %v549 = vpop.f32.mrf.mxu0
  %v550 = vadd.f32 0.0, %v549
  %v551 = vpop.f32.mrf.mxu0
  %552 = vdwg.mxu0
  %v553 = vpack.c.bf16 %v550, %v550
  %v554 = vld [vmem:[%s10] sm:$0xf]
  %v555 = vld [vmem:[%s10 + $0x4] sm:$0xf]
  %v556 = vld [vmem:[%s10 + $0x8] sm:$0xf]
  %v557 = vld [vmem:[%s10 + $0xc] sm:$0xf]
  %v562 = vunpack.c.l.b16 %v554
  %v563 = vunpack.c.l.b16 %v555
  %v564 = vunpack.c.l.b16 %v556
  %v565 = vunpack.c.l.b16 %v557
  %v566 = vpack.c.b16 %v563, %v562
  %v567 = vpack.c.b16 %v565, %v564
  %v571 = vsel %vm52, %v553, 0
  %573 = vmatpush.bf16.msra.mxu0 0
  %574 = vmatpush.bf16.msra.mxu0 0
  %575 = vmatpush.bf16.msra.mxu0 0
  %576 = vmatpush.bf16.msra.mxu0 0
  %577 = vmatpush.bf16.msra.mxu0 0
  %578 = vmatpush.bf16.msra.mxu0 0
  %579 = vmatpush.bf16.msra.mxu0 %v567
  %580 = vmatpush.bf16.msra.mxu0 %v566
  %581 = vmatmul.bf16.gmra.mxu0 %v571
  %v582 = vpop.f32.mrf.mxu0
  %v583 = vadd.f32 0.0, %v582
  %v584 = vpop.f32.mrf.mxu0
  %585 = vdwg.mxu0
  %v586 = vld [vmem:[%s11] sm:$0x1]
  %v588 = vperm.slane %v586, 0
  %v590 = vmul.f32 %v583, %v588
  %v591 = vld [vmem:[%s12] sm:$0x1]
  %v593 = vperm.slane %v591, 0
  %v595 = vadd.f32 %v590, %v593
  %v596 = vpack.c.bf16 %v535, %v535
  %v597 = vld [vmem:[%s5] sm:$0xf]
  %vm598 = vcmask 64512
  %v600 = vsel %vm598, %v597, 0
  %vm602 = vcmask 1043456
  %v604 = vsel %vm602, %v596, 0
  %606 = vmatpush.bf16.msra.mxu0 0
  %607 = vmatpush.bf16.msra.mxu0 0
  %608 = vmatpush.bf16.msra.mxu0 0
  %609 = vmatpush.bf16.msra.mxu0 0
  %610 = vmatpush.bf16.msra.mxu0 0
  %611 = vmatpush.bf16.msra.mxu0 0
  %612 = vmatpush.bf16.msra.mxu0 0
  %613 = vmatpush.bf16.msra.mxu0 %v604
  %614 = vmatmul.bf16.gmra.mxu0 %v600
  %v615 = vpop.f32.mrf.mxu0
  %v616 = vadd.f32 0.0, %v615
  %v617 = vpop.f32.mrf.mxu0
  %618 = vdwg.mxu0
  %v619 = vpack.c.bf16 %v616, %v616
  %v620 = vld [vmem:[%s6] sm:$0xf]
  %v621 = vld [vmem:[%s6 + $0x4] sm:$0xf]
  %v622 = vld [vmem:[%s6 + $0x8] sm:$0xf]
  %v623 = vld [vmem:[%s6 + $0xc] sm:$0xf]
  %v624 = vld [vmem:[%s6 + $0x10] sm:$0xf]
  %v625 = vld [vmem:[%s6 + $0x14] sm:$0xf]
  %v626 = vld [vmem:[%s6 + $0x18] sm:$0xf]
  %v627 = vld [vmem:[%s6 + $0x1c] sm:$0xf]
  %s628 = scalar_lea.vmem %s5, 4
  %v629 = vld [vmem:[%s628] sm:$0xf]
  %v631 = vsel %vm598, %v629, 0
  %633 = vmatpush.bf16.msra.mxu0 0
  %634 = vmatpush.bf16.msra.mxu0 0
  %635 = vmatpush.bf16.msra.mxu0 0
  %636 = vmatpush.bf16.msra.mxu0 0
  %637 = vmatpush.bf16.msra.mxu0 0
  %638 = vmatpush.bf16.msra.mxu0 0
  %639 = vmatpush.bf16.msra.mxu0 0
  %640 = vmatpush.bf16.msra.mxu0 %v604
  %641 = vmatmul.bf16.gmra.mxu0 %v631
  %v642 = vpop.f32.mrf.mxu0
  %v643 = vadd.f32 0.0, %v642
  %v644 = vpop.f32.mrf.mxu0
  %645 = vdwg.mxu0
  %v646 = vpack.c.bf16 %v643, %v643
  %s647 = scalar_lea.vmem %s6, 32
  %v648 = vld [vmem:[%s647] sm:$0xf]
  %v649 = vld [vmem:[%s647 + $0x4] sm:$0xf]
  %v650 = vld [vmem:[%s647 + $0x8] sm:$0xf]
  %v651 = vld [vmem:[%s647 + $0xc] sm:$0xf]
  %v652 = vld [vmem:[%s647 + $0x10] sm:$0xf]
  %v653 = vld [vmem:[%s647 + $0x14] sm:$0xf]
  %v654 = vld [vmem:[%s647 + $0x18] sm:$0xf]
  %v655 = vld [vmem:[%s647 + $0x1c] sm:$0xf]
  %v664 = vunpack.c.l.b16 %v648
  %v665 = vunpack.c.l.b16 %v649
  %v666 = vunpack.c.l.b16 %v650
  %v667 = vunpack.c.l.b16 %v651
  %v668 = vunpack.c.l.b16 %v652
  %v669 = vunpack.c.l.b16 %v653
  %v670 = vunpack.c.l.b16 %v654
  %v671 = vunpack.c.l.b16 %v655
  %v672 = vpack.c.b16 %v665, %v664
  %v673 = vpack.c.b16 %v667, %v666
  %v674 = vpack.c.b16 %v669, %v668
  %v675 = vpack.c.b16 %v671, %v670
  %vm680 = vcmask 523264
  %v682 = vsel %vm680, %v646, 0
  %684 = vmatpush.bf16.msra.mxu0 0
  %685 = vmatpush.bf16.msra.mxu0 0
  %686 = vmatpush.bf16.msra.mxu0 0
  %687 = vmatpush.bf16.msra.mxu0 0
  %688 = vmatpush.bf16.msra.mxu0 %v675
  %689 = vmatpush.bf16.msra.mxu0 %v674
  %690 = vmatpush.bf16.msra.mxu0 %v673
  %691 = vmatpush.bf16.msra.mxu0 %v672
  %692 = vmatmul.bf16.gmra.mxu0 %v682
  %v693 = vpop.f32.mrf.mxu0
  %v694 = vadd.f32 0.0, %v693
  %v695 = vpop.f32.mrf.mxu0
  %696 = vdwg.mxu0
  %v705 = vunpack.c.l.b16 %v620
  %v706 = vunpack.c.l.b16 %v621
  %v707 = vunpack.c.l.b16 %v622
  %v708 = vunpack.c.l.b16 %v623
  %v709 = vunpack.c.l.b16 %v624
  %v710 = vunpack.c.l.b16 %v625
  %v711 = vunpack.c.l.b16 %v626
  %v712 = vunpack.c.l.b16 %v627
  %v713 = vpack.c.b16 %v706, %v705
  %v714 = vpack.c.b16 %v708, %v707
  %v715 = vpack.c.b16 %v710, %v709
  %v716 = vpack.c.b16 %v712, %v711
  %v722 = vsel %vm680, %v619, 0
  %724 = vmatpush.bf16.msra.mxu0 0
  %725 = vmatpush.bf16.msra.mxu0 0
  %726 = vmatpush.bf16.msra.mxu0 0
  %727 = vmatpush.bf16.msra.mxu0 0
  %728 = vmatpush.bf16.msra.mxu0 %v716
  %729 = vmatpush.bf16.msra.mxu0 %v715
  %730 = vmatpush.bf16.msra.mxu0 %v714
  %731 = vmatpush.bf16.msra.mxu0 %v713
  %732 = vmatmul.bf16.gmra.mxu0 %v722
  %v733 = vpop.f32.mrf.mxu0
  %v734 = vadd.f32 %v694, %v733
  %v735 = vpop.f32.mrf.mxu0
  %736 = vdwg.mxu0
  %s737 = scalar_lea.vmem %s5, 8
  %v738 = vld [vmem:[%s737] sm:$0xf]
  %v740 = vsel %vm598, %v738, 0
  %742 = vmatpush.bf16.msra.mxu0 0
  %743 = vmatpush.bf16.msra.mxu0 0
  %744 = vmatpush.bf16.msra.mxu0 0
  %745 = vmatpush.bf16.msra.mxu0 0
  %746 = vmatpush.bf16.msra.mxu0 0
  %747 = vmatpush.bf16.msra.mxu0 0
  %748 = vmatpush.bf16.msra.mxu0 0
  %749 = vmatpush.bf16.msra.mxu0 %v604
  %750 = vmatmul.bf16.gmra.mxu0 %v740
  %v751 = vpop.f32.mrf.mxu0
  %v752 = vadd.f32 0.0, %v751
  %v753 = vpop.f32.mrf.mxu0
  %754 = vdwg.mxu0
  %v755 = vpack.c.bf16 %v752, %v752
  %s756 = scalar_lea.vmem %s6, 64
  %v757 = vld [vmem:[%s756] sm:$0xf]
  %v758 = vld [vmem:[%s756 + $0x4] sm:$0xf]
  %v759 = vld [vmem:[%s756 + $0x8] sm:$0xf]
  %v760 = vld [vmem:[%s756 + $0xc] sm:$0xf]
  %v761 = vld [vmem:[%s756 + $0x10] sm:$0xf]
  %v762 = vld [vmem:[%s756 + $0x14] sm:$0xf]
  %v763 = vld [vmem:[%s756 + $0x18] sm:$0xf]
  %v764 = vld [vmem:[%s756 + $0x1c] sm:$0xf]
  %v773 = vunpack.c.l.b16 %v757
  %v774 = vunpack.c.l.b16 %v758
  %v775 = vunpack.c.l.b16 %v759
  %v776 = vunpack.c.l.b16 %v760
  %v777 = vunpack.c.l.b16 %v761
  %v778 = vunpack.c.l.b16 %v762
  %v779 = vunpack.c.l.b16 %v763
  %v780 = vunpack.c.l.b16 %v764
  %v781 = vpack.c.b16 %v774, %v773
  %v782 = vpack.c.b16 %v776, %v775
  %v783 = vpack.c.b16 %v778, %v777
  %v784 = vpack.c.b16 %v780, %v779
  %v790 = vsel %vm680, %v755, 0
  %792 = vmatpush.bf16.msra.mxu0 0
  %793 = vmatpush.bf16.msra.mxu0 0
  %794 = vmatpush.bf16.msra.mxu0 0
  %795 = vmatpush.bf16.msra.mxu0 0
  %796 = vmatpush.bf16.msra.mxu0 %v784
  %797 = vmatpush.bf16.msra.mxu0 %v783
  %798 = vmatpush.bf16.msra.mxu0 %v782
  %799 = vmatpush.bf16.msra.mxu0 %v781
  %800 = vmatmul.bf16.gmra.mxu0 %v790
  %v801 = vpop.f32.mrf.mxu0
  %v802 = vadd.f32 0.0, %v801
  %v803 = vpop.f32.mrf.mxu0
  %804 = vdwg.mxu0
  %v805 = vadd.f32 %v734, %v802
  %s806 = scalar_lea.vmem %s5, 12
  %v807 = vld [vmem:[%s806] sm:$0xf]
  %v809 = vsel %vm598, %v807, 0
  %811 = vmatpush.bf16.msra.mxu0 0
  %812 = vmatpush.bf16.msra.mxu0 0
  %813 = vmatpush.bf16.msra.mxu0 0
  %814 = vmatpush.bf16.msra.mxu0 0
  %815 = vmatpush.bf16.msra.mxu0 0
  %816 = vmatpush.bf16.msra.mxu0 0
  %817 = vmatpush.bf16.msra.mxu0 0
  %818 = vmatpush.bf16.msra.mxu0 %v604
  %819 = vmatmul.bf16.gmra.mxu0 %v809
  %v820 = vpop.f32.mrf.mxu0
  %v821 = vadd.f32 0.0, %v820
  %v822 = vpop.f32.mrf.mxu0
  %823 = vdwg.mxu0
  %v824 = vpack.c.bf16 %v821, %v821
  %s825 = scalar_lea.vmem %s6, 96
  %v826 = vld [vmem:[%s825] sm:$0xf]
  %v827 = vld [vmem:[%s825 + $0x4] sm:$0xf]
  %v828 = vld [vmem:[%s825 + $0x8] sm:$0xf]
  %v829 = vld [vmem:[%s825 + $0xc] sm:$0xf]
  %v830 = vld [vmem:[%s825 + $0x10] sm:$0xf]
  %v831 = vld [vmem:[%s825 + $0x14] sm:$0xf]
  %v832 = vld [vmem:[%s825 + $0x18] sm:$0xf]
  %v833 = vld [vmem:[%s825 + $0x1c] sm:$0xf]
  %v842 = vunpack.c.l.b16 %v826
  %v843 = vunpack.c.l.b16 %v827
  %v844 = vunpack.c.l.b16 %v828
  %v845 = vunpack.c.l.b16 %v829
  %v846 = vunpack.c.l.b16 %v830
  %v847 = vunpack.c.l.b16 %v831
  %v848 = vunpack.c.l.b16 %v832
  %v849 = vunpack.c.l.b16 %v833
  %v850 = vpack.c.b16 %v843, %v842
  %v851 = vpack.c.b16 %v845, %v844
  %v852 = vpack.c.b16 %v847, %v846
  %v853 = vpack.c.b16 %v849, %v848
  %v859 = vsel %vm680, %v824, 0
  %861 = vmatpush.bf16.msra.mxu0 0
  %862 = vmatpush.bf16.msra.mxu0 0
  %863 = vmatpush.bf16.msra.mxu0 0
  %864 = vmatpush.bf16.msra.mxu0 0
  %865 = vmatpush.bf16.msra.mxu0 %v853
  %866 = vmatpush.bf16.msra.mxu0 %v852
  %867 = vmatpush.bf16.msra.mxu0 %v851
  %868 = vmatpush.bf16.msra.mxu0 %v850
  %869 = vmatmul.bf16.gmra.mxu0 %v859
  %v870 = vpop.f32.mrf.mxu0
  %v871 = vadd.f32 0.0, %v870
  %v872 = vpop.f32.mrf.mxu0
  %873 = vdwg.mxu0
  %v874 = vadd.f32 %v805, %v871
  %s875 = scalar_lea.vmem %s5, 16
  %v876 = vld [vmem:[%s875] sm:$0xf]
  %v878 = vsel %vm598, %v876, 0
  %880 = vmatpush.bf16.msra.mxu0 0
  %881 = vmatpush.bf16.msra.mxu0 0
  %882 = vmatpush.bf16.msra.mxu0 0
  %883 = vmatpush.bf16.msra.mxu0 0
  %884 = vmatpush.bf16.msra.mxu0 0
  %885 = vmatpush.bf16.msra.mxu0 0
  %886 = vmatpush.bf16.msra.mxu0 0
  %887 = vmatpush.bf16.msra.mxu0 %v604
  %888 = vmatmul.bf16.gmra.mxu0 %v878
  %v889 = vpop.f32.mrf.mxu0
  %v890 = vadd.f32 0.0, %v889
  %v891 = vpop.f32.mrf.mxu0
  %892 = vdwg.mxu0
  %v893 = vpack.c.bf16 %v890, %v890
  %s894 = scalar_lea.vmem %s6, 128
  %v895 = vld [vmem:[%s894] sm:$0xf]
  %v896 = vld [vmem:[%s894 + $0x4] sm:$0xf]
  %v897 = vld [vmem:[%s894 + $0x8] sm:$0xf]
  %v898 = vld [vmem:[%s894 + $0xc] sm:$0xf]
  %v899 = vld [vmem:[%s894 + $0x10] sm:$0xf]
  %v900 = vld [vmem:[%s894 + $0x14] sm:$0xf]
  %v901 = vld [vmem:[%s894 + $0x18] sm:$0xf]
  %v902 = vld [vmem:[%s894 + $0x1c] sm:$0xf]
  %v911 = vunpack.c.l.b16 %v895
  %v912 = vunpack.c.l.b16 %v896
  %v913 = vunpack.c.l.b16 %v897
  %v914 = vunpack.c.l.b16 %v898
  %v915 = vunpack.c.l.b16 %v899
  %v916 = vunpack.c.l.b16 %v900
  %v917 = vunpack.c.l.b16 %v901
  %v918 = vunpack.c.l.b16 %v902
  %v919 = vpack.c.b16 %v912, %v911
  %v920 = vpack.c.b16 %v914, %v913
  %v921 = vpack.c.b16 %v916, %v915
  %v922 = vpack.c.b16 %v918, %v917
  %v928 = vsel %vm680, %v893, 0
  %930 = vmatpush.bf16.msra.mxu0 0
  %931 = vmatpush.bf16.msra.mxu0 0
  %932 = vmatpush.bf16.msra.mxu0 0
  %933 = vmatpush.bf16.msra.mxu0 0
  %934 = vmatpush.bf16.msra.mxu0 %v922
  %935 = vmatpush.bf16.msra.mxu0 %v921
  %936 = vmatpush.bf16.msra.mxu0 %v920
  %937 = vmatpush.bf16.msra.mxu0 %v919
  %938 = vmatmul.bf16.gmra.mxu0 %v928
  %v939 = vpop.f32.mrf.mxu0
  %v940 = vadd.f32 0.0, %v939
  %v941 = vpop.f32.mrf.mxu0
  %942 = vdwg.mxu0
  %v943 = vadd.f32 %v874, %v940
  %s944 = scalar_lea.vmem %s5, 20
  %v945 = vld [vmem:[%s944] sm:$0xf]
  %v947 = vsel %vm598, %v945, 0
  %949 = vmatpush.bf16.msra.mxu0 0
  %950 = vmatpush.bf16.msra.mxu0 0
  %951 = vmatpush.bf16.msra.mxu0 0
  %952 = vmatpush.bf16.msra.mxu0 0
  %953 = vmatpush.bf16.msra.mxu0 0
  %954 = vmatpush.bf16.msra.mxu0 0
  %955 = vmatpush.bf16.msra.mxu0 0
  %956 = vmatpush.bf16.msra.mxu0 %v604
  %957 = vmatmul.bf16.gmra.mxu0 %v947
  %v958 = vpop.f32.mrf.mxu0
  %v959 = vadd.f32 0.0, %v958
  %v960 = vpop.f32.mrf.mxu0
  %961 = vdwg.mxu0
  %v962 = vpack.c.bf16 %v959, %v959
  %s963 = scalar_lea.vmem %s6, 160
  %v964 = vld [vmem:[%s963] sm:$0xf]
  %v965 = vld [vmem:[%s963 + $0x4] sm:$0xf]
  %v966 = vld [vmem:[%s963 + $0x8] sm:$0xf]
  %v967 = vld [vmem:[%s963 + $0xc] sm:$0xf]
  %v968 = vld [vmem:[%s963 + $0x10] sm:$0xf]
  %v969 = vld [vmem:[%s963 + $0x14] sm:$0xf]
  %v970 = vld [vmem:[%s963 + $0x18] sm:$0xf]
  %v971 = vld [vmem:[%s963 + $0x1c] sm:$0xf]
  %v980 = vunpack.c.l.b16 %v964
  %v981 = vunpack.c.l.b16 %v965
  %v982 = vunpack.c.l.b16 %v966
  %v983 = vunpack.c.l.b16 %v967
  %v984 = vunpack.c.l.b16 %v968
  %v985 = vunpack.c.l.b16 %v969
  %v986 = vunpack.c.l.b16 %v970
  %v987 = vunpack.c.l.b16 %v971
  %v988 = vpack.c.b16 %v981, %v980
  %v989 = vpack.c.b16 %v983, %v982
  %v990 = vpack.c.b16 %v985, %v984
  %v991 = vpack.c.b16 %v987, %v986
  %v997 = vsel %vm680, %v962, 0
  %999 = vmatpush.bf16.msra.mxu0 0
  %1000 = vmatpush.bf16.msra.mxu0 0
  %1001 = vmatpush.bf16.msra.mxu0 0
  %1002 = vmatpush.bf16.msra.mxu0 0
  %1003 = vmatpush.bf16.msra.mxu0 %v991
  %1004 = vmatpush.bf16.msra.mxu0 %v990
  %1005 = vmatpush.bf16.msra.mxu0 %v989
  %1006 = vmatpush.bf16.msra.mxu0 %v988
  %1007 = vmatmul.bf16.gmra.mxu0 %v997
  %v1008 = vpop.f32.mrf.mxu0
  %v1009 = vadd.f32 0.0, %v1008
  %v1010 = vpop.f32.mrf.mxu0
  %1011 = vdwg.mxu0
  %v1012 = vadd.f32 %v943, %v1009
  %s1013 = scalar_lea.vmem %s5, 24
  %v1014 = vld [vmem:[%s1013] sm:$0xf]
  %v1016 = vsel %vm598, %v1014, 0
  %1018 = vmatpush.bf16.msra.mxu0 0
  %1019 = vmatpush.bf16.msra.mxu0 0
  %1020 = vmatpush.bf16.msra.mxu0 0
  %1021 = vmatpush.bf16.msra.mxu0 0
  %1022 = vmatpush.bf16.msra.mxu0 0
  %1023 = vmatpush.bf16.msra.mxu0 0
  %1024 = vmatpush.bf16.msra.mxu0 0
  %1025 = vmatpush.bf16.msra.mxu0 %v604
  %1026 = vmatmul.bf16.gmra.mxu0 %v1016
  %v1027 = vpop.f32.mrf.mxu0
  %v1028 = vadd.f32 0.0, %v1027
  %v1029 = vpop.f32.mrf.mxu0
  %1030 = vdwg.mxu0
  %v1031 = vpack.c.bf16 %v1028, %v1028
  %s1032 = scalar_lea.vmem %s6, 192
  %v1033 = vld [vmem:[%s1032] sm:$0xf]
  %v1034 = vld [vmem:[%s1032 + $0x4] sm:$0xf]
  %v1035 = vld [vmem:[%s1032 + $0x8] sm:$0xf]
  %v1036 = vld [vmem:[%s1032 + $0xc] sm:$0xf]
  %v1037 = vld [vmem:[%s1032 + $0x10] sm:$0xf]
  %v1038 = vld [vmem:[%s1032 + $0x14] sm:$0xf]
  %v1039 = vld [vmem:[%s1032 + $0x18] sm:$0xf]
  %v1040 = vld [vmem:[%s1032 + $0x1c] sm:$0xf]
  %v1049 = vunpack.c.l.b16 %v1033
  %v1050 = vunpack.c.l.b16 %v1034
  %v1051 = vunpack.c.l.b16 %v1035
  %v1052 = vunpack.c.l.b16 %v1036
  %v1053 = vunpack.c.l.b16 %v1037
  %v1054 = vunpack.c.l.b16 %v1038
  %v1055 = vunpack.c.l.b16 %v1039
  %v1056 = vunpack.c.l.b16 %v1040
  %v1057 = vpack.c.b16 %v1050, %v1049
  %v1058 = vpack.c.b16 %v1052, %v1051
  %v1059 = vpack.c.b16 %v1054, %v1053
  %v1060 = vpack.c.b16 %v1056, %v1055
  %v1066 = vsel %vm680, %v1031, 0
  %1068 = vmatpush.bf16.msra.mxu0 0
  %1069 = vmatpush.bf16.msra.mxu0 0
  %1070 = vmatpush.bf16.msra.mxu0 0
  %1071 = vmatpush.bf16.msra.mxu0 0
  %1072 = vmatpush.bf16.msra.mxu0 %v1060
  %1073 = vmatpush.bf16.msra.mxu0 %v1059
  %1074 = vmatpush.bf16.msra.mxu0 %v1058
  %1075 = vmatpush.bf16.msra.mxu0 %v1057
  %1076 = vmatmul.bf16.gmra.mxu0 %v1066
  %v1077 = vpop.f32.mrf.mxu0
  %v1078 = vadd.f32 0.0, %v1077
  %v1079 = vpop.f32.mrf.mxu0
  %1080 = vdwg.mxu0
  %v1081 = vadd.f32 %v1012, %v1078
  %s1082 = scalar_lea.vmem %s5, 28
  %v1083 = vld [vmem:[%s1082] sm:$0xf]
  %v1085 = vsel %vm598, %v1083, 0
  %1087 = vmatpush.bf16.msra.mxu0 0
  %1088 = vmatpush.bf16.msra.mxu0 0
  %1089 = vmatpush.bf16.msra.mxu0 0
  %1090 = vmatpush.bf16.msra.mxu0 0
  %1091 = vmatpush.bf16.msra.mxu0 0
  %1092 = vmatpush.bf16.msra.mxu0 0
  %1093 = vmatpush.bf16.msra.mxu0 0
  %1094 = vmatpush.bf16.msra.mxu0 %v604
  %1095 = vmatmul.bf16.gmra.mxu0 %v1085
  %v1096 = vpop.f32.mrf.mxu0
  %v1097 = vadd.f32 0.0, %v1096
  %v1098 = vpop.f32.mrf.mxu0
  %1099 = vdwg.mxu0
  %v1100 = vpack.c.bf16 %v1097, %v1097
  %s1101 = scalar_lea.vmem %s6, 224
  %v1102 = vld [vmem:[%s1101] sm:$0xf]
  %v1103 = vld [vmem:[%s1101 + $0x4] sm:$0xf]
  %v1104 = vld [vmem:[%s1101 + $0x8] sm:$0xf]
  %v1105 = vld [vmem:[%s1101 + $0xc] sm:$0xf]
  %v1106 = vld [vmem:[%s1101 + $0x10] sm:$0xf]
  %v1107 = vld [vmem:[%s1101 + $0x14] sm:$0xf]
  %v1108 = vld [vmem:[%s1101 + $0x18] sm:$0xf]
  %v1109 = vld [vmem:[%s1101 + $0x1c] sm:$0xf]
  %v1118 = vunpack.c.l.b16 %v1102
  %v1119 = vunpack.c.l.b16 %v1103
  %v1120 = vunpack.c.l.b16 %v1104
  %v1121 = vunpack.c.l.b16 %v1105
  %v1122 = vunpack.c.l.b16 %v1106
  %v1123 = vunpack.c.l.b16 %v1107
  %v1124 = vunpack.c.l.b16 %v1108
  %v1125 = vunpack.c.l.b16 %v1109
  %v1126 = vpack.c.b16 %v1119, %v1118
  %v1127 = vpack.c.b16 %v1121, %v1120
  %v1128 = vpack.c.b16 %v1123, %v1122
  %v1129 = vpack.c.b16 %v1125, %v1124
  %v1135 = vsel %vm680, %v1100, 0
  %1137 = vmatpush.bf16.msra.mxu0 0
  %1138 = vmatpush.bf16.msra.mxu0 0
  %1139 = vmatpush.bf16.msra.mxu0 0
  %1140 = vmatpush.bf16.msra.mxu0 0
  %1141 = vmatpush.bf16.msra.mxu0 %v1129
  %1142 = vmatpush.bf16.msra.mxu0 %v1128
  %1143 = vmatpush.bf16.msra.mxu0 %v1127
  %1144 = vmatpush.bf16.msra.mxu0 %v1126
  %1145 = vmatmul.bf16.gmra.mxu0 %v1135
  %v1146 = vpop.f32.mrf.mxu0
  %v1147 = vadd.f32 0.0, %v1146
  %v1148 = vpop.f32.mrf.mxu0
  %1149 = vdwg.mxu0
  %v1150 = vadd.f32 %v1081, %v1147
  %s1151 = scalar_lea.vmem %s5, 32
  %v1152 = vld [vmem:[%s1151] sm:$0xf]
  %v1154 = vsel %vm598, %v1152, 0
  %1156 = vmatpush.bf16.msra.mxu0 0
  %1157 = vmatpush.bf16.msra.mxu0 0
  %1158 = vmatpush.bf16.msra.mxu0 0
  %1159 = vmatpush.bf16.msra.mxu0 0
  %1160 = vmatpush.bf16.msra.mxu0 0
  %1161 = vmatpush.bf16.msra.mxu0 0
  %1162 = vmatpush.bf16.msra.mxu0 0
  %1163 = vmatpush.bf16.msra.mxu0 %v604
  %1164 = vmatmul.bf16.gmra.mxu0 %v1154
  %v1165 = vpop.f32.mrf.mxu0
  %v1166 = vadd.f32 0.0, %v1165
  %v1167 = vpop.f32.mrf.mxu0
  %1168 = vdwg.mxu0
  %v1169 = vpack.c.bf16 %v1166, %v1166
  %s1170 = scalar_lea.vmem %s6, 256
  %v1171 = vld [vmem:[%s1170] sm:$0xf]
  %v1172 = vld [vmem:[%s1170 + $0x4] sm:$0xf]
  %v1173 = vld [vmem:[%s1170 + $0x8] sm:$0xf]
  %v1174 = vld [vmem:[%s1170 + $0xc] sm:$0xf]
  %v1175 = vld [vmem:[%s1170 + $0x10] sm:$0xf]
  %v1176 = vld [vmem:[%s1170 + $0x14] sm:$0xf]
  %v1177 = vld [vmem:[%s1170 + $0x18] sm:$0xf]
  %v1178 = vld [vmem:[%s1170 + $0x1c] sm:$0xf]
  %v1187 = vunpack.c.l.b16 %v1171
  %v1188 = vunpack.c.l.b16 %v1172
  %v1189 = vunpack.c.l.b16 %v1173
  %v1190 = vunpack.c.l.b16 %v1174
  %v1191 = vunpack.c.l.b16 %v1175
  %v1192 = vunpack.c.l.b16 %v1176
  %v1193 = vunpack.c.l.b16 %v1177
  %v1194 = vunpack.c.l.b16 %v1178
  %v1195 = vpack.c.b16 %v1188, %v1187
  %v1196 = vpack.c.b16 %v1190, %v1189
  %v1197 = vpack.c.b16 %v1192, %v1191
  %v1198 = vpack.c.b16 %v1194, %v1193
  %v1204 = vsel %vm680, %v1169, 0
  %1206 = vmatpush.bf16.msra.mxu0 0
  %1207 = vmatpush.bf16.msra.mxu0 0
  %1208 = vmatpush.bf16.msra.mxu0 0
  %1209 = vmatpush.bf16.msra.mxu0 0
  %1210 = vmatpush.bf16.msra.mxu0 %v1198
  %1211 = vmatpush.bf16.msra.mxu0 %v1197
  %1212 = vmatpush.bf16.msra.mxu0 %v1196
  %1213 = vmatpush.bf16.msra.mxu0 %v1195
  %1214 = vmatmul.bf16.gmra.mxu0 %v1204
  %v1215 = vpop.f32.mrf.mxu0
  %v1216 = vadd.f32 0.0, %v1215
  %v1217 = vpop.f32.mrf.mxu0
  %1218 = vdwg.mxu0
  %v1219 = vadd.f32 %v1150, %v1216
  %v1220 = vld [vmem:[%s7] sm:$0x1]
  %v1222 = vperm.slane %v1220, 0
  %v1224 = vmul.f32 %v1219, %v1222
  %v1225 = vld [vmem:[%s8] sm:$0x1]
  %v1227 = vperm.slane %v1225, 0
  %v1229 = vadd.f32 %v1224, %v1227
  %v1230 = vadd.f32 %v1229, %v595
  %v1231 = vmax.f32 %v1230, 0.0
  %1232 = vst.msk [vmem:[%s13] sm:$0xff] %vm680, %v1231
  // Predicated region
  $region54: #{backbone_forward.8} parent=0 // pred_check
    _
  $region55: #{backbone_forward.8} parent=0 // pred_check_branch
    %1234 = sbr.rel (0) target = $region57
  $region56: #{backbone_forward.8} parent=0 // pred_region
    _
  $region57: #{backbone_forward.8} parent=0 // pred_fallthru
    _
  // Predicated region
  $region58: #{backbone_forward.8} parent=0 // pred_check
    _
  $region59: #{backbone_forward.8} parent=0 // pred_check_branch
    %1236 = sbr.rel (0) target = $region61
  $region60: #{backbone_forward.8} parent=0 // pred_region
    _
  $region61: #{backbone_forward.8} parent=0 // pred_fallthru
    _

// kernel: backbone_forward.6
$region0: #{backbone_forward.6}
  #allocation0 [shape = 'u32[]', space=smem, size = 0x4, offset = 0x4, fixed_abs, tag = 'smem constant byte address 0x4 - core index']
  #allocation1 [shape = 'u32[72,128]{1,0:T(1,128)}', space=vmem, size = 0x9000, scoped, tag = 'internal scratch']
  %s0 = inlined_call_operand.vmem [shape: f32[128,16], index: 0, kind: input, shape index: {}]
  %s1 = inlined_call_operand.vmem [shape: bf16[9,128,128], index: 1, kind: input, shape index: {}, may-alias: {1,5}]
  %s2 = inlined_call_operand.vmem [shape: bf16[9,16,16], index: 2, kind: input, shape index: {}]
  %s3 = inlined_call_operand.vmem [shape: f32[1,16], index: 3, kind: input, shape index: {}]
  %s4 = inlined_call_operand.vmem [shape: f32[1,16], index: 4, kind: input, shape index: {}]
  %s5 = inlined_call_operand.vmem [shape: bf16[9,128,128], index: 5, kind: input, shape index: {}, may-alias: {1,5}]
  %s6 = inlined_call_operand.vmem [shape: bf16[9,16,16], index: 6, kind: input, shape index: {}]
  %s7 = inlined_call_operand.vmem [shape: f32[1,16], index: 7, kind: input, shape index: {}]
  %s8 = inlined_call_operand.vmem [shape: f32[1,16], index: 8, kind: input, shape index: {}]
  %s9 = inlined_call_operand.vmem [shape: f32[128,16], index: 9, kind: output, shape index: {}]
  %s10 = sld [smem:[#allocation0]]
  $region46: #{backbone_forward.6} parent=0
    _
  %s12 = ssub.s32 1, %s10
  %s13 = scalar_select 0, %s12, %s10
  // Predicated region
  $region2: #{backbone_forward.6} parent=0 // pred_check
    _
  $region3: #{backbone_forward.6} parent=0 // pred_check_branch
    %15 = sbr.rel (0) target = $region5
  $region4: #{backbone_forward.6} parent=0 // pred_region
    _
  $region5: #{backbone_forward.6} parent=0 // pred_fallthru
    _
  // Predicated region
  $region6: #{backbone_forward.6} parent=0 // pred_check
    _
  $region7: #{backbone_forward.6} parent=0 // pred_check_branch
    %17 = sbr.rel (0) target = $region9
  $region8: #{backbone_forward.6} parent=0 // pred_region
    _
  $region9: #{backbone_forward.6} parent=0 // pred_fallthru
    _
  // Predicated region
  $region10: #{backbone_forward.6} parent=0 // pred_check
    _
  $region11: #{backbone_forward.6} parent=0 // pred_check_branch
    %19 = sbr.rel (0) target = $region13
  $region12: #{backbone_forward.6} parent=0 // pred_region
    _
  $region13: #{backbone_forward.6} parent=0 // pred_fallthru
    _
  // Predicated region
  $region14: #{backbone_forward.6} parent=0 // pred_check
    _
  $region15: #{backbone_forward.6} parent=0 // pred_check_branch
    %21 = sbr.rel (0) target = $region17
  $region16: #{backbone_forward.6} parent=0 // pred_region
    _
  $region17: #{backbone_forward.6} parent=0 // pred_fallthru
    _
  // Predicated region
  $region18: #{backbone_forward.6} parent=0 // pred_check
    _
  $region19: #{backbone_forward.6} parent=0 // pred_check_branch
    %23 = sbr.rel (0) target = $region21
  $region20: #{backbone_forward.6} parent=0 // pred_region
    _
  $region21: #{backbone_forward.6} parent=0 // pred_fallthru
    _
  // Predicated region
  $region22: #{backbone_forward.6} parent=0 // pred_check
    _
  $region23: #{backbone_forward.6} parent=0 // pred_check_branch
    %25 = sbr.rel (0) target = $region25
  $region24: #{backbone_forward.6} parent=0 // pred_region
    _
  $region25: #{backbone_forward.6} parent=0 // pred_fallthru
    _
  // Predicated region
  $region26: #{backbone_forward.6} parent=0 // pred_check
    _
  $region27: #{backbone_forward.6} parent=0 // pred_check_branch
    %27 = sbr.rel (0) target = $region29
  $region28: #{backbone_forward.6} parent=0 // pred_region
    _
  $region29: #{backbone_forward.6} parent=0 // pred_fallthru
    _
  // Predicated region
  $region30: #{backbone_forward.6} parent=0 // pred_check
    _
  $region31: #{backbone_forward.6} parent=0 // pred_check_branch
    %29 = sbr.rel (0) target = $region33
  $region32: #{backbone_forward.6} parent=0 // pred_region
    _
  $region33: #{backbone_forward.6} parent=0 // pred_fallthru
    _
  // Predicated region
  $region34: #{backbone_forward.6} parent=0 // pred_check
    _
  $region35: #{backbone_forward.6} parent=0 // pred_check_branch
    %31 = sbr.rel (0) target = $region37
  $region36: #{backbone_forward.6} parent=0 // pred_region
    _
  $region37: #{backbone_forward.6} parent=0 // pred_fallthru
    _
  %v33 = vld [vmem:[%s0] sm:$0xff]
  %v34 = vld [vmem:[%s0 + $0x8] sm:$0xff]
  %v35 = vld [vmem:[%s0 + $0x10] sm:$0xff]
  %v36 = vld [vmem:[%s0 + $0x18] sm:$0xff]
  %v37 = vld [vmem:[%s0 + $0x20] sm:$0xff]
  %v38 = vld [vmem:[%s0 + $0x28] sm:$0xff]
  %v39 = vld [vmem:[%s0 + $0x30] sm:$0xff]
  %v40 = vld [vmem:[%s0 + $0x38] sm:$0xff]
  %v41 = vld [vmem:[%s0 + $0x40] sm:$0xff]
  %v42 = vld [vmem:[%s0 + $0x48] sm:$0xff]
  %v43 = vld [vmem:[%s0 + $0x50] sm:$0xff]
  %v44 = vld [vmem:[%s0 + $0x58] sm:$0xff]
  %v45 = vld [vmem:[%s0 + $0x60] sm:$0xff]
  %v46 = vld [vmem:[%s0 + $0x68] sm:$0xff]
  %v47 = vld [vmem:[%s0 + $0x70] sm:$0xff]
  %v48 = vld [vmem:[%s0 + $0x78] sm:$0xff]
  %v49 = vpack.c.bf16 %v34, %v33
  %v50 = vpack.c.bf16 %v36, %v35
  %v51 = vpack.c.bf16 %v38, %v37
  %v52 = vpack.c.bf16 %v40, %v39
  %v53 = vpack.c.bf16 %v42, %v41
  %v54 = vpack.c.bf16 %v44, %v43
  %v55 = vpack.c.bf16 %v46, %v45
  %v56 = vpack.c.bf16 %v48, %v47
  %v57 = vld [vmem:[%s1] sm:$0xf]
  %v58 = vld [vmem:[%s1 + $0x4] sm:$0xf]
  %v59 = vld [vmem:[%s1 + $0x8] sm:$0xf]
  %v60 = vld [vmem:[%s1 + $0xc] sm:$0xf]
  %v61 = vld [vmem:[%s1 + $0x10] sm:$0xf]
  %v62 = vld [vmem:[%s1 + $0x14] sm:$0xf]
  %v63 = vld [vmem:[%s1 + $0x18] sm:$0xf]
  %v64 = vld [vmem:[%s1 + $0x1c] sm:$0xf]
  %v65 = vld [vmem:[%s1 + $0x20] sm:$0xf]
  %v66 = vld [vmem:[%s1 + $0x24] sm:$0xf]
  %v67 = vld [vmem:[%s1 + $0x28] sm:$0xf]
  %v68 = vld [vmem:[%s1 + $0x2c] sm:$0xf]
  %v69 = vld [vmem:[%s1 + $0x30] sm:$0xf]
  %v70 = vld [vmem:[%s1 + $0x34] sm:$0xf]
  %v71 = vld [vmem:[%s1 + $0x38] sm:$0xf]
  %v72 = vld [vmem:[%s1 + $0x3c] sm:$0xf]
  %v89 = vunpack.c.l.b16 %v57
  %v90 = vunpack.c.l.b16 %v58
  %v91 = vunpack.c.l.b16 %v59
  %v92 = vunpack.c.l.b16 %v60
  %v93 = vunpack.c.l.b16 %v61
  %v94 = vunpack.c.l.b16 %v62
  %v95 = vunpack.c.l.b16 %v63
  %v96 = vunpack.c.l.b16 %v64
  %v97 = vunpack.c.l.b16 %v65
  %v98 = vunpack.c.l.b16 %v66
  %v99 = vunpack.c.l.b16 %v67
  %v100 = vunpack.c.l.b16 %v68
  %v101 = vunpack.c.l.b16 %v69
  %v102 = vunpack.c.l.b16 %v70
  %v103 = vunpack.c.l.b16 %v71
  %v104 = vunpack.c.l.b16 %v72
  %v105 = vpack.c.b16 %v90, %v89
  %v106 = vpack.c.b16 %v92, %v91
  %v107 = vpack.c.b16 %v94, %v93
  %v108 = vpack.c.b16 %v96, %v95
  %v109 = vpack.c.b16 %v98, %v97
  %v110 = vpack.c.b16 %v100, %v99
  %v111 = vpack.c.b16 %v102, %v101
  %v112 = vpack.c.b16 %v104, %v103
  %121 = vmatpush.bf16.msra.mxu0 %v56
  %122 = vmatpush.bf16.msra.mxu0 %v55
  %123 = vmatpush.bf16.msra.mxu0 %v54
  %124 = vmatpush.bf16.msra.mxu0 %v53
  %125 = vmatpush.bf16.msra.mxu0 %v52
  %126 = vmatpush.bf16.msra.mxu0 %v51
  %127 = vmatpush.bf16.msra.mxu0 %v50
  %128 = vmatpush.bf16.msra.mxu0 %v49
  %129 = vmatmul.bf16.gmra.mxu0 %v105
  %v130 = vpop.f32.mrf.mxu0
  %v131 = vadd.f32 0.0, %v130
  %v132 = vpop.f32.mrf.mxu0
  %v133 = vadd.f32 0.0, %v132
  %134 = vmatmul.bf16.gmra.mxu0 %v106
  %v135 = vpop.f32.mrf.mxu0
  %v136 = vadd.f32 0.0, %v135
  %v137 = vpop.f32.mrf.mxu0
  %v138 = vadd.f32 0.0, %v137
  %139 = vmatmul.bf16.gmra.mxu0 %v107
  %v140 = vpop.f32.mrf.mxu0
  %v141 = vadd.f32 0.0, %v140
  %v142 = vpop.f32.mrf.mxu0
  %v143 = vadd.f32 0.0, %v142
  %144 = vmatmul.bf16.gmra.mxu0 %v108
  %v145 = vpop.f32.mrf.mxu0
  %v146 = vadd.f32 0.0, %v145
  %v147 = vpop.f32.mrf.mxu0
  %v148 = vadd.f32 0.0, %v147
  %149 = vmatmul.bf16.gmra.mxu0 %v109
  %v150 = vpop.f32.mrf.mxu0
  %v151 = vadd.f32 0.0, %v150
  %v152 = vpop.f32.mrf.mxu0
  %v153 = vadd.f32 0.0, %v152
  %154 = vmatmul.bf16.gmra.mxu0 %v110
  %v155 = vpop.f32.mrf.mxu0
  %v156 = vadd.f32 0.0, %v155
  %v157 = vpop.f32.mrf.mxu0
  %v158 = vadd.f32 0.0, %v157
  %159 = vmatmul.bf16.gmra.mxu0 %v111
  %v160 = vpop.f32.mrf.mxu0
  %v161 = vadd.f32 0.0, %v160
  %v162 = vpop.f32.mrf.mxu0
  %v163 = vadd.f32 0.0, %v162
  %164 = vmatmul.bf16.gmra.mxu0 %v112
  %v165 = vpop.f32.mrf.mxu0
  %v166 = vadd.f32 0.0, %v165
  %v167 = vpop.f32.mrf.mxu0
  %v168 = vadd.f32 0.0, %v167
  %169 = vdwg.mxu0
  %v170 = vpack.c.bf16 %v133, %v131
  %v171 = vpack.c.bf16 %v138, %v136
  %v172 = vpack.c.bf16 %v143, %v141
  %v173 = vpack.c.bf16 %v148, %v146
  %v174 = vpack.c.bf16 %v153, %v151
  %v175 = vpack.c.bf16 %v158, %v156
  %v176 = vpack.c.bf16 %v163, %v161
  %v177 = vpack.c.bf16 %v168, %v166
  %v178 = vld [vmem:[%s2] sm:$0xf]
  %v179 = vld [vmem:[%s2 + $0x4] sm:$0xf]
  %s180 = scalar_lea.vmem %s1, 64
  %v181 = vld [vmem:[%s180] sm:$0xf]
  %v182 = vld [vmem:[%s180 + $0x4] sm:$0xf]
  %v183 = vld [vmem:[%s180 + $0x8] sm:$0xf]
  %v184 = vld [vmem:[%s180 + $0xc] sm:$0xf]
  %v185 = vld [vmem:[%s180 + $0x10] sm:$0xf]
  %v186 = vld [vmem:[%s180 + $0x14] sm:$0xf]
  %v187 = vld [vmem:[%s180 + $0x18] sm:$0xf]
  %v188 = vld [vmem:[%s180 + $0x1c] sm:$0xf]
  %v189 = vld [vmem:[%s180 + $0x20] sm:$0xf]
  %v190 = vld [vmem:[%s180 + $0x24] sm:$0xf]
  %v191 = vld [vmem:[%s180 + $0x28] sm:$0xf]
  %v192 = vld [vmem:[%s180 + $0x2c] sm:$0xf]
  %v193 = vld [vmem:[%s180 + $0x30] sm:$0xf]
  %v194 = vld [vmem:[%s180 + $0x34] sm:$0xf]
  %v195 = vld [vmem:[%s180 + $0x38] sm:$0xf]
  %v196 = vld [vmem:[%s180 + $0x3c] sm:$0xf]
  %v213 = vunpack.c.l.b16 %v181
  %v214 = vunpack.c.l.b16 %v182
  %v215 = vunpack.c.l.b16 %v183
  %v216 = vunpack.c.l.b16 %v184
  %v217 = vunpack.c.l.b16 %v185
  %v218 = vunpack.c.l.b16 %v186
  %v219 = vunpack.c.l.b16 %v187
  %v220 = vunpack.c.l.b16 %v188
  %v221 = vunpack.c.l.b16 %v189
  %v222 = vunpack.c.l.b16 %v190
  %v223 = vunpack.c.l.b16 %v191
  %v224 = vunpack.c.l.b16 %v192
  %v225 = vunpack.c.l.b16 %v193
  %v226 = vunpack.c.l.b16 %v194
  %v227 = vunpack.c.l.b16 %v195
  %v228 = vunpack.c.l.b16 %v196
  %v229 = vpack.c.b16 %v214, %v213
  %v230 = vpack.c.b16 %v216, %v215
  %v231 = vpack.c.b16 %v218, %v217
  %v232 = vpack.c.b16 %v220, %v219
  %v233 = vpack.c.b16 %v222, %v221
  %v234 = vpack.c.b16 %v224, %v223
  %v235 = vpack.c.b16 %v226, %v225
  %v236 = vpack.c.b16 %v228, %v227
  %245 = vmatpush.bf16.msra.mxu0 %v56
  %246 = vmatpush.bf16.msra.mxu0 %v55
  %247 = vmatpush.bf16.msra.mxu0 %v54
  %248 = vmatpush.bf16.msra.mxu0 %v53
  %249 = vmatpush.bf16.msra.mxu0 %v52
  %250 = vmatpush.bf16.msra.mxu0 %v51
  %251 = vmatpush.bf16.msra.mxu0 %v50
  %252 = vmatpush.bf16.msra.mxu0 %v49
  %253 = vmatmul.bf16.gmra.mxu0 %v229
  %v254 = vpop.f32.mrf.mxu0
  %v255 = vadd.f32 0.0, %v254
  %v256 = vpop.f32.mrf.mxu0
  %v257 = vadd.f32 0.0, %v256
  %258 = vmatmul.bf16.gmra.mxu0 %v230
  %v259 = vpop.f32.mrf.mxu0
  %v260 = vadd.f32 0.0, %v259
  %v261 = vpop.f32.mrf.mxu0
  %v262 = vadd.f32 0.0, %v261
  %263 = vmatmul.bf16.gmra.mxu0 %v231
  %v264 = vpop.f32.mrf.mxu0
  %v265 = vadd.f32 0.0, %v264
  %v266 = vpop.f32.mrf.mxu0
  %v267 = vadd.f32 0.0, %v266
  %268 = vmatmul.bf16.gmra.mxu0 %v232
  %v269 = vpop.f32.mrf.mxu0
  %v270 = vadd.f32 0.0, %v269
  %v271 = vpop.f32.mrf.mxu0
  %v272 = vadd.f32 0.0, %v271
  %273 = vmatmul.bf16.gmra.mxu0 %v233
  %v274 = vpop.f32.mrf.mxu0
  %v275 = vadd.f32 0.0, %v274
  %v276 = vpop.f32.mrf.mxu0
  %v277 = vadd.f32 0.0, %v276
  %278 = vmatmul.bf16.gmra.mxu0 %v234
  %v279 = vpop.f32.mrf.mxu0
  %v280 = vadd.f32 0.0, %v279
  %v281 = vpop.f32.mrf.mxu0
  %v282 = vadd.f32 0.0, %v281
  %283 = vmatmul.bf16.gmra.mxu0 %v235
  %v284 = vpop.f32.mrf.mxu0
  %v285 = vadd.f32 0.0, %v284
  %v286 = vpop.f32.mrf.mxu0
  %v287 = vadd.f32 0.0, %v286
  %288 = vmatmul.bf16.gmra.mxu0 %v236
  %v289 = vpop.f32.mrf.mxu0
  %v290 = vadd.f32 0.0, %v289
  %v291 = vpop.f32.mrf.mxu0
  %v292 = vadd.f32 0.0, %v291
  %293 = vdwg.mxu0
  %v294 = vpack.c.bf16 %v257, %v255
  %v295 = vpack.c.bf16 %v262, %v260
  %v296 = vpack.c.bf16 %v267, %v265
  %v297 = vpack.c.bf16 %v272, %v270
  %v298 = vpack.c.bf16 %v277, %v275
  %v299 = vpack.c.bf16 %v282, %v280
  %v300 = vpack.c.bf16 %v287, %v285
  %v301 = vpack.c.bf16 %v292, %v290
  %s302 = scalar_lea.vmem %s2, 8
  %v303 = vld [vmem:[%s302] sm:$0xf]
  %v304 = vld [vmem:[%s302 + $0x4] sm:$0xf]
  %v307 = vunpack.c.l.b16 %v303
  %v308 = vunpack.c.l.b16 %v304
  %v309 = vpack.c.b16 %v308, %v307
  %vm311 = vcmask 130048
  %v313 = vsel %vm311, %v294, 0
  %v316 = vsel %vm311, %v295, 0
  %v319 = vsel %vm311, %v296, 0
  %v322 = vsel %vm311, %v297, 0
  %v325 = vsel %vm311, %v298, 0
  %v328 = vsel %vm311, %v299, 0
  %v331 = vsel %vm311, %v300, 0
  %v334 = vsel %vm311, %v301, 0
  %336 = vmatpush.bf16.msra.mxu0 0
  %337 = vmatpush.bf16.msra.mxu0 0
  %338 = vmatpush.bf16.msra.mxu0 0
  %339 = vmatpush.bf16.msra.mxu0 0
  %340 = vmatpush.bf16.msra.mxu0 0
  %341 = vmatpush.bf16.msra.mxu0 0
  %342 = vmatpush.bf16.msra.mxu0 0
  %343 = vmatpush.bf16.msra.mxu0 %v309
  %344 = vmatmul.bf16.gmra.mxu0 %v313
  %v345 = vpop.f32.mrf.mxu0
  %v346 = vadd.f32 0.0, %v345
  %v347 = vpop.f32.mrf.mxu0
  %v348 = vadd.f32 0.0, %v347
  %349 = vmatmul.bf16.gmra.mxu0 %v316
  %v350 = vpop.f32.mrf.mxu0
  %v351 = vadd.f32 0.0, %v350
  %v352 = vpop.f32.mrf.mxu0
  %v353 = vadd.f32 0.0, %v352
  %354 = vmatmul.bf16.gmra.mxu0 %v319
  %v355 = vpop.f32.mrf.mxu0
  %v356 = vadd.f32 0.0, %v355
  %v357 = vpop.f32.mrf.mxu0
  %v358 = vadd.f32 0.0, %v357
  %359 = vmatmul.bf16.gmra.mxu0 %v322
  %v360 = vpop.f32.mrf.mxu0
  %v361 = vadd.f32 0.0, %v360
  %v362 = vpop.f32.mrf.mxu0
  %v363 = vadd.f32 0.0, %v362
  %364 = vmatmul.bf16.gmra.mxu0 %v325
  %v365 = vpop.f32.mrf.mxu0
  %v366 = vadd.f32 0.0, %v365
  %v367 = vpop.f32.mrf.mxu0
  %v368 = vadd.f32 0.0, %v367
  %369 = vmatmul.bf16.gmra.mxu0 %v328
  %v370 = vpop.f32.mrf.mxu0
  %v371 = vadd.f32 0.0, %v370
  %v372 = vpop.f32.mrf.mxu0
  %v373 = vadd.f32 0.0, %v372
  %374 = vmatmul.bf16.gmra.mxu0 %v331
  %v375 = vpop.f32.mrf.mxu0
  %v376 = vadd.f32 0.0, %v375
  %v377 = vpop.f32.mrf.mxu0
  %v378 = vadd.f32 0.0, %v377
  %379 = vmatmul.bf16.gmra.mxu0 %v334
  %v380 = vpop.f32.mrf.mxu0
  %v381 = vadd.f32 0.0, %v380
  %v382 = vpop.f32.mrf.mxu0
  %v383 = vadd.f32 0.0, %v382
  %384 = vdwg.mxu0
  %v387 = vunpack.c.l.b16 %v178
  %v388 = vunpack.c.l.b16 %v179
  %v389 = vpack.c.b16 %v388, %v387
  %v392 = vsel %vm311, %v170, 0
  %v395 = vsel %vm311, %v171, 0
  %v398 = vsel %vm311, %v172, 0
  %v401 = vsel %vm311, %v173, 0
  %v404 = vsel %vm311, %v174, 0
  %v407 = vsel %vm311, %v175, 0
  %v410 = vsel %vm311, %v176, 0
  %v413 = vsel %vm311, %v177, 0
  %415 = vmatpush.bf16.msra.mxu0 0
  %416 = vmatpush.bf16.msra.mxu0 0
  %417 = vmatpush.bf16.msra.mxu0 0
  %418 = vmatpush.bf16.msra.mxu0 0
  %419 = vmatpush.bf16.msra.mxu0 0
  %420 = vmatpush.bf16.msra.mxu0 0
  %421 = vmatpush.bf16.msra.mxu0 0
  %422 = vmatpush.bf16.msra.mxu0 %v389
  %423 = vmatmul.bf16.gmra.mxu0 %v392
  %v424 = vpop.f32.mrf.mxu0
  %v425 = vadd.f32 %v346, %v424
  %v426 = vpop.f32.mrf.mxu0
  %v427 = vadd.f32 %v348, %v426
  %428 = vmatmul.bf16.gmra.mxu0 %v395
  %v429 = vpop.f32.mrf.mxu0
  %v430 = vadd.f32 %v351, %v429
  %v431 = vpop.f32.mrf.mxu0
  %v432 = vadd.f32 %v353, %v431
  %433 = vmatmul.bf16.gmra.mxu0 %v398
  %v434 = vpop.f32.mrf.mxu0
  %v435 = vadd.f32 %v356, %v434
  %v436 = vpop.f32.mrf.mxu0
  %v437 = vadd.f32 %v358, %v436
  %438 = vmatmul.bf16.gmra.mxu0 %v401
  %v439 = vpop.f32.mrf.mxu0
  %v440 = vadd.f32 %v361, %v439
  %v441 = vpop.f32.mrf.mxu0
  %v442 = vadd.f32 %v363, %v441
  %443 = vmatmul.bf16.gmra.mxu0 %v404
  %v444 = vpop.f32.mrf.mxu0
  %v445 = vadd.f32 %v366, %v444
  %v446 = vpop.f32.mrf.mxu0
  %v447 = vadd.f32 %v368, %v446
  %448 = vmatmul.bf16.gmra.mxu0 %v407
  %v449 = vpop.f32.mrf.mxu0
  %v450 = vadd.f32 %v371, %v449
  %v451 = vpop.f32.mrf.mxu0
  %v452 = vadd.f32 %v373, %v451
  %453 = vmatmul.bf16.gmra.mxu0 %v410
  %v454 = vpop.f32.mrf.mxu0
  %v455 = vadd.f32 %v376, %v454
  %v456 = vpop.f32.mrf.mxu0
  %v457 = vadd.f32 %v378, %v456
  %458 = vmatmul.bf16.gmra.mxu0 %v413
  %v459 = vpop.f32.mrf.mxu0
  %v460 = vadd.f32 %v381, %v459
  %v461 = vpop.f32.mrf.mxu0
  %v462 = vadd.f32 %v383, %v461
  %463 = vdwg.mxu0
  %s464 = scalar_lea.vmem %s1, 128
  %v465 = vld [vmem:[%s464] sm:$0xf]
  %v466 = vld [vmem:[%s464 + $0x4] sm:$0xf]
  %v467 = vld [vmem:[%s464 + $0x8] sm:$0xf]
  %v468 = vld [vmem:[%s464 + $0xc] sm:$0xf]
  %v469 = vld [vmem:[%s464 + $0x10] sm:$0xf]
  %v470 = vld [vmem:[%s464 + $0x14] sm:$0xf]
  %v471 = vld [vmem:[%s464 + $0x18] sm:$0xf]
  %v472 = vld [vmem:[%s464 + $0x1c] sm:$0xf]
  %v473 = vld [vmem:[%s464 + $0x20] sm:$0xf]
  %v474 = vld [vmem:[%s464 + $0x24] sm:$0xf]
  %v475 = vld [vmem:[%s464 + $0x28] sm:$0xf]
  %v476 = vld [vmem:[%s464 + $0x2c] sm:$0xf]
  %v477 = vld [vmem:[%s464 + $0x30] sm:$0xf]
  %v478 = vld [vmem:[%s464 + $0x34] sm:$0xf]
  %v479 = vld [vmem:[%s464 + $0x38] sm:$0xf]
  %v480 = vld [vmem:[%s464 + $0x3c] sm:$0xf]
  %v497 = vunpack.c.l.b16 %v465
  %v498 = vunpack.c.l.b16 %v466
  %v499 = vunpack.c.l.b16 %v467
  %v500 = vunpack.c.l.b16 %v468
  %v501 = vunpack.c.l.b16 %v469
  %v502 = vunpack.c.l.b16 %v470
  %v503 = vunpack.c.l.b16 %v471
  %v504 = vunpack.c.l.b16 %v472
  %v505 = vunpack.c.l.b16 %v473
  %v506 = vunpack.c.l.b16 %v474
  %v507 = vunpack.c.l.b16 %v475
  %v508 = vunpack.c.l.b16 %v476
  %v509 = vunpack.c.l.b16 %v477
  %v510 = vunpack.c.l.b16 %v478
  %v511 = vunpack.c.l.b16 %v479
  %v512 = vunpack.c.l.b16 %v480
  %v513 = vpack.c.b16 %v498, %v497
  %v514 = vpack.c.b16 %v500, %v499
  %v515 = vpack.c.b16 %v502, %v501
  %v516 = vpack.c.b16 %v504, %v503
  %v517 = vpack.c.b16 %v506, %v505
  %v518 = vpack.c.b16 %v508, %v507
  %v519 = vpack.c.b16 %v510, %v509
  %v520 = vpack.c.b16 %v512, %v511
  %529 = vmatpush.bf16.msra.mxu0 %v56
  %530 = vmatpush.bf16.msra.mxu0 %v55
  %531 = vmatpush.bf16.msra.mxu0 %v54
  %532 = vmatpush.bf16.msra.mxu0 %v53
  %533 = vmatpush.bf16.msra.mxu0 %v52
  %534 = vmatpush.bf16.msra.mxu0 %v51
  %535 = vmatpush.bf16.msra.mxu0 %v50
  %536 = vmatpush.bf16.msra.mxu0 %v49
  %537 = vmatmul.bf16.gmra.mxu0 %v513
  %v538 = vpop.f32.mrf.mxu0
  %v539 = vadd.f32 0.0, %v538
  %v540 = vpop.f32.mrf.mxu0
  %v541 = vadd.f32 0.0, %v540
  %542 = vmatmul.bf16.gmra.mxu0 %v514
  %v543 = vpop.f32.mrf.mxu0
  %v544 = vadd.f32 0.0, %v543
  %v545 = vpop.f32.mrf.mxu0
  %v546 = vadd.f32 0.0, %v545
  %547 = vmatmul.bf16.gmra.mxu0 %v515
  %v548 = vpop.f32.mrf.mxu0
  %v549 = vadd.f32 0.0, %v548
  %v550 = vpop.f32.mrf.mxu0
  %v551 = vadd.f32 0.0, %v550
  %552 = vmatmul.bf16.gmra.mxu0 %v516
  %v553 = vpop.f32.mrf.mxu0
  %v554 = vadd.f32 0.0, %v553
  %v555 = vpop.f32.mrf.mxu0
  %v556 = vadd.f32 0.0, %v555
  %557 = vmatmul.bf16.gmra.mxu0 %v517
  %v558 = vpop.f32.mrf.mxu0
  %v559 = vadd.f32 0.0, %v558
  %v560 = vpop.f32.mrf.mxu0
  %v561 = vadd.f32 0.0, %v560
  %562 = vmatmul.bf16.gmra.mxu0 %v518
  %v563 = vpop.f32.mrf.mxu0
  %v564 = vadd.f32 0.0, %v563
  %v565 = vpop.f32.mrf.mxu0
  %v566 = vadd.f32 0.0, %v565
  %567 = vmatmul.bf16.gmra.mxu0 %v519
  %v568 = vpop.f32.mrf.mxu0
  %v569 = vadd.f32 0.0, %v568
  %v570 = vpop.f32.mrf.mxu0
  %v571 = vadd.f32 0.0, %v570
  %572 = vmatmul.bf16.gmra.mxu0 %v520
  %v573 = vpop.f32.mrf.mxu0
  %v574 = vadd.f32 0.0, %v573
  %v575 = vpop.f32.mrf.mxu0
  %v576 = vadd.f32 0.0, %v575
  %577 = vdwg.mxu0
  %v578 = vpack.c.bf16 %v541, %v539
  %v579 = vpack.c.bf16 %v546, %v544
  %v580 = vpack.c.bf16 %v551, %v549
  %v581 = vpack.c.bf16 %v556, %v554
  %v582 = vpack.c.bf16 %v561, %v559
  %v583 = vpack.c.bf16 %v566, %v564
  %v584 = vpack.c.bf16 %v571, %v569
  %v585 = vpack.c.bf16 %v576, %v574
  %s586 = scalar_lea.vmem %s2, 16
  %v587 = vld [vmem:[%s586] sm:$0xf]
  %v588 = vld [vmem:[%s586 + $0x4] sm:$0xf]
  %v591 = vunpack.c.l.b16 %v587
  %v592 = vunpack.c.l.b16 %v588
  %v593 = vpack.c.b16 %v592, %v591
  %v596 = vsel %vm311, %v578, 0
  %v599 = vsel %vm311, %v579, 0
  %v602 = vsel %vm311, %v580, 0
  %v605 = vsel %vm311, %v581, 0
  %v608 = vsel %vm311, %v582, 0
  %v611 = vsel %vm311, %v583, 0
  %v614 = vsel %vm311, %v584, 0
  %v617 = vsel %vm311, %v585, 0
  %619 = vmatpush.bf16.msra.mxu0 0
  %620 = vmatpush.bf16.msra.mxu0 0
  %621 = vmatpush.bf16.msra.mxu0 0
  %622 = vmatpush.bf16.msra.mxu0 0
  %623 = vmatpush.bf16.msra.mxu0 0
  %624 = vmatpush.bf16.msra.mxu0 0
  %625 = vmatpush.bf16.msra.mxu0 0
  %626 = vmatpush.bf16.msra.mxu0 %v593
  %627 = vmatmul.bf16.gmra.mxu0 %v596
  %v628 = vpop.f32.mrf.mxu0
  %v629 = vadd.f32 0.0, %v628
  %v630 = vpop.f32.mrf.mxu0
  %v631 = vadd.f32 0.0, %v630
  %632 = vmatmul.bf16.gmra.mxu0 %v599
  %v633 = vpop.f32.mrf.mxu0
  %v634 = vadd.f32 0.0, %v633
  %v635 = vpop.f32.mrf.mxu0
  %v636 = vadd.f32 0.0, %v635
  %637 = vmatmul.bf16.gmra.mxu0 %v602
  %v638 = vpop.f32.mrf.mxu0
  %v639 = vadd.f32 0.0, %v638
  %v640 = vpop.f32.mrf.mxu0
  %v641 = vadd.f32 0.0, %v640
  %642 = vmatmul.bf16.gmra.mxu0 %v605
  %v643 = vpop.f32.mrf.mxu0
  %v644 = vadd.f32 0.0, %v643
  %v645 = vpop.f32.mrf.mxu0
  %v646 = vadd.f32 0.0, %v645
  %647 = vmatmul.bf16.gmra.mxu0 %v608
  %v648 = vpop.f32.mrf.mxu0
  %v649 = vadd.f32 0.0, %v648
  %v650 = vpop.f32.mrf.mxu0
  %v651 = vadd.f32 0.0, %v650
  %652 = vmatmul.bf16.gmra.mxu0 %v611
  %v653 = vpop.f32.mrf.mxu0
  %v654 = vadd.f32 0.0, %v653
  %v655 = vpop.f32.mrf.mxu0
  %v656 = vadd.f32 0.0, %v655
  %657 = vmatmul.bf16.gmra.mxu0 %v614
  %v658 = vpop.f32.mrf.mxu0
  %v659 = vadd.f32 0.0, %v658
  %v660 = vpop.f32.mrf.mxu0
  %v661 = vadd.f32 0.0, %v660
  %662 = vmatmul.bf16.gmra.mxu0 %v617
  %v663 = vpop.f32.mrf.mxu0
  %v664 = vadd.f32 0.0, %v663
  %v665 = vpop.f32.mrf.mxu0
  %v666 = vadd.f32 0.0, %v665
  %667 = vdwg.mxu0
  %v668 = vadd.f32 %v425, %v629
  %v669 = vadd.f32 %v427, %v631
  %v670 = vadd.f32 %v430, %v634
  %v671 = vadd.f32 %v432, %v636
  %v672 = vadd.f32 %v435, %v639
  %v673 = vadd.f32 %v437, %v641
  %v674 = vadd.f32 %v440, %v644
  %v675 = vadd.f32 %v442, %v646
  %v676 = vadd.f32 %v445, %v649
  %v677 = vadd.f32 %v447, %v651
  %v678 = vadd.f32 %v450, %v654
  %v679 = vadd.f32 %v452, %v656
  %v680 = vadd.f32 %v455, %v659
  %v681 = vadd.f32 %v457, %v661
  %v682 = vadd.f32 %v460, %v664
  %v683 = vadd.f32 %v462, %v666
  %s684 = scalar_lea.vmem %s1, 192
  %v685 = vld [vmem:[%s684] sm:$0xf]
  %v686 = vld [vmem:[%s684 + $0x4] sm:$0xf]
  %v687 = vld [vmem:[%s684 + $0x8] sm:$0xf]
  %v688 = vld [vmem:[%s684 + $0xc] sm:$0xf]
  %v689 = vld [vmem:[%s684 + $0x10] sm:$0xf]
  %v690 = vld [vmem:[%s684 + $0x14] sm:$0xf]
  %v691 = vld [vmem:[%s684 + $0x18] sm:$0xf]
  %v692 = vld [vmem:[%s684 + $0x1c] sm:$0xf]
  %v693 = vld [vmem:[%s684 + $0x20] sm:$0xf]
  %v694 = vld [vmem:[%s684 + $0x24] sm:$0xf]
  %v695 = vld [vmem:[%s684 + $0x28] sm:$0xf]
  %v696 = vld [vmem:[%s684 + $0x2c] sm:$0xf]
  %v697 = vld [vmem:[%s684 + $0x30] sm:$0xf]
  %v698 = vld [vmem:[%s684 + $0x34] sm:$0xf]
  %v699 = vld [vmem:[%s684 + $0x38] sm:$0xf]
  %v700 = vld [vmem:[%s684 + $0x3c] sm:$0xf]
  %v717 = vunpack.c.l.b16 %v685
  %v718 = vunpack.c.l.b16 %v686
  %v719 = vunpack.c.l.b16 %v687
  %v720 = vunpack.c.l.b16 %v688
  %v721 = vunpack.c.l.b16 %v689
  %v722 = vunpack.c.l.b16 %v690
  %v723 = vunpack.c.l.b16 %v691
  %v724 = vunpack.c.l.b16 %v692
  %v725 = vunpack.c.l.b16 %v693
  %v726 = vunpack.c.l.b16 %v694
  %v727 = vunpack.c.l.b16 %v695
  %v728 = vunpack.c.l.b16 %v696
  %v729 = vunpack.c.l.b16 %v697
  %v730 = vunpack.c.l.b16 %v698
  %v731 = vunpack.c.l.b16 %v699
  %v732 = vunpack.c.l.b16 %v700
  %v733 = vpack.c.b16 %v718, %v717
  %v734 = vpack.c.b16 %v720, %v719
  %v735 = vpack.c.b16 %v722, %v721
  %v736 = vpack.c.b16 %v724, %v723
  %v737 = vpack.c.b16 %v726, %v725
  %v738 = vpack.c.b16 %v728, %v727
  %v739 = vpack.c.b16 %v730, %v729
  %v740 = vpack.c.b16 %v732, %v731
  %749 = vmatpush.bf16.msra.mxu0 %v56
  %750 = vmatpush.bf16.msra.mxu0 %v55
  %751 = vmatpush.bf16.msra.mxu0 %v54
  %752 = vmatpush.bf16.msra.mxu0 %v53
  %753 = vmatpush.bf16.msra.mxu0 %v52
  %754 = vmatpush.bf16.msra.mxu0 %v51
  %755 = vmatpush.bf16.msra.mxu0 %v50
  %756 = vmatpush.bf16.msra.mxu0 %v49
  %757 = vmatmul.bf16.gmra.mxu0 %v733
  %v758 = vpop.f32.mrf.mxu0
  %v759 = vadd.f32 0.0, %v758
  %v760 = vpop.f32.mrf.mxu0
  %v761 = vadd.f32 0.0, %v760
  %762 = vmatmul.bf16.gmra.mxu0 %v734
  %v763 = vpop.f32.mrf.mxu0
  %v764 = vadd.f32 0.0, %v763
  %v765 = vpop.f32.mrf.mxu0
  %v766 = vadd.f32 0.0, %v765
  %767 = vmatmul.bf16.gmra.mxu0 %v735
  %v768 = vpop.f32.mrf.mxu0
  %v769 = vadd.f32 0.0, %v768
  %v770 = vpop.f32.mrf.mxu0
  %v771 = vadd.f32 0.0, %v770
  %772 = vmatmul.bf16.gmra.mxu0 %v736
  %v773 = vpop.f32.mrf.mxu0
  %v774 = vadd.f32 0.0, %v773
  %v775 = vpop.f32.mrf.mxu0
  %v776 = vadd.f32 0.0, %v775
  %777 = vmatmul.bf16.gmra.mxu0 %v737
  %v778 = vpop.f32.mrf.mxu0
  %v779 = vadd.f32 0.0, %v778
  %v780 = vpop.f32.mrf.mxu0
  %v781 = vadd.f32 0.0, %v780
  %782 = vmatmul.bf16.gmra.mxu0 %v738
  %v783 = vpop.f32.mrf.mxu0
  %v784 = vadd.f32 0.0, %v783
  %v785 = vpop.f32.mrf.mxu0
  %v786 = vadd.f32 0.0, %v785
  %787 = vmatmul.bf16.gmra.mxu0 %v739
  %v788 = vpop.f32.mrf.mxu0
  %v789 = vadd.f32 0.0, %v788
  %v790 = vpop.f32.mrf.mxu0
  %v791 = vadd.f32 0.0, %v790
  %792 = vmatmul.bf16.gmra.mxu0 %v740
  %v793 = vpop.f32.mrf.mxu0
  %v794 = vadd.f32 0.0, %v793
  %v795 = vpop.f32.mrf.mxu0
  %v796 = vadd.f32 0.0, %v795
  %797 = vdwg.mxu0
  %v798 = vpack.c.bf16 %v761, %v759
  %v799 = vpack.c.bf16 %v766, %v764
  %v800 = vpack.c.bf16 %v771, %v769
  %v801 = vpack.c.bf16 %v776, %v774
  %v802 = vpack.c.bf16 %v781, %v779
  %v803 = vpack.c.bf16 %v786, %v784
  %v804 = vpack.c.bf16 %v791, %v789
  %v805 = vpack.c.bf16 %v796, %v794
  %s806 = scalar_lea.vmem %s2, 24
  %v807 = vld [vmem:[%s806] sm:$0xf]
  %v808 = vld [vmem:[%s806 + $0x4] sm:$0xf]
  %v811 = vunpack.c.l.b16 %v807
  %v812 = vunpack.c.l.b16 %v808
  %v813 = vpack.c.b16 %v812, %v811
  %v816 = vsel %vm311, %v798, 0
  %v819 = vsel %vm311, %v799, 0
  %v822 = vsel %vm311, %v800, 0
  %v825 = vsel %vm311, %v801, 0
  %v828 = vsel %vm311, %v802, 0
  %v831 = vsel %vm311, %v803, 0
  %v834 = vsel %vm311, %v804, 0
  %v837 = vsel %vm311, %v805, 0
  %839 = vmatpush.bf16.msra.mxu0 0
  %840 = vmatpush.bf16.msra.mxu0 0
  %841 = vmatpush.bf16.msra.mxu0 0
  %842 = vmatpush.bf16.msra.mxu0 0
  %843 = vmatpush.bf16.msra.mxu0 0
  %844 = vmatpush.bf16.msra.mxu0 0
  %845 = vmatpush.bf16.msra.mxu0 0
  %846 = vmatpush.bf16.msra.mxu0 %v813
  %847 = vmatmul.bf16.gmra.mxu0 %v816
  %v848 = vpop.f32.mrf.mxu0
  %v849 = vadd.f32 0.0, %v848
  %v850 = vpop.f32.mrf.mxu0
  %v851 = vadd.f32 0.0, %v850
  %852 = vmatmul.bf16.gmra.mxu0 %v819
  %v853 = vpop.f32.mrf.mxu0
  %v854 = vadd.f32 0.0, %v853
  %v855 = vpop.f32.mrf.mxu0
  %v856 = vadd.f32 0.0, %v855
  %857 = vmatmul.bf16.gmra.mxu0 %v822
  %v858 = vpop.f32.mrf.mxu0
  %v859 = vadd.f32 0.0, %v858
  %v860 = vpop.f32.mrf.mxu0
  %v861 = vadd.f32 0.0, %v860
  %862 = vmatmul.bf16.gmra.mxu0 %v825
  %v863 = vpop.f32.mrf.mxu0
  %v864 = vadd.f32 0.0, %v863
  %v865 = vpop.f32.mrf.mxu0
  %v866 = vadd.f32 0.0, %v865
  %867 = vmatmul.bf16.gmra.mxu0 %v828
  %v868 = vpop.f32.mrf.mxu0
  %v869 = vadd.f32 0.0, %v868
  %v870 = vpop.f32.mrf.mxu0
  %v871 = vadd.f32 0.0, %v870
  %872 = vmatmul.bf16.gmra.mxu0 %v831
  %v873 = vpop.f32.mrf.mxu0
  %v874 = vadd.f32 0.0, %v873
  %v875 = vpop.f32.mrf.mxu0
  %v876 = vadd.f32 0.0, %v875
  %877 = vmatmul.bf16.gmra.mxu0 %v834
  %v878 = vpop.f32.mrf.mxu0
  %v879 = vadd.f32 0.0, %v878
  %v880 = vpop.f32.mrf.mxu0
  %v881 = vadd.f32 0.0, %v880
  %882 = vmatmul.bf16.gmra.mxu0 %v837
  %v883 = vpop.f32.mrf.mxu0
  %v884 = vadd.f32 0.0, %v883
  %v885 = vpop.f32.mrf.mxu0
  %v886 = vadd.f32 0.0, %v885
  %887 = vdwg.mxu0
  %v888 = vadd.f32 %v668, %v849
  %v889 = vadd.f32 %v669, %v851
  %v890 = vadd.f32 %v670, %v854
  %v891 = vadd.f32 %v671, %v856
  %v892 = vadd.f32 %v672, %v859
  %v893 = vadd.f32 %v673, %v861
  %v894 = vadd.f32 %v674, %v864
  %v895 = vadd.f32 %v675, %v866
  %v896 = vadd.f32 %v676, %v869
  %v897 = vadd.f32 %v677, %v871
  %v898 = vadd.f32 %v678, %v874
  %v899 = vadd.f32 %v679, %v876
  %v900 = vadd.f32 %v680, %v879
  %v901 = vadd.f32 %v681, %v881
  %v902 = vadd.f32 %v682, %v884
  %v903 = vadd.f32 %v683, %v886
  %s904 = scalar_lea.vmem %s1, 256
  %v905 = vld [vmem:[%s904] sm:$0xf]
  %v906 = vld [vmem:[%s904 + $0x4] sm:$0xf]
  %v907 = vld [vmem:[%s904 + $0x8] sm:$0xf]
  %v908 = vld [vmem:[%s904 + $0xc] sm:$0xf]
  %v909 = vld [vmem:[%s904 + $0x10] sm:$0xf]
  %v910 = vld [vmem:[%s904 + $0x14] sm:$0xf]
  %v911 = vld [vmem:[%s904 + $0x18] sm:$0xf]
  %v912 = vld [vmem:[%s904 + $0x1c] sm:$0xf]
  %v913 = vld [vmem:[%s904 + $0x20] sm:$0xf]
  %v914 = vld [vmem:[%s904 + $0x24] sm:$0xf]
  %v915 = vld [vmem:[%s904 + $0x28] sm:$0xf]
  %v916 = vld [vmem:[%s904 + $0x2c] sm:$0xf]
  %v917 = vld [vmem:[%s904 + $0x30] sm:$0xf]
  %v918 = vld [vmem:[%s904 + $0x34] sm:$0xf]
  %v919 = vld [vmem:[%s904 + $0x38] sm:$0xf]
  %v920 = vld [vmem:[%s904 + $0x3c] sm:$0xf]
  %v937 = vunpack.c.l.b16 %v905
  %v938 = vunpack.c.l.b16 %v906
  %v939 = vunpack.c.l.b16 %v907
  %v940 = vunpack.c.l.b16 %v908
  %v941 = vunpack.c.l.b16 %v909
  %v942 = vunpack.c.l.b16 %v910
  %v943 = vunpack.c.l.b16 %v911
  %v944 = vunpack.c.l.b16 %v912
  %v945 = vunpack.c.l.b16 %v913
  %v946 = vunpack.c.l.b16 %v914
  %v947 = vunpack.c.l.b16 %v915
  %v948 = vunpack.c.l.b16 %v916
  %v949 = vunpack.c.l.b16 %v917
  %v950 = vunpack.c.l.b16 %v918
  %v951 = vunpack.c.l.b16 %v919
  %v952 = vunpack.c.l.b16 %v920
  %v953 = vpack.c.b16 %v938, %v937
  %v954 = vpack.c.b16 %v940, %v939
  %v955 = vpack.c.b16 %v942, %v941
  %v956 = vpack.c.b16 %v944, %v943
  %v957 = vpack.c.b16 %v946, %v945
  %v958 = vpack.c.b16 %v948, %v947
  %v959 = vpack.c.b16 %v950, %v949
  %v960 = vpack.c.b16 %v952, %v951
  %969 = vmatpush.bf16.msra.mxu0 %v56
  %970 = vmatpush.bf16.msra.mxu0 %v55
  %971 = vmatpush.bf16.msra.mxu0 %v54
  %972 = vmatpush.bf16.msra.mxu0 %v53
  %973 = vmatpush.bf16.msra.mxu0 %v52
  %974 = vmatpush.bf16.msra.mxu0 %v51
  %975 = vmatpush.bf16.msra.mxu0 %v50
  %976 = vmatpush.bf16.msra.mxu0 %v49
  %977 = vmatmul.bf16.gmra.mxu0 %v953
  %v978 = vpop.f32.mrf.mxu0
  %v979 = vadd.f32 0.0, %v978
  %v980 = vpop.f32.mrf.mxu0
  %v981 = vadd.f32 0.0, %v980
  %982 = vmatmul.bf16.gmra.mxu0 %v954
  %v983 = vpop.f32.mrf.mxu0
  %v984 = vadd.f32 0.0, %v983
  %v985 = vpop.f32.mrf.mxu0
  %v986 = vadd.f32 0.0, %v985
  %987 = vmatmul.bf16.gmra.mxu0 %v955
  %v988 = vpop.f32.mrf.mxu0
  %v989 = vadd.f32 0.0, %v988
  %v990 = vpop.f32.mrf.mxu0
  %v991 = vadd.f32 0.0, %v990
  %992 = vmatmul.bf16.gmra.mxu0 %v956
  %v993 = vpop.f32.mrf.mxu0
  %v994 = vadd.f32 0.0, %v993
  %v995 = vpop.f32.mrf.mxu0
  %v996 = vadd.f32 0.0, %v995
  %997 = vmatmul.bf16.gmra.mxu0 %v957
  %v998 = vpop.f32.mrf.mxu0
  %v999 = vadd.f32 0.0, %v998
  %v1000 = vpop.f32.mrf.mxu0
  %v1001 = vadd.f32 0.0, %v1000
  %1002 = vmatmul.bf16.gmra.mxu0 %v958
  %v1003 = vpop.f32.mrf.mxu0
  %v1004 = vadd.f32 0.0, %v1003
  %v1005 = vpop.f32.mrf.mxu0
  %v1006 = vadd.f32 0.0, %v1005
  %1007 = vmatmul.bf16.gmra.mxu0 %v959
  %v1008 = vpop.f32.mrf.mxu0
  %v1009 = vadd.f32 0.0, %v1008
  %v1010 = vpop.f32.mrf.mxu0
  %v1011 = vadd.f32 0.0, %v1010
  %1012 = vmatmul.bf16.gmra.mxu0 %v960
  %v1013 = vpop.f32.mrf.mxu0
  %v1014 = vadd.f32 0.0, %v1013
  %v1015 = vpop.f32.mrf.mxu0
  %v1016 = vadd.f32 0.0, %v1015
  %1017 = vdwg.mxu0
  %v1018 = vpack.c.bf16 %v981, %v979
  %v1019 = vpack.c.bf16 %v986, %v984
  %v1020 = vpack.c.bf16 %v991, %v989
  %v1021 = vpack.c.bf16 %v996, %v994
  %v1022 = vpack.c.bf16 %v1001, %v999
  %v1023 = vpack.c.bf16 %v1006, %v1004
  %v1024 = vpack.c.bf16 %v1011, %v1009
  %v1025 = vpack.c.bf16 %v1016, %v1014
  %s1026 = scalar_lea.vmem %s2, 32
  %v1027 = vld [vmem:[%s1026] sm:$0xf]
  %v1028 = vld [vmem:[%s1026 + $0x4] sm:$0xf]
  %v1031 = vunpack.c.l.b16 %v1027
  %v1032 = vunpack.c.l.b16 %v1028
  %v1033 = vpack.c.b16 %v1032, %v1031
  %v1036 = vsel %vm311, %v1018, 0
  %v1039 = vsel %vm311, %v1019, 0
  %v1042 = vsel %vm311, %v1020, 0
  %v1045 = vsel %vm311, %v1021, 0
  %v1048 = vsel %vm311, %v1022, 0
  %v1051 = vsel %vm311, %v1023, 0
  %v1054 = vsel %vm311, %v1024, 0
  %v1057 = vsel %vm311, %v1025, 0
  %1059 = vmatpush.bf16.msra.mxu0 0
  %1060 = vmatpush.bf16.msra.mxu0 0
  %1061 = vmatpush.bf16.msra.mxu0 0
  %1062 = vmatpush.bf16.msra.mxu0 0
  %1063 = vmatpush.bf16.msra.mxu0 0
  %1064 = vmatpush.bf16.msra.mxu0 0
  %1065 = vmatpush.bf16.msra.mxu0 0
  %1066 = vmatpush.bf16.msra.mxu0 %v1033
  %1067 = vmatmul.bf16.gmra.mxu0 %v1036
  %v1068 = vpop.f32.mrf.mxu0
  %v1069 = vadd.f32 0.0, %v1068
  %v1070 = vpop.f32.mrf.mxu0
  %v1071 = vadd.f32 0.0, %v1070
  %1072 = vmatmul.bf16.gmra.mxu0 %v1039
  %v1073 = vpop.f32.mrf.mxu0
  %v1074 = vadd.f32 0.0, %v1073
  %v1075 = vpop.f32.mrf.mxu0
  %v1076 = vadd.f32 0.0, %v1075
  %1077 = vmatmul.bf16.gmra.mxu0 %v1042
  %v1078 = vpop.f32.mrf.mxu0
  %v1079 = vadd.f32 0.0, %v1078
  %v1080 = vpop.f32.mrf.mxu0
  %v1081 = vadd.f32 0.0, %v1080
  %1082 = vmatmul.bf16.gmra.mxu0 %v1045
  %v1083 = vpop.f32.mrf.mxu0
  %v1084 = vadd.f32 0.0, %v1083
  %v1085 = vpop.f32.mrf.mxu0
  %v1086 = vadd.f32 0.0, %v1085
  %1087 = vmatmul.bf16.gmra.mxu0 %v1048
  %v1088 = vpop.f32.mrf.mxu0
  %v1089 = vadd.f32 0.0, %v1088
  %v1090 = vpop.f32.mrf.mxu0
  %v1091 = vadd.f32 0.0, %v1090
  %1092 = vmatmul.bf16.gmra.mxu0 %v1051
  %v1093 = vpop.f32.mrf.mxu0
  %v1094 = vadd.f32 0.0, %v1093
  %v1095 = vpop.f32.mrf.mxu0
  %v1096 = vadd.f32 0.0, %v1095
  %1097 = vmatmul.bf16.gmra.mxu0 %v1054
  %v1098 = vpop.f32.mrf.mxu0
  %v1099 = vadd.f32 0.0, %v1098
  %v1100 = vpop.f32.mrf.mxu0
  %v1101 = vadd.f32 0.0, %v1100
  %1102 = vmatmul.bf16.gmra.mxu0 %v1057
  %v1103 = vpop.f32.mrf.mxu0
  %v1104 = vadd.f32 0.0, %v1103
  %v1105 = vpop.f32.mrf.mxu0
  %v1106 = vadd.f32 0.0, %v1105
  %1107 = vdwg.mxu0
  %v1108 = vadd.f32 %v888, %v1069
  %v1109 = vadd.f32 %v889, %v1071
  %v1110 = vadd.f32 %v890, %v1074
  %v1111 = vadd.f32 %v891, %v1076
  %v1112 = vadd.f32 %v892, %v1079
  %v1113 = vadd.f32 %v893, %v1081
  %v1114 = vadd.f32 %v894, %v1084
  %v1115 = vadd.f32 %v895, %v1086
  %v1116 = vadd.f32 %v896, %v1089
  %v1117 = vadd.f32 %v897, %v1091
  %v1118 = vadd.f32 %v898, %v1094
  %v1119 = vadd.f32 %v899, %v1096
  %v1120 = vadd.f32 %v900, %v1099
  %v1121 = vadd.f32 %v901, %v1101
  %v1122 = vadd.f32 %v902, %v1104
  %v1123 = vadd.f32 %v903, %v1106
  %s1124 = scalar_lea.vmem %s1, 320
  %v1125 = vld [vmem:[%s1124] sm:$0xf]
  %v1126 = vld [vmem:[%s1124 + $0x4] sm:$0xf]
  %v1127 = vld [vmem:[%s1124 + $0x8] sm:$0xf]
  %v1128 = vld [vmem:[%s1124 + $0xc] sm:$0xf]
  %v1129 = vld [vmem:[%s1124 + $0x10] sm:$0xf]
  %v1130 = vld [vmem:[%s1124 + $0x14] sm:$0xf]
  %v1131 = vld [vmem:[%s1124 + $0x18] sm:$0xf]
  %v1132 = vld [vmem:[%s1124 + $0x1c] sm:$0xf]
  %v1133 = vld [vmem:[%s1124 + $0x20] sm:$0xf]
  %v1134 = vld [vmem:[%s1124 + $0x24] sm:$0xf]
  %v1135 = vld [vmem:[%s1124 + $0x28] sm:$0xf]
  %v1136 = vld [vmem:[%s1124 + $0x2c] sm:$0xf]
  %v1137 = vld [vmem:[%s1124 + $0x30] sm:$0xf]
  %v1138 = vld [vmem:[%s1124 + $0x34] sm:$0xf]
  %v1139 = vld [vmem:[%s1124 + $0x38] sm:$0xf]
  %v1140 = vld [vmem:[%s1124 + $0x3c] sm:$0xf]
  %v1157 = vunpack.c.l.b16 %v1125
  %v1158 = vunpack.c.l.b16 %v1126
  %v1159 = vunpack.c.l.b16 %v1127
  %v1160 = vunpack.c.l.b16 %v1128
  %v1161 = vunpack.c.l.b16 %v1129
  %v1162 = vunpack.c.l.b16 %v1130
  %v1163 = vunpack.c.l.b16 %v1131
  %v1164 = vunpack.c.l.b16 %v1132
  %v1165 = vunpack.c.l.b16 %v1133
  %v1166 = vunpack.c.l.b16 %v1134
  %v1167 = vunpack.c.l.b16 %v1135
  %v1168 = vunpack.c.l.b16 %v1136
  %v1169 = vunpack.c.l.b16 %v1137
  %v1170 = vunpack.c.l.b16 %v1138
  %v1171 = vunpack.c.l.b16 %v1139
  %v1172 = vunpack.c.l.b16 %v1140
  %v1173 = vpack.c.b16 %v1158, %v1157
  %v1174 = vpack.c.b16 %v1160, %v1159
  %v1175 = vpack.c.b16 %v1162, %v1161
  %v1176 = vpack.c.b16 %v1164, %v1163
  %v1177 = vpack.c.b16 %v1166, %v1165
  %v1178 = vpack.c.b16 %v1168, %v1167
  %v1179 = vpack.c.b16 %v1170, %v1169
  %v1180 = vpack.c.b16 %v1172, %v1171
  %1189 = vmatpush.bf16.msra.mxu0 %v56
  %1190 = vmatpush.bf16.msra.mxu0 %v55
  %1191 = vmatpush.bf16.msra.mxu0 %v54
  %1192 = vmatpush.bf16.msra.mxu0 %v53
  %1193 = vmatpush.bf16.msra.mxu0 %v52
  %1194 = vmatpush.bf16.msra.mxu0 %v51
  %1195 = vmatpush.bf16.msra.mxu0 %v50
  %1196 = vmatpush.bf16.msra.mxu0 %v49
  %1197 = vmatmul.bf16.gmra.mxu0 %v1173
  %v1198 = vpop.f32.mrf.mxu0
  %v1199 = vadd.f32 0.0, %v1198
  %v1200 = vpop.f32.mrf.mxu0
  %v1201 = vadd.f32 0.0, %v1200
  %1202 = vmatmul.bf16.gmra.mxu0 %v1174
  %v1203 = vpop.f32.mrf.mxu0
  %v1204 = vadd.f32 0.0, %v1203
  %v1205 = vpop.f32.mrf.mxu0
  %v1206 = vadd.f32 0.0, %v1205
  %1207 = vmatmul.bf16.gmra.mxu0 %v1175
  %v1208 = vpop.f32.mrf.mxu0
  %v1209 = vadd.f32 0.0, %v1208
  %v1210 = vpop.f32.mrf.mxu0
  %v1211 = vadd.f32 0.0, %v1210
  %1212 = vmatmul.bf16.gmra.mxu0 %v1176
  %v1213 = vpop.f32.mrf.mxu0
  %v1214 = vadd.f32 0.0, %v1213
  %v1215 = vpop.f32.mrf.mxu0
  %v1216 = vadd.f32 0.0, %v1215
  %1217 = vmatmul.bf16.gmra.mxu0 %v1177
  %v1218 = vpop.f32.mrf.mxu0
  %v1219 = vadd.f32 0.0, %v1218
  %v1220 = vpop.f32.mrf.mxu0
  %v1221 = vadd.f32 0.0, %v1220
  %1222 = vmatmul.bf16.gmra.mxu0 %v1178
  %v1223 = vpop.f32.mrf.mxu0
  %v1224 = vadd.f32 0.0, %v1223
  %v1225 = vpop.f32.mrf.mxu0
  %v1226 = vadd.f32 0.0, %v1225
  %1227 = vmatmul.bf16.gmra.mxu0 %v1179
  %v1228 = vpop.f32.mrf.mxu0
  %v1229 = vadd.f32 0.0, %v1228
  %v1230 = vpop.f32.mrf.mxu0
  %v1231 = vadd.f32 0.0, %v1230
  %1232 = vmatmul.bf16.gmra.mxu0 %v1180
  %v1233 = vpop.f32.mrf.mxu0
  %v1234 = vadd.f32 0.0, %v1233
  %v1235 = vpop.f32.mrf.mxu0
  %v1236 = vadd.f32 0.0, %v1235
  %1237 = vdwg.mxu0
  %v1238 = vpack.c.bf16 %v1201, %v1199
  %v1239 = vpack.c.bf16 %v1206, %v1204
  %v1240 = vpack.c.bf16 %v1211, %v1209
  %v1241 = vpack.c.bf16 %v1216, %v1214
  %v1242 = vpack.c.bf16 %v1221, %v1219
  %v1243 = vpack.c.bf16 %v1226, %v1224
  %v1244 = vpack.c.bf16 %v1231, %v1229
  %v1245 = vpack.c.bf16 %v1236, %v1234
  %s1246 = scalar_lea.vmem %s2, 40
  %v1247 = vld [vmem:[%s1246] sm:$0xf]
  %v1248 = vld [vmem:[%s1246 + $0x4] sm:$0xf]
  %v1251 = vunpack.c.l.b16 %v1247
  %v1252 = vunpack.c.l.b16 %v1248
  %v1253 = vpack.c.b16 %v1252, %v1251
  %v1256 = vsel %vm311, %v1238, 0
  %v1259 = vsel %vm311, %v1239, 0
  %v1262 = vsel %vm311, %v1240, 0
  %v1265 = vsel %vm311, %v1241, 0
  %v1268 = vsel %vm311, %v1242, 0
  %v1271 = vsel %vm311, %v1243, 0
  %v1274 = vsel %vm311, %v1244, 0
  %v1277 = vsel %vm311, %v1245, 0
  %1279 = vmatpush.bf16.msra.mxu0 0
  %1280 = vmatpush.bf16.msra.mxu0 0
  %1281 = vmatpush.bf16.msra.mxu0 0
  %1282 = vmatpush.bf16.msra.mxu0 0
  %1283 = vmatpush.bf16.msra.mxu0 0
  %1284 = vmatpush.bf16.msra.mxu0 0
  %1285 = vmatpush.bf16.msra.mxu0 0
  %1286 = vmatpush.bf16.msra.mxu0 %v1253
  %1287 = vmatmul.bf16.gmra.mxu0 %v1256
  %v1288 = vpop.f32.mrf.mxu0
  %v1289 = vadd.f32 0.0, %v1288
  %v1290 = vpop.f32.mrf.mxu0
  %v1291 = vadd.f32 0.0, %v1290
  %1292 = vmatmul.bf16.gmra.mxu0 %v1259
  %v1293 = vpop.f32.mrf.mxu0
  %v1294 = vadd.f32 0.0, %v1293
  %v1295 = vpop.f32.mrf.mxu0
  %v1296 = vadd.f32 0.0, %v1295
  %1297 = vmatmul.bf16.gmra.mxu0 %v1262
  %v1298 = vpop.f32.mrf.mxu0
  %v1299 = vadd.f32 0.0, %v1298
  %v1300 = vpop.f32.mrf.mxu0
  %v1301 = vadd.f32 0.0, %v1300
  %1302 = vmatmul.bf16.gmra.mxu0 %v1265
  %v1303 = vpop.f32.mrf.mxu0
  %v1304 = vadd.f32 0.0, %v1303
  %v1305 = vpop.f32.mrf.mxu0
  %v1306 = vadd.f32 0.0, %v1305
  %1307 = vmatmul.bf16.gmra.mxu0 %v1268
  %v1308 = vpop.f32.mrf.mxu0
  %v1309 = vadd.f32 0.0, %v1308
  %v1310 = vpop.f32.mrf.mxu0
  %v1311 = vadd.f32 0.0, %v1310
  %1312 = vmatmul.bf16.gmra.mxu0 %v1271
  %v1313 = vpop.f32.mrf.mxu0
  %v1314 = vadd.f32 0.0, %v1313
  %v1315 = vpop.f32.mrf.mxu0
  %v1316 = vadd.f32 0.0, %v1315
  %1317 = vmatmul.bf16.gmra.mxu0 %v1274
  %v1318 = vpop.f32.mrf.mxu0
  %v1319 = vadd.f32 0.0, %v1318
  %v1320 = vpop.f32.mrf.mxu0
  %v1321 = vadd.f32 0.0, %v1320
  %1322 = vmatmul.bf16.gmra.mxu0 %v1277
  %v1323 = vpop.f32.mrf.mxu0
  %v1324 = vadd.f32 0.0, %v1323
  %v1325 = vpop.f32.mrf.mxu0
  %v1326 = vadd.f32 0.0, %v1325
  %1327 = vdwg.mxu0
  %v1328 = vadd.f32 %v1108, %v1289
  %v1329 = vadd.f32 %v1109, %v1291
  %v1330 = vadd.f32 %v1110, %v1294
  %v1331 = vadd.f32 %v1111, %v1296
  %v1332 = vadd.f32 %v1112, %v1299
  %v1333 = vadd.f32 %v1113, %v1301
  %v1334 = vadd.f32 %v1114, %v1304
  %v1335 = vadd.f32 %v1115, %v1306
  %v1336 = vadd.f32 %v1116, %v1309
  %v1337 = vadd.f32 %v1117, %v1311
  %v1338 = vadd.f32 %v1118, %v1314
  %v1339 = vadd.f32 %v1119, %v1316
  %v1340 = vadd.f32 %v1120, %v1319
  %v1341 = vadd.f32 %v1121, %v1321
  %v1342 = vadd.f32 %v1122, %v1324
  %v1343 = vadd.f32 %v1123, %v1326
  %s1344 = scalar_lea.vmem %s1, 384
  %v1345 = vld [vmem:[%s1344] sm:$0xf]
  %v1346 = vld [vmem:[%s1344 + $0x4] sm:$0xf]
  %v1347 = vld [vmem:[%s1344 + $0x8] sm:$0xf]
  %v1348 = vld [vmem:[%s1344 + $0xc] sm:$0xf]
  %v1349 = vld [vmem:[%s1344 + $0x10] sm:$0xf]
  %v1350 = vld [vmem:[%s1344 + $0x14] sm:$0xf]
  %v1351 = vld [vmem:[%s1344 + $0x18] sm:$0xf]
  %v1352 = vld [vmem:[%s1344 + $0x1c] sm:$0xf]
  %v1353 = vld [vmem:[%s1344 + $0x20] sm:$0xf]
  %v1354 = vld [vmem:[%s1344 + $0x24] sm:$0xf]
  %v1355 = vld [vmem:[%s1344 + $0x28] sm:$0xf]
  %v1356 = vld [vmem:[%s1344 + $0x2c] sm:$0xf]
  %v1357 = vld [vmem:[%s1344 + $0x30] sm:$0xf]
  %v1358 = vld [vmem:[%s1344 + $0x34] sm:$0xf]
  %v1359 = vld [vmem:[%s1344 + $0x38] sm:$0xf]
  %v1360 = vld [vmem:[%s1344 + $0x3c] sm:$0xf]
  %v1377 = vunpack.c.l.b16 %v1345
  %v1378 = vunpack.c.l.b16 %v1346
  %v1379 = vunpack.c.l.b16 %v1347
  %v1380 = vunpack.c.l.b16 %v1348
  %v1381 = vunpack.c.l.b16 %v1349
  %v1382 = vunpack.c.l.b16 %v1350
  %v1383 = vunpack.c.l.b16 %v1351
  %v1384 = vunpack.c.l.b16 %v1352
  %v1385 = vunpack.c.l.b16 %v1353
  %v1386 = vunpack.c.l.b16 %v1354
  %v1387 = vunpack.c.l.b16 %v1355
  %v1388 = vunpack.c.l.b16 %v1356
  %v1389 = vunpack.c.l.b16 %v1357
  %v1390 = vunpack.c.l.b16 %v1358
  %v1391 = vunpack.c.l.b16 %v1359
  %v1392 = vunpack.c.l.b16 %v1360
  %v1393 = vpack.c.b16 %v1378, %v1377
  %v1394 = vpack.c.b16 %v1380, %v1379
  %v1395 = vpack.c.b16 %v1382, %v1381
  %v1396 = vpack.c.b16 %v1384, %v1383
  %v1397 = vpack.c.b16 %v1386, %v1385
  %v1398 = vpack.c.b16 %v1388, %v1387
  %v1399 = vpack.c.b16 %v1390, %v1389
  %v1400 = vpack.c.b16 %v1392, %v1391
  %1409 = vmatpush.bf16.msra.mxu0 %v56
  %1410 = vmatpush.bf16.msra.mxu0 %v55
  %1411 = vmatpush.bf16.msra.mxu0 %v54
  %1412 = vmatpush.bf16.msra.mxu0 %v53
  %1413 = vmatpush.bf16.msra.mxu0 %v52
  %1414 = vmatpush.bf16.msra.mxu0 %v51
  %1415 = vmatpush.bf16.msra.mxu0 %v50
  %1416 = vmatpush.bf16.msra.mxu0 %v49
  %1417 = vmatmul.bf16.gmra.mxu0 %v1393
  %v1418 = vpop.f32.mrf.mxu0
  %v1419 = vadd.f32 0.0, %v1418
  %v1420 = vpop.f32.mrf.mxu0
  %v1421 = vadd.f32 0.0, %v1420
  %1422 = vmatmul.bf16.gmra.mxu0 %v1394
  %v1423 = vpop.f32.mrf.mxu0
  %v1424 = vadd.f32 0.0, %v1423
  %v1425 = vpop.f32.mrf.mxu0
  %v1426 = vadd.f32 0.0, %v1425
  %1427 = vmatmul.bf16.gmra.mxu0 %v1395
  %v1428 = vpop.f32.mrf.mxu0
  %v1429 = vadd.f32 0.0, %v1428
  %v1430 = vpop.f32.mrf.mxu0
  %v1431 = vadd.f32 0.0, %v1430
  %1432 = vmatmul.bf16.gmra.mxu0 %v1396
  %v1433 = vpop.f32.mrf.mxu0
  %v1434 = vadd.f32 0.0, %v1433
  %v1435 = vpop.f32.mrf.mxu0
  %v1436 = vadd.f32 0.0, %v1435
  %1437 = vmatmul.bf16.gmra.mxu0 %v1397
  %v1438 = vpop.f32.mrf.mxu0
  %v1439 = vadd.f32 0.0, %v1438
  %v1440 = vpop.f32.mrf.mxu0
  %v1441 = vadd.f32 0.0, %v1440
  %1442 = vmatmul.bf16.gmra.mxu0 %v1398
  %v1443 = vpop.f32.mrf.mxu0
  %v1444 = vadd.f32 0.0, %v1443
  %v1445 = vpop.f32.mrf.mxu0
  %v1446 = vadd.f32 0.0, %v1445
  %1447 = vmatmul.bf16.gmra.mxu0 %v1399
  %v1448 = vpop.f32.mrf.mxu0
  %v1449 = vadd.f32 0.0, %v1448
  %v1450 = vpop.f32.mrf.mxu0
  %v1451 = vadd.f32 0.0, %v1450
  %1452 = vmatmul.bf16.gmra.mxu0 %v1400
  %v1453 = vpop.f32.mrf.mxu0
  %v1454 = vadd.f32 0.0, %v1453
  %v1455 = vpop.f32.mrf.mxu0
  %v1456 = vadd.f32 0.0, %v1455
  %1457 = vdwg.mxu0
  %v1458 = vpack.c.bf16 %v1421, %v1419
  %v1459 = vpack.c.bf16 %v1426, %v1424
  %v1460 = vpack.c.bf16 %v1431, %v1429
  %v1461 = vpack.c.bf16 %v1436, %v1434
  %v1462 = vpack.c.bf16 %v1441, %v1439
  %v1463 = vpack.c.bf16 %v1446, %v1444
  %v1464 = vpack.c.bf16 %v1451, %v1449
  %v1465 = vpack.c.bf16 %v1456, %v1454
  %s1466 = scalar_lea.vmem %s2, 48
  %v1467 = vld [vmem:[%s1466] sm:$0xf]
  %v1468 = vld [vmem:[%s1466 + $0x4] sm:$0xf]
  %v1471 = vunpack.c.l.b16 %v1467
  %v1472 = vunpack.c.l.b16 %v1468
  %v1473 = vpack.c.b16 %v1472, %v1471
  %v1476 = vsel %vm311, %v1458, 0
  %v1479 = vsel %vm311, %v1459, 0
  %v1482 = vsel %vm311, %v1460, 0
  %v1485 = vsel %vm311, %v1461, 0
  %v1488 = vsel %vm311, %v1462, 0
  %v1491 = vsel %vm311, %v1463, 0
  %v1494 = vsel %vm311, %v1464, 0
  %v1497 = vsel %vm311, %v1465, 0
  %1499 = vmatpush.bf16.msra.mxu0 0
  %1500 = vmatpush.bf16.msra.mxu0 0
  %1501 = vmatpush.bf16.msra.mxu0 0
  %1502 = vmatpush.bf16.msra.mxu0 0
  %1503 = vmatpush.bf16.msra.mxu0 0
  %1504 = vmatpush.bf16.msra.mxu0 0
  %1505 = vmatpush.bf16.msra.mxu0 0
  %1506 = vmatpush.bf16.msra.mxu0 %v1473
  %1507 = vmatmul.bf16.gmra.mxu0 %v1476
  %v1508 = vpop.f32.mrf.mxu0
  %v1509 = vadd.f32 0.0, %v1508
  %v1510 = vpop.f32.mrf.mxu0
  %v1511 = vadd.f32 0.0, %v1510
  %1512 = vmatmul.bf16.gmra.mxu0 %v1479
  %v1513 = vpop.f32.mrf.mxu0
  %v1514 = vadd.f32 0.0, %v1513
  %v1515 = vpop.f32.mrf.mxu0
  %v1516 = vadd.f32 0.0, %v1515
  %1517 = vmatmul.bf16.gmra.mxu0 %v1482
  %v1518 = vpop.f32.mrf.mxu0
  %v1519 = vadd.f32 0.0, %v1518
  %v1520 = vpop.f32.mrf.mxu0
  %v1521 = vadd.f32 0.0, %v1520
  %1522 = vmatmul.bf16.gmra.mxu0 %v1485
  %v1523 = vpop.f32.mrf.mxu0
  %v1524 = vadd.f32 0.0, %v1523
  %v1525 = vpop.f32.mrf.mxu0
  %v1526 = vadd.f32 0.0, %v1525
  %1527 = vmatmul.bf16.gmra.mxu0 %v1488
  %v1528 = vpop.f32.mrf.mxu0
  %v1529 = vadd.f32 0.0, %v1528
  %v1530 = vpop.f32.mrf.mxu0
  %v1531 = vadd.f32 0.0, %v1530
  %1532 = vmatmul.bf16.gmra.mxu0 %v1491
  %v1533 = vpop.f32.mrf.mxu0
  %v1534 = vadd.f32 0.0, %v1533
  %v1535 = vpop.f32.mrf.mxu0
  %v1536 = vadd.f32 0.0, %v1535
  %1537 = vmatmul.bf16.gmra.mxu0 %v1494
  %v1538 = vpop.f32.mrf.mxu0
  %v1539 = vadd.f32 0.0, %v1538
  %v1540 = vpop.f32.mrf.mxu0
  %v1541 = vadd.f32 0.0, %v1540
  %1542 = vmatmul.bf16.gmra.mxu0 %v1497
  %v1543 = vpop.f32.mrf.mxu0
  %v1544 = vadd.f32 0.0, %v1543
  %v1545 = vpop.f32.mrf.mxu0
  %v1546 = vadd.f32 0.0, %v1545
  %1547 = vdwg.mxu0
  %v1548 = vadd.f32 %v1328, %v1509
  %v1549 = vadd.f32 %v1329, %v1511
  %v1550 = vadd.f32 %v1330, %v1514
  %v1551 = vadd.f32 %v1331, %v1516
  %v1552 = vadd.f32 %v1332, %v1519
  %v1553 = vadd.f32 %v1333, %v1521
  %v1554 = vadd.f32 %v1334, %v1524
  %v1555 = vadd.f32 %v1335, %v1526
  %v1556 = vadd.f32 %v1336, %v1529
  %v1557 = vadd.f32 %v1337, %v1531
  %v1558 = vadd.f32 %v1338, %v1534
  %v1559 = vadd.f32 %v1339, %v1536
  %v1560 = vadd.f32 %v1340, %v1539
  %v1561 = vadd.f32 %v1341, %v1541
  %v1562 = vadd.f32 %v1342, %v1544
  %v1563 = vadd.f32 %v1343, %v1546
  %s1564 = scalar_lea.vmem %s1, 448
  %v1565 = vld [vmem:[%s1564] sm:$0xf]
  %v1566 = vld [vmem:[%s1564 + $0x4] sm:$0xf]
  %v1567 = vld [vmem:[%s1564 + $0x8] sm:$0xf]
  %v1568 = vld [vmem:[%s1564 + $0xc] sm:$0xf]
  %v1569 = vld [vmem:[%s1564 + $0x10] sm:$0xf]
  %v1570 = vld [vmem:[%s1564 + $0x14] sm:$0xf]
  %v1571 = vld [vmem:[%s1564 + $0x18] sm:$0xf]
  %v1572 = vld [vmem:[%s1564 + $0x1c] sm:$0xf]
  %v1573 = vld [vmem:[%s1564 + $0x20] sm:$0xf]
  %v1574 = vld [vmem:[%s1564 + $0x24] sm:$0xf]
  %v1575 = vld [vmem:[%s1564 + $0x28] sm:$0xf]
  %v1576 = vld [vmem:[%s1564 + $0x2c] sm:$0xf]
  %v1577 = vld [vmem:[%s1564 + $0x30] sm:$0xf]
  %v1578 = vld [vmem:[%s1564 + $0x34] sm:$0xf]
  %v1579 = vld [vmem:[%s1564 + $0x38] sm:$0xf]
  %v1580 = vld [vmem:[%s1564 + $0x3c] sm:$0xf]
  %v1597 = vunpack.c.l.b16 %v1565
  %v1598 = vunpack.c.l.b16 %v1566
  %v1599 = vunpack.c.l.b16 %v1567
  %v1600 = vunpack.c.l.b16 %v1568
  %v1601 = vunpack.c.l.b16 %v1569
  %v1602 = vunpack.c.l.b16 %v1570
  %v1603 = vunpack.c.l.b16 %v1571
  %v1604 = vunpack.c.l.b16 %v1572
  %v1605 = vunpack.c.l.b16 %v1573
  %v1606 = vunpack.c.l.b16 %v1574
  %v1607 = vunpack.c.l.b16 %v1575
  %v1608 = vunpack.c.l.b16 %v1576
  %v1609 = vunpack.c.l.b16 %v1577
  %v1610 = vunpack.c.l.b16 %v1578
  %v1611 = vunpack.c.l.b16 %v1579
  %v1612 = vunpack.c.l.b16 %v1580
  %v1613 = vpack.c.b16 %v1598, %v1597
  %v1614 = vpack.c.b16 %v1600, %v1599
  %v1615 = vpack.c.b16 %v1602, %v1601
  %v1616 = vpack.c.b16 %v1604, %v1603
  %v1617 = vpack.c.b16 %v1606, %v1605
  %v1618 = vpack.c.b16 %v1608, %v1607
  %v1619 = vpack.c.b16 %v1610, %v1609
  %v1620 = vpack.c.b16 %v1612, %v1611
  %1629 = vmatpush.bf16.msra.mxu0 %v56
  %1630 = vmatpush.bf16.msra.mxu0 %v55
  %1631 = vmatpush.bf16.msra.mxu0 %v54
  %1632 = vmatpush.bf16.msra.mxu0 %v53
  %1633 = vmatpush.bf16.msra.mxu0 %v52
  %1634 = vmatpush.bf16.msra.mxu0 %v51
  %1635 = vmatpush.bf16.msra.mxu0 %v50
  %1636 = vmatpush.bf16.msra.mxu0 %v49
  %1637 = vmatmul.bf16.gmra.mxu0 %v1613
  %v1638 = vpop.f32.mrf.mxu0
  %v1639 = vadd.f32 0.0, %v1638
  %v1640 = vpop.f32.mrf.mxu0
  %v1641 = vadd.f32 0.0, %v1640
  %1642 = vmatmul.bf16.gmra.mxu0 %v1614
  %v1643 = vpop.f32.mrf.mxu0
  %v1644 = vadd.f32 0.0, %v1643
  %v1645 = vpop.f32.mrf.mxu0
  %v1646 = vadd.f32 0.0, %v1645
  %1647 = vmatmul.bf16.gmra.mxu0 %v1615
  %v1648 = vpop.f32.mrf.mxu0
  %v1649 = vadd.f32 0.0, %v1648
  %v1650 = vpop.f32.mrf.mxu0
  %v1651 = vadd.f32 0.0, %v1650
  %1652 = vmatmul.bf16.gmra.mxu0 %v1616
  %v1653 = vpop.f32.mrf.mxu0
  %v1654 = vadd.f32 0.0, %v1653
  %v1655 = vpop.f32.mrf.mxu0
  %v1656 = vadd.f32 0.0, %v1655
  %1657 = vmatmul.bf16.gmra.mxu0 %v1617
  %v1658 = vpop.f32.mrf.mxu0
  %v1659 = vadd.f32 0.0, %v1658
  %v1660 = vpop.f32.mrf.mxu0
  %v1661 = vadd.f32 0.0, %v1660
  %1662 = vmatmul.bf16.gmra.mxu0 %v1618
  %v1663 = vpop.f32.mrf.mxu0
  %v1664 = vadd.f32 0.0, %v1663
  %v1665 = vpop.f32.mrf.mxu0
  %v1666 = vadd.f32 0.0, %v1665
  %1667 = vmatmul.bf16.gmra.mxu0 %v1619
  %v1668 = vpop.f32.mrf.mxu0
  %v1669 = vadd.f32 0.0, %v1668
  %v1670 = vpop.f32.mrf.mxu0
  %v1671 = vadd.f32 0.0, %v1670
  %1672 = vmatmul.bf16.gmra.mxu0 %v1620
  %v1673 = vpop.f32.mrf.mxu0
  %v1674 = vadd.f32 0.0, %v1673
  %v1675 = vpop.f32.mrf.mxu0
  %v1676 = vadd.f32 0.0, %v1675
  %1677 = vdwg.mxu0
  %v1678 = vpack.c.bf16 %v1641, %v1639
  %v1679 = vpack.c.bf16 %v1646, %v1644
  %v1680 = vpack.c.bf16 %v1651, %v1649
  %v1681 = vpack.c.bf16 %v1656, %v1654
  %v1682 = vpack.c.bf16 %v1661, %v1659
  %v1683 = vpack.c.bf16 %v1666, %v1664
  %v1684 = vpack.c.bf16 %v1671, %v1669
  %v1685 = vpack.c.bf16 %v1676, %v1674
  %s1686 = scalar_lea.vmem %s2, 56
  %v1687 = vld [vmem:[%s1686] sm:$0xf]
  %v1688 = vld [vmem:[%s1686 + $0x4] sm:$0xf]
  %v1691 = vunpack.c.l.b16 %v1687
  %v1692 = vunpack.c.l.b16 %v1688
  %v1693 = vpack.c.b16 %v1692, %v1691
  %v1696 = vsel %vm311, %v1678, 0
  %v1699 = vsel %vm311, %v1679, 0
  %v1702 = vsel %vm311, %v1680, 0
  %v1705 = vsel %vm311, %v1681, 0
  %v1708 = vsel %vm311, %v1682, 0
  %v1711 = vsel %vm311, %v1683, 0
  %v1714 = vsel %vm311, %v1684, 0
  %v1717 = vsel %vm311, %v1685, 0
  %1719 = vmatpush.bf16.msra.mxu0 0
  %1720 = vmatpush.bf16.msra.mxu0 0
  %1721 = vmatpush.bf16.msra.mxu0 0
  %1722 = vmatpush.bf16.msra.mxu0 0
  %1723 = vmatpush.bf16.msra.mxu0 0
  %1724 = vmatpush.bf16.msra.mxu0 0
  %1725 = vmatpush.bf16.msra.mxu0 0
  %1726 = vmatpush.bf16.msra.mxu0 %v1693
  %1727 = vmatmul.bf16.gmra.mxu0 %v1696
  %v1728 = vpop.f32.mrf.mxu0
  %v1729 = vadd.f32 0.0, %v1728
  %v1730 = vpop.f32.mrf.mxu0
  %v1731 = vadd.f32 0.0, %v1730
  %1732 = vmatmul.bf16.gmra.mxu0 %v1699
  %v1733 = vpop.f32.mrf.mxu0
  %v1734 = vadd.f32 0.0, %v1733
  %v1735 = vpop.f32.mrf.mxu0
  %v1736 = vadd.f32 0.0, %v1735
  %1737 = vmatmul.bf16.gmra.mxu0 %v1702
  %v1738 = vpop.f32.mrf.mxu0
  %v1739 = vadd.f32 0.0, %v1738
  %v1740 = vpop.f32.mrf.mxu0
  %v1741 = vadd.f32 0.0, %v1740
  %1742 = vmatmul.bf16.gmra.mxu0 %v1705
  %v1743 = vpop.f32.mrf.mxu0
  %v1744 = vadd.f32 0.0, %v1743
  %v1745 = vpop.f32.mrf.mxu0
  %v1746 = vadd.f32 0.0, %v1745
  %1747 = vmatmul.bf16.gmra.mxu0 %v1708
  %v1748 = vpop.f32.mrf.mxu0
  %v1749 = vadd.f32 0.0, %v1748
  %v1750 = vpop.f32.mrf.mxu0
  %v1751 = vadd.f32 0.0, %v1750
  %1752 = vmatmul.bf16.gmra.mxu0 %v1711
  %v1753 = vpop.f32.mrf.mxu0
  %v1754 = vadd.f32 0.0, %v1753
  %v1755 = vpop.f32.mrf.mxu0
  %v1756 = vadd.f32 0.0, %v1755
  %1757 = vmatmul.bf16.gmra.mxu0 %v1714
  %v1758 = vpop.f32.mrf.mxu0
  %v1759 = vadd.f32 0.0, %v1758
  %v1760 = vpop.f32.mrf.mxu0
  %v1761 = vadd.f32 0.0, %v1760
  %1762 = vmatmul.bf16.gmra.mxu0 %v1717
  %v1763 = vpop.f32.mrf.mxu0
  %v1764 = vadd.f32 0.0, %v1763
  %v1765 = vpop.f32.mrf.mxu0
  %v1766 = vadd.f32 0.0, %v1765
  %1767 = vdwg.mxu0
  %v1768 = vadd.f32 %v1548, %v1729
  %v1769 = vadd.f32 %v1549, %v1731
  %v1770 = vadd.f32 %v1550, %v1734
  %v1771 = vadd.f32 %v1551, %v1736
  %v1772 = vadd.f32 %v1552, %v1739
  %v1773 = vadd.f32 %v1553, %v1741
  %v1774 = vadd.f32 %v1554, %v1744
  %v1775 = vadd.f32 %v1555, %v1746
  %v1776 = vadd.f32 %v1556, %v1749
  %v1777 = vadd.f32 %v1557, %v1751
  %v1778 = vadd.f32 %v1558, %v1754
  %v1779 = vadd.f32 %v1559, %v1756
  %v1780 = vadd.f32 %v1560, %v1759
  %v1781 = vadd.f32 %v1561, %v1761
  %v1782 = vadd.f32 %v1562, %v1764
  %v1783 = vadd.f32 %v1563, %v1766
  %s1784 = scalar_lea.vmem %s1, 512
  %v1785 = vld [vmem:[%s1784] sm:$0xf]
  %v1786 = vld [vmem:[%s1784 + $0x4] sm:$0xf]
  %v1787 = vld [vmem:[%s1784 + $0x8] sm:$0xf]
  %v1788 = vld [vmem:[%s1784 + $0xc] sm:$0xf]
  %v1789 = vld [vmem:[%s1784 + $0x10] sm:$0xf]
  %v1790 = vld [vmem:[%s1784 + $0x14] sm:$0xf]
  %v1791 = vld [vmem:[%s1784 + $0x18] sm:$0xf]
  %v1792 = vld [vmem:[%s1784 + $0x1c] sm:$0xf]
  %v1793 = vld [vmem:[%s1784 + $0x20] sm:$0xf]
  %v1794 = vld [vmem:[%s1784 + $0x24] sm:$0xf]
  %v1795 = vld [vmem:[%s1784 + $0x28] sm:$0xf]
  %v1796 = vld [vmem:[%s1784 + $0x2c] sm:$0xf]
  %v1797 = vld [vmem:[%s1784 + $0x30] sm:$0xf]
  %v1798 = vld [vmem:[%s1784 + $0x34] sm:$0xf]
  %v1799 = vld [vmem:[%s1784 + $0x38] sm:$0xf]
  %v1800 = vld [vmem:[%s1784 + $0x3c] sm:$0xf]
  %v1817 = vunpack.c.l.b16 %v1785
  %v1818 = vunpack.c.l.b16 %v1786
  %v1819 = vunpack.c.l.b16 %v1787
  %v1820 = vunpack.c.l.b16 %v1788
  %v1821 = vunpack.c.l.b16 %v1789
  %v1822 = vunpack.c.l.b16 %v1790
  %v1823 = vunpack.c.l.b16 %v1791
  %v1824 = vunpack.c.l.b16 %v1792
  %v1825 = vunpack.c.l.b16 %v1793
  %v1826 = vunpack.c.l.b16 %v1794
  %v1827 = vunpack.c.l.b16 %v1795
  %v1828 = vunpack.c.l.b16 %v1796
  %v1829 = vunpack.c.l.b16 %v1797
  %v1830 = vunpack.c.l.b16 %v1798
  %v1831 = vunpack.c.l.b16 %v1799
  %v1832 = vunpack.c.l.b16 %v1800
  %v1833 = vpack.c.b16 %v1818, %v1817
  %v1834 = vpack.c.b16 %v1820, %v1819
  %v1835 = vpack.c.b16 %v1822, %v1821
  %v1836 = vpack.c.b16 %v1824, %v1823
  %v1837 = vpack.c.b16 %v1826, %v1825
  %v1838 = vpack.c.b16 %v1828, %v1827
  %v1839 = vpack.c.b16 %v1830, %v1829
  %v1840 = vpack.c.b16 %v1832, %v1831
  %1849 = vmatpush.bf16.msra.mxu0 %v56
  %1850 = vmatpush.bf16.msra.mxu0 %v55
  %1851 = vmatpush.bf16.msra.mxu0 %v54
  %1852 = vmatpush.bf16.msra.mxu0 %v53
  %1853 = vmatpush.bf16.msra.mxu0 %v52
  %1854 = vmatpush.bf16.msra.mxu0 %v51
  %1855 = vmatpush.bf16.msra.mxu0 %v50
  %1856 = vmatpush.bf16.msra.mxu0 %v49
  %1857 = vmatmul.bf16.gmra.mxu0 %v1833
  %v1858 = vpop.f32.mrf.mxu0
  %v1859 = vadd.f32 0.0, %v1858
  %v1860 = vpop.f32.mrf.mxu0
  %v1861 = vadd.f32 0.0, %v1860
  %1862 = vmatmul.bf16.gmra.mxu0 %v1834
  %v1863 = vpop.f32.mrf.mxu0
  %v1864 = vadd.f32 0.0, %v1863
  %v1865 = vpop.f32.mrf.mxu0
  %v1866 = vadd.f32 0.0, %v1865
  %1867 = vmatmul.bf16.gmra.mxu0 %v1835
  %v1868 = vpop.f32.mrf.mxu0
  %v1869 = vadd.f32 0.0, %v1868
  %v1870 = vpop.f32.mrf.mxu0
  %v1871 = vadd.f32 0.0, %v1870
  %1872 = vmatmul.bf16.gmra.mxu0 %v1836
  %v1873 = vpop.f32.mrf.mxu0
  %v1874 = vadd.f32 0.0, %v1873
  %v1875 = vpop.f32.mrf.mxu0
  %v1876 = vadd.f32 0.0, %v1875
  %1877 = vmatmul.bf16.gmra.mxu0 %v1837
  %v1878 = vpop.f32.mrf.mxu0
  %v1879 = vadd.f32 0.0, %v1878
  %v1880 = vpop.f32.mrf.mxu0
  %v1881 = vadd.f32 0.0, %v1880
  %1882 = vmatmul.bf16.gmra.mxu0 %v1838
  %v1883 = vpop.f32.mrf.mxu0
  %v1884 = vadd.f32 0.0, %v1883
  %v1885 = vpop.f32.mrf.mxu0
  %v1886 = vadd.f32 0.0, %v1885
  %1887 = vmatmul.bf16.gmra.mxu0 %v1839
  %v1888 = vpop.f32.mrf.mxu0
  %v1889 = vadd.f32 0.0, %v1888
  %v1890 = vpop.f32.mrf.mxu0
  %v1891 = vadd.f32 0.0, %v1890
  %1892 = vmatmul.bf16.gmra.mxu0 %v1840
  %v1893 = vpop.f32.mrf.mxu0
  %v1894 = vadd.f32 0.0, %v1893
  %v1895 = vpop.f32.mrf.mxu0
  %v1896 = vadd.f32 0.0, %v1895
  %1897 = vdwg.mxu0
  %v1898 = vpack.c.bf16 %v1861, %v1859
  %v1899 = vpack.c.bf16 %v1866, %v1864
  %v1900 = vpack.c.bf16 %v1871, %v1869
  %v1901 = vpack.c.bf16 %v1876, %v1874
  %v1902 = vpack.c.bf16 %v1881, %v1879
  %v1903 = vpack.c.bf16 %v1886, %v1884
  %v1904 = vpack.c.bf16 %v1891, %v1889
  %v1905 = vpack.c.bf16 %v1896, %v1894
  %s1906 = scalar_lea.vmem %s2, 64
  %v1907 = vld [vmem:[%s1906] sm:$0xf]
  %v1908 = vld [vmem:[%s1906 + $0x4] sm:$0xf]
  %v1911 = vunpack.c.l.b16 %v1907
  %v1912 = vunpack.c.l.b16 %v1908
  %v1913 = vpack.c.b16 %v1912, %v1911
  %v1916 = vsel %vm311, %v1898, 0
  %v1919 = vsel %vm311, %v1899, 0
  %v1922 = vsel %vm311, %v1900, 0
  %v1925 = vsel %vm311, %v1901, 0
  %v1928 = vsel %vm311, %v1902, 0
  %v1931 = vsel %vm311, %v1903, 0
  %v1934 = vsel %vm311, %v1904, 0
  %v1937 = vsel %vm311, %v1905, 0
  %1939 = vmatpush.bf16.msra.mxu0 0
  %1940 = vmatpush.bf16.msra.mxu0 0
  %1941 = vmatpush.bf16.msra.mxu0 0
  %1942 = vmatpush.bf16.msra.mxu0 0
  %1943 = vmatpush.bf16.msra.mxu0 0
  %1944 = vmatpush.bf16.msra.mxu0 0
  %1945 = vmatpush.bf16.msra.mxu0 0
  %1946 = vmatpush.bf16.msra.mxu0 %v1913
  %1947 = vmatmul.bf16.gmra.mxu0 %v1916
  %v1948 = vpop.f32.mrf.mxu0
  %v1949 = vadd.f32 0.0, %v1948
  %v1950 = vpop.f32.mrf.mxu0
  %v1951 = vadd.f32 0.0, %v1950
  %1952 = vmatmul.bf16.gmra.mxu0 %v1919
  %v1953 = vpop.f32.mrf.mxu0
  %v1954 = vadd.f32 0.0, %v1953
  %v1955 = vpop.f32.mrf.mxu0
  %v1956 = vadd.f32 0.0, %v1955
  %1957 = vmatmul.bf16.gmra.mxu0 %v1922
  %v1958 = vpop.f32.mrf.mxu0
  %v1959 = vadd.f32 0.0, %v1958
  %v1960 = vpop.f32.mrf.mxu0
  %v1961 = vadd.f32 0.0, %v1960
  %1962 = vmatmul.bf16.gmra.mxu0 %v1925
  %v1963 = vpop.f32.mrf.mxu0
  %v1964 = vadd.f32 0.0, %v1963
  %v1965 = vpop.f32.mrf.mxu0
  %v1966 = vadd.f32 0.0, %v1965
  %1967 = vmatmul.bf16.gmra.mxu0 %v1928
  %v1968 = vpop.f32.mrf.mxu0
  %v1969 = vadd.f32 0.0, %v1968
  %v1970 = vpop.f32.mrf.mxu0
  %v1971 = vadd.f32 0.0, %v1970
  %1972 = vmatmul.bf16.gmra.mxu0 %v1931
  %v1973 = vpop.f32.mrf.mxu0
  %v1974 = vadd.f32 0.0, %v1973
  %v1975 = vpop.f32.mrf.mxu0
  %v1976 = vadd.f32 0.0, %v1975
  %1977 = vmatmul.bf16.gmra.mxu0 %v1934
  %v1978 = vpop.f32.mrf.mxu0
  %v1979 = vadd.f32 0.0, %v1978
  %v1980 = vpop.f32.mrf.mxu0
  %v1981 = vadd.f32 0.0, %v1980
  %1982 = vmatmul.bf16.gmra.mxu0 %v1937
  %v1983 = vpop.f32.mrf.mxu0
  %v1984 = vadd.f32 0.0, %v1983
  %v1985 = vpop.f32.mrf.mxu0
  %v1986 = vadd.f32 0.0, %v1985
  %1987 = vdwg.mxu0
  %v1988 = vadd.f32 %v1768, %v1949
  %v1989 = vadd.f32 %v1769, %v1951
  %v1990 = vadd.f32 %v1770, %v1954
  %v1991 = vadd.f32 %v1771, %v1956
  %v1992 = vadd.f32 %v1772, %v1959
  %v1993 = vadd.f32 %v1773, %v1961
  %v1994 = vadd.f32 %v1774, %v1964
  %v1995 = vadd.f32 %v1775, %v1966
  %v1996 = vadd.f32 %v1776, %v1969
  %v1997 = vadd.f32 %v1777, %v1971
  %v1998 = vadd.f32 %v1778, %v1974
  %v1999 = vadd.f32 %v1779, %v1976
  %v2000 = vadd.f32 %v1780, %v1979
  %v2001 = vadd.f32 %v1781, %v1981
  %v2002 = vadd.f32 %v1782, %v1984
  %v2003 = vadd.f32 %v1783, %v1986
  %v2004 = vld [vmem:[%s3] sm:$0x1]
  %v2006 = vperm.slane %v2004, 0
  %v2008 = vmul.f32 %v1988, %v2006
  %v2009 = vmul.f32 %v1989, %v2006
  %v2010 = vmul.f32 %v1990, %v2006
  %v2011 = vmul.f32 %v1991, %v2006
  %v2012 = vmul.f32 %v1992, %v2006
  %v2013 = vmul.f32 %v1993, %v2006
  %v2014 = vmul.f32 %v1994, %v2006
  %v2015 = vmul.f32 %v1995, %v2006
  %v2016 = vmul.f32 %v1996, %v2006
  %v2017 = vmul.f32 %v1997, %v2006
  %v2018 = vmul.f32 %v1998, %v2006
  %v2019 = vmul.f32 %v1999, %v2006
  %v2020 = vmul.f32 %v2000, %v2006
  %v2021 = vmul.f32 %v2001, %v2006
  %v2022 = vmul.f32 %v2002, %v2006
  %v2023 = vmul.f32 %v2003, %v2006
  %v2024 = vld [vmem:[%s4] sm:$0x1]
  %v2026 = vperm.slane %v2024, 0
  %v2028 = vadd.f32 %v2008, %v2026
  %v2029 = vadd.f32 %v2009, %v2026
  %v2030 = vadd.f32 %v2010, %v2026
  %v2031 = vadd.f32 %v2011, %v2026
  %v2032 = vadd.f32 %v2012, %v2026
  %v2033 = vadd.f32 %v2013, %v2026
  %v2034 = vadd.f32 %v2014, %v2026
  %v2035 = vadd.f32 %v2015, %v2026
  %v2036 = vadd.f32 %v2016, %v2026
  %v2037 = vadd.f32 %v2017, %v2026
  %v2038 = vadd.f32 %v2018, %v2026
  %v2039 = vadd.f32 %v2019, %v2026
  %v2040 = vadd.f32 %v2020, %v2026
  %v2041 = vadd.f32 %v2021, %v2026
  %v2042 = vadd.f32 %v2022, %v2026
  %v2043 = vadd.f32 %v2023, %v2026
  %v2044 = vmax.f32 %v2028, 0.0
  %v2045 = vmax.f32 %v2029, 0.0
  %v2046 = vmax.f32 %v2030, 0.0
  %v2047 = vmax.f32 %v2031, 0.0
  %v2048 = vmax.f32 %v2032, 0.0
  %v2049 = vmax.f32 %v2033, 0.0
  %v2050 = vmax.f32 %v2034, 0.0
  %v2051 = vmax.f32 %v2035, 0.0
  %v2052 = vmax.f32 %v2036, 0.0
  %v2053 = vmax.f32 %v2037, 0.0
  %v2054 = vmax.f32 %v2038, 0.0
  %v2055 = vmax.f32 %v2039, 0.0
  %v2056 = vmax.f32 %v2040, 0.0
  %v2057 = vmax.f32 %v2041, 0.0
  %v2058 = vmax.f32 %v2042, 0.0
  %v2059 = vmax.f32 %v2043, 0.0
  %v2060 = vpack.c.bf16 %v2045, %v2044
  %v2061 = vpack.c.bf16 %v2047, %v2046
  %v2062 = vpack.c.bf16 %v2049, %v2048
  %v2063 = vpack.c.bf16 %v2051, %v2050
  %v2064 = vpack.c.bf16 %v2053, %v2052
  %v2065 = vpack.c.bf16 %v2055, %v2054
  %v2066 = vpack.c.bf16 %v2057, %v2056
  %v2067 = vpack.c.bf16 %v2059, %v2058
  %v2068 = vld [vmem:[%s5] sm:$0xf]
  %v2069 = vld [vmem:[%s5 + $0x4] sm:$0xf]
  %v2070 = vld [vmem:[%s5 + $0x8] sm:$0xf]
  %v2071 = vld [vmem:[%s5 + $0xc] sm:$0xf]
  %v2072 = vld [vmem:[%s5 + $0x10] sm:$0xf]
  %v2073 = vld [vmem:[%s5 + $0x14] sm:$0xf]
  %v2074 = vld [vmem:[%s5 + $0x18] sm:$0xf]
  %v2075 = vld [vmem:[%s5 + $0x1c] sm:$0xf]
  %v2076 = vld [vmem:[%s5 + $0x20] sm:$0xf]
  %v2077 = vld [vmem:[%s5 + $0x24] sm:$0xf]
  %v2078 = vld [vmem:[%s5 + $0x28] sm:$0xf]
  %v2079 = vld [vmem:[%s5 + $0x2c] sm:$0xf]
  %v2080 = vld [vmem:[%s5 + $0x30] sm:$0xf]
  %v2081 = vld [vmem:[%s5 + $0x34] sm:$0xf]
  %v2082 = vld [vmem:[%s5 + $0x38] sm:$0xf]
  %v2083 = vld [vmem:[%s5 + $0x3c] sm:$0xf]
  %v2100 = vunpack.c.l.b16 %v2068
  %v2101 = vunpack.c.l.b16 %v2069
  %v2102 = vunpack.c.l.b16 %v2070
  %v2103 = vunpack.c.l.b16 %v2071
  %v2104 = vunpack.c.l.b16 %v2072
  %v2105 = vunpack.c.l.b16 %v2073
  %v2106 = vunpack.c.l.b16 %v2074
  %v2107 = vunpack.c.l.b16 %v2075
  %v2108 = vunpack.c.l.b16 %v2076
  %v2109 = vunpack.c.l.b16 %v2077
  %v2110 = vunpack.c.l.b16 %v2078
  %v2111 = vunpack.c.l.b16 %v2079
  %v2112 = vunpack.c.l.b16 %v2080
  %v2113 = vunpack.c.l.b16 %v2081
  %v2114 = vunpack.c.l.b16 %v2082
  %v2115 = vunpack.c.l.b16 %v2083
  %v2116 = vpack.c.b16 %v2101, %v2100
  %v2117 = vpack.c.b16 %v2103, %v2102
  %v2118 = vpack.c.b16 %v2105, %v2104
  %v2119 = vpack.c.b16 %v2107, %v2106
  %v2120 = vpack.c.b16 %v2109, %v2108
  %v2121 = vpack.c.b16 %v2111, %v2110
  %v2122 = vpack.c.b16 %v2113, %v2112
  %v2123 = vpack.c.b16 %v2115, %v2114
  %2132 = vmatpush.bf16.msra.mxu0 %v2067
  %2133 = vmatpush.bf16.msra.mxu0 %v2066
  %2134 = vmatpush.bf16.msra.mxu0 %v2065
  %2135 = vmatpush.bf16.msra.mxu0 %v2064
  %2136 = vmatpush.bf16.msra.mxu0 %v2063
  %2137 = vmatpush.bf16.msra.mxu0 %v2062
  %2138 = vmatpush.bf16.msra.mxu0 %v2061
  %2139 = vmatpush.bf16.msra.mxu0 %v2060
  %2140 = vmatmul.bf16.gmra.mxu0 %v2116
  %v2141 = vpop.f32.mrf.mxu0
  %v2142 = vadd.f32 0.0, %v2141
  %v2143 = vpop.f32.mrf.mxu0
  %v2144 = vadd.f32 0.0, %v2143
  %2145 = vmatmul.bf16.gmra.mxu0 %v2117
  %v2146 = vpop.f32.mrf.mxu0
  %v2147 = vadd.f32 0.0, %v2146
  %v2148 = vpop.f32.mrf.mxu0
  %v2149 = vadd.f32 0.0, %v2148
  %2150 = vmatmul.bf16.gmra.mxu0 %v2118
  %v2151 = vpop.f32.mrf.mxu0
  %v2152 = vadd.f32 0.0, %v2151
  %v2153 = vpop.f32.mrf.mxu0
  %v2154 = vadd.f32 0.0, %v2153
  %2155 = vmatmul.bf16.gmra.mxu0 %v2119
  %v2156 = vpop.f32.mrf.mxu0
  %v2157 = vadd.f32 0.0, %v2156
  %v2158 = vpop.f32.mrf.mxu0
  %v2159 = vadd.f32 0.0, %v2158
  %2160 = vmatmul.bf16.gmra.mxu0 %v2120
  %v2161 = vpop.f32.mrf.mxu0
  %v2162 = vadd.f32 0.0, %v2161
  %v2163 = vpop.f32.mrf.mxu0
  %v2164 = vadd.f32 0.0, %v2163
  %2165 = vmatmul.bf16.gmra.mxu0 %v2121
  %v2166 = vpop.f32.mrf.mxu0
  %v2167 = vadd.f32 0.0, %v2166
  %v2168 = vpop.f32.mrf.mxu0
  %v2169 = vadd.f32 0.0, %v2168
  %2170 = vmatmul.bf16.gmra.mxu0 %v2122
  %v2171 = vpop.f32.mrf.mxu0
  %v2172 = vadd.f32 0.0, %v2171
  %v2173 = vpop.f32.mrf.mxu0
  %v2174 = vadd.f32 0.0, %v2173
  %2175 = vmatmul.bf16.gmra.mxu0 %v2123
  %v2176 = vpop.f32.mrf.mxu0
  %v2177 = vadd.f32 0.0, %v2176
  %v2178 = vpop.f32.mrf.mxu0
  %v2179 = vadd.f32 0.0, %v2178
  %2180 = vdwg.mxu0
  %v2181 = vpack.c.bf16 %v2144, %v2142
  %v2182 = vpack.c.bf16 %v2149, %v2147
  %v2183 = vpack.c.bf16 %v2154, %v2152
  %v2184 = vpack.c.bf16 %v2159, %v2157
  %v2185 = vpack.c.bf16 %v2164, %v2162
  %v2186 = vpack.c.bf16 %v2169, %v2167
  %v2187 = vpack.c.bf16 %v2174, %v2172
  %v2188 = vpack.c.bf16 %v2179, %v2177
  %v2189 = vld [vmem:[%s6] sm:$0xf]
  %v2190 = vld [vmem:[%s6 + $0x4] sm:$0xf]
  %s2191 = scalar_lea.vmem %s5, 64
  %v2192 = vld [vmem:[%s2191] sm:$0xf]
  %v2193 = vld [vmem:[%s2191 + $0x4] sm:$0xf]
  %v2194 = vld [vmem:[%s2191 + $0x8] sm:$0xf]
  %v2195 = vld [vmem:[%s2191 + $0xc] sm:$0xf]
  %v2196 = vld [vmem:[%s2191 + $0x10] sm:$0xf]
  %v2197 = vld [vmem:[%s2191 + $0x14] sm:$0xf]
  %v2198 = vld [vmem:[%s2191 + $0x18] sm:$0xf]
  %v2199 = vld [vmem:[%s2191 + $0x1c] sm:$0xf]
  %v2200 = vld [vmem:[%s2191 + $0x20] sm:$0xf]
  %v2201 = vld [vmem:[%s2191 + $0x24] sm:$0xf]
  %v2202 = vld [vmem:[%s2191 + $0x28] sm:$0xf]
  %v2203 = vld [vmem:[%s2191 + $0x2c] sm:$0xf]
  %v2204 = vld [vmem:[%s2191 + $0x30] sm:$0xf]
  %v2205 = vld [vmem:[%s2191 + $0x34] sm:$0xf]
  %v2206 = vld [vmem:[%s2191 + $0x38] sm:$0xf]
  %v2207 = vld [vmem:[%s2191 + $0x3c] sm:$0xf]
  %v2224 = vunpack.c.l.b16 %v2192
  %v2225 = vunpack.c.l.b16 %v2193
  %v2226 = vunpack.c.l.b16 %v2194
  %v2227 = vunpack.c.l.b16 %v2195
  %v2228 = vunpack.c.l.b16 %v2196
  %v2229 = vunpack.c.l.b16 %v2197
  %v2230 = vunpack.c.l.b16 %v2198
  %v2231 = vunpack.c.l.b16 %v2199
  %v2232 = vunpack.c.l.b16 %v2200
  %v2233 = vunpack.c.l.b16 %v2201
  %v2234 = vunpack.c.l.b16 %v2202
  %v2235 = vunpack.c.l.b16 %v2203
  %v2236 = vunpack.c.l.b16 %v2204
  %v2237 = vunpack.c.l.b16 %v2205
  %v2238 = vunpack.c.l.b16 %v2206
  %v2239 = vunpack.c.l.b16 %v2207
  %v2240 = vpack.c.b16 %v2225, %v2224
  %v2241 = vpack.c.b16 %v2227, %v2226
  %v2242 = vpack.c.b16 %v2229, %v2228
  %v2243 = vpack.c.b16 %v2231, %v2230
  %v2244 = vpack.c.b16 %v2233, %v2232
  %v2245 = vpack.c.b16 %v2235, %v2234
  %v2246 = vpack.c.b16 %v2237, %v2236
  %v2247 = vpack.c.b16 %v2239, %v2238
  %2256 = vmatpush.bf16.msra.mxu0 %v2067
  %2257 = vmatpush.bf16.msra.mxu0 %v2066
  %2258 = vmatpush.bf16.msra.mxu0 %v2065
  %2259 = vmatpush.bf16.msra.mxu0 %v2064
  %2260 = vmatpush.bf16.msra.mxu0 %v2063
  %2261 = vmatpush.bf16.msra.mxu0 %v2062
  %2262 = vmatpush.bf16.msra.mxu0 %v2061
  %2263 = vmatpush.bf16.msra.mxu0 %v2060
  %2264 = vmatmul.bf16.gmra.mxu0 %v2240
  %v2265 = vpop.f32.mrf.mxu0
  %v2266 = vadd.f32 0.0, %v2265
  %v2267 = vpop.f32.mrf.mxu0
  %v2268 = vadd.f32 0.0, %v2267
  %2269 = vmatmul.bf16.gmra.mxu0 %v2241
  %v2270 = vpop.f32.mrf.mxu0
  %v2271 = vadd.f32 0.0, %v2270
  %v2272 = vpop.f32.mrf.mxu0
  %v2273 = vadd.f32 0.0, %v2272
  %2274 = vmatmul.bf16.gmra.mxu0 %v2242
  %v2275 = vpop.f32.mrf.mxu0
  %v2276 = vadd.f32 0.0, %v2275
  %v2277 = vpop.f32.mrf.mxu0
  %v2278 = vadd.f32 0.0, %v2277
  %2279 = vmatmul.bf16.gmra.mxu0 %v2243
  %v2280 = vpop.f32.mrf.mxu0
  %v2281 = vadd.f32 0.0, %v2280
  %v2282 = vpop.f32.mrf.mxu0
  %v2283 = vadd.f32 0.0, %v2282
  %2284 = vmatmul.bf16.gmra.mxu0 %v2244
  %v2285 = vpop.f32.mrf.mxu0
  %v2286 = vadd.f32 0.0, %v2285
  %v2287 = vpop.f32.mrf.mxu0
  %v2288 = vadd.f32 0.0, %v2287
  %2289 = vmatmul.bf16.gmra.mxu0 %v2245
  %v2290 = vpop.f32.mrf.mxu0
  %v2291 = vadd.f32 0.0, %v2290
  %v2292 = vpop.f32.mrf.mxu0
  %v2293 = vadd.f32 0.0, %v2292
  %2294 = vmatmul.bf16.gmra.mxu0 %v2246
  %v2295 = vpop.f32.mrf.mxu0
  %v2296 = vadd.f32 0.0, %v2295
  %v2297 = vpop.f32.mrf.mxu0
  %v2298 = vadd.f32 0.0, %v2297
  %2299 = vmatmul.bf16.gmra.mxu0 %v2247
  %v2300 = vpop.f32.mrf.mxu0
  %v2301 = vadd.f32 0.0, %v2300
  %v2302 = vpop.f32.mrf.mxu0
  %v2303 = vadd.f32 0.0, %v2302
  %2304 = vdwg.mxu0
  %v2305 = vpack.c.bf16 %v2268, %v2266
  %v2306 = vpack.c.bf16 %v2273, %v2271
  %v2307 = vpack.c.bf16 %v2278, %v2276
  %v2308 = vpack.c.bf16 %v2283, %v2281
  %v2309 = vpack.c.bf16 %v2288, %v2286
  %v2310 = vpack.c.bf16 %v2293, %v2291
  %v2311 = vpack.c.bf16 %v2298, %v2296
  %v2312 = vpack.c.bf16 %v2303, %v2301
  %s2313 = scalar_lea.vmem %s6, 8
  %v2314 = vld [vmem:[%s2313] sm:$0xf]
  %v2315 = vld [vmem:[%s2313 + $0x4] sm:$0xf]
  %v2318 = vunpack.c.l.b16 %v2314
  %v2319 = vunpack.c.l.b16 %v2315
  %v2320 = vpack.c.b16 %v2319, %v2318
  %v2323 = vsel %vm311, %v2305, 0
  %v2326 = vsel %vm311, %v2306, 0
  %v2329 = vsel %vm311, %v2307, 0
  %v2332 = vsel %vm311, %v2308, 0
  %v2335 = vsel %vm311, %v2309, 0
  %v2338 = vsel %vm311, %v2310, 0
  %v2341 = vsel %vm311, %v2311, 0
  %v2344 = vsel %vm311, %v2312, 0
  %2346 = vmatpush.bf16.msra.mxu0 0
  %2347 = vmatpush.bf16.msra.mxu0 0
  %2348 = vmatpush.bf16.msra.mxu0 0
  %2349 = vmatpush.bf16.msra.mxu0 0
  %2350 = vmatpush.bf16.msra.mxu0 0
  %2351 = vmatpush.bf16.msra.mxu0 0
  %2352 = vmatpush.bf16.msra.mxu0 0
  %2353 = vmatpush.bf16.msra.mxu0 %v2320
  %2354 = vmatmul.bf16.gmra.mxu0 %v2323
  %v2355 = vpop.f32.mrf.mxu0
  %v2356 = vadd.f32 0.0, %v2355
  %v2357 = vpop.f32.mrf.mxu0
  %v2358 = vadd.f32 0.0, %v2357
  %2359 = vmatmul.bf16.gmra.mxu0 %v2326
  %v2360 = vpop.f32.mrf.mxu0
  %v2361 = vadd.f32 0.0, %v2360
  %v2362 = vpop.f32.mrf.mxu0
  %v2363 = vadd.f32 0.0, %v2362
  %2364 = vmatmul.bf16.gmra.mxu0 %v2329
  %v2365 = vpop.f32.mrf.mxu0
  %v2366 = vadd.f32 0.0, %v2365
  %v2367 = vpop.f32.mrf.mxu0
  %v2368 = vadd.f32 0.0, %v2367
  %2369 = vmatmul.bf16.gmra.mxu0 %v2332
  %v2370 = vpop.f32.mrf.mxu0
  %v2371 = vadd.f32 0.0, %v2370
  %v2372 = vpop.f32.mrf.mxu0
  %v2373 = vadd.f32 0.0, %v2372
  %2374 = vmatmul.bf16.gmra.mxu0 %v2335
  %v2375 = vpop.f32.mrf.mxu0
  %v2376 = vadd.f32 0.0, %v2375
  %v2377 = vpop.f32.mrf.mxu0
  %v2378 = vadd.f32 0.0, %v2377
  %2379 = vmatmul.bf16.gmra.mxu0 %v2338
  %v2380 = vpop.f32.mrf.mxu0
  %v2381 = vadd.f32 0.0, %v2380
  %v2382 = vpop.f32.mrf.mxu0
  %v2383 = vadd.f32 0.0, %v2382
  %2384 = vmatmul.bf16.gmra.mxu0 %v2341
  %v2385 = vpop.f32.mrf.mxu0
  %v2386 = vadd.f32 0.0, %v2385
  %v2387 = vpop.f32.mrf.mxu0
  %v2388 = vadd.f32 0.0, %v2387
  %2389 = vmatmul.bf16.gmra.mxu0 %v2344
  %v2390 = vpop.f32.mrf.mxu0
  %v2391 = vadd.f32 0.0, %v2390
  %v2392 = vpop.f32.mrf.mxu0
  %v2393 = vadd.f32 0.0, %v2392
  %2394 = vdwg.mxu0
  %v2397 = vunpack.c.l.b16 %v2189
  %v2398 = vunpack.c.l.b16 %v2190
  %v2399 = vpack.c.b16 %v2398, %v2397
  %v2402 = vsel %vm311, %v2181, 0
  %v2405 = vsel %vm311, %v2182, 0
  %v2408 = vsel %vm311, %v2183, 0
  %v2411 = vsel %vm311, %v2184, 0
  %v2414 = vsel %vm311, %v2185, 0
  %v2417 = vsel %vm311, %v2186, 0
  %v2420 = vsel %vm311, %v2187, 0
  %v2423 = vsel %vm311, %v2188, 0
  %2425 = vmatpush.bf16.msra.mxu0 0
  %2426 = vmatpush.bf16.msra.mxu0 0
  %2427 = vmatpush.bf16.msra.mxu0 0
  %2428 = vmatpush.bf16.msra.mxu0 0
  %2429 = vmatpush.bf16.msra.mxu0 0
  %2430 = vmatpush.bf16.msra.mxu0 0
  %2431 = vmatpush.bf16.msra.mxu0 0
  %2432 = vmatpush.bf16.msra.mxu0 %v2399
  %2433 = vmatmul.bf16.gmra.mxu0 %v2402
  %v2434 = vpop.f32.mrf.mxu0
  %v2435 = vadd.f32 %v2356, %v2434
  %v2436 = vpop.f32.mrf.mxu0
  %v2437 = vadd.f32 %v2358, %v2436
  %2438 = vmatmul.bf16.gmra.mxu0 %v2405
  %v2439 = vpop.f32.mrf.mxu0
  %v2440 = vadd.f32 %v2361, %v2439
  %v2441 = vpop.f32.mrf.mxu0
  %v2442 = vadd.f32 %v2363, %v2441
  %2443 = vmatmul.bf16.gmra.mxu0 %v2408
  %v2444 = vpop.f32.mrf.mxu0
  %v2445 = vadd.f32 %v2366, %v2444
  %v2446 = vpop.f32.mrf.mxu0
  %v2447 = vadd.f32 %v2368, %v2446
  %2448 = vmatmul.bf16.gmra.mxu0 %v2411
  %v2449 = vpop.f32.mrf.mxu0
  %v2450 = vadd.f32 %v2371, %v2449
  %v2451 = vpop.f32.mrf.mxu0
  %v2452 = vadd.f32 %v2373, %v2451
  %2453 = vmatmul.bf16.gmra.mxu0 %v2414
  %v2454 = vpop.f32.mrf.mxu0
  %v2455 = vadd.f32 %v2376, %v2454
  %v2456 = vpop.f32.mrf.mxu0
  %v2457 = vadd.f32 %v2378, %v2456
  %2458 = vmatmul.bf16.gmra.mxu0 %v2417
  %v2459 = vpop.f32.mrf.mxu0
  %v2460 = vadd.f32 %v2381, %v2459
  %v2461 = vpop.f32.mrf.mxu0
  %v2462 = vadd.f32 %v2383, %v2461
  %2463 = vmatmul.bf16.gmra.mxu0 %v2420
  %v2464 = vpop.f32.mrf.mxu0
  %v2465 = vadd.f32 %v2386, %v2464
  %v2466 = vpop.f32.mrf.mxu0
  %v2467 = vadd.f32 %v2388, %v2466
  %2468 = vmatmul.bf16.gmra.mxu0 %v2423
  %v2469 = vpop.f32.mrf.mxu0
  %v2470 = vadd.f32 %v2391, %v2469
  %v2471 = vpop.f32.mrf.mxu0
  %v2472 = vadd.f32 %v2393, %v2471
  %2473 = vdwg.mxu0
  %s2474 = scalar_lea.vmem %s5, 128
  %v2475 = vld [vmem:[%s2474] sm:$0xf]
  %v2476 = vld [vmem:[%s2474 + $0x4] sm:$0xf]
  %v2477 = vld [vmem:[%s2474 + $0x8] sm:$0xf]
  %v2478 = vld [vmem:[%s2474 + $0xc] sm:$0xf]
  %v2479 = vld [vmem:[%s2474 + $0x10] sm:$0xf]
  %v2480 = vld [vmem:[%s2474 + $0x14] sm:$0xf]
  %v2481 = vld [vmem:[%s2474 + $0x18] sm:$0xf]
  %v2482 = vld [vmem:[%s2474 + $0x1c] sm:$0xf]
  %v2483 = vld [vmem:[%s2474 + $0x20] sm:$0xf]
  %v2484 = vld [vmem:[%s2474 + $0x24] sm:$0xf]
  %v2485 = vld [vmem:[%s2474 + $0x28] sm:$0xf]
  %v2486 = vld [vmem:[%s2474 + $0x2c] sm:$0xf]
  %v2487 = vld [vmem:[%s2474 + $0x30] sm:$0xf]
  %v2488 = vld [vmem:[%s2474 + $0x34] sm:$0xf]
  %v2489 = vld [vmem:[%s2474 + $0x38] sm:$0xf]
  %v2490 = vld [vmem:[%s2474 + $0x3c] sm:$0xf]
  %v2507 = vunpack.c.l.b16 %v2475
  %v2508 = vunpack.c.l.b16 %v2476
  %v2509 = vunpack.c.l.b16 %v2477
  %v2510 = vunpack.c.l.b16 %v2478
  %v2511 = vunpack.c.l.b16 %v2479
  %v2512 = vunpack.c.l.b16 %v2480
  %v2513 = vunpack.c.l.b16 %v2481
  %v2514 = vunpack.c.l.b16 %v2482
  %v2515 = vunpack.c.l.b16 %v2483
  %v2516 = vunpack.c.l.b16 %v2484
  %v2517 = vunpack.c.l.b16 %v2485
  %v2518 = vunpack.c.l.b16 %v2486
  %v2519 = vunpack.c.l.b16 %v2487
  %v2520 = vunpack.c.l.b16 %v2488
  %v2521 = vunpack.c.l.b16 %v2489
  %v2522 = vunpack.c.l.b16 %v2490
  %v2523 = vpack.c.b16 %v2508, %v2507
  %v2524 = vpack.c.b16 %v2510, %v2509
  %v2525 = vpack.c.b16 %v2512, %v2511
  %v2526 = vpack.c.b16 %v2514, %v2513
  %v2527 = vpack.c.b16 %v2516, %v2515
  %v2528 = vpack.c.b16 %v2518, %v2517
  %v2529 = vpack.c.b16 %v2520, %v2519
  %v2530 = vpack.c.b16 %v2522, %v2521
  %2539 = vmatpush.bf16.msra.mxu0 %v2067
  %2540 = vmatpush.bf16.msra.mxu0 %v2066
  %2541 = vmatpush.bf16.msra.mxu0 %v2065
  %2542 = vmatpush.bf16.msra.mxu0 %v2064
  %2543 = vmatpush.bf16.msra.mxu0 %v2063
  %2544 = vmatpush.bf16.msra.mxu0 %v2062
  %2545 = vmatpush.bf16.msra.mxu0 %v2061
  %2546 = vmatpush.bf16.msra.mxu0 %v2060
  %2547 = vmatmul.bf16.gmra.mxu0 %v2523
  %v2548 = vpop.f32.mrf.mxu0
  %v2549 = vadd.f32 0.0, %v2548
  %v2550 = vpop.f32.mrf.mxu0
  %v2551 = vadd.f32 0.0, %v2550
  %2552 = vmatmul.bf16.gmra.mxu0 %v2524
  %v2553 = vpop.f32.mrf.mxu0
  %v2554 = vadd.f32 0.0, %v2553
  %v2555 = vpop.f32.mrf.mxu0
  %v2556 = vadd.f32 0.0, %v2555
  %2557 = vmatmul.bf16.gmra.mxu0 %v2525
  %v2558 = vpop.f32.mrf.mxu0
  %v2559 = vadd.f32 0.0, %v2558
  %v2560 = vpop.f32.mrf.mxu0
  %v2561 = vadd.f32 0.0, %v2560
  %2562 = vmatmul.bf16.gmra.mxu0 %v2526
  %v2563 = vpop.f32.mrf.mxu0
  %v2564 = vadd.f32 0.0, %v2563
  %v2565 = vpop.f32.mrf.mxu0
  %v2566 = vadd.f32 0.0, %v2565
  %2567 = vmatmul.bf16.gmra.mxu0 %v2527
  %v2568 = vpop.f32.mrf.mxu0
  %v2569 = vadd.f32 0.0, %v2568
  %v2570 = vpop.f32.mrf.mxu0
  %v2571 = vadd.f32 0.0, %v2570
  %2572 = vmatmul.bf16.gmra.mxu0 %v2528
  %v2573 = vpop.f32.mrf.mxu0
  %v2574 = vadd.f32 0.0, %v2573
  %v2575 = vpop.f32.mrf.mxu0
  %v2576 = vadd.f32 0.0, %v2575
  %2577 = vmatmul.bf16.gmra.mxu0 %v2529
  %v2578 = vpop.f32.mrf.mxu0
  %v2579 = vadd.f32 0.0, %v2578
  %v2580 = vpop.f32.mrf.mxu0
  %v2581 = vadd.f32 0.0, %v2580
  %2582 = vmatmul.bf16.gmra.mxu0 %v2530
  %v2583 = vpop.f32.mrf.mxu0
  %v2584 = vadd.f32 0.0, %v2583
  %v2585 = vpop.f32.mrf.mxu0
  %v2586 = vadd.f32 0.0, %v2585
  %2587 = vdwg.mxu0
  %v2588 = vpack.c.bf16 %v2551, %v2549
  %v2589 = vpack.c.bf16 %v2556, %v2554
  %v2590 = vpack.c.bf16 %v2561, %v2559
  %v2591 = vpack.c.bf16 %v2566, %v2564
  %v2592 = vpack.c.bf16 %v2571, %v2569
  %v2593 = vpack.c.bf16 %v2576, %v2574
  %v2594 = vpack.c.bf16 %v2581, %v2579
  %v2595 = vpack.c.bf16 %v2586, %v2584
  %s2596 = scalar_lea.vmem %s6, 16
  %v2597 = vld [vmem:[%s2596] sm:$0xf]
  %v2598 = vld [vmem:[%s2596 + $0x4] sm:$0xf]
  %v2601 = vunpack.c.l.b16 %v2597
  %v2602 = vunpack.c.l.b16 %v2598
  %v2603 = vpack.c.b16 %v2602, %v2601
  %v2606 = vsel %vm311, %v2588, 0
  %v2609 = vsel %vm311, %v2589, 0
  %v2612 = vsel %vm311, %v2590, 0
  %v2615 = vsel %vm311, %v2591, 0
  %v2618 = vsel %vm311, %v2592, 0
  %v2621 = vsel %vm311, %v2593, 0
  %v2624 = vsel %vm311, %v2594, 0
  %v2627 = vsel %vm311, %v2595, 0
  %2629 = vmatpush.bf16.msra.mxu0 0
  %2630 = vmatpush.bf16.msra.mxu0 0
  %2631 = vmatpush.bf16.msra.mxu0 0
  %2632 = vmatpush.bf16.msra.mxu0 0
  %2633 = vmatpush.bf16.msra.mxu0 0
  %2634 = vmatpush.bf16.msra.mxu0 0
  %2635 = vmatpush.bf16.msra.mxu0 0
  %2636 = vmatpush.bf16.msra.mxu0 %v2603
  %2637 = vmatmul.bf16.gmra.mxu0 %v2606
  %v2638 = vpop.f32.mrf.mxu0
  %v2639 = vadd.f32 0.0, %v2638
  %v2640 = vpop.f32.mrf.mxu0
  %v2641 = vadd.f32 0.0, %v2640
  %2642 = vmatmul.bf16.gmra.mxu0 %v2609
  %v2643 = vpop.f32.mrf.mxu0
  %v2644 = vadd.f32 0.0, %v2643
  %v2645 = vpop.f32.mrf.mxu0
  %v2646 = vadd.f32 0.0, %v2645
  %2647 = vmatmul.bf16.gmra.mxu0 %v2612
  %v2648 = vpop.f32.mrf.mxu0
  %v2649 = vadd.f32 0.0, %v2648
  %v2650 = vpop.f32.mrf.mxu0
  %v2651 = vadd.f32 0.0, %v2650
  %2652 = vmatmul.bf16.gmra.mxu0 %v2615
  %v2653 = vpop.f32.mrf.mxu0
  %v2654 = vadd.f32 0.0, %v2653
  %v2655 = vpop.f32.mrf.mxu0
  %v2656 = vadd.f32 0.0, %v2655
  %2657 = vmatmul.bf16.gmra.mxu0 %v2618
  %v2658 = vpop.f32.mrf.mxu0
  %v2659 = vadd.f32 0.0, %v2658
  %v2660 = vpop.f32.mrf.mxu0
  %v2661 = vadd.f32 0.0, %v2660
  %2662 = vmatmul.bf16.gmra.mxu0 %v2621
  %v2663 = vpop.f32.mrf.mxu0
  %v2664 = vadd.f32 0.0, %v2663
  %v2665 = vpop.f32.mrf.mxu0
  %v2666 = vadd.f32 0.0, %v2665
  %2667 = vmatmul.bf16.gmra.mxu0 %v2624
  %v2668 = vpop.f32.mrf.mxu0
  %v2669 = vadd.f32 0.0, %v2668
  %v2670 = vpop.f32.mrf.mxu0
  %v2671 = vadd.f32 0.0, %v2670
  %2672 = vmatmul.bf16.gmra.mxu0 %v2627
  %v2673 = vpop.f32.mrf.mxu0
  %v2674 = vadd.f32 0.0, %v2673
  %v2675 = vpop.f32.mrf.mxu0
  %v2676 = vadd.f32 0.0, %v2675
  %2677 = vdwg.mxu0
  %v2678 = vadd.f32 %v2435, %v2639
  %v2679 = vadd.f32 %v2437, %v2641
  %v2680 = vadd.f32 %v2440, %v2644
  %v2681 = vadd.f32 %v2442, %v2646
  %v2682 = vadd.f32 %v2445, %v2649
  %v2683 = vadd.f32 %v2447, %v2651
  %v2684 = vadd.f32 %v2450, %v2654
  %v2685 = vadd.f32 %v2452, %v2656
  %v2686 = vadd.f32 %v2455, %v2659
  %v2687 = vadd.f32 %v2457, %v2661
  %v2688 = vadd.f32 %v2460, %v2664
  %v2689 = vadd.f32 %v2462, %v2666
  %v2690 = vadd.f32 %v2465, %v2669
  %v2691 = vadd.f32 %v2467, %v2671
  %v2692 = vadd.f32 %v2470, %v2674
  %v2693 = vadd.f32 %v2472, %v2676
  %s2694 = scalar_lea.vmem %s5, 192
  %v2695 = vld [vmem:[%s2694] sm:$0xf]
  %v2696 = vld [vmem:[%s2694 + $0x4] sm:$0xf]
  %v2697 = vld [vmem:[%s2694 + $0x8] sm:$0xf]
  %v2698 = vld [vmem:[%s2694 + $0xc] sm:$0xf]
  %v2699 = vld [vmem:[%s2694 + $0x10] sm:$0xf]
  %v2700 = vld [vmem:[%s2694 + $0x14] sm:$0xf]
  %v2701 = vld [vmem:[%s2694 + $0x18] sm:$0xf]
  %v2702 = vld [vmem:[%s2694 + $0x1c] sm:$0xf]
  %v2703 = vld [vmem:[%s2694 + $0x20] sm:$0xf]
  %v2704 = vld [vmem:[%s2694 + $0x24] sm:$0xf]
  %v2705 = vld [vmem:[%s2694 + $0x28] sm:$0xf]
  %v2706 = vld [vmem:[%s2694 + $0x2c] sm:$0xf]
  %v2707 = vld [vmem:[%s2694 + $0x30] sm:$0xf]
  %v2708 = vld [vmem:[%s2694 + $0x34] sm:$0xf]
  %v2709 = vld [vmem:[%s2694 + $0x38] sm:$0xf]
  %v2710 = vld [vmem:[%s2694 + $0x3c] sm:$0xf]
  %v2727 = vunpack.c.l.b16 %v2695
  %v2728 = vunpack.c.l.b16 %v2696
  %v2729 = vunpack.c.l.b16 %v2697
  %v2730 = vunpack.c.l.b16 %v2698
  %v2731 = vunpack.c.l.b16 %v2699
  %v2732 = vunpack.c.l.b16 %v2700
  %v2733 = vunpack.c.l.b16 %v2701
  %v2734 = vunpack.c.l.b16 %v2702
  %v2735 = vunpack.c.l.b16 %v2703
  %v2736 = vunpack.c.l.b16 %v2704
  %v2737 = vunpack.c.l.b16 %v2705
  %v2738 = vunpack.c.l.b16 %v2706
  %v2739 = vunpack.c.l.b16 %v2707
  %v2740 = vunpack.c.l.b16 %v2708
  %v2741 = vunpack.c.l.b16 %v2709
  %v2742 = vunpack.c.l.b16 %v2710
  %v2743 = vpack.c.b16 %v2728, %v2727
  %v2744 = vpack.c.b16 %v2730, %v2729
  %v2745 = vpack.c.b16 %v2732, %v2731
  %v2746 = vpack.c.b16 %v2734, %v2733
  %v2747 = vpack.c.b16 %v2736, %v2735
  %v2748 = vpack.c.b16 %v2738, %v2737
  %v2749 = vpack.c.b16 %v2740, %v2739
  %v2750 = vpack.c.b16 %v2742, %v2741
  %2759 = vmatpush.bf16.msra.mxu0 %v2067
  %2760 = vmatpush.bf16.msra.mxu0 %v2066
  %2761 = vmatpush.bf16.msra.mxu0 %v2065
  %2762 = vmatpush.bf16.msra.mxu0 %v2064
  %2763 = vmatpush.bf16.msra.mxu0 %v2063
  %2764 = vmatpush.bf16.msra.mxu0 %v2062
  %2765 = vmatpush.bf16.msra.mxu0 %v2061
  %2766 = vmatpush.bf16.msra.mxu0 %v2060
  %2767 = vmatmul.bf16.gmra.mxu0 %v2743
  %v2768 = vpop.f32.mrf.mxu0
  %v2769 = vadd.f32 0.0, %v2768
  %v2770 = vpop.f32.mrf.mxu0
  %v2771 = vadd.f32 0.0, %v2770
  %2772 = vmatmul.bf16.gmra.mxu0 %v2744
  %v2773 = vpop.f32.mrf.mxu0
  %v2774 = vadd.f32 0.0, %v2773
  %v2775 = vpop.f32.mrf.mxu0
  %v2776 = vadd.f32 0.0, %v2775
  %2777 = vmatmul.bf16.gmra.mxu0 %v2745
  %v2778 = vpop.f32.mrf.mxu0
  %v2779 = vadd.f32 0.0, %v2778
  %v2780 = vpop.f32.mrf.mxu0
  %v2781 = vadd.f32 0.0, %v2780
  %2782 = vmatmul.bf16.gmra.mxu0 %v2746
  %v2783 = vpop.f32.mrf.mxu0
  %v2784 = vadd.f32 0.0, %v2783
  %v2785 = vpop.f32.mrf.mxu0
  %v2786 = vadd.f32 0.0, %v2785
  %2787 = vmatmul.bf16.gmra.mxu0 %v2747
  %v2788 = vpop.f32.mrf.mxu0
  %v2789 = vadd.f32 0.0, %v2788
  %v2790 = vpop.f32.mrf.mxu0
  %v2791 = vadd.f32 0.0, %v2790
  %2792 = vmatmul.bf16.gmra.mxu0 %v2748
  %v2793 = vpop.f32.mrf.mxu0
  %v2794 = vadd.f32 0.0, %v2793
  %v2795 = vpop.f32.mrf.mxu0
  %v2796 = vadd.f32 0.0, %v2795
  %2797 = vmatmul.bf16.gmra.mxu0 %v2749
  %v2798 = vpop.f32.mrf.mxu0
  %v2799 = vadd.f32 0.0, %v2798
  %v2800 = vpop.f32.mrf.mxu0
  %v2801 = vadd.f32 0.0, %v2800
  %2802 = vmatmul.bf16.gmra.mxu0 %v2750
  %v2803 = vpop.f32.mrf.mxu0
  %v2804 = vadd.f32 0.0, %v2803
  %v2805 = vpop.f32.mrf.mxu0
  %v2806 = vadd.f32 0.0, %v2805
  %2807 = vdwg.mxu0
  %v2808 = vpack.c.bf16 %v2771, %v2769
  %v2809 = vpack.c.bf16 %v2776, %v2774
  %v2810 = vpack.c.bf16 %v2781, %v2779
  %v2811 = vpack.c.bf16 %v2786, %v2784
  %v2812 = vpack.c.bf16 %v2791, %v2789
  %v2813 = vpack.c.bf16 %v2796, %v2794
  %v2814 = vpack.c.bf16 %v2801, %v2799
  %v2815 = vpack.c.bf16 %v2806, %v2804
  %s2816 = scalar_lea.vmem %s6, 24
  %v2817 = vld [vmem:[%s2816] sm:$0xf]
  %v2818 = vld [vmem:[%s2816 + $0x4] sm:$0xf]
  %v2821 = vunpack.c.l.b16 %v2817
  %v2822 = vunpack.c.l.b16 %v2818
  %v2823 = vpack.c.b16 %v2822, %v2821
  %v2826 = vsel %vm311, %v2808, 0
  %v2829 = vsel %vm311, %v2809, 0
  %v2832 = vsel %vm311, %v2810, 0
  %v2835 = vsel %vm311, %v2811, 0
  %v2838 = vsel %vm311, %v2812, 0
  %v2841 = vsel %vm311, %v2813, 0
  %v2844 = vsel %vm311, %v2814, 0
  %v2847 = vsel %vm311, %v2815, 0
  %2849 = vmatpush.bf16.msra.mxu0 0
  %2850 = vmatpush.bf16.msra.mxu0 0
  %2851 = vmatpush.bf16.msra.mxu0 0
  %2852 = vmatpush.bf16.msra.mxu0 0
  %2853 = vmatpush.bf16.msra.mxu0 0
  %2854 = vmatpush.bf16.msra.mxu0 0
  %2855 = vmatpush.bf16.msra.mxu0 0
  %2856 = vmatpush.bf16.msra.mxu0 %v2823
  %2857 = vmatmul.bf16.gmra.mxu0 %v2826
  %v2858 = vpop.f32.mrf.mxu0
  %v2859 = vadd.f32 0.0, %v2858
  %v2860 = vpop.f32.mrf.mxu0
  %v2861 = vadd.f32 0.0, %v2860
  %2862 = vmatmul.bf16.gmra.mxu0 %v2829
  %v2863 = vpop.f32.mrf.mxu0
  %v2864 = vadd.f32 0.0, %v2863
  %v2865 = vpop.f32.mrf.mxu0
  %v2866 = vadd.f32 0.0, %v2865
  %2867 = vmatmul.bf16.gmra.mxu0 %v2832
  %v2868 = vpop.f32.mrf.mxu0
  %v2869 = vadd.f32 0.0, %v2868
  %v2870 = vpop.f32.mrf.mxu0
  %v2871 = vadd.f32 0.0, %v2870
  %2872 = vmatmul.bf16.gmra.mxu0 %v2835
  %v2873 = vpop.f32.mrf.mxu0
  %v2874 = vadd.f32 0.0, %v2873
  %v2875 = vpop.f32.mrf.mxu0
  %v2876 = vadd.f32 0.0, %v2875
  %2877 = vmatmul.bf16.gmra.mxu0 %v2838
  %v2878 = vpop.f32.mrf.mxu0
  %v2879 = vadd.f32 0.0, %v2878
  %v2880 = vpop.f32.mrf.mxu0
  %v2881 = vadd.f32 0.0, %v2880
  %2882 = vmatmul.bf16.gmra.mxu0 %v2841
  %v2883 = vpop.f32.mrf.mxu0
  %v2884 = vadd.f32 0.0, %v2883
  %v2885 = vpop.f32.mrf.mxu0
  %v2886 = vadd.f32 0.0, %v2885
  %2887 = vmatmul.bf16.gmra.mxu0 %v2844
  %v2888 = vpop.f32.mrf.mxu0
  %v2889 = vadd.f32 0.0, %v2888
  %v2890 = vpop.f32.mrf.mxu0
  %v2891 = vadd.f32 0.0, %v2890
  %2892 = vmatmul.bf16.gmra.mxu0 %v2847
  %v2893 = vpop.f32.mrf.mxu0
  %v2894 = vadd.f32 0.0, %v2893
  %v2895 = vpop.f32.mrf.mxu0
  %v2896 = vadd.f32 0.0, %v2895
  %2897 = vdwg.mxu0
  %v2898 = vadd.f32 %v2678, %v2859
  %v2899 = vadd.f32 %v2679, %v2861
  %v2900 = vadd.f32 %v2680, %v2864
  %v2901 = vadd.f32 %v2681, %v2866
  %v2902 = vadd.f32 %v2682, %v2869
  %v2903 = vadd.f32 %v2683, %v2871
  %v2904 = vadd.f32 %v2684, %v2874
  %v2905 = vadd.f32 %v2685, %v2876
  %v2906 = vadd.f32 %v2686, %v2879
  %v2907 = vadd.f32 %v2687, %v2881
  %v2908 = vadd.f32 %v2688, %v2884
  %v2909 = vadd.f32 %v2689, %v2886
  %v2910 = vadd.f32 %v2690, %v2889
  %v2911 = vadd.f32 %v2691, %v2891
  %v2912 = vadd.f32 %v2692, %v2894
  %v2913 = vadd.f32 %v2693, %v2896
  %s2914 = scalar_lea.vmem %s5, 256
  %v2915 = vld [vmem:[%s2914] sm:$0xf]
  %v2916 = vld [vmem:[%s2914 + $0x4] sm:$0xf]
  %v2917 = vld [vmem:[%s2914 + $0x8] sm:$0xf]
  %v2918 = vld [vmem:[%s2914 + $0xc] sm:$0xf]
  %v2919 = vld [vmem:[%s2914 + $0x10] sm:$0xf]
  %v2920 = vld [vmem:[%s2914 + $0x14] sm:$0xf]
  %v2921 = vld [vmem:[%s2914 + $0x18] sm:$0xf]
  %v2922 = vld [vmem:[%s2914 + $0x1c] sm:$0xf]
  %v2923 = vld [vmem:[%s2914 + $0x20] sm:$0xf]
  %v2924 = vld [vmem:[%s2914 + $0x24] sm:$0xf]
  %v2925 = vld [vmem:[%s2914 + $0x28] sm:$0xf]
  %v2926 = vld [vmem:[%s2914 + $0x2c] sm:$0xf]
  %v2927 = vld [vmem:[%s2914 + $0x30] sm:$0xf]
  %v2928 = vld [vmem:[%s2914 + $0x34] sm:$0xf]
  %v2929 = vld [vmem:[%s2914 + $0x38] sm:$0xf]
  %v2930 = vld [vmem:[%s2914 + $0x3c] sm:$0xf]
  %v2947 = vunpack.c.l.b16 %v2915
  %v2948 = vunpack.c.l.b16 %v2916
  %v2949 = vunpack.c.l.b16 %v2917
  %v2950 = vunpack.c.l.b16 %v2918
  %v2951 = vunpack.c.l.b16 %v2919
  %v2952 = vunpack.c.l.b16 %v2920
  %v2953 = vunpack.c.l.b16 %v2921
  %v2954 = vunpack.c.l.b16 %v2922
  %v2955 = vunpack.c.l.b16 %v2923
  %v2956 = vunpack.c.l.b16 %v2924
  %v2957 = vunpack.c.l.b16 %v2925
  %v2958 = vunpack.c.l.b16 %v2926
  %v2959 = vunpack.c.l.b16 %v2927
  %v2960 = vunpack.c.l.b16 %v2928
  %v2961 = vunpack.c.l.b16 %v2929
  %v2962 = vunpack.c.l.b16 %v2930
  %v2963 = vpack.c.b16 %v2948, %v2947
  %v2964 = vpack.c.b16 %v2950, %v2949
  %v2965 = vpack.c.b16 %v2952, %v2951
  %v2966 = vpack.c.b16 %v2954, %v2953
  %v2967 = vpack.c.b16 %v2956, %v2955
  %v2968 = vpack.c.b16 %v2958, %v2957
  %v2969 = vpack.c.b16 %v2960, %v2959
  %v2970 = vpack.c.b16 %v2962, %v2961
  %2979 = vmatpush.bf16.msra.mxu0 %v2067
  %2980 = vmatpush.bf16.msra.mxu0 %v2066
  %2981 = vmatpush.bf16.msra.mxu0 %v2065
  %2982 = vmatpush.bf16.msra.mxu0 %v2064
  %2983 = vmatpush.bf16.msra.mxu0 %v2063
  %2984 = vmatpush.bf16.msra.mxu0 %v2062
  %2985 = vmatpush.bf16.msra.mxu0 %v2061
  %2986 = vmatpush.bf16.msra.mxu0 %v2060
  %2987 = vmatmul.bf16.gmra.mxu0 %v2963
  %v2988 = vpop.f32.mrf.mxu0
  %v2989 = vadd.f32 0.0, %v2988
  %v2990 = vpop.f32.mrf.mxu0
  %v2991 = vadd.f32 0.0, %v2990
  %2992 = vmatmul.bf16.gmra.mxu0 %v2964
  %v2993 = vpop.f32.mrf.mxu0
  %v2994 = vadd.f32 0.0, %v2993
  %v2995 = vpop.f32.mrf.mxu0
  %v2996 = vadd.f32 0.0, %v2995
  %2997 = vmatmul.bf16.gmra.mxu0 %v2965
  %v2998 = vpop.f32.mrf.mxu0
  %v2999 = vadd.f32 0.0, %v2998
  %v3000 = vpop.f32.mrf.mxu0
  %v3001 = vadd.f32 0.0, %v3000
  %3002 = vmatmul.bf16.gmra.mxu0 %v2966
  %v3003 = vpop.f32.mrf.mxu0
  %v3004 = vadd.f32 0.0, %v3003
  %v3005 = vpop.f32.mrf.mxu0
  %v3006 = vadd.f32 0.0, %v3005
  %3007 = vmatmul.bf16.gmra.mxu0 %v2967
  %v3008 = vpop.f32.mrf.mxu0
  %v3009 = vadd.f32 0.0, %v3008
  %v3010 = vpop.f32.mrf.mxu0
  %v3011 = vadd.f32 0.0, %v3010
  %3012 = vmatmul.bf16.gmra.mxu0 %v2968
  %v3013 = vpop.f32.mrf.mxu0
  %v3014 = vadd.f32 0.0, %v3013
  %v3015 = vpop.f32.mrf.mxu0
  %v3016 = vadd.f32 0.0, %v3015
  %3017 = vmatmul.bf16.gmra.mxu0 %v2969
  %v3018 = vpop.f32.mrf.mxu0
  %v3019 = vadd.f32 0.0, %v3018
  %v3020 = vpop.f32.mrf.mxu0
  %v3021 = vadd.f32 0.0, %v3020
  %3022 = vmatmul.bf16.gmra.mxu0 %v2970
  %v3023 = vpop.f32.mrf.mxu0
  %v3024 = vadd.f32 0.0, %v3023
  %v3025 = vpop.f32.mrf.mxu0
  %v3026 = vadd.f32 0.0, %v3025
  %3027 = vdwg.mxu0
  %v3028 = vpack.c.bf16 %v2991, %v2989
  %v3029 = vpack.c.bf16 %v2996, %v2994
  %v3030 = vpack.c.bf16 %v3001, %v2999
  %v3031 = vpack.c.bf16 %v3006, %v3004
  %v3032 = vpack.c.bf16 %v3011, %v3009
  %v3033 = vpack.c.bf16 %v3016, %v3014
  %v3034 = vpack.c.bf16 %v3021, %v3019
  %v3035 = vpack.c.bf16 %v3026, %v3024
  %s3036 = scalar_lea.vmem %s6, 32
  %v3037 = vld [vmem:[%s3036] sm:$0xf]
  %v3038 = vld [vmem:[%s3036 + $0x4] sm:$0xf]
  %v3041 = vunpack.c.l.b16 %v3037
  %v3042 = vunpack.c.l.b16 %v3038
  %v3043 = vpack.c.b16 %v3042, %v3041
  %v3046 = vsel %vm311, %v3028, 0
  %v3049 = vsel %vm311, %v3029, 0
  %v3052 = vsel %vm311, %v3030, 0
  %v3055 = vsel %vm311, %v3031, 0
  %v3058 = vsel %vm311, %v3032, 0
  %v3061 = vsel %vm311, %v3033, 0
  %v3064 = vsel %vm311, %v3034, 0
  %v3067 = vsel %vm311, %v3035, 0
  %3069 = vmatpush.bf16.msra.mxu0 0
  %3070 = vmatpush.bf16.msra.mxu0 0
  %3071 = vmatpush.bf16.msra.mxu0 0
  %3072 = vmatpush.bf16.msra.mxu0 0
  %3073 = vmatpush.bf16.msra.mxu0 0
  %3074 = vmatpush.bf16.msra.mxu0 0
  %3075 = vmatpush.bf16.msra.mxu0 0
  %3076 = vmatpush.bf16.msra.mxu0 %v3043
  %3077 = vmatmul.bf16.gmra.mxu0 %v3046
  %v3078 = vpop.f32.mrf.mxu0
  %v3079 = vadd.f32 0.0, %v3078
  %v3080 = vpop.f32.mrf.mxu0
  %v3081 = vadd.f32 0.0, %v3080
  %3082 = vmatmul.bf16.gmra.mxu0 %v3049
  %v3083 = vpop.f32.mrf.mxu0
  %v3084 = vadd.f32 0.0, %v3083
  %v3085 = vpop.f32.mrf.mxu0
  %v3086 = vadd.f32 0.0, %v3085
  %3087 = vmatmul.bf16.gmra.mxu0 %v3052
  %v3088 = vpop.f32.mrf.mxu0
  %v3089 = vadd.f32 0.0, %v3088
  %v3090 = vpop.f32.mrf.mxu0
  %v3091 = vadd.f32 0.0, %v3090
  %3092 = vmatmul.bf16.gmra.mxu0 %v3055
  %v3093 = vpop.f32.mrf.mxu0
  %v3094 = vadd.f32 0.0, %v3093
  %v3095 = vpop.f32.mrf.mxu0
  %v3096 = vadd.f32 0.0, %v3095
  %3097 = vmatmul.bf16.gmra.mxu0 %v3058
  %v3098 = vpop.f32.mrf.mxu0
  %v3099 = vadd.f32 0.0, %v3098
  %v3100 = vpop.f32.mrf.mxu0
  %v3101 = vadd.f32 0.0, %v3100
  %3102 = vmatmul.bf16.gmra.mxu0 %v3061
  %v3103 = vpop.f32.mrf.mxu0
  %v3104 = vadd.f32 0.0, %v3103
  %v3105 = vpop.f32.mrf.mxu0
  %v3106 = vadd.f32 0.0, %v3105
  %3107 = vmatmul.bf16.gmra.mxu0 %v3064
  %v3108 = vpop.f32.mrf.mxu0
  %v3109 = vadd.f32 0.0, %v3108
  %v3110 = vpop.f32.mrf.mxu0
  %v3111 = vadd.f32 0.0, %v3110
  %3112 = vmatmul.bf16.gmra.mxu0 %v3067
  %v3113 = vpop.f32.mrf.mxu0
  %v3114 = vadd.f32 0.0, %v3113
  %v3115 = vpop.f32.mrf.mxu0
  %v3116 = vadd.f32 0.0, %v3115
  %3117 = vdwg.mxu0
  %v3118 = vadd.f32 %v2898, %v3079
  %v3119 = vadd.f32 %v2899, %v3081
  %v3120 = vadd.f32 %v2900, %v3084
  %v3121 = vadd.f32 %v2901, %v3086
  %v3122 = vadd.f32 %v2902, %v3089
  %v3123 = vadd.f32 %v2903, %v3091
  %v3124 = vadd.f32 %v2904, %v3094
  %v3125 = vadd.f32 %v2905, %v3096
  %v3126 = vadd.f32 %v2906, %v3099
  %v3127 = vadd.f32 %v2907, %v3101
  %v3128 = vadd.f32 %v2908, %v3104
  %v3129 = vadd.f32 %v2909, %v3106
  %v3130 = vadd.f32 %v2910, %v3109
  %v3131 = vadd.f32 %v2911, %v3111
  %v3132 = vadd.f32 %v2912, %v3114
  %v3133 = vadd.f32 %v2913, %v3116
  %s3134 = scalar_lea.vmem %s5, 320
  %v3135 = vld [vmem:[%s3134] sm:$0xf]
  %v3136 = vld [vmem:[%s3134 + $0x4] sm:$0xf]
  %v3137 = vld [vmem:[%s3134 + $0x8] sm:$0xf]
  %v3138 = vld [vmem:[%s3134 + $0xc] sm:$0xf]
  %v3139 = vld [vmem:[%s3134 + $0x10] sm:$0xf]
  %v3140 = vld [vmem:[%s3134 + $0x14] sm:$0xf]
  %v3141 = vld [vmem:[%s3134 + $0x18] sm:$0xf]
  %v3142 = vld [vmem:[%s3134 + $0x1c] sm:$0xf]
  %v3143 = vld [vmem:[%s3134 + $0x20] sm:$0xf]
  %v3144 = vld [vmem:[%s3134 + $0x24] sm:$0xf]
  %v3145 = vld [vmem:[%s3134 + $0x28] sm:$0xf]
  %v3146 = vld [vmem:[%s3134 + $0x2c] sm:$0xf]
  %v3147 = vld [vmem:[%s3134 + $0x30] sm:$0xf]
  %v3148 = vld [vmem:[%s3134 + $0x34] sm:$0xf]
  %v3149 = vld [vmem:[%s3134 + $0x38] sm:$0xf]
  %v3150 = vld [vmem:[%s3134 + $0x3c] sm:$0xf]
  %v3167 = vunpack.c.l.b16 %v3135
  %v3168 = vunpack.c.l.b16 %v3136
  %v3169 = vunpack.c.l.b16 %v3137
  %v3170 = vunpack.c.l.b16 %v3138
  %v3171 = vunpack.c.l.b16 %v3139
  %v3172 = vunpack.c.l.b16 %v3140
  %v3173 = vunpack.c.l.b16 %v3141
  %v3174 = vunpack.c.l.b16 %v3142
  %v3175 = vunpack.c.l.b16 %v3143
  %v3176 = vunpack.c.l.b16 %v3144
  %v3177 = vunpack.c.l.b16 %v3145
  %v3178 = vunpack.c.l.b16 %v3146
  %v3179 = vunpack.c.l.b16 %v3147
  %v3180 = vunpack.c.l.b16 %v3148
  %v3181 = vunpack.c.l.b16 %v3149
  %v3182 = vunpack.c.l.b16 %v3150
  %v3183 = vpack.c.b16 %v3168, %v3167
  %v3184 = vpack.c.b16 %v3170, %v3169
  %v3185 = vpack.c.b16 %v3172, %v3171
  %v3186 = vpack.c.b16 %v3174, %v3173
  %v3187 = vpack.c.b16 %v3176, %v3175
  %v3188 = vpack.c.b16 %v3178, %v3177
  %v3189 = vpack.c.b16 %v3180, %v3179
  %v3190 = vpack.c.b16 %v3182, %v3181
  %3199 = vmatpush.bf16.msra.mxu0 %v2067
  %3200 = vmatpush.bf16.msra.mxu0 %v2066
  %3201 = vmatpush.bf16.msra.mxu0 %v2065
  %3202 = vmatpush.bf16.msra.mxu0 %v2064
  %3203 = vmatpush.bf16.msra.mxu0 %v2063
  %3204 = vmatpush.bf16.msra.mxu0 %v2062
  %3205 = vmatpush.bf16.msra.mxu0 %v2061
  %3206 = vmatpush.bf16.msra.mxu0 %v2060
  %3207 = vmatmul.bf16.gmra.mxu0 %v3183
  %v3208 = vpop.f32.mrf.mxu0
  %v3209 = vadd.f32 0.0, %v3208
  %v3210 = vpop.f32.mrf.mxu0
  %v3211 = vadd.f32 0.0, %v3210
  %3212 = vmatmul.bf16.gmra.mxu0 %v3184
  %v3213 = vpop.f32.mrf.mxu0
  %v3214 = vadd.f32 0.0, %v3213
  %v3215 = vpop.f32.mrf.mxu0
  %v3216 = vadd.f32 0.0, %v3215
  %3217 = vmatmul.bf16.gmra.mxu0 %v3185
  %v3218 = vpop.f32.mrf.mxu0
  %v3219 = vadd.f32 0.0, %v3218
  %v3220 = vpop.f32.mrf.mxu0
  %v3221 = vadd.f32 0.0, %v3220
  %3222 = vmatmul.bf16.gmra.mxu0 %v3186
  %v3223 = vpop.f32.mrf.mxu0
  %v3224 = vadd.f32 0.0, %v3223
  %v3225 = vpop.f32.mrf.mxu0
  %v3226 = vadd.f32 0.0, %v3225
  %3227 = vmatmul.bf16.gmra.mxu0 %v3187
  %v3228 = vpop.f32.mrf.mxu0
  %v3229 = vadd.f32 0.0, %v3228
  %v3230 = vpop.f32.mrf.mxu0
  %v3231 = vadd.f32 0.0, %v3230
  %3232 = vmatmul.bf16.gmra.mxu0 %v3188
  %v3233 = vpop.f32.mrf.mxu0
  %v3234 = vadd.f32 0.0, %v3233
  %v3235 = vpop.f32.mrf.mxu0
  %v3236 = vadd.f32 0.0, %v3235
  %3237 = vmatmul.bf16.gmra.mxu0 %v3189
  %v3238 = vpop.f32.mrf.mxu0
  %v3239 = vadd.f32 0.0, %v3238
  %v3240 = vpop.f32.mrf.mxu0
  %v3241 = vadd.f32 0.0, %v3240
  %3242 = vmatmul.bf16.gmra.mxu0 %v3190
  %v3243 = vpop.f32.mrf.mxu0
  %v3244 = vadd.f32 0.0, %v3243
  %v3245 = vpop.f32.mrf.mxu0
  %v3246 = vadd.f32 0.0, %v3245
  %3247 = vdwg.mxu0
  %v3248 = vpack.c.bf16 %v3211, %v3209
  %v3249 = vpack.c.bf16 %v3216, %v3214
  %v3250 = vpack.c.bf16 %v3221, %v3219
  %v3251 = vpack.c.bf16 %v3226, %v3224
  %v3252 = vpack.c.bf16 %v3231, %v3229
  %v3253 = vpack.c.bf16 %v3236, %v3234
  %v3254 = vpack.c.bf16 %v3241, %v3239
  %v3255 = vpack.c.bf16 %v3246, %v3244
  %s3256 = scalar_lea.vmem %s6, 40
  %v3257 = vld [vmem:[%s3256] sm:$0xf]
  %v3258 = vld [vmem:[%s3256 + $0x4] sm:$0xf]
  %v3261 = vunpack.c.l.b16 %v3257
  %v3262 = vunpack.c.l.b16 %v3258
  %v3263 = vpack.c.b16 %v3262, %v3261
  %v3266 = vsel %vm311, %v3248, 0
  %v3269 = vsel %vm311, %v3249, 0
  %v3272 = vsel %vm311, %v3250, 0
  %v3275 = vsel %vm311, %v3251, 0
  %v3278 = vsel %vm311, %v3252, 0
  %v3281 = vsel %vm311, %v3253, 0
  %v3284 = vsel %vm311, %v3254, 0
  %v3287 = vsel %vm311, %v3255, 0
  %3289 = vmatpush.bf16.msra.mxu0 0
  %3290 = vmatpush.bf16.msra.mxu0 0
  %3291 = vmatpush.bf16.msra.mxu0 0
  %3292 = vmatpush.bf16.msra.mxu0 0
  %3293 = vmatpush.bf16.msra.mxu0 0
  %3294 = vmatpush.bf16.msra.mxu0 0
  %3295 = vmatpush.bf16.msra.mxu0 0
  %3296 = vmatpush.bf16.msra.mxu0 %v3263
  %3297 = vmatmul.bf16.gmra.mxu0 %v3266
  %v3298 = vpop.f32.mrf.mxu0
  %v3299 = vadd.f32 0.0, %v3298
  %v3300 = vpop.f32.mrf.mxu0
  %v3301 = vadd.f32 0.0, %v3300
  %3302 = vmatmul.bf16.gmra.mxu0 %v3269
  %v3303 = vpop.f32.mrf.mxu0
  %v3304 = vadd.f32 0.0, %v3303
  %v3305 = vpop.f32.mrf.mxu0
  %v3306 = vadd.f32 0.0, %v3305
  %3307 = vmatmul.bf16.gmra.mxu0 %v3272
  %v3308 = vpop.f32.mrf.mxu0
  %v3309 = vadd.f32 0.0, %v3308
  %v3310 = vpop.f32.mrf.mxu0
  %v3311 = vadd.f32 0.0, %v3310
  %3312 = vmatmul.bf16.gmra.mxu0 %v3275
  %v3313 = vpop.f32.mrf.mxu0
  %v3314 = vadd.f32 0.0, %v3313
  %v3315 = vpop.f32.mrf.mxu0
  %v3316 = vadd.f32 0.0, %v3315
  %3317 = vmatmul.bf16.gmra.mxu0 %v3278
  %v3318 = vpop.f32.mrf.mxu0
  %v3319 = vadd.f32 0.0, %v3318
  %v3320 = vpop.f32.mrf.mxu0
  %v3321 = vadd.f32 0.0, %v3320
  %3322 = vmatmul.bf16.gmra.mxu0 %v3281
  %v3323 = vpop.f32.mrf.mxu0
  %v3324 = vadd.f32 0.0, %v3323
  %v3325 = vpop.f32.mrf.mxu0
  %v3326 = vadd.f32 0.0, %v3325
  %3327 = vmatmul.bf16.gmra.mxu0 %v3284
  %v3328 = vpop.f32.mrf.mxu0
  %v3329 = vadd.f32 0.0, %v3328
  %v3330 = vpop.f32.mrf.mxu0
  %v3331 = vadd.f32 0.0, %v3330
  %3332 = vmatmul.bf16.gmra.mxu0 %v3287
  %v3333 = vpop.f32.mrf.mxu0
  %v3334 = vadd.f32 0.0, %v3333
  %v3335 = vpop.f32.mrf.mxu0
  %v3336 = vadd.f32 0.0, %v3335
  %3337 = vdwg.mxu0
  %v3338 = vadd.f32 %v3118, %v3299
  %v3339 = vadd.f32 %v3119, %v3301
  %v3340 = vadd.f32 %v3120, %v3304
  %v3341 = vadd.f32 %v3121, %v3306
  %v3342 = vadd.f32 %v3122, %v3309
  %v3343 = vadd.f32 %v3123, %v3311
  %v3344 = vadd.f32 %v3124, %v3314
  %v3345 = vadd.f32 %v3125, %v3316
  %v3346 = vadd.f32 %v3126, %v3319
  %v3347 = vadd.f32 %v3127, %v3321
  %v3348 = vadd.f32 %v3128, %v3324
  %v3349 = vadd.f32 %v3129, %v3326
  %v3350 = vadd.f32 %v3130, %v3329
  %v3351 = vadd.f32 %v3131, %v3331
  %v3352 = vadd.f32 %v3132, %v3334
  %v3353 = vadd.f32 %v3133, %v3336
  %s3354 = scalar_lea.vmem %s5, 384
  %v3355 = vld [vmem:[%s3354] sm:$0xf]
  %v3356 = vld [vmem:[%s3354 + $0x4] sm:$0xf]
  %v3357 = vld [vmem:[%s3354 + $0x8] sm:$0xf]
  %v3358 = vld [vmem:[%s3354 + $0xc] sm:$0xf]
  %v3359 = vld [vmem:[%s3354 + $0x10] sm:$0xf]
  %v3360 = vld [vmem:[%s3354 + $0x14] sm:$0xf]
  %v3361 = vld [vmem:[%s3354 + $0x18] sm:$0xf]
  %v3362 = vld [vmem:[%s3354 + $0x1c] sm:$0xf]
  %v3363 = vld [vmem:[%s3354 + $0x20] sm:$0xf]
  %v3364 = vld [vmem:[%s3354 + $0x24] sm:$0xf]
  %v3365 = vld [vmem:[%s3354 + $0x28] sm:$0xf]
  %v3366 = vld [vmem:[%s3354 + $0x2c] sm:$0xf]
  %v3367 = vld [vmem:[%s3354 + $0x30] sm:$0xf]
  %v3368 = vld [vmem:[%s3354 + $0x34] sm:$0xf]
  %v3369 = vld [vmem:[%s3354 + $0x38] sm:$0xf]
  %v3370 = vld [vmem:[%s3354 + $0x3c] sm:$0xf]
  %v3387 = vunpack.c.l.b16 %v3355
  %v3388 = vunpack.c.l.b16 %v3356
  %v3389 = vunpack.c.l.b16 %v3357
  %v3390 = vunpack.c.l.b16 %v3358
  %v3391 = vunpack.c.l.b16 %v3359
  %v3392 = vunpack.c.l.b16 %v3360
  %v3393 = vunpack.c.l.b16 %v3361
  %v3394 = vunpack.c.l.b16 %v3362
  %v3395 = vunpack.c.l.b16 %v3363
  %v3396 = vunpack.c.l.b16 %v3364
  %v3397 = vunpack.c.l.b16 %v3365
  %v3398 = vunpack.c.l.b16 %v3366
  %v3399 = vunpack.c.l.b16 %v3367
  %v3400 = vunpack.c.l.b16 %v3368
  %v3401 = vunpack.c.l.b16 %v3369
  %v3402 = vunpack.c.l.b16 %v3370
  %v3403 = vpack.c.b16 %v3388, %v3387
  %v3404 = vpack.c.b16 %v3390, %v3389
  %v3405 = vpack.c.b16 %v3392, %v3391
  %v3406 = vpack.c.b16 %v3394, %v3393
  %v3407 = vpack.c.b16 %v3396, %v3395
  %v3408 = vpack.c.b16 %v3398, %v3397
  %v3409 = vpack.c.b16 %v3400, %v3399
  %v3410 = vpack.c.b16 %v3402, %v3401
  %3419 = vmatpush.bf16.msra.mxu0 %v2067
  %3420 = vmatpush.bf16.msra.mxu0 %v2066
  %3421 = vmatpush.bf16.msra.mxu0 %v2065
  %3422 = vmatpush.bf16.msra.mxu0 %v2064
  %3423 = vmatpush.bf16.msra.mxu0 %v2063
  %3424 = vmatpush.bf16.msra.mxu0 %v2062
  %3425 = vmatpush.bf16.msra.mxu0 %v2061
  %3426 = vmatpush.bf16.msra.mxu0 %v2060
  %3427 = vmatmul.bf16.gmra.mxu0 %v3403
  %v3428 = vpop.f32.mrf.mxu0
  %v3429 = vadd.f32 0.0, %v3428
  %v3430 = vpop.f32.mrf.mxu0
  %v3431 = vadd.f32 0.0, %v3430
  %3432 = vmatmul.bf16.gmra.mxu0 %v3404
  %v3433 = vpop.f32.mrf.mxu0
  %v3434 = vadd.f32 0.0, %v3433
  %v3435 = vpop.f32.mrf.mxu0
  %v3436 = vadd.f32 0.0, %v3435
  %3437 = vmatmul.bf16.gmra.mxu0 %v3405
  %v3438 = vpop.f32.mrf.mxu0
  %v3439 = vadd.f32 0.0, %v3438
  %v3440 = vpop.f32.mrf.mxu0
  %v3441 = vadd.f32 0.0, %v3440
  %3442 = vmatmul.bf16.gmra.mxu0 %v3406
  %v3443 = vpop.f32.mrf.mxu0
  %v3444 = vadd.f32 0.0, %v3443
  %v3445 = vpop.f32.mrf.mxu0
  %v3446 = vadd.f32 0.0, %v3445
  %3447 = vmatmul.bf16.gmra.mxu0 %v3407
  %v3448 = vpop.f32.mrf.mxu0
  %v3449 = vadd.f32 0.0, %v3448
  %v3450 = vpop.f32.mrf.mxu0
  %v3451 = vadd.f32 0.0, %v3450
  %3452 = vmatmul.bf16.gmra.mxu0 %v3408
  %v3453 = vpop.f32.mrf.mxu0
  %v3454 = vadd.f32 0.0, %v3453
  %v3455 = vpop.f32.mrf.mxu0
  %v3456 = vadd.f32 0.0, %v3455
  %3457 = vmatmul.bf16.gmra.mxu0 %v3409
  %v3458 = vpop.f32.mrf.mxu0
  %v3459 = vadd.f32 0.0, %v3458
  %v3460 = vpop.f32.mrf.mxu0
  %v3461 = vadd.f32 0.0, %v3460
  %3462 = vmatmul.bf16.gmra.mxu0 %v3410
  %v3463 = vpop.f32.mrf.mxu0
  %v3464 = vadd.f32 0.0, %v3463
  %v3465 = vpop.f32.mrf.mxu0
  %v3466 = vadd.f32 0.0, %v3465
  %3467 = vdwg.mxu0
  %v3468 = vpack.c.bf16 %v3431, %v3429
  %v3469 = vpack.c.bf16 %v3436, %v3434
  %v3470 = vpack.c.bf16 %v3441, %v3439
  %v3471 = vpack.c.bf16 %v3446, %v3444
  %v3472 = vpack.c.bf16 %v3451, %v3449
  %v3473 = vpack.c.bf16 %v3456, %v3454
  %v3474 = vpack.c.bf16 %v3461, %v3459
  %v3475 = vpack.c.bf16 %v3466, %v3464
  %s3476 = scalar_lea.vmem %s6, 48
  %v3477 = vld [vmem:[%s3476] sm:$0xf]
  %v3478 = vld [vmem:[%s3476 + $0x4] sm:$0xf]
  %v3481 = vunpack.c.l.b16 %v3477
  %v3482 = vunpack.c.l.b16 %v3478
  %v3483 = vpack.c.b16 %v3482, %v3481
  %v3486 = vsel %vm311, %v3468, 0
  %v3489 = vsel %vm311, %v3469, 0
  %v3492 = vsel %vm311, %v3470, 0
  %v3495 = vsel %vm311, %v3471, 0
  %v3498 = vsel %vm311, %v3472, 0
  %v3501 = vsel %vm311, %v3473, 0
  %v3504 = vsel %vm311, %v3474, 0
  %v3507 = vsel %vm311, %v3475, 0
  %3509 = vmatpush.bf16.msra.mxu0 0
  %3510 = vmatpush.bf16.msra.mxu0 0
  %3511 = vmatpush.bf16.msra.mxu0 0
  %3512 = vmatpush.bf16.msra.mxu0 0
  %3513 = vmatpush.bf16.msra.mxu0 0
  %3514 = vmatpush.bf16.msra.mxu0 0
  %3515 = vmatpush.bf16.msra.mxu0 0
  %3516 = vmatpush.bf16.msra.mxu0 %v3483
  %3517 = vmatmul.bf16.gmra.mxu0 %v3486
  %v3518 = vpop.f32.mrf.mxu0
  %v3519 = vadd.f32 0.0, %v3518
  %v3520 = vpop.f32.mrf.mxu0
  %v3521 = vadd.f32 0.0, %v3520
  %3522 = vmatmul.bf16.gmra.mxu0 %v3489
  %v3523 = vpop.f32.mrf.mxu0
  %v3524 = vadd.f32 0.0, %v3523
  %v3525 = vpop.f32.mrf.mxu0
  %v3526 = vadd.f32 0.0, %v3525
  %3527 = vmatmul.bf16.gmra.mxu0 %v3492
  %v3528 = vpop.f32.mrf.mxu0
  %v3529 = vadd.f32 0.0, %v3528
  %v3530 = vpop.f32.mrf.mxu0
  %v3531 = vadd.f32 0.0, %v3530
  %3532 = vmatmul.bf16.gmra.mxu0 %v3495
  %v3533 = vpop.f32.mrf.mxu0
  %v3534 = vadd.f32 0.0, %v3533
  %v3535 = vpop.f32.mrf.mxu0
  %v3536 = vadd.f32 0.0, %v3535
  %3537 = vmatmul.bf16.gmra.mxu0 %v3498
  %v3538 = vpop.f32.mrf.mxu0
  %v3539 = vadd.f32 0.0, %v3538
  %v3540 = vpop.f32.mrf.mxu0
  %v3541 = vadd.f32 0.0, %v3540
  %3542 = vmatmul.bf16.gmra.mxu0 %v3501
  %v3543 = vpop.f32.mrf.mxu0
  %v3544 = vadd.f32 0.0, %v3543
  %v3545 = vpop.f32.mrf.mxu0
  %v3546 = vadd.f32 0.0, %v3545
  %3547 = vmatmul.bf16.gmra.mxu0 %v3504
  %v3548 = vpop.f32.mrf.mxu0
  %v3549 = vadd.f32 0.0, %v3548
  %v3550 = vpop.f32.mrf.mxu0
  %v3551 = vadd.f32 0.0, %v3550
  %3552 = vmatmul.bf16.gmra.mxu0 %v3507
  %v3553 = vpop.f32.mrf.mxu0
  %v3554 = vadd.f32 0.0, %v3553
  %v3555 = vpop.f32.mrf.mxu0
  %v3556 = vadd.f32 0.0, %v3555
  %3557 = vdwg.mxu0
  %v3558 = vadd.f32 %v3338, %v3519
  %v3559 = vadd.f32 %v3339, %v3521
  %v3560 = vadd.f32 %v3340, %v3524
  %v3561 = vadd.f32 %v3341, %v3526
  %v3562 = vadd.f32 %v3342, %v3529
  %v3563 = vadd.f32 %v3343, %v3531
  %v3564 = vadd.f32 %v3344, %v3534
  %v3565 = vadd.f32 %v3345, %v3536
  %v3566 = vadd.f32 %v3346, %v3539
  %v3567 = vadd.f32 %v3347, %v3541
  %v3568 = vadd.f32 %v3348, %v3544
  %v3569 = vadd.f32 %v3349, %v3546
  %v3570 = vadd.f32 %v3350, %v3549
  %v3571 = vadd.f32 %v3351, %v3551
  %v3572 = vadd.f32 %v3352, %v3554
  %v3573 = vadd.f32 %v3353, %v3556
  %s3574 = scalar_lea.vmem %s5, 448
  %v3575 = vld [vmem:[%s3574] sm:$0xf]
  %v3576 = vld [vmem:[%s3574 + $0x4] sm:$0xf]
  %v3577 = vld [vmem:[%s3574 + $0x8] sm:$0xf]
  %v3578 = vld [vmem:[%s3574 + $0xc] sm:$0xf]
  %v3579 = vld [vmem:[%s3574 + $0x10] sm:$0xf]
  %v3580 = vld [vmem:[%s3574 + $0x14] sm:$0xf]
  %v3581 = vld [vmem:[%s3574 + $0x18] sm:$0xf]
  %v3582 = vld [vmem:[%s3574 + $0x1c] sm:$0xf]
  %v3583 = vld [vmem:[%s3574 + $0x20] sm:$0xf]
  %v3584 = vld [vmem:[%s3574 + $0x24] sm:$0xf]
  %v3585 = vld [vmem:[%s3574 + $0x28] sm:$0xf]
  %v3586 = vld [vmem:[%s3574 + $0x2c] sm:$0xf]
  %v3587 = vld [vmem:[%s3574 + $0x30] sm:$0xf]
  %v3588 = vld [vmem:[%s3574 + $0x34] sm:$0xf]
  %v3589 = vld [vmem:[%s3574 + $0x38] sm:$0xf]
  %v3590 = vld [vmem:[%s3574 + $0x3c] sm:$0xf]
  %v3607 = vunpack.c.l.b16 %v3575
  %v3608 = vunpack.c.l.b16 %v3576
  %v3609 = vunpack.c.l.b16 %v3577
  %v3610 = vunpack.c.l.b16 %v3578
  %v3611 = vunpack.c.l.b16 %v3579
  %v3612 = vunpack.c.l.b16 %v3580
  %v3613 = vunpack.c.l.b16 %v3581
  %v3614 = vunpack.c.l.b16 %v3582
  %v3615 = vunpack.c.l.b16 %v3583
  %v3616 = vunpack.c.l.b16 %v3584
  %v3617 = vunpack.c.l.b16 %v3585
  %v3618 = vunpack.c.l.b16 %v3586
  %v3619 = vunpack.c.l.b16 %v3587
  %v3620 = vunpack.c.l.b16 %v3588
  %v3621 = vunpack.c.l.b16 %v3589
  %v3622 = vunpack.c.l.b16 %v3590
  %v3623 = vpack.c.b16 %v3608, %v3607
  %v3624 = vpack.c.b16 %v3610, %v3609
  %v3625 = vpack.c.b16 %v3612, %v3611
  %v3626 = vpack.c.b16 %v3614, %v3613
  %v3627 = vpack.c.b16 %v3616, %v3615
  %v3628 = vpack.c.b16 %v3618, %v3617
  %v3629 = vpack.c.b16 %v3620, %v3619
  %v3630 = vpack.c.b16 %v3622, %v3621
  %3639 = vmatpush.bf16.msra.mxu0 %v2067
  %3640 = vmatpush.bf16.msra.mxu0 %v2066
  %3641 = vmatpush.bf16.msra.mxu0 %v2065
  %3642 = vmatpush.bf16.msra.mxu0 %v2064
  %3643 = vmatpush.bf16.msra.mxu0 %v2063
  %3644 = vmatpush.bf16.msra.mxu0 %v2062
  %3645 = vmatpush.bf16.msra.mxu0 %v2061
  %3646 = vmatpush.bf16.msra.mxu0 %v2060
  %3647 = vmatmul.bf16.gmra.mxu0 %v3623
  %v3648 = vpop.f32.mrf.mxu0
  %v3649 = vadd.f32 0.0, %v3648
  %v3650 = vpop.f32.mrf.mxu0
  %v3651 = vadd.f32 0.0, %v3650
  %3652 = vmatmul.bf16.gmra.mxu0 %v3624
  %v3653 = vpop.f32.mrf.mxu0
  %v3654 = vadd.f32 0.0, %v3653
  %v3655 = vpop.f32.mrf.mxu0
  %v3656 = vadd.f32 0.0, %v3655
  %3657 = vmatmul.bf16.gmra.mxu0 %v3625
  %v3658 = vpop.f32.mrf.mxu0
  %v3659 = vadd.f32 0.0, %v3658
  %v3660 = vpop.f32.mrf.mxu0
  %v3661 = vadd.f32 0.0, %v3660
  %3662 = vmatmul.bf16.gmra.mxu0 %v3626
  %v3663 = vpop.f32.mrf.mxu0
  %v3664 = vadd.f32 0.0, %v3663
  %v3665 = vpop.f32.mrf.mxu0
  %v3666 = vadd.f32 0.0, %v3665
  %3667 = vmatmul.bf16.gmra.mxu0 %v3627
  %v3668 = vpop.f32.mrf.mxu0
  %v3669 = vadd.f32 0.0, %v3668
  %v3670 = vpop.f32.mrf.mxu0
  %v3671 = vadd.f32 0.0, %v3670
  %3672 = vmatmul.bf16.gmra.mxu0 %v3628
  %v3673 = vpop.f32.mrf.mxu0
  %v3674 = vadd.f32 0.0, %v3673
  %v3675 = vpop.f32.mrf.mxu0
  %v3676 = vadd.f32 0.0, %v3675
  %3677 = vmatmul.bf16.gmra.mxu0 %v3629
  %v3678 = vpop.f32.mrf.mxu0
  %v3679 = vadd.f32 0.0, %v3678
  %v3680 = vpop.f32.mrf.mxu0
  %v3681 = vadd.f32 0.0, %v3680
  %3682 = vmatmul.bf16.gmra.mxu0 %v3630
  %v3683 = vpop.f32.mrf.mxu0
  %v3684 = vadd.f32 0.0, %v3683
  %v3685 = vpop.f32.mrf.mxu0
  %v3686 = vadd.f32 0.0, %v3685
  %3687 = vdwg.mxu0
  %v3688 = vpack.c.bf16 %v3651, %v3649
  %v3689 = vpack.c.bf16 %v3656, %v3654
  %v3690 = vpack.c.bf16 %v3661, %v3659
  %v3691 = vpack.c.bf16 %v3666, %v3664
  %v3692 = vpack.c.bf16 %v3671, %v3669
  %v3693 = vpack.c.bf16 %v3676, %v3674
  %v3694 = vpack.c.bf16 %v3681, %v3679
  %v3695 = vpack.c.bf16 %v3686, %v3684
  %s3696 = scalar_lea.vmem %s6, 56
  %v3697 = vld [vmem:[%s3696] sm:$0xf]
  %v3698 = vld [vmem:[%s3696 + $0x4] sm:$0xf]
  %v3701 = vunpack.c.l.b16 %v3697
  %v3702 = vunpack.c.l.b16 %v3698
  %v3703 = vpack.c.b16 %v3702, %v3701
  %v3706 = vsel %vm311, %v3688, 0
  %v3709 = vsel %vm311, %v3689, 0
  %v3712 = vsel %vm311, %v3690, 0
  %v3715 = vsel %vm311, %v3691, 0
  %v3718 = vsel %vm311, %v3692, 0
  %v3721 = vsel %vm311, %v3693, 0
  %v3724 = vsel %vm311, %v3694, 0
  %v3727 = vsel %vm311, %v3695, 0
  %3729 = vmatpush.bf16.msra.mxu0 0
  %3730 = vmatpush.bf16.msra.mxu0 0
  %3731 = vmatpush.bf16.msra.mxu0 0
  %3732 = vmatpush.bf16.msra.mxu0 0
  %3733 = vmatpush.bf16.msra.mxu0 0
  %3734 = vmatpush.bf16.msra.mxu0 0
  %3735 = vmatpush.bf16.msra.mxu0 0
  %3736 = vmatpush.bf16.msra.mxu0 %v3703
  %3737 = vmatmul.bf16.gmra.mxu0 %v3706
  %v3738 = vpop.f32.mrf.mxu0
  %v3739 = vadd.f32 0.0, %v3738
  %v3740 = vpop.f32.mrf.mxu0
  %v3741 = vadd.f32 0.0, %v3740
  %3742 = vmatmul.bf16.gmra.mxu0 %v3709
  %v3743 = vpop.f32.mrf.mxu0
  %v3744 = vadd.f32 0.0, %v3743
  %v3745 = vpop.f32.mrf.mxu0
  %v3746 = vadd.f32 0.0, %v3745
  %3747 = vmatmul.bf16.gmra.mxu0 %v3712
  %v3748 = vpop.f32.mrf.mxu0
  %v3749 = vadd.f32 0.0, %v3748
  %v3750 = vpop.f32.mrf.mxu0
  %v3751 = vadd.f32 0.0, %v3750
  %3752 = vmatmul.bf16.gmra.mxu0 %v3715
  %v3753 = vpop.f32.mrf.mxu0
  %v3754 = vadd.f32 0.0, %v3753
  %v3755 = vpop.f32.mrf.mxu0
  %v3756 = vadd.f32 0.0, %v3755
  %3757 = vmatmul.bf16.gmra.mxu0 %v3718
  %v3758 = vpop.f32.mrf.mxu0
  %v3759 = vadd.f32 0.0, %v3758
  %v3760 = vpop.f32.mrf.mxu0
  %v3761 = vadd.f32 0.0, %v3760
  %3762 = vmatmul.bf16.gmra.mxu0 %v3721
  %v3763 = vpop.f32.mrf.mxu0
  %v3764 = vadd.f32 0.0, %v3763
  %v3765 = vpop.f32.mrf.mxu0
  %v3766 = vadd.f32 0.0, %v3765
  %3767 = vmatmul.bf16.gmra.mxu0 %v3724
  %v3768 = vpop.f32.mrf.mxu0
  %v3769 = vadd.f32 0.0, %v3768
  %v3770 = vpop.f32.mrf.mxu0
  %v3771 = vadd.f32 0.0, %v3770
  %3772 = vmatmul.bf16.gmra.mxu0 %v3727
  %v3773 = vpop.f32.mrf.mxu0
  %v3774 = vadd.f32 0.0, %v3773
  %v3775 = vpop.f32.mrf.mxu0
  %v3776 = vadd.f32 0.0, %v3775
  %3777 = vdwg.mxu0
  %v3778 = vadd.f32 %v3558, %v3739
  %v3779 = vadd.f32 %v3559, %v3741
  %v3780 = vadd.f32 %v3560, %v3744
  %v3781 = vadd.f32 %v3561, %v3746
  %v3782 = vadd.f32 %v3562, %v3749
  %v3783 = vadd.f32 %v3563, %v3751
  %v3784 = vadd.f32 %v3564, %v3754
  %v3785 = vadd.f32 %v3565, %v3756
  %v3786 = vadd.f32 %v3566, %v3759
  %v3787 = vadd.f32 %v3567, %v3761
  %v3788 = vadd.f32 %v3568, %v3764
  %v3789 = vadd.f32 %v3569, %v3766
  %v3790 = vadd.f32 %v3570, %v3769
  %v3791 = vadd.f32 %v3571, %v3771
  %v3792 = vadd.f32 %v3572, %v3774
  %v3793 = vadd.f32 %v3573, %v3776
  %s3794 = scalar_lea.vmem %s5, 512
  %v3795 = vld [vmem:[%s3794] sm:$0xf]
  %v3796 = vld [vmem:[%s3794 + $0x4] sm:$0xf]
  %v3797 = vld [vmem:[%s3794 + $0x8] sm:$0xf]
  %v3798 = vld [vmem:[%s3794 + $0xc] sm:$0xf]
  %v3799 = vld [vmem:[%s3794 + $0x10] sm:$0xf]
  %v3800 = vld [vmem:[%s3794 + $0x14] sm:$0xf]
  %v3801 = vld [vmem:[%s3794 + $0x18] sm:$0xf]
  %v3802 = vld [vmem:[%s3794 + $0x1c] sm:$0xf]
  %v3803 = vld [vmem:[%s3794 + $0x20] sm:$0xf]
  %v3804 = vld [vmem:[%s3794 + $0x24] sm:$0xf]
  %v3805 = vld [vmem:[%s3794 + $0x28] sm:$0xf]
  %v3806 = vld [vmem:[%s3794 + $0x2c] sm:$0xf]
  %v3807 = vld [vmem:[%s3794 + $0x30] sm:$0xf]
  %v3808 = vld [vmem:[%s3794 + $0x34] sm:$0xf]
  %v3809 = vld [vmem:[%s3794 + $0x38] sm:$0xf]
  %v3810 = vld [vmem:[%s3794 + $0x3c] sm:$0xf]
  %v3827 = vunpack.c.l.b16 %v3795
  %v3828 = vunpack.c.l.b16 %v3796
  %v3829 = vunpack.c.l.b16 %v3797
  %v3830 = vunpack.c.l.b16 %v3798
  %v3831 = vunpack.c.l.b16 %v3799
  %v3832 = vunpack.c.l.b16 %v3800
  %v3833 = vunpack.c.l.b16 %v3801
  %v3834 = vunpack.c.l.b16 %v3802
  %v3835 = vunpack.c.l.b16 %v3803
  %v3836 = vunpack.c.l.b16 %v3804
  %v3837 = vunpack.c.l.b16 %v3805
  %v3838 = vunpack.c.l.b16 %v3806
  %v3839 = vunpack.c.l.b16 %v3807
  %v3840 = vunpack.c.l.b16 %v3808
  %v3841 = vunpack.c.l.b16 %v3809
  %v3842 = vunpack.c.l.b16 %v3810
  %v3843 = vpack.c.b16 %v3828, %v3827
  %v3844 = vpack.c.b16 %v3830, %v3829
  %v3845 = vpack.c.b16 %v3832, %v3831
  %v3846 = vpack.c.b16 %v3834, %v3833
  %v3847 = vpack.c.b16 %v3836, %v3835
  %v3848 = vpack.c.b16 %v3838, %v3837
  %v3849 = vpack.c.b16 %v3840, %v3839
  %v3850 = vpack.c.b16 %v3842, %v3841
  %3859 = vmatpush.bf16.msra.mxu0 %v2067
  %3860 = vmatpush.bf16.msra.mxu0 %v2066
  %3861 = vmatpush.bf16.msra.mxu0 %v2065
  %3862 = vmatpush.bf16.msra.mxu0 %v2064
  %3863 = vmatpush.bf16.msra.mxu0 %v2063
  %3864 = vmatpush.bf16.msra.mxu0 %v2062
  %3865 = vmatpush.bf16.msra.mxu0 %v2061
  %3866 = vmatpush.bf16.msra.mxu0 %v2060
  %3867 = vmatmul.bf16.gmra.mxu0 %v3843
  %v3868 = vpop.f32.mrf.mxu0
  %v3869 = vadd.f32 0.0, %v3868
  %v3870 = vpop.f32.mrf.mxu0
  %v3871 = vadd.f32 0.0, %v3870
  %3872 = vmatmul.bf16.gmra.mxu0 %v3844
  %v3873 = vpop.f32.mrf.mxu0
  %v3874 = vadd.f32 0.0, %v3873
  %v3875 = vpop.f32.mrf.mxu0
  %v3876 = vadd.f32 0.0, %v3875
  %3877 = vmatmul.bf16.gmra.mxu0 %v3845
  %v3878 = vpop.f32.mrf.mxu0
  %v3879 = vadd.f32 0.0, %v3878
  %v3880 = vpop.f32.mrf.mxu0
  %v3881 = vadd.f32 0.0, %v3880
  %3882 = vmatmul.bf16.gmra.mxu0 %v3846
  %v3883 = vpop.f32.mrf.mxu0
  %v3884 = vadd.f32 0.0, %v3883
  %v3885 = vpop.f32.mrf.mxu0
  %v3886 = vadd.f32 0.0, %v3885
  %3887 = vmatmul.bf16.gmra.mxu0 %v3847
  %v3888 = vpop.f32.mrf.mxu0
  %v3889 = vadd.f32 0.0, %v3888
  %v3890 = vpop.f32.mrf.mxu0
  %v3891 = vadd.f32 0.0, %v3890
  %3892 = vmatmul.bf16.gmra.mxu0 %v3848
  %v3893 = vpop.f32.mrf.mxu0
  %v3894 = vadd.f32 0.0, %v3893
  %v3895 = vpop.f32.mrf.mxu0
  %v3896 = vadd.f32 0.0, %v3895
  %3897 = vmatmul.bf16.gmra.mxu0 %v3849
  %v3898 = vpop.f32.mrf.mxu0
  %v3899 = vadd.f32 0.0, %v3898
  %v3900 = vpop.f32.mrf.mxu0
  %v3901 = vadd.f32 0.0, %v3900
  %3902 = vmatmul.bf16.gmra.mxu0 %v3850
  %v3903 = vpop.f32.mrf.mxu0
  %v3904 = vadd.f32 0.0, %v3903
  %v3905 = vpop.f32.mrf.mxu0
  %v3906 = vadd.f32 0.0, %v3905
  %3907 = vdwg.mxu0
  %v3908 = vpack.c.bf16 %v3871, %v3869
  %v3909 = vpack.c.bf16 %v3876, %v3874
  %v3910 = vpack.c.bf16 %v3881, %v3879
  %v3911 = vpack.c.bf16 %v3886, %v3884
  %v3912 = vpack.c.bf16 %v3891, %v3889
  %v3913 = vpack.c.bf16 %v3896, %v3894
  %v3914 = vpack.c.bf16 %v3901, %v3899
  %v3915 = vpack.c.bf16 %v3906, %v3904
  %s3916 = scalar_lea.vmem %s6, 64
  %v3917 = vld [vmem:[%s3916] sm:$0xf]
  %v3918 = vld [vmem:[%s3916 + $0x4] sm:$0xf]
  %v3921 = vunpack.c.l.b16 %v3917
  %v3922 = vunpack.c.l.b16 %v3918
  %v3923 = vpack.c.b16 %v3922, %v3921
  %v3926 = vsel %vm311, %v3908, 0
  %v3929 = vsel %vm311, %v3909, 0
  %v3932 = vsel %vm311, %v3910, 0
  %v3935 = vsel %vm311, %v3911, 0
  %v3938 = vsel %vm311, %v3912, 0
  %v3941 = vsel %vm311, %v3913, 0
  %v3944 = vsel %vm311, %v3914, 0
  %v3947 = vsel %vm311, %v3915, 0
  %3949 = vmatpush.bf16.msra.mxu0 0
  %3950 = vmatpush.bf16.msra.mxu0 0
  %3951 = vmatpush.bf16.msra.mxu0 0
  %3952 = vmatpush.bf16.msra.mxu0 0
  %3953 = vmatpush.bf16.msra.mxu0 0
  %3954 = vmatpush.bf16.msra.mxu0 0
  %3955 = vmatpush.bf16.msra.mxu0 0
  %3956 = vmatpush.bf16.msra.mxu0 %v3923
  %3957 = vmatmul.bf16.gmra.mxu0 %v3926
  %v3958 = vpop.f32.mrf.mxu0
  %v3959 = vadd.f32 0.0, %v3958
  %v3960 = vpop.f32.mrf.mxu0
  %v3961 = vadd.f32 0.0, %v3960
  %3962 = vmatmul.bf16.gmra.mxu0 %v3929
  %v3963 = vpop.f32.mrf.mxu0
  %v3964 = vadd.f32 0.0, %v3963
  %v3965 = vpop.f32.mrf.mxu0
  %v3966 = vadd.f32 0.0, %v3965
  %3967 = vmatmul.bf16.gmra.mxu0 %v3932
  %v3968 = vpop.f32.mrf.mxu0
  %v3969 = vadd.f32 0.0, %v3968
  %v3970 = vpop.f32.mrf.mxu0
  %v3971 = vadd.f32 0.0, %v3970
  %3972 = vmatmul.bf16.gmra.mxu0 %v3935
  %v3973 = vpop.f32.mrf.mxu0
  %v3974 = vadd.f32 0.0, %v3973
  %v3975 = vpop.f32.mrf.mxu0
  %v3976 = vadd.f32 0.0, %v3975
  %3977 = vmatmul.bf16.gmra.mxu0 %v3938
  %v3978 = vpop.f32.mrf.mxu0
  %v3979 = vadd.f32 0.0, %v3978
  %v3980 = vpop.f32.mrf.mxu0
  %v3981 = vadd.f32 0.0, %v3980
  %3982 = vmatmul.bf16.gmra.mxu0 %v3941
  %v3983 = vpop.f32.mrf.mxu0
  %v3984 = vadd.f32 0.0, %v3983
  %v3985 = vpop.f32.mrf.mxu0
  %v3986 = vadd.f32 0.0, %v3985
  %3987 = vmatmul.bf16.gmra.mxu0 %v3944
  %v3988 = vpop.f32.mrf.mxu0
  %v3989 = vadd.f32 0.0, %v3988
  %v3990 = vpop.f32.mrf.mxu0
  %v3991 = vadd.f32 0.0, %v3990
  %3992 = vmatmul.bf16.gmra.mxu0 %v3947
  %v3993 = vpop.f32.mrf.mxu0
  %v3994 = vadd.f32 0.0, %v3993
  %v3995 = vpop.f32.mrf.mxu0
  %v3996 = vadd.f32 0.0, %v3995
  %3997 = vdwg.mxu0
  %v3998 = vadd.f32 %v3778, %v3959
  %v3999 = vadd.f32 %v3779, %v3961
  %v4000 = vadd.f32 %v3780, %v3964
  %v4001 = vadd.f32 %v3781, %v3966
  %v4002 = vadd.f32 %v3782, %v3969
  %v4003 = vadd.f32 %v3783, %v3971
  %v4004 = vadd.f32 %v3784, %v3974
  %v4005 = vadd.f32 %v3785, %v3976
  %v4006 = vadd.f32 %v3786, %v3979
  %v4007 = vadd.f32 %v3787, %v3981
  %v4008 = vadd.f32 %v3788, %v3984
  %v4009 = vadd.f32 %v3789, %v3986
  %v4010 = vadd.f32 %v3790, %v3989
  %v4011 = vadd.f32 %v3791, %v3991
  %v4012 = vadd.f32 %v3792, %v3994
  %v4013 = vadd.f32 %v3793, %v3996
  %v4014 = vld [vmem:[%s7] sm:$0x1]
  %v4016 = vperm.slane %v4014, 0
  %v4018 = vmul.f32 %v3998, %v4016
  %v4019 = vmul.f32 %v3999, %v4016
  %v4020 = vmul.f32 %v4000, %v4016
  %v4021 = vmul.f32 %v4001, %v4016
  %v4022 = vmul.f32 %v4002, %v4016
  %v4023 = vmul.f32 %v4003, %v4016
  %v4024 = vmul.f32 %v4004, %v4016
  %v4025 = vmul.f32 %v4005, %v4016
  %v4026 = vmul.f32 %v4006, %v4016
  %v4027 = vmul.f32 %v4007, %v4016
  %v4028 = vmul.f32 %v4008, %v4016
  %v4029 = vmul.f32 %v4009, %v4016
  %v4030 = vmul.f32 %v4010, %v4016
  %v4031 = vmul.f32 %v4011, %v4016
  %v4032 = vmul.f32 %v4012, %v4016
  %v4033 = vmul.f32 %v4013, %v4016
  %v4034 = vld [vmem:[%s8] sm:$0x1]
  %v4036 = vperm.slane %v4034, 0
  %v4038 = vadd.f32 %v4018, %v4036
  %v4039 = vadd.f32 %v4019, %v4036
  %v4040 = vadd.f32 %v4020, %v4036
  %v4041 = vadd.f32 %v4021, %v4036
  %v4042 = vadd.f32 %v4022, %v4036
  %v4043 = vadd.f32 %v4023, %v4036
  %v4044 = vadd.f32 %v4024, %v4036
  %v4045 = vadd.f32 %v4025, %v4036
  %v4046 = vadd.f32 %v4026, %v4036
  %v4047 = vadd.f32 %v4027, %v4036
  %v4048 = vadd.f32 %v4028, %v4036
  %v4049 = vadd.f32 %v4029, %v4036
  %v4050 = vadd.f32 %v4030, %v4036
  %v4051 = vadd.f32 %v4031, %v4036
  %v4052 = vadd.f32 %v4032, %v4036
  %v4053 = vadd.f32 %v4033, %v4036
  %v4054 = vadd.f32 %v4038, %v33
  %v4055 = vadd.f32 %v4039, %v34
  %v4056 = vadd.f32 %v4040, %v35
  %v4057 = vadd.f32 %v4041, %v36
  %v4058 = vadd.f32 %v4042, %v37
  %v4059 = vadd.f32 %v4043, %v38
  %v4060 = vadd.f32 %v4044, %v39
  %v4061 = vadd.f32 %v4045, %v40
  %v4062 = vadd.f32 %v4046, %v41
  %v4063 = vadd.f32 %v4047, %v42
  %v4064 = vadd.f32 %v4048, %v43
  %v4065 = vadd.f32 %v4049, %v44
  %v4066 = vadd.f32 %v4050, %v45
  %v4067 = vadd.f32 %v4051, %v46
  %v4068 = vadd.f32 %v4052, %v47
  %v4069 = vadd.f32 %v4053, %v48
  %v4070 = vmax.f32 %v4054, 0.0
  %v4071 = vmax.f32 %v4055, 0.0
  %v4072 = vmax.f32 %v4056, 0.0
  %v4073 = vmax.f32 %v4057, 0.0
  %v4074 = vmax.f32 %v4058, 0.0
  %v4075 = vmax.f32 %v4059, 0.0
  %v4076 = vmax.f32 %v4060, 0.0
  %v4077 = vmax.f32 %v4061, 0.0
  %v4078 = vmax.f32 %v4062, 0.0
  %v4079 = vmax.f32 %v4063, 0.0
  %v4080 = vmax.f32 %v4064, 0.0
  %v4081 = vmax.f32 %v4065, 0.0
  %v4082 = vmax.f32 %v4066, 0.0
  %v4083 = vmax.f32 %v4067, 0.0
  %v4084 = vmax.f32 %v4068, 0.0
  %v4085 = vmax.f32 %v4069, 0.0
  %4086 = vst.msk [vmem:[%s9] sm:$0xff] %vm311, %v4070
  %4087 = vst.msk [vmem:[%s9 + $0x8] sm:$0xff] %vm311, %v4071
  %4088 = vst.msk [vmem:[%s9 + $0x10] sm:$0xff] %vm311, %v4072
  %4089 = vst.msk [vmem:[%s9 + $0x18] sm:$0xff] %vm311, %v4073
  %4090 = vst.msk [vmem:[%s9 + $0x20] sm:$0xff] %vm311, %v4074
  %4091 = vst.msk [vmem:[%s9 + $0x28] sm:$0xff] %vm311, %v4075
  %4092 = vst.msk [vmem:[%s9 + $0x30] sm:$0xff] %vm311, %v4076
  %4093 = vst.msk [vmem:[%s9 + $0x38] sm:$0xff] %vm311, %v4077
  %4094 = vst.msk [vmem:[%s9 + $0x40] sm:$0xff] %vm311, %v4078
  %4095 = vst.msk [vmem:[%s9 + $0x48] sm:$0xff] %vm311, %v4079
  %4096 = vst.msk [vmem:[%s9 + $0x50] sm:$0xff] %vm311, %v4080
  %4097 = vst.msk [vmem:[%s9 + $0x58] sm:$0xff] %vm311, %v4081
  %4098 = vst.msk [vmem:[%s9 + $0x60] sm:$0xff] %vm311, %v4082
  %4099 = vst.msk [vmem:[%s9 + $0x68] sm:$0xff] %vm311, %v4083
  %4100 = vst.msk [vmem:[%s9 + $0x70] sm:$0xff] %vm311, %v4084
  %4101 = vst.msk [vmem:[%s9 + $0x78] sm:$0xff] %vm311, %v4085
  // Predicated region
  $region38: #{backbone_forward.6} parent=0 // pred_check
    _
  $region39: #{backbone_forward.6} parent=0 // pred_check_branch
    %4103 = sbr.rel (0) target = $region41
  $region40: #{backbone_forward.6} parent=0 // pred_region
    _
  $region41: #{backbone_forward.6} parent=0 // pred_fallthru
    _
  // Predicated region
  $region42: #{backbone_forward.6} parent=0 // pred_check
    _
  $region43: #{backbone_forward.6} parent=0 // pred_check_branch
    %4105 = sbr.rel (0) target = $region45
  $region44: #{backbone_forward.6} parent=0 // pred_region
    _
  $region45: #{backbone_forward.6} parent=0 // pred_fallthru
    _

// kernel: backbone_forward.9
$region0: #{backbone_forward.9}
  #allocation0 [shape = 'u32[]', space=smem, size = 0x4, offset = 0x4, fixed_abs, tag = 'smem constant byte address 0x4 - core index']
  #allocation1 [shape = 'u32[72,128]{1,0:T(1,128)}', space=vmem, size = 0x9000, scoped, tag = 'internal scratch']
  %s0 = inlined_call_operand.vmem [shape: f32[8,64], index: 0, kind: input, shape index: {}]
  %s1 = inlined_call_operand.vmem [shape: bf16[9,8,8], index: 1, kind: input, shape index: {}, may-alias: {1,5}]
  %s2 = inlined_call_operand.vmem [shape: bf16[9,64,128], index: 2, kind: input, shape index: {}]
  %s3 = inlined_call_operand.vmem [shape: f32[1,128], index: 3, kind: input, shape index: {}]
  %s4 = inlined_call_operand.vmem [shape: f32[1,128], index: 4, kind: input, shape index: {}]
  %s5 = inlined_call_operand.vmem [shape: bf16[9,8,8], index: 5, kind: input, shape index: {}, may-alias: {1,5}]
  %s6 = inlined_call_operand.vmem [shape: bf16[9,128,128], index: 6, kind: input, shape index: {}]
  %s7 = inlined_call_operand.vmem [shape: f32[1,128], index: 7, kind: input, shape index: {}]
  %s8 = inlined_call_operand.vmem [shape: f32[1,128], index: 8, kind: input, shape index: {}]
  %s9 = inlined_call_operand.vmem [shape: bf16[8,8], index: 9, kind: input, shape index: {}]
  %s10 = inlined_call_operand.vmem [shape: bf16[64,128], index: 10, kind: input, shape index: {}]
  %s11 = inlined_call_operand.hbm [shape: f32[1,128], index: 11, kind: input, shape index: {}]
  %s12 = inlined_call_operand.hbm [shape: f32[1,128], index: 12, kind: input, shape index: {}]
  %s13 = inlined_call_operand.hbm [shape: f32[8,128], index: 13, kind: output, shape index: {}]
  %s14 = sld [smem:[#allocation0]]
  $region70: #{backbone_forward.9} parent=0
    _
  %s16 = ssub.s32 1, %s14
  %s17 = scalar_select 0, %s16, %s14
  $region1: #{backbone_forward.9} parent=0
    #allocation2 [shape = 'u8[512]{0}', space=vmem, size = 0x400, scoped, tag = 'input window, operand 11, single buffered']
    #allocation3 [shape = 's32[1]{0}', space=sflag, size = 0x4, scoped, tag = 'scoped memory for backbone_forward.9']
    #allocation4 [shape = 's32[1]{0}', space=sflag, size = 0x4, scoped, tag = 'scoped memory for backbone_forward.9']
    #allocation5 [shape = 'u8[512]{0}', space=vmem, size = 0x400, scoped, tag = 'input window, operand 12, single buffered']
    #allocation6 [shape = 's32[1]{0}', space=sflag, size = 0x4, scoped, tag = 'scoped memory for backbone_forward.9']
    #allocation7 [shape = 'u8[4096]{0}', space=vmem, size = 0x1000, scoped, tag = 'output window, operand 0, single buffered']
    %18 = vsyncpa [#allocation3], 0
    %19 = vsyncpa [#allocation6], 0
    %20 = vsyncpa [#allocation4], 0
    // Predicated region
    $region2: #{backbone_forward.9} parent=1 // pred_check
      _
    $region3: #{backbone_forward.9} parent=1 // pred_check_branch
      %22 = sbr.rel (0) target = $region5
    $region4: #{backbone_forward.9} parent=1 // pred_region
      _
    $region5: #{backbone_forward.9} parent=1 // pred_fallthru
      _
    // Predicated region
    $region6: #{backbone_forward.9} parent=1 // pred_check
      _
    $region7: #{backbone_forward.9} parent=1 // pred_check_branch
      %24 = sbr.rel (0) target = $region9
    $region8: #{backbone_forward.9} parent=1 // pred_region
      _
    $region9: #{backbone_forward.9} parent=1 // pred_fallthru
      _
    // Predicated region
    $region10: #{backbone_forward.9} parent=1 // pred_check
      _
    $region11: #{backbone_forward.9} parent=1 // pred_check_branch
      %26 = sbr.rel (0) target = $region13
    $region12: #{backbone_forward.9} parent=1 // pred_region
      _
    $region13: #{backbone_forward.9} parent=1 // pred_fallthru
      _
    // Predicated region
    $region14: #{backbone_forward.9} parent=1 // pred_check
      _
    $region15: #{backbone_forward.9} parent=1 // pred_check_branch
      %28 = sbr.rel (0) target = $region17
    $region16: #{backbone_forward.9} parent=1 // pred_region
      _
    $region17: #{backbone_forward.9} parent=1 // pred_fallthru
      _
    // Predicated region
    $region18: #{backbone_forward.9} parent=1 // pred_check
      _
    $region19: #{backbone_forward.9} parent=1 // pred_check_branch
      %30 = sbr.rel (0) target = $region21
    $region20: #{backbone_forward.9} parent=1 // pred_region
      _
    $region21: #{backbone_forward.9} parent=1 // pred_fallthru
      _
    // Predicated region
    $region22: #{backbone_forward.9} parent=1 // pred_check
      _
    $region23: #{backbone_forward.9} parent=1 // pred_check_branch
      %32 = sbr.rel (0) target = $region25
    $region24: #{backbone_forward.9} parent=1 // pred_region
      _
    $region25: #{backbone_forward.9} parent=1 // pred_fallthru
      _
    // Predicated region
    $region26: #{backbone_forward.9} parent=1 // pred_check
      _
    $region27: #{backbone_forward.9} parent=1 // pred_check_branch
      %34 = sbr.rel (0) target = $region29
    $region28: #{backbone_forward.9} parent=1 // pred_region
      _
    $region29: #{backbone_forward.9} parent=1 // pred_fallthru
      _
    // Predicated region
    $region30: #{backbone_forward.9} parent=1 // pred_check
      _
    $region31: #{backbone_forward.9} parent=1 // pred_check_branch
      %36 = sbr.rel (0) target = $region33
    $region32: #{backbone_forward.9} parent=1 // pred_region
      _
    $region33: #{backbone_forward.9} parent=1 // pred_fallthru
      _
    // Predicated region
    $region34: #{backbone_forward.9} parent=1 // pred_check
      _
    $region35: #{backbone_forward.9} parent=1 // pred_check_branch
      %38 = sbr.rel (0) target = $region37
    $region36: #{backbone_forward.9} parent=1 // pred_region
      _
    $region37: #{backbone_forward.9} parent=1 // pred_fallthru
      _
    // Predicated region
    $region38: #{backbone_forward.9} parent=1 // pred_check
      _
    $region39: #{backbone_forward.9} parent=1 // pred_check_branch
      %40 = sbr.rel (0) target = $region41
    $region40: #{backbone_forward.9} parent=1 // pred_region
      _
    $region41: #{backbone_forward.9} parent=1 // pred_fallthru
      _
    // Predicated region
    $region42: #{backbone_forward.9} parent=1 // pred_check
      _
    $region43: #{backbone_forward.9} parent=1 // pred_check_branch
      %42 = sbr.rel (0) target = $region45
    $region44: #{backbone_forward.9} parent=1 // pred_region
      _
    $region45: #{backbone_forward.9} parent=1 // pred_fallthru
      _
    // Predicated region
    $region46: #{backbone_forward.9} parent=1 // pred_check
      _
    $region47: #{backbone_forward.9} parent=1 // pred_check_branch
      %44 = sbr.rel (0) target = $region49
    $region48: #{backbone_forward.9} parent=1 // pred_region
      %46 = vsyncadd [#allocation3], 0
      %s48 = sshll.u32 %s11, 4
      %s49 = int_to_ptr.hbm [resolvable:$true] %s48
      %s50 = sshll.u32 [#allocation2], 4
      %s51 = int_to_ptr.vmem [resolvable:$true] %s50
      %53 = dma.hbm_to_vmem [thread:$0]  %s49, 16, %s51, [#allocation3]
    $region49: #{backbone_forward.9} parent=1 // pred_fallthru
      _
    // Predicated region
    $region50: #{backbone_forward.9} parent=1 // pred_check
      _
    $region51: #{backbone_forward.9} parent=1 // pred_check_branch
      %55 = sbr.rel (0) target = $region53
    $region52: #{backbone_forward.9} parent=1 // pred_region
      %57 = vsyncadd [#allocation6], 0
      %s59 = sshll.u32 %s12, 4
      %s60 = int_to_ptr.hbm [resolvable:$true] %s59
      %s61 = sshll.u32 [#allocation5], 4
      %s62 = int_to_ptr.vmem [resolvable:$true] %s61
      %64 = dma.hbm_to_vmem [thread:$0]  %s60, 16, %s62, [#allocation6]
    $region53: #{backbone_forward.9} parent=1 // pred_fallthru
      _
    // Predicated region
    $region54: #{backbone_forward.9} parent=1 // pred_check
      _
    $region55: #{backbone_forward.9} parent=1 // pred_check_branch
      %66 = sbr.rel (0) target = $region57
    $region56: #{backbone_forward.9} parent=1 // pred_region
      %68 = dma.done [#allocation3], 16
    $region57: #{backbone_forward.9} parent=1 // pred_fallthru
      _
    // Predicated region
    $region58: #{backbone_forward.9} parent=1 // pred_check
      _
    $region59: #{backbone_forward.9} parent=1 // pred_check_branch
      %70 = sbr.rel (0) target = $region61
    $region60: #{backbone_forward.9} parent=1 // pred_region
      %72 = dma.done [#allocation6], 16
    $region61: #{backbone_forward.9} parent=1 // pred_fallthru
      _
    %v74 = vld [vmem:[%s0] sm:$0xff]
    %v75 = vpack.c.bf16 %v74, %v74
    %v76 = vld [vmem:[%s1] sm:$0xf]
    %vm77 = vcmask 64512
    %v79 = vsel %vm77, %v76, 0
    %vm81 = vcmask 1043456
    %v83 = vsel %vm81, %v75, 0
    %85 = vmatpush.bf16.msra.mxu0 0
    %86 = vmatpush.bf16.msra.mxu0 0
    %87 = vmatpush.bf16.msra.mxu0 0
    %88 = vmatpush.bf16.msra.mxu0 0
    %89 = vmatpush.bf16.msra.mxu0 0
    %90 = vmatpush.bf16.msra.mxu0 0
    %91 = vmatpush.bf16.msra.mxu0 0
    %92 = vmatpush.bf16.msra.mxu0 %v83
    %93 = vmatmul.bf16.gmra.mxu0 %v79
    %v94 = vpop.f32.mrf.mxu0
    %v95 = vadd.f32 0.0, %v94
    %v96 = vpop.f32.mrf.mxu0
    %97 = vdwg.mxu0
    %v98 = vpack.c.bf16 %v95, %v95
    %v99 = vld [vmem:[%s2] sm:$0xf]
    %v100 = vld [vmem:[%s2 + $0x4] sm:$0xf]
    %v101 = vld [vmem:[%s2 + $0x8] sm:$0xf]
    %v102 = vld [vmem:[%s2 + $0xc] sm:$0xf]
    %v103 = vld [vmem:[%s2 + $0x10] sm:$0xf]
    %v104 = vld [vmem:[%s2 + $0x14] sm:$0xf]
    %v105 = vld [vmem:[%s2 + $0x18] sm:$0xf]
    %v106 = vld [vmem:[%s2 + $0x1c] sm:$0xf]
    %s107 = scalar_lea.vmem %s1, 4
    %v108 = vld [vmem:[%s107] sm:$0xf]
    %v110 = vsel %vm77, %v108, 0
    %112 = vmatpush.bf16.msra.mxu0 0
    %113 = vmatpush.bf16.msra.mxu0 0
    %114 = vmatpush.bf16.msra.mxu0 0
    %115 = vmatpush.bf16.msra.mxu0 0
    %116 = vmatpush.bf16.msra.mxu0 0
    %117 = vmatpush.bf16.msra.mxu0 0
    %118 = vmatpush.bf16.msra.mxu0 0
    %119 = vmatpush.bf16.msra.mxu0 %v83
    %120 = vmatmul.bf16.gmra.mxu0 %v110
    %v121 = vpop.f32.mrf.mxu0
    %v122 = vadd.f32 0.0, %v121
    %v123 = vpop.f32.mrf.mxu0
    %124 = vdwg.mxu0
    %v125 = vpack.c.bf16 %v122, %v122
    %s126 = scalar_lea.vmem %s2, 32
    %v127 = vld [vmem:[%s126] sm:$0xf]
    %v128 = vld [vmem:[%s126 + $0x4] sm:$0xf]
    %v129 = vld [vmem:[%s126 + $0x8] sm:$0xf]
    %v130 = vld [vmem:[%s126 + $0xc] sm:$0xf]
    %v131 = vld [vmem:[%s126 + $0x10] sm:$0xf]
    %v132 = vld [vmem:[%s126 + $0x14] sm:$0xf]
    %v133 = vld [vmem:[%s126 + $0x18] sm:$0xf]
    %v134 = vld [vmem:[%s126 + $0x1c] sm:$0xf]
    %v143 = vunpack.c.l.b16 %v127
    %v144 = vunpack.c.l.b16 %v128
    %v145 = vunpack.c.l.b16 %v129
    %v146 = vunpack.c.l.b16 %v130
    %v147 = vunpack.c.l.b16 %v131
    %v148 = vunpack.c.l.b16 %v132
    %v149 = vunpack.c.l.b16 %v133
    %v150 = vunpack.c.l.b16 %v134
    %v151 = vpack.c.b16 %v144, %v143
    %v152 = vpack.c.b16 %v146, %v145
    %v153 = vpack.c.b16 %v148, %v147
    %v154 = vpack.c.b16 %v150, %v149
    %vm159 = vcmask 523264
    %v161 = vsel %vm159, %v125, 0
    %163 = vmatpush.bf16.msra.mxu0 0
    %164 = vmatpush.bf16.msra.mxu0 0
    %165 = vmatpush.bf16.msra.mxu0 0
    %166 = vmatpush.bf16.msra.mxu0 0
    %167 = vmatpush.bf16.msra.mxu0 %v154
    %168 = vmatpush.bf16.msra.mxu0 %v153
    %169 = vmatpush.bf16.msra.mxu0 %v152
    %170 = vmatpush.bf16.msra.mxu0 %v151
    %171 = vmatmul.bf16.gmra.mxu0 %v161
    %v172 = vpop.f32.mrf.mxu0
    %v173 = vadd.f32 0.0, %v172
    %v174 = vpop.f32.mrf.mxu0
    %175 = vdwg.mxu0
    %v184 = vunpack.c.l.b16 %v99
    %v185 = vunpack.c.l.b16 %v100
    %v186 = vunpack.c.l.b16 %v101
    %v187 = vunpack.c.l.b16 %v102
    %v188 = vunpack.c.l.b16 %v103
    %v189 = vunpack.c.l.b16 %v104
    %v190 = vunpack.c.l.b16 %v105
    %v191 = vunpack.c.l.b16 %v106
    %v192 = vpack.c.b16 %v185, %v184
    %v193 = vpack.c.b16 %v187, %v186
    %v194 = vpack.c.b16 %v189, %v188
    %v195 = vpack.c.b16 %v191, %v190
    %v201 = vsel %vm159, %v98, 0
    %203 = vmatpush.bf16.msra.mxu0 0
    %204 = vmatpush.bf16.msra.mxu0 0
    %205 = vmatpush.bf16.msra.mxu0 0
    %206 = vmatpush.bf16.msra.mxu0 0
    %207 = vmatpush.bf16.msra.mxu0 %v195
    %208 = vmatpush.bf16.msra.mxu0 %v194
    %209 = vmatpush.bf16.msra.mxu0 %v193
    %210 = vmatpush.bf16.msra.mxu0 %v192
    %211 = vmatmul.bf16.gmra.mxu0 %v201
    %v212 = vpop.f32.mrf.mxu0
    %v213 = vadd.f32 %v173, %v212
    %v214 = vpop.f32.mrf.mxu0
    %215 = vdwg.mxu0
    %s216 = scalar_lea.vmem %s1, 8
    %v217 = vld [vmem:[%s216] sm:$0xf]
    %v219 = vsel %vm77, %v217, 0
    %221 = vmatpush.bf16.msra.mxu0 0
    %222 = vmatpush.bf16.msra.mxu0 0
    %223 = vmatpush.bf16.msra.mxu0 0
    %224 = vmatpush.bf16.msra.mxu0 0
    %225 = vmatpush.bf16.msra.mxu0 0
    %226 = vmatpush.bf16.msra.mxu0 0
    %227 = vmatpush.bf16.msra.mxu0 0
    %228 = vmatpush.bf16.msra.mxu0 %v83
    %229 = vmatmul.bf16.gmra.mxu0 %v219
    %v230 = vpop.f32.mrf.mxu0
    %v231 = vadd.f32 0.0, %v230
    %v232 = vpop.f32.mrf.mxu0
    %233 = vdwg.mxu0
    %v234 = vpack.c.bf16 %v231, %v231
    %s235 = scalar_lea.vmem %s2, 64
    %v236 = vld [vmem:[%s235] sm:$0xf]
    %v237 = vld [vmem:[%s235 + $0x4] sm:$0xf]
    %v238 = vld [vmem:[%s235 + $0x8] sm:$0xf]
    %v239 = vld [vmem:[%s235 + $0xc] sm:$0xf]
    %v240 = vld [vmem:[%s235 + $0x10] sm:$0xf]
    %v241 = vld [vmem:[%s235 + $0x14] sm:$0xf]
    %v242 = vld [vmem:[%s235 + $0x18] sm:$0xf]
    %v243 = vld [vmem:[%s235 + $0x1c] sm:$0xf]
    %v252 = vunpack.c.l.b16 %v236
    %v253 = vunpack.c.l.b16 %v237
    %v254 = vunpack.c.l.b16 %v238
    %v255 = vunpack.c.l.b16 %v239
    %v256 = vunpack.c.l.b16 %v240
    %v257 = vunpack.c.l.b16 %v241
    %v258 = vunpack.c.l.b16 %v242
    %v259 = vunpack.c.l.b16 %v243
    %v260 = vpack.c.b16 %v253, %v252
    %v261 = vpack.c.b16 %v255, %v254
    %v262 = vpack.c.b16 %v257, %v256
    %v263 = vpack.c.b16 %v259, %v258
    %v269 = vsel %vm159, %v234, 0
    %271 = vmatpush.bf16.msra.mxu0 0
    %272 = vmatpush.bf16.msra.mxu0 0
    %273 = vmatpush.bf16.msra.mxu0 0
    %274 = vmatpush.bf16.msra.mxu0 0
    %275 = vmatpush.bf16.msra.mxu0 %v263
    %276 = vmatpush.bf16.msra.mxu0 %v262
    %277 = vmatpush.bf16.msra.mxu0 %v261
    %278 = vmatpush.bf16.msra.mxu0 %v260
    %279 = vmatmul.bf16.gmra.mxu0 %v269
    %v280 = vpop.f32.mrf.mxu0
    %v281 = vadd.f32 0.0, %v280
    %v282 = vpop.f32.mrf.mxu0
    %283 = vdwg.mxu0
    %v284 = vadd.f32 %v213, %v281
    %s285 = scalar_lea.vmem %s1, 12
    %v286 = vld [vmem:[%s285] sm:$0xf]
    %v288 = vsel %vm77, %v286, 0
    %290 = vmatpush.bf16.msra.mxu0 0
    %291 = vmatpush.bf16.msra.mxu0 0
    %292 = vmatpush.bf16.msra.mxu0 0
    %293 = vmatpush.bf16.msra.mxu0 0
    %294 = vmatpush.bf16.msra.mxu0 0
    %295 = vmatpush.bf16.msra.mxu0 0
    %296 = vmatpush.bf16.msra.mxu0 0
    %297 = vmatpush.bf16.msra.mxu0 %v83
    %298 = vmatmul.bf16.gmra.mxu0 %v288
    %v299 = vpop.f32.mrf.mxu0
    %v300 = vadd.f32 0.0, %v299
    %v301 = vpop.f32.mrf.mxu0
    %302 = vdwg.mxu0
    %v303 = vpack.c.bf16 %v300, %v300
    %s304 = scalar_lea.vmem %s2, 96
    %v305 = vld [vmem:[%s304] sm:$0xf]
    %v306 = vld [vmem:[%s304 + $0x4] sm:$0xf]
    %v307 = vld [vmem:[%s304 + $0x8] sm:$0xf]
    %v308 = vld [vmem:[%s304 + $0xc] sm:$0xf]
    %v309 = vld [vmem:[%s304 + $0x10] sm:$0xf]
    %v310 = vld [vmem:[%s304 + $0x14] sm:$0xf]
    %v311 = vld [vmem:[%s304 + $0x18] sm:$0xf]
    %v312 = vld [vmem:[%s304 + $0x1c] sm:$0xf]
    %v321 = vunpack.c.l.b16 %v305
    %v322 = vunpack.c.l.b16 %v306
    %v323 = vunpack.c.l.b16 %v307
    %v324 = vunpack.c.l.b16 %v308
    %v325 = vunpack.c.l.b16 %v309
    %v326 = vunpack.c.l.b16 %v310
    %v327 = vunpack.c.l.b16 %v311
    %v328 = vunpack.c.l.b16 %v312
    %v329 = vpack.c.b16 %v322, %v321
    %v330 = vpack.c.b16 %v324, %v323
    %v331 = vpack.c.b16 %v326, %v325
    %v332 = vpack.c.b16 %v328, %v327
    %v338 = vsel %vm159, %v303, 0
    %340 = vmatpush.bf16.msra.mxu0 0
    %341 = vmatpush.bf16.msra.mxu0 0
    %342 = vmatpush.bf16.msra.mxu0 0
    %343 = vmatpush.bf16.msra.mxu0 0
    %344 = vmatpush.bf16.msra.mxu0 %v332
    %345 = vmatpush.bf16.msra.mxu0 %v331
    %346 = vmatpush.bf16.msra.mxu0 %v330
    %347 = vmatpush.bf16.msra.mxu0 %v329
    %348 = vmatmul.bf16.gmra.mxu0 %v338
    %v349 = vpop.f32.mrf.mxu0
    %v350 = vadd.f32 0.0, %v349
    %v351 = vpop.f32.mrf.mxu0
    %352 = vdwg.mxu0
    %v353 = vadd.f32 %v284, %v350
    %s354 = scalar_lea.vmem %s1, 16
    %v355 = vld [vmem:[%s354] sm:$0xf]
    %v357 = vsel %vm77, %v355, 0
    %359 = vmatpush.bf16.msra.mxu0 0
    %360 = vmatpush.bf16.msra.mxu0 0
    %361 = vmatpush.bf16.msra.mxu0 0
    %362 = vmatpush.bf16.msra.mxu0 0
    %363 = vmatpush.bf16.msra.mxu0 0
    %364 = vmatpush.bf16.msra.mxu0 0
    %365 = vmatpush.bf16.msra.mxu0 0
    %366 = vmatpush.bf16.msra.mxu0 %v83
    %367 = vmatmul.bf16.gmra.mxu0 %v357
    %v368 = vpop.f32.mrf.mxu0
    %v369 = vadd.f32 0.0, %v368
    %v370 = vpop.f32.mrf.mxu0
    %371 = vdwg.mxu0
    %v372 = vpack.c.bf16 %v369, %v369
    %s373 = scalar_lea.vmem %s2, 128
    %v374 = vld [vmem:[%s373] sm:$0xf]
    %v375 = vld [vmem:[%s373 + $0x4] sm:$0xf]
    %v376 = vld [vmem:[%s373 + $0x8] sm:$0xf]
    %v377 = vld [vmem:[%s373 + $0xc] sm:$0xf]
    %v378 = vld [vmem:[%s373 + $0x10] sm:$0xf]
    %v379 = vld [vmem:[%s373 + $0x14] sm:$0xf]
    %v380 = vld [vmem:[%s373 + $0x18] sm:$0xf]
    %v381 = vld [vmem:[%s373 + $0x1c] sm:$0xf]
    %v390 = vunpack.c.l.b16 %v374
    %v391 = vunpack.c.l.b16 %v375
    %v392 = vunpack.c.l.b16 %v376
    %v393 = vunpack.c.l.b16 %v377
    %v394 = vunpack.c.l.b16 %v378
    %v395 = vunpack.c.l.b16 %v379
    %v396 = vunpack.c.l.b16 %v380
    %v397 = vunpack.c.l.b16 %v381
    %v398 = vpack.c.b16 %v391, %v390
    %v399 = vpack.c.b16 %v393, %v392
    %v400 = vpack.c.b16 %v395, %v394
    %v401 = vpack.c.b16 %v397, %v396
    %v407 = vsel %vm159, %v372, 0
    %409 = vmatpush.bf16.msra.mxu0 0
    %410 = vmatpush.bf16.msra.mxu0 0
    %411 = vmatpush.bf16.msra.mxu0 0
    %412 = vmatpush.bf16.msra.mxu0 0
    %413 = vmatpush.bf16.msra.mxu0 %v401
    %414 = vmatpush.bf16.msra.mxu0 %v400
    %415 = vmatpush.bf16.msra.mxu0 %v399
    %416 = vmatpush.bf16.msra.mxu0 %v398
    %417 = vmatmul.bf16.gmra.mxu0 %v407
    %v418 = vpop.f32.mrf.mxu0
    %v419 = vadd.f32 0.0, %v418
    %v420 = vpop.f32.mrf.mxu0
    %421 = vdwg.mxu0
    %v422 = vadd.f32 %v353, %v419
    %s423 = scalar_lea.vmem %s1, 20
    %v424 = vld [vmem:[%s423] sm:$0xf]
    %v426 = vsel %vm77, %v424, 0
    %428 = vmatpush.bf16.msra.mxu0 0
    %429 = vmatpush.bf16.msra.mxu0 0
    %430 = vmatpush.bf16.msra.mxu0 0
    %431 = vmatpush.bf16.msra.mxu0 0
    %432 = vmatpush.bf16.msra.mxu0 0
    %433 = vmatpush.bf16.msra.mxu0 0
    %434 = vmatpush.bf16.msra.mxu0 0
    %435 = vmatpush.bf16.msra.mxu0 %v83
    %436 = vmatmul.bf16.gmra.mxu0 %v426
    %v437 = vpop.f32.mrf.mxu0
    %v438 = vadd.f32 0.0, %v437
    %v439 = vpop.f32.mrf.mxu0
    %440 = vdwg.mxu0
    %v441 = vpack.c.bf16 %v438, %v438
    %s442 = scalar_lea.vmem %s2, 160
    %v443 = vld [vmem:[%s442] sm:$0xf]
    %v444 = vld [vmem:[%s442 + $0x4] sm:$0xf]
    %v445 = vld [vmem:[%s442 + $0x8] sm:$0xf]
    %v446 = vld [vmem:[%s442 + $0xc] sm:$0xf]
    %v447 = vld [vmem:[%s442 + $0x10] sm:$0xf]
    %v448 = vld [vmem:[%s442 + $0x14] sm:$0xf]
    %v449 = vld [vmem:[%s442 + $0x18] sm:$0xf]
    %v450 = vld [vmem:[%s442 + $0x1c] sm:$0xf]
    %v459 = vunpack.c.l.b16 %v443
    %v460 = vunpack.c.l.b16 %v444
    %v461 = vunpack.c.l.b16 %v445
    %v462 = vunpack.c.l.b16 %v446
    %v463 = vunpack.c.l.b16 %v447
    %v464 = vunpack.c.l.b16 %v448
    %v465 = vunpack.c.l.b16 %v449
    %v466 = vunpack.c.l.b16 %v450
    %v467 = vpack.c.b16 %v460, %v459
    %v468 = vpack.c.b16 %v462, %v461
    %v469 = vpack.c.b16 %v464, %v463
    %v470 = vpack.c.b16 %v466, %v465
    %v476 = vsel %vm159, %v441, 0
    %478 = vmatpush.bf16.msra.mxu0 0
    %479 = vmatpush.bf16.msra.mxu0 0
    %480 = vmatpush.bf16.msra.mxu0 0
    %481 = vmatpush.bf16.msra.mxu0 0
    %482 = vmatpush.bf16.msra.mxu0 %v470
    %483 = vmatpush.bf16.msra.mxu0 %v469
    %484 = vmatpush.bf16.msra.mxu0 %v468
    %485 = vmatpush.bf16.msra.mxu0 %v467
    %486 = vmatmul.bf16.gmra.mxu0 %v476
    %v487 = vpop.f32.mrf.mxu0
    %v488 = vadd.f32 0.0, %v487
    %v489 = vpop.f32.mrf.mxu0
    %490 = vdwg.mxu0
    %v491 = vadd.f32 %v422, %v488
    %s492 = scalar_lea.vmem %s1, 24
    %v493 = vld [vmem:[%s492] sm:$0xf]
    %v495 = vsel %vm77, %v493, 0
    %497 = vmatpush.bf16.msra.mxu0 0
    %498 = vmatpush.bf16.msra.mxu0 0
    %499 = vmatpush.bf16.msra.mxu0 0
    %500 = vmatpush.bf16.msra.mxu0 0
    %501 = vmatpush.bf16.msra.mxu0 0
    %502 = vmatpush.bf16.msra.mxu0 0
    %503 = vmatpush.bf16.msra.mxu0 0
    %504 = vmatpush.bf16.msra.mxu0 %v83
    %505 = vmatmul.bf16.gmra.mxu0 %v495
    %v506 = vpop.f32.mrf.mxu0
    %v507 = vadd.f32 0.0, %v506
    %v508 = vpop.f32.mrf.mxu0
    %509 = vdwg.mxu0
    %v510 = vpack.c.bf16 %v507, %v507
    %s511 = scalar_lea.vmem %s2, 192
    %v512 = vld [vmem:[%s511] sm:$0xf]
    %v513 = vld [vmem:[%s511 + $0x4] sm:$0xf]
    %v514 = vld [vmem:[%s511 + $0x8] sm:$0xf]
    %v515 = vld [vmem:[%s511 + $0xc] sm:$0xf]
    %v516 = vld [vmem:[%s511 + $0x10] sm:$0xf]
    %v517 = vld [vmem:[%s511 + $0x14] sm:$0xf]
    %v518 = vld [vmem:[%s511 + $0x18] sm:$0xf]
    %v519 = vld [vmem:[%s511 + $0x1c] sm:$0xf]
    %v528 = vunpack.c.l.b16 %v512
    %v529 = vunpack.c.l.b16 %v513
    %v530 = vunpack.c.l.b16 %v514
    %v531 = vunpack.c.l.b16 %v515
    %v532 = vunpack.c.l.b16 %v516
    %v533 = vunpack.c.l.b16 %v517
    %v534 = vunpack.c.l.b16 %v518
    %v535 = vunpack.c.l.b16 %v519
    %v536 = vpack.c.b16 %v529, %v528
    %v537 = vpack.c.b16 %v531, %v530
    %v538 = vpack.c.b16 %v533, %v532
    %v539 = vpack.c.b16 %v535, %v534
    %v545 = vsel %vm159, %v510, 0
    %547 = vmatpush.bf16.msra.mxu0 0
    %548 = vmatpush.bf16.msra.mxu0 0
    %549 = vmatpush.bf16.msra.mxu0 0
    %550 = vmatpush.bf16.msra.mxu0 0
    %551 = vmatpush.bf16.msra.mxu0 %v539
    %552 = vmatpush.bf16.msra.mxu0 %v538
    %553 = vmatpush.bf16.msra.mxu0 %v537
    %554 = vmatpush.bf16.msra.mxu0 %v536
    %555 = vmatmul.bf16.gmra.mxu0 %v545
    %v556 = vpop.f32.mrf.mxu0
    %v557 = vadd.f32 0.0, %v556
    %v558 = vpop.f32.mrf.mxu0
    %559 = vdwg.mxu0
    %v560 = vadd.f32 %v491, %v557
    %s561 = scalar_lea.vmem %s1, 28
    %v562 = vld [vmem:[%s561] sm:$0xf]
    %v564 = vsel %vm77, %v562, 0
    %566 = vmatpush.bf16.msra.mxu0 0
    %567 = vmatpush.bf16.msra.mxu0 0
    %568 = vmatpush.bf16.msra.mxu0 0
    %569 = vmatpush.bf16.msra.mxu0 0
    %570 = vmatpush.bf16.msra.mxu0 0
    %571 = vmatpush.bf16.msra.mxu0 0
    %572 = vmatpush.bf16.msra.mxu0 0
    %573 = vmatpush.bf16.msra.mxu0 %v83
    %574 = vmatmul.bf16.gmra.mxu0 %v564
    %v575 = vpop.f32.mrf.mxu0
    %v576 = vadd.f32 0.0, %v575
    %v577 = vpop.f32.mrf.mxu0
    %578 = vdwg.mxu0
    %v579 = vpack.c.bf16 %v576, %v576
    %s580 = scalar_lea.vmem %s2, 224
    %v581 = vld [vmem:[%s580] sm:$0xf]
    %v582 = vld [vmem:[%s580 + $0x4] sm:$0xf]
    %v583 = vld [vmem:[%s580 + $0x8] sm:$0xf]
    %v584 = vld [vmem:[%s580 + $0xc] sm:$0xf]
    %v585 = vld [vmem:[%s580 + $0x10] sm:$0xf]
    %v586 = vld [vmem:[%s580 + $0x14] sm:$0xf]
    %v587 = vld [vmem:[%s580 + $0x18] sm:$0xf]
    %v588 = vld [vmem:[%s580 + $0x1c] sm:$0xf]
    %v597 = vunpack.c.l.b16 %v581
    %v598 = vunpack.c.l.b16 %v582
    %v599 = vunpack.c.l.b16 %v583
    %v600 = vunpack.c.l.b16 %v584
    %v601 = vunpack.c.l.b16 %v585
    %v602 = vunpack.c.l.b16 %v586
    %v603 = vunpack.c.l.b16 %v587
    %v604 = vunpack.c.l.b16 %v588
    %v605 = vpack.c.b16 %v598, %v597
    %v606 = vpack.c.b16 %v600, %v599
    %v607 = vpack.c.b16 %v602, %v601
    %v608 = vpack.c.b16 %v604, %v603
    %v614 = vsel %vm159, %v579, 0
    %616 = vmatpush.bf16.msra.mxu0 0
    %617 = vmatpush.bf16.msra.mxu0 0
    %618 = vmatpush.bf16.msra.mxu0 0
    %619 = vmatpush.bf16.msra.mxu0 0
    %620 = vmatpush.bf16.msra.mxu0 %v608
    %621 = vmatpush.bf16.msra.mxu0 %v607
    %622 = vmatpush.bf16.msra.mxu0 %v606
    %623 = vmatpush.bf16.msra.mxu0 %v605
    %624 = vmatmul.bf16.gmra.mxu0 %v614
    %v625 = vpop.f32.mrf.mxu0
    %v626 = vadd.f32 0.0, %v625
    %v627 = vpop.f32.mrf.mxu0
    %628 = vdwg.mxu0
    %v629 = vadd.f32 %v560, %v626
    %s630 = scalar_lea.vmem %s1, 32
    %v631 = vld [vmem:[%s630] sm:$0xf]
    %v633 = vsel %vm77, %v631, 0
    %635 = vmatpush.bf16.msra.mxu0 0
    %636 = vmatpush.bf16.msra.mxu0 0
    %637 = vmatpush.bf16.msra.mxu0 0
    %638 = vmatpush.bf16.msra.mxu0 0
    %639 = vmatpush.bf16.msra.mxu0 0
    %640 = vmatpush.bf16.msra.mxu0 0
    %641 = vmatpush.bf16.msra.mxu0 0
    %642 = vmatpush.bf16.msra.mxu0 %v83
    %643 = vmatmul.bf16.gmra.mxu0 %v633
    %v644 = vpop.f32.mrf.mxu0
    %v645 = vadd.f32 0.0, %v644
    %v646 = vpop.f32.mrf.mxu0
    %647 = vdwg.mxu0
    %v648 = vpack.c.bf16 %v645, %v645
    %s649 = scalar_lea.vmem %s2, 256
    %v650 = vld [vmem:[%s649] sm:$0xf]
    %v651 = vld [vmem:[%s649 + $0x4] sm:$0xf]
    %v652 = vld [vmem:[%s649 + $0x8] sm:$0xf]
    %v653 = vld [vmem:[%s649 + $0xc] sm:$0xf]
    %v654 = vld [vmem:[%s649 + $0x10] sm:$0xf]
    %v655 = vld [vmem:[%s649 + $0x14] sm:$0xf]
    %v656 = vld [vmem:[%s649 + $0x18] sm:$0xf]
    %v657 = vld [vmem:[%s649 + $0x1c] sm:$0xf]
    %v666 = vunpack.c.l.b16 %v650
    %v667 = vunpack.c.l.b16 %v651
    %v668 = vunpack.c.l.b16 %v652
    %v669 = vunpack.c.l.b16 %v653
    %v670 = vunpack.c.l.b16 %v654
    %v671 = vunpack.c.l.b16 %v655
    %v672 = vunpack.c.l.b16 %v656
    %v673 = vunpack.c.l.b16 %v657
    %v674 = vpack.c.b16 %v667, %v666
    %v675 = vpack.c.b16 %v669, %v668
    %v676 = vpack.c.b16 %v671, %v670
    %v677 = vpack.c.b16 %v673, %v672
    %v683 = vsel %vm159, %v648, 0
    %685 = vmatpush.bf16.msra.mxu0 0
    %686 = vmatpush.bf16.msra.mxu0 0
    %687 = vmatpush.bf16.msra.mxu0 0
    %688 = vmatpush.bf16.msra.mxu0 0
    %689 = vmatpush.bf16.msra.mxu0 %v677
    %690 = vmatpush.bf16.msra.mxu0 %v676
    %691 = vmatpush.bf16.msra.mxu0 %v675
    %692 = vmatpush.bf16.msra.mxu0 %v674
    %693 = vmatmul.bf16.gmra.mxu0 %v683
    %v694 = vpop.f32.mrf.mxu0
    %v695 = vadd.f32 0.0, %v694
    %v696 = vpop.f32.mrf.mxu0
    %697 = vdwg.mxu0
    %v698 = vadd.f32 %v629, %v695
    %v699 = vld [vmem:[%s3] sm:$0x1]
    %v701 = vperm.slane %v699, 0
    %v703 = vmul.f32 %v698, %v701
    %v704 = vld [vmem:[%s4] sm:$0x1]
    %v706 = vperm.slane %v704, 0
    %v708 = vadd.f32 %v703, %v706
    %v709 = vmax.f32 %v708, 0.0
    %v710 = vld [vmem:[%s9] sm:$0xf]
    %v712 = vsel %vm77, %v710, 0
    %714 = vmatpush.bf16.msra.mxu0 0
    %715 = vmatpush.bf16.msra.mxu0 0
    %716 = vmatpush.bf16.msra.mxu0 0
    %717 = vmatpush.bf16.msra.mxu0 0
    %718 = vmatpush.bf16.msra.mxu0 0
    %719 = vmatpush.bf16.msra.mxu0 0
    %720 = vmatpush.bf16.msra.mxu0 0
    %721 = vmatpush.bf16.msra.mxu0 %v83
    %722 = vmatmul.bf16.gmra.mxu0 %v712
    %v723 = vpop.f32.mrf.mxu0
    %v724 = vadd.f32 0.0, %v723
    %v725 = vpop.f32.mrf.mxu0
    %726 = vdwg.mxu0
    %v727 = vpack.c.bf16 %v724, %v724
    %v728 = vld [vmem:[%s10] sm:$0xf]
    %v729 = vld [vmem:[%s10 + $0x4] sm:$0xf]
    %v730 = vld [vmem:[%s10 + $0x8] sm:$0xf]
    %v731 = vld [vmem:[%s10 + $0xc] sm:$0xf]
    %v732 = vld [vmem:[%s10 + $0x10] sm:$0xf]
    %v733 = vld [vmem:[%s10 + $0x14] sm:$0xf]
    %v734 = vld [vmem:[%s10 + $0x18] sm:$0xf]
    %v735 = vld [vmem:[%s10 + $0x1c] sm:$0xf]
    %v744 = vunpack.c.l.b16 %v728
    %v745 = vunpack.c.l.b16 %v729
    %v746 = vunpack.c.l.b16 %v730
    %v747 = vunpack.c.l.b16 %v731
    %v748 = vunpack.c.l.b16 %v732
    %v749 = vunpack.c.l.b16 %v733
    %v750 = vunpack.c.l.b16 %v734
    %v751 = vunpack.c.l.b16 %v735
    %v752 = vpack.c.b16 %v745, %v744
    %v753 = vpack.c.b16 %v747, %v746
    %v754 = vpack.c.b16 %v749, %v748
    %v755 = vpack.c.b16 %v751, %v750
    %v761 = vsel %vm159, %v727, 0
    %763 = vmatpush.bf16.msra.mxu0 0
    %764 = vmatpush.bf16.msra.mxu0 0
    %765 = vmatpush.bf16.msra.mxu0 0
    %766 = vmatpush.bf16.msra.mxu0 0
    %767 = vmatpush.bf16.msra.mxu0 %v755
    %768 = vmatpush.bf16.msra.mxu0 %v754
    %769 = vmatpush.bf16.msra.mxu0 %v753
    %770 = vmatpush.bf16.msra.mxu0 %v752
    %771 = vmatmul.bf16.gmra.mxu0 %v761
    %v772 = vpop.f32.mrf.mxu0
    %v773 = vadd.f32 0.0, %v772
    %v774 = vpop.f32.mrf.mxu0
    %775 = vdwg.mxu0
    %v776 = vld [vmem:[#allocation2] sm:$0x1]
    %v778 = vperm.slane %v776, 0
    %v780 = vmul.f32 %v773, %v778
    %v781 = vld [vmem:[#allocation5] sm:$0x1]
    %v783 = vperm.slane %v781, 0
    %v785 = vadd.f32 %v780, %v783
    %v786 = vpack.c.bf16 %v709, %v709
    %v787 = vld [vmem:[%s5] sm:$0xf]
    %v789 = vsel %vm77, %v787, 0
    %v792 = vsel %vm81, %v786, 0
    %794 = vmatpush.bf16.msra.mxu0 0
    %795 = vmatpush.bf16.msra.mxu0 0
    %796 = vmatpush.bf16.msra.mxu0 0
    %797 = vmatpush.bf16.msra.mxu0 0
    %798 = vmatpush.bf16.msra.mxu0 0
    %799 = vmatpush.bf16.msra.mxu0 0
    %800 = vmatpush.bf16.msra.mxu0 0
    %801 = vmatpush.bf16.msra.mxu0 %v792
    %802 = vmatmul.bf16.gmra.mxu0 %v789
    %v803 = vpop.f32.mrf.mxu0
    %v804 = vadd.f32 0.0, %v803
    %v805 = vpop.f32.mrf.mxu0
    %806 = vdwg.mxu0
    %v807 = vpack.c.bf16 %v804, %v804
    %v808 = vld [vmem:[%s6] sm:$0xf]
    %v809 = vld [vmem:[%s6 + $0x4] sm:$0xf]
    %v810 = vld [vmem:[%s6 + $0x8] sm:$0xf]
    %v811 = vld [vmem:[%s6 + $0xc] sm:$0xf]
    %v812 = vld [vmem:[%s6 + $0x10] sm:$0xf]
    %v813 = vld [vmem:[%s6 + $0x14] sm:$0xf]
    %v814 = vld [vmem:[%s6 + $0x18] sm:$0xf]
    %v815 = vld [vmem:[%s6 + $0x1c] sm:$0xf]
    %v816 = vld [vmem:[%s6 + $0x20] sm:$0xf]
    %v817 = vld [vmem:[%s6 + $0x24] sm:$0xf]
    %v818 = vld [vmem:[%s6 + $0x28] sm:$0xf]
    %v819 = vld [vmem:[%s6 + $0x2c] sm:$0xf]
    %v820 = vld [vmem:[%s6 + $0x30] sm:$0xf]
    %v821 = vld [vmem:[%s6 + $0x34] sm:$0xf]
    %v822 = vld [vmem:[%s6 + $0x38] sm:$0xf]
    %v823 = vld [vmem:[%s6 + $0x3c] sm:$0xf]
    %s824 = scalar_lea.vmem %s5, 4
    %v825 = vld [vmem:[%s824] sm:$0xf]
    %v827 = vsel %vm77, %v825, 0
    %829 = vmatpush.bf16.msra.mxu0 0
    %830 = vmatpush.bf16.msra.mxu0 0
    %831 = vmatpush.bf16.msra.mxu0 0
    %832 = vmatpush.bf16.msra.mxu0 0
    %833 = vmatpush.bf16.msra.mxu0 0
    %834 = vmatpush.bf16.msra.mxu0 0
    %835 = vmatpush.bf16.msra.mxu0 0
    %836 = vmatpush.bf16.msra.mxu0 %v792
    %837 = vmatmul.bf16.gmra.mxu0 %v827
    %v838 = vpop.f32.mrf.mxu0
    %v839 = vadd.f32 0.0, %v838
    %v840 = vpop.f32.mrf.mxu0
    %841 = vdwg.mxu0
    %v842 = vpack.c.bf16 %v839, %v839
    %s843 = scalar_lea.vmem %s6, 64
    %v844 = vld [vmem:[%s843] sm:$0xf]
    %v845 = vld [vmem:[%s843 + $0x4] sm:$0xf]
    %v846 = vld [vmem:[%s843 + $0x8] sm:$0xf]
    %v847 = vld [vmem:[%s843 + $0xc] sm:$0xf]
    %v848 = vld [vmem:[%s843 + $0x10] sm:$0xf]
    %v849 = vld [vmem:[%s843 + $0x14] sm:$0xf]
    %v850 = vld [vmem:[%s843 + $0x18] sm:$0xf]
    %v851 = vld [vmem:[%s843 + $0x1c] sm:$0xf]
    %v852 = vld [vmem:[%s843 + $0x20] sm:$0xf]
    %v853 = vld [vmem:[%s843 + $0x24] sm:$0xf]
    %v854 = vld [vmem:[%s843 + $0x28] sm:$0xf]
    %v855 = vld [vmem:[%s843 + $0x2c] sm:$0xf]
    %v856 = vld [vmem:[%s843 + $0x30] sm:$0xf]
    %v857 = vld [vmem:[%s843 + $0x34] sm:$0xf]
    %v858 = vld [vmem:[%s843 + $0x38] sm:$0xf]
    %v859 = vld [vmem:[%s843 + $0x3c] sm:$0xf]
    %v876 = vunpack.c.l.b16 %v844
    %v877 = vunpack.c.l.b16 %v845
    %v878 = vunpack.c.l.b16 %v846
    %v879 = vunpack.c.l.b16 %v847
    %v880 = vunpack.c.l.b16 %v848
    %v881 = vunpack.c.l.b16 %v849
    %v882 = vunpack.c.l.b16 %v850
    %v883 = vunpack.c.l.b16 %v851
    %v884 = vunpack.c.l.b16 %v852
    %v885 = vunpack.c.l.b16 %v853
    %v886 = vunpack.c.l.b16 %v854
    %v887 = vunpack.c.l.b16 %v855
    %v888 = vunpack.c.l.b16 %v856
    %v889 = vunpack.c.l.b16 %v857
    %v890 = vunpack.c.l.b16 %v858
    %v891 = vunpack.c.l.b16 %v859
    %v892 = vpack.c.b16 %v877, %v876
    %v893 = vpack.c.b16 %v879, %v878
    %v894 = vpack.c.b16 %v881, %v880
    %v895 = vpack.c.b16 %v883, %v882
    %v896 = vpack.c.b16 %v885, %v884
    %v897 = vpack.c.b16 %v887, %v886
    %v898 = vpack.c.b16 %v889, %v888
    %v899 = vpack.c.b16 %v891, %v890
    %908 = vmatpush.bf16.msra.mxu0 %v899
    %909 = vmatpush.bf16.msra.mxu0 %v898
    %910 = vmatpush.bf16.msra.mxu0 %v897
    %911 = vmatpush.bf16.msra.mxu0 %v896
    %912 = vmatpush.bf16.msra.mxu0 %v895
    %913 = vmatpush.bf16.msra.mxu0 %v894
    %914 = vmatpush.bf16.msra.mxu0 %v893
    %915 = vmatpush.bf16.msra.mxu0 %v892
    %916 = vmatmul.bf16.gmra.mxu0 %v842
    %v917 = vpop.f32.mrf.mxu0
    %v918 = vadd.f32 0.0, %v917
    %v919 = vpop.f32.mrf.mxu0
    %920 = vdwg.mxu0
    %v937 = vunpack.c.l.b16 %v808
    %v938 = vunpack.c.l.b16 %v809
    %v939 = vunpack.c.l.b16 %v810
    %v940 = vunpack.c.l.b16 %v811
    %v941 = vunpack.c.l.b16 %v812
    %v942 = vunpack.c.l.b16 %v813
    %v943 = vunpack.c.l.b16 %v814
    %v944 = vunpack.c.l.b16 %v815
    %v945 = vunpack.c.l.b16 %v816
    %v946 = vunpack.c.l.b16 %v817
    %v947 = vunpack.c.l.b16 %v818
    %v948 = vunpack.c.l.b16 %v819
    %v949 = vunpack.c.l.b16 %v820
    %v950 = vunpack.c.l.b16 %v821
    %v951 = vunpack.c.l.b16 %v822
    %v952 = vunpack.c.l.b16 %v823
    %v953 = vpack.c.b16 %v938, %v937
    %v954 = vpack.c.b16 %v940, %v939
    %v955 = vpack.c.b16 %v942, %v941
    %v956 = vpack.c.b16 %v944, %v943
    %v957 = vpack.c.b16 %v946, %v945
    %v958 = vpack.c.b16 %v948, %v947
    %v959 = vpack.c.b16 %v950, %v949
    %v960 = vpack.c.b16 %v952, %v951
    %969 = vmatpush.bf16.msra.mxu0 %v960
    %970 = vmatpush.bf16.msra.mxu0 %v959
    %971 = vmatpush.bf16.msra.mxu0 %v958
    %972 = vmatpush.bf16.msra.mxu0 %v957
    %973 = vmatpush.bf16.msra.mxu0 %v956
    %974 = vmatpush.bf16.msra.mxu0 %v955
    %975 = vmatpush.bf16.msra.mxu0 %v954
    %976 = vmatpush.bf16.msra.mxu0 %v953
    %977 = vmatmul.bf16.gmra.mxu0 %v807
    %v978 = vpop.f32.mrf.mxu0
    %v979 = vadd.f32 %v918, %v978
    %v980 = vpop.f32.mrf.mxu0
    %981 = vdwg.mxu0
    %s982 = scalar_lea.vmem %s5, 8
    %v983 = vld [vmem:[%s982] sm:$0xf]
    %v985 = vsel %vm77, %v983, 0
    %987 = vmatpush.bf16.msra.mxu0 0
    %988 = vmatpush.bf16.msra.mxu0 0
    %989 = vmatpush.bf16.msra.mxu0 0
    %990 = vmatpush.bf16.msra.mxu0 0
    %991 = vmatpush.bf16.msra.mxu0 0
    %992 = vmatpush.bf16.msra.mxu0 0
    %993 = vmatpush.bf16.msra.mxu0 0
    %994 = vmatpush.bf16.msra.mxu0 %v792
    %995 = vmatmul.bf16.gmra.mxu0 %v985
    %v996 = vpop.f32.mrf.mxu0
    %v997 = vadd.f32 0.0, %v996
    %v998 = vpop.f32.mrf.mxu0
    %999 = vdwg.mxu0
    %v1000 = vpack.c.bf16 %v997, %v997
    %s1001 = scalar_lea.vmem %s6, 128
    %v1002 = vld [vmem:[%s1001] sm:$0xf]
    %v1003 = vld [vmem:[%s1001 + $0x4] sm:$0xf]
    %v1004 = vld [vmem:[%s1001 + $0x8] sm:$0xf]
    %v1005 = vld [vmem:[%s1001 + $0xc] sm:$0xf]
    %v1006 = vld [vmem:[%s1001 + $0x10] sm:$0xf]
    %v1007 = vld [vmem:[%s1001 + $0x14] sm:$0xf]
    %v1008 = vld [vmem:[%s1001 + $0x18] sm:$0xf]
    %v1009 = vld [vmem:[%s1001 + $0x1c] sm:$0xf]
    %v1010 = vld [vmem:[%s1001 + $0x20] sm:$0xf]
    %v1011 = vld [vmem:[%s1001 + $0x24] sm:$0xf]
    %v1012 = vld [vmem:[%s1001 + $0x28] sm:$0xf]
    %v1013 = vld [vmem:[%s1001 + $0x2c] sm:$0xf]
    %v1014 = vld [vmem:[%s1001 + $0x30] sm:$0xf]
    %v1015 = vld [vmem:[%s1001 + $0x34] sm:$0xf]
    %v1016 = vld [vmem:[%s1001 + $0x38] sm:$0xf]
    %v1017 = vld [vmem:[%s1001 + $0x3c] sm:$0xf]
    %v1034 = vunpack.c.l.b16 %v1002
    %v1035 = vunpack.c.l.b16 %v1003
    %v1036 = vunpack.c.l.b16 %v1004
    %v1037 = vunpack.c.l.b16 %v1005
    %v1038 = vunpack.c.l.b16 %v1006
    %v1039 = vunpack.c.l.b16 %v1007
    %v1040 = vunpack.c.l.b16 %v1008
    %v1041 = vunpack.c.l.b16 %v1009
    %v1042 = vunpack.c.l.b16 %v1010
    %v1043 = vunpack.c.l.b16 %v1011
    %v1044 = vunpack.c.l.b16 %v1012
    %v1045 = vunpack.c.l.b16 %v1013
    %v1046 = vunpack.c.l.b16 %v1014
    %v1047 = vunpack.c.l.b16 %v1015
    %v1048 = vunpack.c.l.b16 %v1016
    %v1049 = vunpack.c.l.b16 %v1017
    %v1050 = vpack.c.b16 %v1035, %v1034
    %v1051 = vpack.c.b16 %v1037, %v1036
    %v1052 = vpack.c.b16 %v1039, %v1038
    %v1053 = vpack.c.b16 %v1041, %v1040
    %v1054 = vpack.c.b16 %v1043, %v1042
    %v1055 = vpack.c.b16 %v1045, %v1044
    %v1056 = vpack.c.b16 %v1047, %v1046
    %v1057 = vpack.c.b16 %v1049, %v1048
    %1066 = vmatpush.bf16.msra.mxu0 %v1057
    %1067 = vmatpush.bf16.msra.mxu0 %v1056
    %1068 = vmatpush.bf16.msra.mxu0 %v1055
    %1069 = vmatpush.bf16.msra.mxu0 %v1054
    %1070 = vmatpush.bf16.msra.mxu0 %v1053
    %1071 = vmatpush.bf16.msra.mxu0 %v1052
    %1072 = vmatpush.bf16.msra.mxu0 %v1051
    %1073 = vmatpush.bf16.msra.mxu0 %v1050
    %1074 = vmatmul.bf16.gmra.mxu0 %v1000
    %v1075 = vpop.f32.mrf.mxu0
    %v1076 = vadd.f32 0.0, %v1075
    %v1077 = vpop.f32.mrf.mxu0
    %1078 = vdwg.mxu0
    %v1079 = vadd.f32 %v979, %v1076
    %s1080 = scalar_lea.vmem %s5, 12
    %v1081 = vld [vmem:[%s1080] sm:$0xf]
    %v1083 = vsel %vm77, %v1081, 0
    %1085 = vmatpush.bf16.msra.mxu0 0
    %1086 = vmatpush.bf16.msra.mxu0 0
    %1087 = vmatpush.bf16.msra.mxu0 0
    %1088 = vmatpush.bf16.msra.mxu0 0
    %1089 = vmatpush.bf16.msra.mxu0 0
    %1090 = vmatpush.bf16.msra.mxu0 0
    %1091 = vmatpush.bf16.msra.mxu0 0
    %1092 = vmatpush.bf16.msra.mxu0 %v792
    %1093 = vmatmul.bf16.gmra.mxu0 %v1083
    %v1094 = vpop.f32.mrf.mxu0
    %v1095 = vadd.f32 0.0, %v1094
    %v1096 = vpop.f32.mrf.mxu0
    %1097 = vdwg.mxu0
    %v1098 = vpack.c.bf16 %v1095, %v1095
    %s1099 = scalar_lea.vmem %s6, 192
    %v1100 = vld [vmem:[%s1099] sm:$0xf]
    %v1101 = vld [vmem:[%s1099 + $0x4] sm:$0xf]
    %v1102 = vld [vmem:[%s1099 + $0x8] sm:$0xf]
    %v1103 = vld [vmem:[%s1099 + $0xc] sm:$0xf]
    %v1104 = vld [vmem:[%s1099 + $0x10] sm:$0xf]
    %v1105 = vld [vmem:[%s1099 + $0x14] sm:$0xf]
    %v1106 = vld [vmem:[%s1099 + $0x18] sm:$0xf]
    %v1107 = vld [vmem:[%s1099 + $0x1c] sm:$0xf]
    %v1108 = vld [vmem:[%s1099 + $0x20] sm:$0xf]
    %v1109 = vld [vmem:[%s1099 + $0x24] sm:$0xf]
    %v1110 = vld [vmem:[%s1099 + $0x28] sm:$0xf]
    %v1111 = vld [vmem:[%s1099 + $0x2c] sm:$0xf]
    %v1112 = vld [vmem:[%s1099 + $0x30] sm:$0xf]
    %v1113 = vld [vmem:[%s1099 + $0x34] sm:$0xf]
    %v1114 = vld [vmem:[%s1099 + $0x38] sm:$0xf]
    %v1115 = vld [vmem:[%s1099 + $0x3c] sm:$0xf]
    %v1132 = vunpack.c.l.b16 %v1100
    %v1133 = vunpack.c.l.b16 %v1101
    %v1134 = vunpack.c.l.b16 %v1102
    %v1135 = vunpack.c.l.b16 %v1103
    %v1136 = vunpack.c.l.b16 %v1104
    %v1137 = vunpack.c.l.b16 %v1105
    %v1138 = vunpack.c.l.b16 %v1106
    %v1139 = vunpack.c.l.b16 %v1107
    %v1140 = vunpack.c.l.b16 %v1108
    %v1141 = vunpack.c.l.b16 %v1109
    %v1142 = vunpack.c.l.b16 %v1110
    %v1143 = vunpack.c.l.b16 %v1111
    %v1144 = vunpack.c.l.b16 %v1112
    %v1145 = vunpack.c.l.b16 %v1113
    %v1146 = vunpack.c.l.b16 %v1114
    %v1147 = vunpack.c.l.b16 %v1115
    %v1148 = vpack.c.b16 %v1133, %v1132
    %v1149 = vpack.c.b16 %v1135, %v1134
    %v1150 = vpack.c.b16 %v1137, %v1136
    %v1151 = vpack.c.b16 %v1139, %v1138
    %v1152 = vpack.c.b16 %v1141, %v1140
    %v1153 = vpack.c.b16 %v1143, %v1142
    %v1154 = vpack.c.b16 %v1145, %v1144
    %v1155 = vpack.c.b16 %v1147, %v1146
    %1164 = vmatpush.bf16.msra.mxu0 %v1155
    %1165 = vmatpush.bf16.msra.mxu0 %v1154
    %1166 = vmatpush.bf16.msra.mxu0 %v1153
    %1167 = vmatpush.bf16.msra.mxu0 %v1152
    %1168 = vmatpush.bf16.msra.mxu0 %v1151
    %1169 = vmatpush.bf16.msra.mxu0 %v1150
    %1170 = vmatpush.bf16.msra.mxu0 %v1149
    %1171 = vmatpush.bf16.msra.mxu0 %v1148
    %1172 = vmatmul.bf16.gmra.mxu0 %v1098
    %v1173 = vpop.f32.mrf.mxu0
    %v1174 = vadd.f32 0.0, %v1173
    %v1175 = vpop.f32.mrf.mxu0
    %1176 = vdwg.mxu0
    %v1177 = vadd.f32 %v1079, %v1174
    %s1178 = scalar_lea.vmem %s5, 16
    %v1179 = vld [vmem:[%s1178] sm:$0xf]
    %v1181 = vsel %vm77, %v1179, 0
    %1183 = vmatpush.bf16.msra.mxu0 0
    %1184 = vmatpush.bf16.msra.mxu0 0
    %1185 = vmatpush.bf16.msra.mxu0 0
    %1186 = vmatpush.bf16.msra.mxu0 0
    %1187 = vmatpush.bf16.msra.mxu0 0
    %1188 = vmatpush.bf16.msra.mxu0 0
    %1189 = vmatpush.bf16.msra.mxu0 0
    %1190 = vmatpush.bf16.msra.mxu0 %v792
    %1191 = vmatmul.bf16.gmra.mxu0 %v1181
    %v1192 = vpop.f32.mrf.mxu0
    %v1193 = vadd.f32 0.0, %v1192
    %v1194 = vpop.f32.mrf.mxu0
    %1195 = vdwg.mxu0
    %v1196 = vpack.c.bf16 %v1193, %v1193
    %s1197 = scalar_lea.vmem %s6, 256
    %v1198 = vld [vmem:[%s1197] sm:$0xf]
    %v1199 = vld [vmem:[%s1197 + $0x4] sm:$0xf]
    %v1200 = vld [vmem:[%s1197 + $0x8] sm:$0xf]
    %v1201 = vld [vmem:[%s1197 + $0xc] sm:$0xf]
    %v1202 = vld [vmem:[%s1197 + $0x10] sm:$0xf]
    %v1203 = vld [vmem:[%s1197 + $0x14] sm:$0xf]
    %v1204 = vld [vmem:[%s1197 + $0x18] sm:$0xf]
    %v1205 = vld [vmem:[%s1197 + $0x1c] sm:$0xf]
    %v1206 = vld [vmem:[%s1197 + $0x20] sm:$0xf]
    %v1207 = vld [vmem:[%s1197 + $0x24] sm:$0xf]
    %v1208 = vld [vmem:[%s1197 + $0x28] sm:$0xf]
    %v1209 = vld [vmem:[%s1197 + $0x2c] sm:$0xf]
    %v1210 = vld [vmem:[%s1197 + $0x30] sm:$0xf]
    %v1211 = vld [vmem:[%s1197 + $0x34] sm:$0xf]
    %v1212 = vld [vmem:[%s1197 + $0x38] sm:$0xf]
    %v1213 = vld [vmem:[%s1197 + $0x3c] sm:$0xf]
    %v1230 = vunpack.c.l.b16 %v1198
    %v1231 = vunpack.c.l.b16 %v1199
    %v1232 = vunpack.c.l.b16 %v1200
    %v1233 = vunpack.c.l.b16 %v1201
    %v1234 = vunpack.c.l.b16 %v1202
    %v1235 = vunpack.c.l.b16 %v1203
    %v1236 = vunpack.c.l.b16 %v1204
    %v1237 = vunpack.c.l.b16 %v1205
    %v1238 = vunpack.c.l.b16 %v1206
    %v1239 = vunpack.c.l.b16 %v1207
    %v1240 = vunpack.c.l.b16 %v1208
    %v1241 = vunpack.c.l.b16 %v1209
    %v1242 = vunpack.c.l.b16 %v1210
    %v1243 = vunpack.c.l.b16 %v1211
    %v1244 = vunpack.c.l.b16 %v1212
    %v1245 = vunpack.c.l.b16 %v1213
    %v1246 = vpack.c.b16 %v1231, %v1230
    %v1247 = vpack.c.b16 %v1233, %v1232
    %v1248 = vpack.c.b16 %v1235, %v1234
    %v1249 = vpack.c.b16 %v1237, %v1236
    %v1250 = vpack.c.b16 %v1239, %v1238
    %v1251 = vpack.c.b16 %v1241, %v1240
    %v1252 = vpack.c.b16 %v1243, %v1242
    %v1253 = vpack.c.b16 %v1245, %v1244
    %1262 = vmatpush.bf16.msra.mxu0 %v1253
    %1263 = vmatpush.bf16.msra.mxu0 %v1252
    %1264 = vmatpush.bf16.msra.mxu0 %v1251
    %1265 = vmatpush.bf16.msra.mxu0 %v1250
    %1266 = vmatpush.bf16.msra.mxu0 %v1249
    %1267 = vmatpush.bf16.msra.mxu0 %v1248
    %1268 = vmatpush.bf16.msra.mxu0 %v1247
    %1269 = vmatpush.bf16.msra.mxu0 %v1246
    %1270 = vmatmul.bf16.gmra.mxu0 %v1196
    %v1271 = vpop.f32.mrf.mxu0
    %v1272 = vadd.f32 0.0, %v1271
    %v1273 = vpop.f32.mrf.mxu0
    %1274 = vdwg.mxu0
    %v1275 = vadd.f32 %v1177, %v1272
    %s1276 = scalar_lea.vmem %s5, 20
    %v1277 = vld [vmem:[%s1276] sm:$0xf]
    %v1279 = vsel %vm77, %v1277, 0
    %1281 = vmatpush.bf16.msra.mxu0 0
    %1282 = vmatpush.bf16.msra.mxu0 0
    %1283 = vmatpush.bf16.msra.mxu0 0
    %1284 = vmatpush.bf16.msra.mxu0 0
    %1285 = vmatpush.bf16.msra.mxu0 0
    %1286 = vmatpush.bf16.msra.mxu0 0
    %1287 = vmatpush.bf16.msra.mxu0 0
    %1288 = vmatpush.bf16.msra.mxu0 %v792
    %1289 = vmatmul.bf16.gmra.mxu0 %v1279
    %v1290 = vpop.f32.mrf.mxu0
    %v1291 = vadd.f32 0.0, %v1290
    %v1292 = vpop.f32.mrf.mxu0
    %1293 = vdwg.mxu0
    %v1294 = vpack.c.bf16 %v1291, %v1291
    %s1295 = scalar_lea.vmem %s6, 320
    %v1296 = vld [vmem:[%s1295] sm:$0xf]
    %v1297 = vld [vmem:[%s1295 + $0x4] sm:$0xf]
    %v1298 = vld [vmem:[%s1295 + $0x8] sm:$0xf]
    %v1299 = vld [vmem:[%s1295 + $0xc] sm:$0xf]
    %v1300 = vld [vmem:[%s1295 + $0x10] sm:$0xf]
    %v1301 = vld [vmem:[%s1295 + $0x14] sm:$0xf]
    %v1302 = vld [vmem:[%s1295 + $0x18] sm:$0xf]
    %v1303 = vld [vmem:[%s1295 + $0x1c] sm:$0xf]
    %v1304 = vld [vmem:[%s1295 + $0x20] sm:$0xf]
    %v1305 = vld [vmem:[%s1295 + $0x24] sm:$0xf]
    %v1306 = vld [vmem:[%s1295 + $0x28] sm:$0xf]
    %v1307 = vld [vmem:[%s1295 + $0x2c] sm:$0xf]
    %v1308 = vld [vmem:[%s1295 + $0x30] sm:$0xf]
    %v1309 = vld [vmem:[%s1295 + $0x34] sm:$0xf]
    %v1310 = vld [vmem:[%s1295 + $0x38] sm:$0xf]
    %v1311 = vld [vmem:[%s1295 + $0x3c] sm:$0xf]
    %v1328 = vunpack.c.l.b16 %v1296
    %v1329 = vunpack.c.l.b16 %v1297
    %v1330 = vunpack.c.l.b16 %v1298
    %v1331 = vunpack.c.l.b16 %v1299
    %v1332 = vunpack.c.l.b16 %v1300
    %v1333 = vunpack.c.l.b16 %v1301
    %v1334 = vunpack.c.l.b16 %v1302
    %v1335 = vunpack.c.l.b16 %v1303
    %v1336 = vunpack.c.l.b16 %v1304
    %v1337 = vunpack.c.l.b16 %v1305
    %v1338 = vunpack.c.l.b16 %v1306
    %v1339 = vunpack.c.l.b16 %v1307
    %v1340 = vunpack.c.l.b16 %v1308
    %v1341 = vunpack.c.l.b16 %v1309
    %v1342 = vunpack.c.l.b16 %v1310
    %v1343 = vunpack.c.l.b16 %v1311
    %v1344 = vpack.c.b16 %v1329, %v1328
    %v1345 = vpack.c.b16 %v1331, %v1330
    %v1346 = vpack.c.b16 %v1333, %v1332
    %v1347 = vpack.c.b16 %v1335, %v1334
    %v1348 = vpack.c.b16 %v1337, %v1336
    %v1349 = vpack.c.b16 %v1339, %v1338
    %v1350 = vpack.c.b16 %v1341, %v1340
    %v1351 = vpack.c.b16 %v1343, %v1342
    %1360 = vmatpush.bf16.msra.mxu0 %v1351
    %1361 = vmatpush.bf16.msra.mxu0 %v1350
    %1362 = vmatpush.bf16.msra.mxu0 %v1349
    %1363 = vmatpush.bf16.msra.mxu0 %v1348
    %1364 = vmatpush.bf16.msra.mxu0 %v1347
    %1365 = vmatpush.bf16.msra.mxu0 %v1346
    %1366 = vmatpush.bf16.msra.mxu0 %v1345
    %1367 = vmatpush.bf16.msra.mxu0 %v1344
    %1368 = vmatmul.bf16.gmra.mxu0 %v1294
    %v1369 = vpop.f32.mrf.mxu0
    %v1370 = vadd.f32 0.0, %v1369
    %v1371 = vpop.f32.mrf.mxu0
    %1372 = vdwg.mxu0
    %v1373 = vadd.f32 %v1275, %v1370
    %s1374 = scalar_lea.vmem %s5, 24
    %v1375 = vld [vmem:[%s1374] sm:$0xf]
    %v1377 = vsel %vm77, %v1375, 0
    %1379 = vmatpush.bf16.msra.mxu0 0
    %1380 = vmatpush.bf16.msra.mxu0 0
    %1381 = vmatpush.bf16.msra.mxu0 0
    %1382 = vmatpush.bf16.msra.mxu0 0
    %1383 = vmatpush.bf16.msra.mxu0 0
    %1384 = vmatpush.bf16.msra.mxu0 0
    %1385 = vmatpush.bf16.msra.mxu0 0
    %1386 = vmatpush.bf16.msra.mxu0 %v792
    %1387 = vmatmul.bf16.gmra.mxu0 %v1377
    %v1388 = vpop.f32.mrf.mxu0
    %v1389 = vadd.f32 0.0, %v1388
    %v1390 = vpop.f32.mrf.mxu0
    %1391 = vdwg.mxu0
    %v1392 = vpack.c.bf16 %v1389, %v1389
    %s1393 = scalar_lea.vmem %s6, 384
    %v1394 = vld [vmem:[%s1393] sm:$0xf]
    %v1395 = vld [vmem:[%s1393 + $0x4] sm:$0xf]
    %v1396 = vld [vmem:[%s1393 + $0x8] sm:$0xf]
    %v1397 = vld [vmem:[%s1393 + $0xc] sm:$0xf]
    %v1398 = vld [vmem:[%s1393 + $0x10] sm:$0xf]
    %v1399 = vld [vmem:[%s1393 + $0x14] sm:$0xf]
    %v1400 = vld [vmem:[%s1393 + $0x18] sm:$0xf]
    %v1401 = vld [vmem:[%s1393 + $0x1c] sm:$0xf]
    %v1402 = vld [vmem:[%s1393 + $0x20] sm:$0xf]
    %v1403 = vld [vmem:[%s1393 + $0x24] sm:$0xf]
    %v1404 = vld [vmem:[%s1393 + $0x28] sm:$0xf]
    %v1405 = vld [vmem:[%s1393 + $0x2c] sm:$0xf]
    %v1406 = vld [vmem:[%s1393 + $0x30] sm:$0xf]
    %v1407 = vld [vmem:[%s1393 + $0x34] sm:$0xf]
    %v1408 = vld [vmem:[%s1393 + $0x38] sm:$0xf]
    %v1409 = vld [vmem:[%s1393 + $0x3c] sm:$0xf]
    %v1426 = vunpack.c.l.b16 %v1394
    %v1427 = vunpack.c.l.b16 %v1395
    %v1428 = vunpack.c.l.b16 %v1396
    %v1429 = vunpack.c.l.b16 %v1397
    %v1430 = vunpack.c.l.b16 %v1398
    %v1431 = vunpack.c.l.b16 %v1399
    %v1432 = vunpack.c.l.b16 %v1400
    %v1433 = vunpack.c.l.b16 %v1401
    %v1434 = vunpack.c.l.b16 %v1402
    %v1435 = vunpack.c.l.b16 %v1403
    %v1436 = vunpack.c.l.b16 %v1404
    %v1437 = vunpack.c.l.b16 %v1405
    %v1438 = vunpack.c.l.b16 %v1406
    %v1439 = vunpack.c.l.b16 %v1407
    %v1440 = vunpack.c.l.b16 %v1408
    %v1441 = vunpack.c.l.b16 %v1409
    %v1442 = vpack.c.b16 %v1427, %v1426
    %v1443 = vpack.c.b16 %v1429, %v1428
    %v1444 = vpack.c.b16 %v1431, %v1430
    %v1445 = vpack.c.b16 %v1433, %v1432
    %v1446 = vpack.c.b16 %v1435, %v1434
    %v1447 = vpack.c.b16 %v1437, %v1436
    %v1448 = vpack.c.b16 %v1439, %v1438
    %v1449 = vpack.c.b16 %v1441, %v1440
    %1458 = vmatpush.bf16.msra.mxu0 %v1449
    %1459 = vmatpush.bf16.msra.mxu0 %v1448
    %1460 = vmatpush.bf16.msra.mxu0 %v1447
    %1461 = vmatpush.bf16.msra.mxu0 %v1446
    %1462 = vmatpush.bf16.msra.mxu0 %v1445
    %1463 = vmatpush.bf16.msra.mxu0 %v1444
    %1464 = vmatpush.bf16.msra.mxu0 %v1443
    %1465 = vmatpush.bf16.msra.mxu0 %v1442
    %1466 = vmatmul.bf16.gmra.mxu0 %v1392
    %v1467 = vpop.f32.mrf.mxu0
    %v1468 = vadd.f32 0.0, %v1467
    %v1469 = vpop.f32.mrf.mxu0
    %1470 = vdwg.mxu0
    %v1471 = vadd.f32 %v1373, %v1468
    %s1472 = scalar_lea.vmem %s5, 28
    %v1473 = vld [vmem:[%s1472] sm:$0xf]
    %v1475 = vsel %vm77, %v1473, 0
    %1477 = vmatpush.bf16.msra.mxu0 0
    %1478 = vmatpush.bf16.msra.mxu0 0
    %1479 = vmatpush.bf16.msra.mxu0 0
    %1480 = vmatpush.bf16.msra.mxu0 0
    %1481 = vmatpush.bf16.msra.mxu0 0
    %1482 = vmatpush.bf16.msra.mxu0 0
    %1483 = vmatpush.bf16.msra.mxu0 0
    %1484 = vmatpush.bf16.msra.mxu0 %v792
    %1485 = vmatmul.bf16.gmra.mxu0 %v1475
    %v1486 = vpop.f32.mrf.mxu0
    %v1487 = vadd.f32 0.0, %v1486
    %v1488 = vpop.f32.mrf.mxu0
    %1489 = vdwg.mxu0
    %v1490 = vpack.c.bf16 %v1487, %v1487
    %s1491 = scalar_lea.vmem %s6, 448
    %v1492 = vld [vmem:[%s1491] sm:$0xf]
    %v1493 = vld [vmem:[%s1491 + $0x4] sm:$0xf]
    %v1494 = vld [vmem:[%s1491 + $0x8] sm:$0xf]
    %v1495 = vld [vmem:[%s1491 + $0xc] sm:$0xf]
    %v1496 = vld [vmem:[%s1491 + $0x10] sm:$0xf]
    %v1497 = vld [vmem:[%s1491 + $0x14] sm:$0xf]
    %v1498 = vld [vmem:[%s1491 + $0x18] sm:$0xf]
    %v1499 = vld [vmem:[%s1491 + $0x1c] sm:$0xf]
    %v1500 = vld [vmem:[%s1491 + $0x20] sm:$0xf]
    %v1501 = vld [vmem:[%s1491 + $0x24] sm:$0xf]
    %v1502 = vld [vmem:[%s1491 + $0x28] sm:$0xf]
    %v1503 = vld [vmem:[%s1491 + $0x2c] sm:$0xf]
    %v1504 = vld [vmem:[%s1491 + $0x30] sm:$0xf]
    %v1505 = vld [vmem:[%s1491 + $0x34] sm:$0xf]
    %v1506 = vld [vmem:[%s1491 + $0x38] sm:$0xf]
    %v1507 = vld [vmem:[%s1491 + $0x3c] sm:$0xf]
    %v1524 = vunpack.c.l.b16 %v1492
    %v1525 = vunpack.c.l.b16 %v1493
    %v1526 = vunpack.c.l.b16 %v1494
    %v1527 = vunpack.c.l.b16 %v1495
    %v1528 = vunpack.c.l.b16 %v1496
    %v1529 = vunpack.c.l.b16 %v1497
    %v1530 = vunpack.c.l.b16 %v1498
    %v1531 = vunpack.c.l.b16 %v1499
    %v1532 = vunpack.c.l.b16 %v1500
    %v1533 = vunpack.c.l.b16 %v1501
    %v1534 = vunpack.c.l.b16 %v1502
    %v1535 = vunpack.c.l.b16 %v1503
    %v1536 = vunpack.c.l.b16 %v1504
    %v1537 = vunpack.c.l.b16 %v1505
    %v1538 = vunpack.c.l.b16 %v1506
    %v1539 = vunpack.c.l.b16 %v1507
    %v1540 = vpack.c.b16 %v1525, %v1524
    %v1541 = vpack.c.b16 %v1527, %v1526
    %v1542 = vpack.c.b16 %v1529, %v1528
    %v1543 = vpack.c.b16 %v1531, %v1530
    %v1544 = vpack.c.b16 %v1533, %v1532
    %v1545 = vpack.c.b16 %v1535, %v1534
    %v1546 = vpack.c.b16 %v1537, %v1536
    %v1547 = vpack.c.b16 %v1539, %v1538
    %1556 = vmatpush.bf16.msra.mxu0 %v1547
    %1557 = vmatpush.bf16.msra.mxu0 %v1546
    %1558 = vmatpush.bf16.msra.mxu0 %v1545
    %1559 = vmatpush.bf16.msra.mxu0 %v1544
    %1560 = vmatpush.bf16.msra.mxu0 %v1543
    %1561 = vmatpush.bf16.msra.mxu0 %v1542
    %1562 = vmatpush.bf16.msra.mxu0 %v1541
    %1563 = vmatpush.bf16.msra.mxu0 %v1540
    %1564 = vmatmul.bf16.gmra.mxu0 %v1490
    %v1565 = vpop.f32.mrf.mxu0
    %v1566 = vadd.f32 0.0, %v1565
    %v1567 = vpop.f32.mrf.mxu0
    %1568 = vdwg.mxu0
    %v1569 = vadd.f32 %v1471, %v1566
    %s1570 = scalar_lea.vmem %s5, 32
    %v1571 = vld [vmem:[%s1570] sm:$0xf]
    %v1573 = vsel %vm77, %v1571, 0
    %1575 = vmatpush.bf16.msra.mxu0 0
    %1576 = vmatpush.bf16.msra.mxu0 0
    %1577 = vmatpush.bf16.msra.mxu0 0
    %1578 = vmatpush.bf16.msra.mxu0 0
    %1579 = vmatpush.bf16.msra.mxu0 0
    %1580 = vmatpush.bf16.msra.mxu0 0
    %1581 = vmatpush.bf16.msra.mxu0 0
    %1582 = vmatpush.bf16.msra.mxu0 %v792
    %1583 = vmatmul.bf16.gmra.mxu0 %v1573
    %v1584 = vpop.f32.mrf.mxu0
    %v1585 = vadd.f32 0.0, %v1584
    %v1586 = vpop.f32.mrf.mxu0
    %1587 = vdwg.mxu0
    %v1588 = vpack.c.bf16 %v1585, %v1585
    %s1589 = scalar_lea.vmem %s6, 512
    %v1590 = vld [vmem:[%s1589] sm:$0xf]
    %v1591 = vld [vmem:[%s1589 + $0x4] sm:$0xf]
    %v1592 = vld [vmem:[%s1589 + $0x8] sm:$0xf]
    %v1593 = vld [vmem:[%s1589 + $0xc] sm:$0xf]
    %v1594 = vld [vmem:[%s1589 + $0x10] sm:$0xf]
    %v1595 = vld [vmem:[%s1589 + $0x14] sm:$0xf]
    %v1596 = vld [vmem:[%s1589 + $0x18] sm:$0xf]
    %v1597 = vld [vmem:[%s1589 + $0x1c] sm:$0xf]
    %v1598 = vld [vmem:[%s1589 + $0x20] sm:$0xf]
    %v1599 = vld [vmem:[%s1589 + $0x24] sm:$0xf]
    %v1600 = vld [vmem:[%s1589 + $0x28] sm:$0xf]
    %v1601 = vld [vmem:[%s1589 + $0x2c] sm:$0xf]
    %v1602 = vld [vmem:[%s1589 + $0x30] sm:$0xf]
    %v1603 = vld [vmem:[%s1589 + $0x34] sm:$0xf]
    %v1604 = vld [vmem:[%s1589 + $0x38] sm:$0xf]
    %v1605 = vld [vmem:[%s1589 + $0x3c] sm:$0xf]
    %v1622 = vunpack.c.l.b16 %v1590
    %v1623 = vunpack.c.l.b16 %v1591
    %v1624 = vunpack.c.l.b16 %v1592
    %v1625 = vunpack.c.l.b16 %v1593
    %v1626 = vunpack.c.l.b16 %v1594
    %v1627 = vunpack.c.l.b16 %v1595
    %v1628 = vunpack.c.l.b16 %v1596
    %v1629 = vunpack.c.l.b16 %v1597
    %v1630 = vunpack.c.l.b16 %v1598
    %v1631 = vunpack.c.l.b16 %v1599
    %v1632 = vunpack.c.l.b16 %v1600
    %v1633 = vunpack.c.l.b16 %v1601
    %v1634 = vunpack.c.l.b16 %v1602
    %v1635 = vunpack.c.l.b16 %v1603
    %v1636 = vunpack.c.l.b16 %v1604
    %v1637 = vunpack.c.l.b16 %v1605
    %v1638 = vpack.c.b16 %v1623, %v1622
    %v1639 = vpack.c.b16 %v1625, %v1624
    %v1640 = vpack.c.b16 %v1627, %v1626
    %v1641 = vpack.c.b16 %v1629, %v1628
    %v1642 = vpack.c.b16 %v1631, %v1630
    %v1643 = vpack.c.b16 %v1633, %v1632
    %v1644 = vpack.c.b16 %v1635, %v1634
    %v1645 = vpack.c.b16 %v1637, %v1636
    %1654 = vmatpush.bf16.msra.mxu0 %v1645
    %1655 = vmatpush.bf16.msra.mxu0 %v1644
    %1656 = vmatpush.bf16.msra.mxu0 %v1643
    %1657 = vmatpush.bf16.msra.mxu0 %v1642
    %1658 = vmatpush.bf16.msra.mxu0 %v1641
    %1659 = vmatpush.bf16.msra.mxu0 %v1640
    %1660 = vmatpush.bf16.msra.mxu0 %v1639
    %1661 = vmatpush.bf16.msra.mxu0 %v1638
    %1662 = vmatmul.bf16.gmra.mxu0 %v1588
    %v1663 = vpop.f32.mrf.mxu0
    %v1664 = vadd.f32 0.0, %v1663
    %v1665 = vpop.f32.mrf.mxu0
    %1666 = vdwg.mxu0
    %v1667 = vadd.f32 %v1569, %v1664
    %v1668 = vld [vmem:[%s7] sm:$0x1]
    %v1670 = vperm.slane %v1668, 0
    %v1672 = vmul.f32 %v1667, %v1670
    %v1673 = vld [vmem:[%s8] sm:$0x1]
    %v1675 = vperm.slane %v1673, 0
    %v1677 = vadd.f32 %v1672, %v1675
    %v1678 = vadd.f32 %v1677, %v785
    %v1679 = vmax.f32 %v1678, 0.0
    %1680 = vst [vmem:[#allocation7] sm:$0xff] %v1679
    // Predicated region
    $region62: #{backbone_forward.9} parent=1 // pred_check
      _
    $region63: #{backbone_forward.9} parent=1 // pred_check_branch
      %1682 = sbr.rel (0) target = $region65
    $region64: #{backbone_forward.9} parent=1 // pred_region
      %1684 = vsyncadd [#allocation4], 0
      %s1686 = sshll.u32 [#allocation7], 4
      %s1687 = int_to_ptr.vmem [resolvable:$true] %s1686
      %s1688 = sshll.u32 %s13, 4
      %s1689 = int_to_ptr.hbm [resolvable:$true] %s1688
      %1691 = dma.vmem_to_hbm [thread:$0]  %s1687, 128, %s1689, [#allocation4]
    $region65: #{backbone_forward.9} parent=1 // pred_fallthru
      _
    // Predicated region
    $region66: #{backbone_forward.9} parent=1 // pred_check
      _
    $region67: #{backbone_forward.9} parent=1 // pred_check_branch
      %1693 = sbr.rel (0) target = $region69
    $region68: #{backbone_forward.9} parent=1 // pred_region
      %1695 = dma.done [#allocation4], 128
    $region69: #{backbone_forward.9} parent=1 // pred_fallthru
      _
    %1696 = vsyncpa [#allocation3], 1
    %1697 = vsyncpa [#allocation6], 1
    %1698 = vsyncpa [#allocation4], 1

</llo_original>
